<compile_context>
chip_gen: v7x
topology: tpu7x:2x2x1
jax: 0.10.0
libtpu: 0.0.40
codegen_flags: <defaults>
</compile_context>

<pallas_src>
import jax
import jax.numpy as jnp
from jax.experimental import pallas as pl
from jax.experimental.pallas import tpu as pltpu

EPS = 1e-5
LANE = 128
# bf16 operands are MXU-native on v5e/v6e/v7x.  Flip to jnp.float32 for a tighter-tolerance
# path (the test tolerance in __main__ adapts automatically).
MATMUL_DTYPE = jnp.bfloat16


def _conv_bn_kernel(x_ref, w_ref, b_ref, scale_ref, shift_ref,
                    y_ref, sum_ref, ssq_ref,
                    pad_ref, acc_ref, *, apply_input_act):
    """3x3 same-padding conv on one image, plus per-image BN partial statistics.

    x_ref       (H*W, Cp)   activations of this image (flat pixels, lane-dense channels)
    w_ref       (9*Cp, Cp)  pre-packed conv weights, tap-major along K (matmul dtype)
    b_ref       (1, Cp)     conv bias (f32)
    scale/shift (1, Cp)     previous layer's BN affine; fused with ReLU onto x when
                            apply_input_act=True (used for the second conv pass)
    y_ref       (H*W, Cp)   raw conv output, pre-BN (bf16 inter-pass intermediate)
    sum_ref     (1, Cp)     per-image per-channel sum of y        (two-phase batch BN)
    ssq_ref     (1, Cp)     per-image per-channel sum of y*y
    pad_ref     VMEM (H+2, W+2, Cp)  spatially padded activations (matmul dtype)
    acc_ref     VMEM (H*W, Cp)       f32 matmul accumulator
    """
    Hp2, Wp2, Cp = pad_ref.shape
    H, W = Hp2 - 2, Wp2 - 2
    HW = H * W

    act = x_ref[...].astype(jnp.float32)
    if apply_input_act:                          # static (trace-time) flag
        act = jnp.maximum(act * scale_ref[...] + shift_ref[...], 0.0)
    act = act.astype(pad_ref.dtype)              # cast once before the padded store

    # Zero only the 1-pixel border.  It is re-zeroed every step (cheap) so the 'parallel'
    # grid axis stays correct no matter which core runs which step first.
    zrow = jnp.zeros((1, Wp2, Cp), pad_ref.dtype)
    zcol = jnp.zeros((Hp2, 1, Cp), pad_ref.dtype)
    pad_ref[0:1, :, :] = zrow
    pad_ref[H + 1:H + 2, :, :] = zrow
    pad_ref[:, 0:1, :] = zcol
    pad_ref[:, W + 1:W + 2, :] = zcol
    pad_ref[1:H + 1, 1:W + 1, :] = act.reshape(H, W, Cp)

    # 9 accumulated K=Cp MXU matmuls over the shifted taps (no materialized im2col).
    acc_ref[...] = jnp.zeros((HW, Cp), jnp.float32)
    for k in range(9):
        dy, dx = divmod(k, 3)
        lhs = pad_ref[dy:dy + H, dx:dx + W, :].reshape(HW, Cp)
        acc_ref[...] += jnp.dot(lhs, w_ref[k * Cp:(k + 1) * Cp, :],
                                preferred_element_type=jnp.float32)

    y = acc_ref[...] + b_ref[...]                # f32 pre-BN conv output
    y_ref[...] = y.astype(y_ref.dtype)           # bf16 round trip to HBM
    sum_ref[...] = jnp.sum(y, axis=0, keepdims=True)       # stats from the f32 accumulator
    ssq_ref[...] = jnp.sum(y * y, axis=0, keepdims=True)


def _conv1_kernel(*refs):
    _conv_bn_kernel(*refs, apply_input_act=False)


def _conv2_kernel(*refs):
    _conv_bn_kernel(*refs, apply_input_act=True)


def _bn_add_relu_kernel(y_ref, x_ref, scale_ref, shift_ref, o_ref):
    """out = relu(bn2(y2) + x) on a lane-dense (H*W, Cp) block (f32 math)."""
    o_ref[...] = jnp.maximum(
        y_ref[...].astype(jnp.float32) * scale_ref[...] + shift_ref[...] + x_ref[...], 0.0)


def residual_block(x_nchw, params, *, matmul_dtype=MATMUL_DTYPE):
    """Pallas implementation of ResidualBlock.forward; x_nchw: (N, C, H, W) float32."""
    N, C, H, W = x_nchw.shape
    Cp = ((C + LANE - 1) // LANE) * LANE
    HW = H * W
    inter_dtype = matmul_dtype                       # bf16 inter-pass intermediates (y1, y2)
    it_mm = jnp.dtype(matmul_dtype).itemsize
    it_in = jnp.dtype(inter_dtype).itemsize

    # TODO(synk): at C << 64 the lane padding to Cp=128 makes most MXU/HBM work zero padding;
    # a (W*C)-on-lanes layout would be needed to make the tiny-C case truly efficient.

    # ---- glue: NCHW -> NHWC, pad channels to a lane-dense multiple of 128 ----
    x = jnp.transpose(x_nchw, (0, 2, 3, 1)).astype(jnp.float32)
    x_flat = jnp.pad(x, ((0, 0), (0, 0), (0, 0), (0, Cp - C))).reshape(N, HW, Cp)

    def pack_w(w):  # PyTorch (Cout, Cin, 3, 3) -> (9*Cp, Cp), K index = (tap, cin)
        wt = jnp.transpose(jnp.asarray(w, jnp.float32), (2, 3, 1, 0))   # (3,3,Cin,Cout)
        wt = jnp.pad(wt, ((0, 0), (0, 0), (0, Cp - C), (0, Cp - C)))
        return wt.reshape(9 * Cp, Cp).astype(matmul_dtype)

    def row(v, pad_val=0.0):
        return jnp.pad(jnp.asarray(v, jnp.float32), (0, Cp - C),
                       constant_values=pad_val).reshape(1, Cp)

    w1, w2 = pack_w(params['w1']), pack_w(params['w2'])
    b1, b2 = row(params['b1']), row(params['b2'])
    g1, g2 = row(params['g1'], 1.0), row(params['g2'], 1.0)
    be1, be2 = row(params['be1']), row(params['be2'])
    ones = jnp.ones((1, Cp), jnp.float32)
    zeros = jnp.zeros((1, Cp), jnp.float32)

    # ---- VMEM budget: single-counted; BlockSpec'd arrays are double-buffered (x2) ----
    step_b = (2 * HW * Cp * 4                 # input image block (f32), 2x buffered
              + 2 * HW * Cp * it_in           # conv output block (bf16), 2x buffered
              + 2 * 2 * Cp * 4                # per-image stats outputs, 2x buffered
              + 2 * 9 * Cp * Cp * it_mm       # packed weights, 2x buffered
              + 2 * 3 * Cp * 4                # bias / scale / shift rows, 2x buffered
              + (H + 2) * (W + 2) * Cp * it_mm   # padded scratch (single buffered)
              + HW * Cp * 4)                  # f32 accumulator scratch (single buffered)
    try:
        phys_vmem = int(pltpu.get_tpu_info().vmem_capacity_bytes)
    except Exception:                         # conservative fallback: v7x per-core VMEM
        phys_vmem = 64 * 2 ** 20
    vmem_limit = int(min(max(step_b + (4 << 20), 16 << 20), phys_vmem - (12 << 20)))
    cparams = pltpu.CompilerParams(dimension_semantics=("parallel",),
                                   vmem_limit_bytes=vmem_limit)

    img_spec = pl.BlockSpec((None, HW, Cp), lambda n: (n, 0, 0))
    stat_spec = pl.BlockSpec((None, 1, Cp), lambda n: (n, 0, 0))
    row_spec = pl.BlockSpec((1, Cp), lambda n: (0, 0))
    w_spec = pl.BlockSpec((9 * Cp, Cp), lambda n: (0, 0))

    def conv_pass(kernel_fn, inp, wp, bp, scale, shift):
        # TODO(synk): for very large H*W add a second (halo'd row-tile) grid axis so the
        # per-image pad/acc scratches stay small relative to v7x's 64 MiB VMEM.
        cost = pl.CostEstimate(
            flops=2 * N * HW * 9 * Cp * Cp,
            transcendentals=0,
            bytes_accessed=int(N * HW * Cp * (inp.dtype.itemsize + it_in)
                               + 9 * Cp * Cp * it_mm
                               + 2 * N * Cp * 4 + 3 * Cp * 4))
        return pl.pallas_call(
            kernel_fn,
            out_shape=(jax.ShapeDtypeStruct((N, HW, Cp), inter_dtype),
                       jax.ShapeDtypeStruct((N, 1, Cp), jnp.float32),
                       jax.ShapeDtypeStruct((N, 1, Cp), jnp.float32)),
            grid=(N,),
            in_specs=[img_spec, w_spec, row_spec, row_spec, row_spec],
            out_specs=(img_spec, stat_spec, stat_spec),
            scratch_shapes=[pltpu.VMEM((H + 2, W + 2, Cp), matmul_dtype),
                            pltpu.VMEM((HW, Cp), jnp.float32)],
            compiler_params=cparams,
            cost_estimate=cost,
        )(inp, wp, bp, scale, shift)

    def bn_affine(s, ss, gamma, beta):
        # tiny (1, Cp) cross-image combine of the per-image partial sums (two-phase batch BN)
        cnt = float(N * HW)
        mean = jnp.sum(s, axis=0) / cnt
        var = jnp.maximum(jnp.sum(ss, axis=0) / cnt - mean * mean, 0.0)
        scale = gamma * jax.lax.rsqrt(var + EPS)
        return scale, beta - mean * scale

    # pass 1: conv1 (+ BN1 partial stats)
    y1, s1, ss1 = conv_pass(_conv1_kernel, x_flat, w1, b1, ones, zeros)
    sc1, sh1 = bn_affine(s1, ss1, g1, be1)
    # pass 2: BN1 + ReLU applied on the fly, conv2 (+ BN2 partial stats)
    y2, s2, ss2 = conv_pass(_conv2_kernel, y1, w2, b2, sc1, sh1)
    sc2, sh2 = bn_affine(s2, ss2, g2, be2)

    # pass 3: BN2 + residual + ReLU (lane-dense elementwise; residual already flat & f32)
    out = pl.pallas_call(
        _bn_add_relu_kernel,
        out_shape=jax.ShapeDtypeStruct((N, HW, Cp), jnp.float32),
        grid=(N,),
        in_specs=[img_spec, img_spec, row_spec, row_spec],
        out_specs=img_spec,
        compiler_params=cparams,
    )(y2, x_flat, sc2, sh2)

    # ---- glue: drop channel padding, NHWC -> NCHW ----
    out = out.reshape(N, H, W, Cp)[..., :C]
    return jnp.transpose(out, (0, 3, 1, 2))


def residual_block_ref(x, params):
    """Pure-JAX reference matching the PyTorch forward (training-mode BN)."""
    def conv(x, w, b):
        y = jax.lax.conv_general_dilated(
            x, w, window_strides=(1, 1), padding=((1, 1), (1, 1)),
            dimension_numbers=('NCHW', 'OIHW', 'NCHW'))
        return y + b[None, :, None, None]

    def bn(x, g, be):
        mean = x.mean(axis=(0, 2, 3), keepdims=True)
        var = ((x - mean) ** 2).mean(axis=(0, 2, 3), keepdims=True)
        return g[None, :, None, None] * (x - mean) / jnp.sqrt(var + EPS) + be[None, :, None, None]

    y = jax.nn.relu(bn(conv(x, params['w1'], params['b1']), params['g1'], params['be1']))
    y = bn(conv(y, params['w2'], params['b2']), params['g2'], params['be2'])
    return jax.nn.relu(y + x)


if __name__ == "__main__":
    N, C, H, W = 2, 4, 16, 16
    key = jax.random.PRNGKey(0)
    ks = jax.random.split(key, 9)

    x = jax.random.normal(ks[0], (N, C, H, W), jnp.float32)
    params = {
        'w1': 0.1 * jax.random.normal(ks[1], (C, C, 3, 3), jnp.float32),
        'b1': 0.1 * jax.random.normal(ks[2], (C,), jnp.float32),
        'g1': 1.0 + 0.1 * jax.random.normal(ks[3], (C,), jnp.float32),
        'be1': 0.1 * jax.random.normal(ks[4], (C,), jnp.float32),
        'w2': 0.1 * jax.random.normal(ks[5], (C, C, 3, 3), jnp.float32),
        'b2': 0.1 * jax.random.normal(ks[6], (C,), jnp.float32),
        'g2': 1.0 + 0.1 * jax.random.normal(ks[7], (C,), jnp.float32),
        'be2': 0.1 * jax.random.normal(ks[8], (C,), jnp.float32),
    }

    out = jax.block_until_ready(residual_block(x, params))
    ref = jax.block_until_ready(residual_block_ref(x, params))

    tol = 1e-4 if MATMUL_DTYPE == jnp.float32 else 5e-2
    assert out.shape == (N, C, H, W), out.shape
    assert jnp.allclose(out, ref, atol=tol, rtol=tol), float(jnp.max(jnp.abs(out - ref)))
    print("KERNEL_OK")
</pallas_src>

<mosaic_0001>
module attributes {stable_mosaic.version = 11 : i64} {
  func.func @_conv1_kernel(%arg0: i32, %arg1: memref<1x256x128xf32, #tpu.memory_space<vmem>>, %arg2: memref<1152x128xbf16, #tpu.memory_space<vmem>>, %arg3: memref<1x128xf32, #tpu.memory_space<vmem>>, %arg4: memref<1x128xf32, #tpu.memory_space<vmem>>, %arg5: memref<1x128xf32, #tpu.memory_space<vmem>>, %arg6: memref<1x256x128xbf16, #tpu.memory_space<vmem>>, %arg7: memref<1x1x128xf32, #tpu.memory_space<vmem>>, %arg8: memref<1x1x128xf32, #tpu.memory_space<vmem>>, %arg9: memref<18x18x128xbf16, #tpu.memory_space<vmem>>, %arg10: memref<256x128xf32, #tpu.memory_space<vmem>>) attributes {dimension_semantics = [#tpu.dimension_semantics<parallel>], iteration_bounds = array<i64: 2>, scalar_prefetch = 0 : i64, scratch_operands = 2 : i64, tpu.core_type = #tpu.core_type<tc>, window_params = [{transform_indices = @transform_0, window_bounds = array<i64: 1, 256, 128>}, {pipeline_mode = #tpu.pipeline_mode<synchronous>, transform_indices = @transform_1, window_bounds = array<i64: 1152, 128>}, {pipeline_mode = #tpu.pipeline_mode<synchronous>, transform_indices = @transform_2, window_bounds = array<i64: 1, 128>}, {pipeline_mode = #tpu.pipeline_mode<synchronous>, transform_indices = @transform_3, window_bounds = array<i64: 1, 128>}, {pipeline_mode = #tpu.pipeline_mode<synchronous>, transform_indices = @transform_4, window_bounds = array<i64: 1, 128>}, {transform_indices = @transform_5, window_bounds = array<i64: 1, 256, 128>}, {transform_indices = @transform_6, window_bounds = array<i64: 1, 1, 128>}, {transform_indices = @transform_7, window_bounds = array<i64: 1, 1, 128>}]} {
    %c0 = arith.constant 0 : index
    %c0_0 = arith.constant 0 : index
    %c0_1 = arith.constant 0 : index
    %0 = vector.load %arg1[%c0, %c0_0, %c0_1] : memref<1x256x128xf32, #tpu.memory_space<vmem>>, vector<1x256x128xf32>
    %1 = vector.shape_cast %0 : vector<1x256x128xf32> to vector<256x128xf32>
    %2 = arith.truncf %1 : vector<256x128xf32> to vector<256x128xbf16>
    %cst = arith.constant 0.000000e+00 : bf16
    %3 = vector.broadcast %cst : bf16 to vector<1x18x128xbf16>
    %cst_2 = arith.constant 0.000000e+00 : bf16
    %4 = vector.broadcast %cst_2 : bf16 to vector<18x1x128xbf16>
    %c0_3 = arith.constant 0 : index
    %c0_4 = arith.constant 0 : index
    %c0_5 = arith.constant 0 : index
    %5 = vector.load %arg9[%c0_3, %c0_4, %c0_5] : memref<18x18x128xbf16, #tpu.memory_space<vmem>>, vector<1x18x128xbf16>
    tpu.vector_store %arg9[%c0_3, %c0_4, %c0_5], %3 {strides = array<i32>} : memref<18x18x128xbf16, #tpu.memory_space<vmem>>, vector<1x18x128xbf16>,
    %c17 = arith.constant 17 : index
    %c0_6 = arith.constant 0 : index
    %c0_7 = arith.constant 0 : index
    %6 = vector.load %arg9[%c17, %c0_6, %c0_7] : memref<18x18x128xbf16, #tpu.memory_space<vmem>>, vector<1x18x128xbf16>
    tpu.vector_store %arg9[%c17, %c0_6, %c0_7], %3 {strides = array<i32>} : memref<18x18x128xbf16, #tpu.memory_space<vmem>>, vector<1x18x128xbf16>,
    %c0_8 = arith.constant 0 : index
    %c0_9 = arith.constant 0 : index
    %c0_10 = arith.constant 0 : index
    %7 = vector.load %arg9[%c0_8, %c0_9, %c0_10] : memref<18x18x128xbf16, #tpu.memory_space<vmem>>, vector<18x1x128xbf16>
    tpu.vector_store %arg9[%c0_8, %c0_9, %c0_10], %4 {strides = array<i32>} : memref<18x18x128xbf16, #tpu.memory_space<vmem>>, vector<18x1x128xbf16>,
    %c0_11 = arith.constant 0 : index
    %c17_12 = arith.constant 17 : index
    %c0_13 = arith.constant 0 : index
    %8 = vector.load %arg9[%c0_11, %c17_12, %c0_13] : memref<18x18x128xbf16, #tpu.memory_space<vmem>>, vector<18x1x128xbf16>
    tpu.vector_store %arg9[%c0_11, %c17_12, %c0_13], %4 {strides = array<i32>} : memref<18x18x128xbf16, #tpu.memory_space<vmem>>, vector<18x1x128xbf16>,
    %9 = vector.shape_cast %2 : vector<256x128xbf16> to vector<16x16x128xbf16>
    %c1 = arith.constant 1 : index
    %c1_14 = arith.constant 1 : index
    %c0_15 = arith.constant 0 : index
    %10 = vector.load %arg9[%c1, %c1_14, %c0_15] : memref<18x18x128xbf16, #tpu.memory_space<vmem>>, vector<16x16x128xbf16>
    tpu.vector_store %arg9[%c1, %c1_14, %c0_15], %9 {strides = array<i32>} : memref<18x18x128xbf16, #tpu.memory_space<vmem>>, vector<16x16x128xbf16>,
    %cst_16 = arith.constant 0.000000e+00 : f32
    %11 = vector.broadcast %cst_16 : f32 to vector<256x128xf32>
    %c0_17 = arith.constant 0 : index
    %c0_18 = arith.constant 0 : index
    %12 = vector.load %arg10[%c0_17, %c0_18] : memref<256x128xf32, #tpu.memory_space<vmem>>, vector<256x128xf32>
    tpu.vector_store %arg10[%c0_17, %c0_18], %11 {strides = array<i32>} : memref<256x128xf32, #tpu.memory_space<vmem>>, vector<256x128xf32>,
    %c0_19 = arith.constant 0 : index
    %c0_20 = arith.constant 0 : index
    %c0_21 = arith.constant 0 : index
    %13 = vector.load %arg9[%c0_19, %c0_20, %c0_21] : memref<18x18x128xbf16, #tpu.memory_space<vmem>>, vector<16x16x128xbf16>
    %14 = vector.shape_cast %13 : vector<16x16x128xbf16> to vector<256x128xbf16>
    %c0_22 = arith.constant 0 : index
    %c0_23 = arith.constant 0 : index
    %15 = vector.load %arg10[%c0_22, %c0_23] : memref<256x128xf32, #tpu.memory_space<vmem>>, vector<256x128xf32>
    %c0_24 = arith.constant 0 : index
    %c0_25 = arith.constant 0 : index
    %16 = vector.load %arg2[%c0_24, %c0_25] : memref<1152x128xbf16, #tpu.memory_space<vmem>>, vector<128x128xbf16>
    %cst_26 = arith.constant dense<0.000000e+00> : vector<256x128xf32>
    %17 = tpu.matmul %14, %16, %cst_26 {dimension_numbers = #tpu.dot_dimension_numbers<[1], [0], [0], [1], [0, 0, 1, 1], [], []>} : vector<256x128xbf16>, vector<128x128xbf16>, vector<256x128xf32> -> vector<256x128xf32>
    %18 = arith.addf %15, %17 : vector<256x128xf32>
    %c0_27 = arith.constant 0 : index
    %c0_28 = arith.constant 0 : index
    %19 = vector.load %arg10[%c0_27, %c0_28] : memref<256x128xf32, #tpu.memory_space<vmem>>, vector<256x128xf32>
    tpu.vector_store %arg10[%c0_27, %c0_28], %18 {strides = array<i32>} : memref<256x128xf32, #tpu.memory_space<vmem>>, vector<256x128xf32>,
    %c0_29 = arith.constant 0 : index
    %c1_30 = arith.constant 1 : index
    %c0_31 = arith.constant 0 : index
    %20 = vector.load %arg9[%c0_29, %c1_30, %c0_31] : memref<18x18x128xbf16, #tpu.memory_space<vmem>>, vector<16x16x128xbf16>
    %21 = vector.shape_cast %20 : vector<16x16x128xbf16> to vector<256x128xbf16>
    %c0_32 = arith.constant 0 : index
    %c0_33 = arith.constant 0 : index
    %22 = vector.load %arg10[%c0_32, %c0_33] : memref<256x128xf32, #tpu.memory_space<vmem>>, vector<256x128xf32>
    %c128 = arith.constant 128 : index
    %c0_34 = arith.constant 0 : index
    %23 = vector.load %arg2[%c128, %c0_34] : memref<1152x128xbf16, #tpu.memory_space<vmem>>, vector<128x128xbf16>
    %cst_35 = arith.constant dense<0.000000e+00> : vector<256x128xf32>
    %24 = tpu.matmul %21, %23, %cst_35 {dimension_numbers = #tpu.dot_dimension_numbers<[1], [0], [0], [1], [0, 0, 1, 1], [], []>} : vector<256x128xbf16>, vector<128x128xbf16>, vector<256x128xf32> -> vector<256x128xf32>
    %25 = arith.addf %22, %24 : vector<256x128xf32>
    %c0_36 = arith.constant 0 : index
    %c0_37 = arith.constant 0 : index
    %26 = vector.load %arg10[%c0_36, %c0_37] : memref<256x128xf32, #tpu.memory_space<vmem>>, vector<256x128xf32>
    tpu.vector_store %arg10[%c0_36, %c0_37], %25 {strides = array<i32>} : memref<256x128xf32, #tpu.memory_space<vmem>>, vector<256x128xf32>,
    %c0_38 = arith.constant 0 : index
    %c2 = arith.constant 2 : index
    %c0_39 = arith.constant 0 : index
    %27 = vector.load %arg9[%c0_38, %c2, %c0_39] : memref<18x18x128xbf16, #tpu.memory_space<vmem>>, vector<16x16x128xbf16>
    %28 = vector.shape_cast %27 : vector<16x16x128xbf16> to vector<256x128xbf16>
    %c0_40 = arith.constant 0 : index
    %c0_41 = arith.constant 0 : index
    %29 = vector.load %arg10[%c0_40, %c0_41] : memref<256x128xf32, #tpu.memory_space<vmem>>, vector<256x128xf32>
    %c256 = arith.constant 256 : index
    %c0_42 = arith.constant 0 : index
    %30 = vector.load %arg2[%c256, %c0_42] : memref<1152x128xbf16, #tpu.memory_space<vmem>>, vector<128x128xbf16>
    %cst_43 = arith.constant dense<0.000000e+00> : vector<256x128xf32>
    %31 = tpu.matmul %28, %30, %cst_43 {dimension_numbers = #tpu.dot_dimension_numbers<[1], [0], [0], [1], [0, 0, 1, 1], [], []>} : vector<256x128xbf16>, vector<128x128xbf16>, vector<256x128xf32> -> vector<256x128xf32>
    %32 = arith.addf %29, %31 : vector<256x128xf32>
    %c0_44 = arith.constant 0 : index
    %c0_45 = arith.constant 0 : index
    %33 = vector.load %arg10[%c0_44, %c0_45] : memref<256x128xf32, #tpu.memory_space<vmem>>, vector<256x128xf32>
    tpu.vector_store %arg10[%c0_44, %c0_45], %32 {strides = array<i32>} : memref<256x128xf32, #tpu.memory_space<vmem>>, vector<256x128xf32>,
    %c1_46 = arith.constant 1 : index
    %c0_47 = arith.constant 0 : index
    %c0_48 = arith.constant 0 : index
    %34 = vector.load %arg9[%c1_46, %c0_47, %c0_48] : memref<18x18x128xbf16, #tpu.memory_space<vmem>>, vector<16x16x128xbf16>
    %35 = vector.shape_cast %34 : vector<16x16x128xbf16> to vector<256x128xbf16>
    %c0_49 = arith.constant 0 : index
    %c0_50 = arith.constant 0 : index
    %36 = vector.load %arg10[%c0_49, %c0_50] : memref<256x128xf32, #tpu.memory_space<vmem>>, vector<256x128xf32>
    %c384 = arith.constant 384 : index
    %c0_51 = arith.constant 0 : index
    %37 = vector.load %arg2[%c384, %c0_51] : memref<1152x128xbf16, #tpu.memory_space<vmem>>, vector<128x128xbf16>
    %cst_52 = arith.constant dense<0.000000e+00> : vector<256x128xf32>
    %38 = tpu.matmul %35, %37, %cst_52 {dimension_numbers = #tpu.dot_dimension_numbers<[1], [0], [0], [1], [0, 0, 1, 1], [], []>} : vector<256x128xbf16>, vector<128x128xbf16>, vector<256x128xf32> -> vector<256x128xf32>
    %39 = arith.addf %36, %38 : vector<256x128xf32>
    %c0_53 = arith.constant 0 : index
    %c0_54 = arith.constant 0 : index
    %40 = vector.load %arg10[%c0_53, %c0_54] : memref<256x128xf32, #tpu.memory_space<vmem>>, vector<256x128xf32>
    tpu.vector_store %arg10[%c0_53, %c0_54], %39 {strides = array<i32>} : memref<256x128xf32, #tpu.memory_space<vmem>>, vector<256x128xf32>,
    %c1_55 = arith.constant 1 : index
    %c1_56 = arith.constant 1 : index
    %c0_57 = arith.constant 0 : index
    %41 = vector.load %arg9[%c1_55, %c1_56, %c0_57] : memref<18x18x128xbf16, #tpu.memory_space<vmem>>, vector<16x16x128xbf16>
    %42 = vector.shape_cast %41 : vector<16x16x128xbf16> to vector<256x128xbf16>
    %c0_58 = arith.constant 0 : index
    %c0_59 = arith.constant 0 : index
    %43 = vector.load %arg10[%c0_58, %c0_59] : memref<256x128xf32, #tpu.memory_space<vmem>>, vector<256x128xf32>
    %c512 = arith.constant 512 : index
    %c0_60 = arith.constant 0 : index
    %44 = vector.load %arg2[%c512, %c0_60] : memref<1152x128xbf16, #tpu.memory_space<vmem>>, vector<128x128xbf16>
    %cst_61 = arith.constant dense<0.000000e+00> : vector<256x128xf32>
    %45 = tpu.matmul %42, %44, %cst_61 {dimension_numbers = #tpu.dot_dimension_numbers<[1], [0], [0], [1], [0, 0, 1, 1], [], []>} : vector<256x128xbf16>, vector<128x128xbf16>, vector<256x128xf32> -> vector<256x128xf32>
    %46 = arith.addf %43, %45 : vector<256x128xf32>
    %c0_62 = arith.constant 0 : index
    %c0_63 = arith.constant 0 : index
    %47 = vector.load %arg10[%c0_62, %c0_63] : memref<256x128xf32, #tpu.memory_space<vmem>>, vector<256x128xf32>
    tpu.vector_store %arg10[%c0_62, %c0_63], %46 {strides = array<i32>} : memref<256x128xf32, #tpu.memory_space<vmem>>, vector<256x128xf32>,
    %c1_64 = arith.constant 1 : index
    %c2_65 = arith.constant 2 : index
    %c0_66 = arith.constant 0 : index
    %48 = vector.load %arg9[%c1_64, %c2_65, %c0_66] : memref<18x18x128xbf16, #tpu.memory_space<vmem>>, vector<16x16x128xbf16>
    %49 = vector.shape_cast %48 : vector<16x16x128xbf16> to vector<256x128xbf16>
    %c0_67 = arith.constant 0 : index
    %c0_68 = arith.constant 0 : index
    %50 = vector.load %arg10[%c0_67, %c0_68] : memref<256x128xf32, #tpu.memory_space<vmem>>, vector<256x128xf32>
    %c640 = arith.constant 640 : index
    %c0_69 = arith.constant 0 : index
    %51 = vector.load %arg2[%c640, %c0_69] : memref<1152x128xbf16, #tpu.memory_space<vmem>>, vector<128x128xbf16>
    %cst_70 = arith.constant dense<0.000000e+00> : vector<256x128xf32>
    %52 = tpu.matmul %49, %51, %cst_70 {dimension_numbers = #tpu.dot_dimension_numbers<[1], [0], [0], [1], [0, 0, 1, 1], [], []>} : vector<256x128xbf16>, vector<128x128xbf16>, vector<256x128xf32> -> vector<256x128xf32>
    %53 = arith.addf %50, %52 : vector<256x128xf32>
    %c0_71 = arith.constant 0 : index
    %c0_72 = arith.constant 0 : index
    %54 = vector.load %arg10[%c0_71, %c0_72] : memref<256x128xf32, #tpu.memory_space<vmem>>, vector<256x128xf32>
    tpu.vector_store %arg10[%c0_71, %c0_72], %53 {strides = array<i32>} : memref<256x128xf32, #tpu.memory_space<vmem>>, vector<256x128xf32>,
    %c2_73 = arith.constant 2 : index
    %c0_74 = arith.constant 0 : index
    %c0_75 = arith.constant 0 : index
    %55 = vector.load %arg9[%c2_73, %c0_74, %c0_75] : memref<18x18x128xbf16, #tpu.memory_space<vmem>>, vector<16x16x128xbf16>
    %56 = vector.shape_cast %55 : vector<16x16x128xbf16> to vector<256x128xbf16>
    %c0_76 = arith.constant 0 : index
    %c0_77 = arith.constant 0 : index
    %57 = vector.load %arg10[%c0_76, %c0_77] : memref<256x128xf32, #tpu.memory_space<vmem>>, vector<256x128xf32>
    %c768 = arith.constant 768 : index
    %c0_78 = arith.constant 0 : index
    %58 = vector.load %arg2[%c768, %c0_78] : memref<1152x128xbf16, #tpu.memory_space<vmem>>, vector<128x128xbf16>
    %cst_79 = arith.constant dense<0.000000e+00> : vector<256x128xf32>
    %59 = tpu.matmul %56, %58, %cst_79 {dimension_numbers = #tpu.dot_dimension_numbers<[1], [0], [0], [1], [0, 0, 1, 1], [], []>} : vector<256x128xbf16>, vector<128x128xbf16>, vector<256x128xf32> -> vector<256x128xf32>
    %60 = arith.addf %57, %59 : vector<256x128xf32>
    %c0_80 = arith.constant 0 : index
    %c0_81 = arith.constant 0 : index
    %61 = vector.load %arg10[%c0_80, %c0_81] : memref<256x128xf32, #tpu.memory_space<vmem>>, vector<256x128xf32>
    tpu.vector_store %arg10[%c0_80, %c0_81], %60 {strides = array<i32>} : memref<256x128xf32, #tpu.memory_space<vmem>>, vector<256x128xf32>,
    %c2_82 = arith.constant 2 : index
    %c1_83 = arith.constant 1 : index
    %c0_84 = arith.constant 0 : index
    %62 = vector.load %arg9[%c2_82, %c1_83, %c0_84] : memref<18x18x128xbf16, #tpu.memory_space<vmem>>, vector<16x16x128xbf16>
    %63 = vector.shape_cast %62 : vector<16x16x128xbf16> to vector<256x128xbf16>
    %c0_85 = arith.constant 0 : index
    %c0_86 = arith.constant 0 : index
    %64 = vector.load %arg10[%c0_85, %c0_86] : memref<256x128xf32, #tpu.memory_space<vmem>>, vector<256x128xf32>
    %c896 = arith.constant 896 : index
    %c0_87 = arith.constant 0 : index
    %65 = vector.load %arg2[%c896, %c0_87] : memref<1152x128xbf16, #tpu.memory_space<vmem>>, vector<128x128xbf16>
    %cst_88 = arith.constant dense<0.000000e+00> : vector<256x128xf32>
    %66 = tpu.matmul %63, %65, %cst_88 {dimension_numbers = #tpu.dot_dimension_numbers<[1], [0], [0], [1], [0, 0, 1, 1], [], []>} : vector<256x128xbf16>, vector<128x128xbf16>, vector<256x128xf32> -> vector<256x128xf32>
    %67 = arith.addf %64, %66 : vector<256x128xf32>
    %c0_89 = arith.constant 0 : index
    %c0_90 = arith.constant 0 : index
    %68 = vector.load %arg10[%c0_89, %c0_90] : memref<256x128xf32, #tpu.memory_space<vmem>>, vector<256x128xf32>
    tpu.vector_store %arg10[%c0_89, %c0_90], %67 {strides = array<i32>} : memref<256x128xf32, #tpu.memory_space<vmem>>, vector<256x128xf32>,
    %c2_91 = arith.constant 2 : index
    %c2_92 = arith.constant 2 : index
    %c0_93 = arith.constant 0 : index
    %69 = vector.load %arg9[%c2_91, %c2_92, %c0_93] : memref<18x18x128xbf16, #tpu.memory_space<vmem>>, vector<16x16x128xbf16>
    %70 = vector.shape_cast %69 : vector<16x16x128xbf16> to vector<256x128xbf16>
    %c0_94 = arith.constant 0 : index
    %c0_95 = arith.constant 0 : index
    %71 = vector.load %arg10[%c0_94, %c0_95] : memref<256x128xf32, #tpu.memory_space<vmem>>, vector<256x128xf32>
    %c1024 = arith.constant 1024 : index
    %c0_96 = arith.constant 0 : index
    %72 = vector.load %arg2[%c1024, %c0_96] : memref<1152x128xbf16, #tpu.memory_space<vmem>>, vector<128x128xbf16>
    %cst_97 = arith.constant dense<0.000000e+00> : vector<256x128xf32>
    %73 = tpu.matmul %70, %72, %cst_97 {dimension_numbers = #tpu.dot_dimension_numbers<[1], [0], [0], [1], [0, 0, 1, 1], [], []>} : vector<256x128xbf16>, vector<128x128xbf16>, vector<256x128xf32> -> vector<256x128xf32>
    %74 = arith.addf %71, %73 : vector<256x128xf32>
    %c0_98 = arith.constant 0 : index
    %c0_99 = arith.constant 0 : index
    %75 = vector.load %arg10[%c0_98, %c0_99] : memref<256x128xf32, #tpu.memory_space<vmem>>, vector<256x128xf32>
    tpu.vector_store %arg10[%c0_98, %c0_99], %74 {strides = array<i32>} : memref<256x128xf32, #tpu.memory_space<vmem>>, vector<256x128xf32>,
    %c0_100 = arith.constant 0 : index
    %c0_101 = arith.constant 0 : index
    %76 = vector.load %arg10[%c0_100, %c0_101] : memref<256x128xf32, #tpu.memory_space<vmem>>, vector<256x128xf32>
    %c0_102 = arith.constant 0 : index
    %c0_103 = arith.constant 0 : index
    %77 = vector.load %arg3[%c0_102, %c0_103] : memref<1x128xf32, #tpu.memory_space<vmem>>, vector<1x128xf32>
    %78 = vector.broadcast %77 : vector<1x128xf32> to vector<256x128xf32>
    %79 = arith.addf %76, %78 : vector<256x128xf32>
    %80 = arith.truncf %79 : vector<256x128xf32> to vector<256x128xbf16>
    %c0_104 = arith.constant 0 : index
    %c0_105 = arith.constant 0 : index
    %c0_106 = arith.constant 0 : index
    %81 = vector.load %arg6[%c0_104, %c0_105, %c0_106] : memref<1x256x128xbf16, #tpu.memory_space<vmem>>, vector<1x256x128xbf16>
    %82 = vector.shape_cast %81 : vector<1x256x128xbf16> to vector<256x128xbf16>
    %83 = vector.shape_cast %80 : vector<256x128xbf16> to vector<1x256x128xbf16>
    tpu.vector_store %arg6[%c0_104, %c0_105, %c0_106], %83 {strides = array<i32>} : memref<1x256x128xbf16, #tpu.memory_space<vmem>>, vector<1x256x128xbf16>,
    %cst_107 = arith.constant dense<0.000000e+00> : vector<128xf32>
    %84 = vector.multi_reduction <add>, %79, %cst_107 [0] : vector<256x128xf32> to vector<128xf32>
    %85 = vector.shape_cast %84 : vector<128xf32> to vector<1x128xf32>
    %c0_108 = arith.constant 0 : index
    %c0_109 = arith.constant 0 : index
    %c0_110 = arith.constant 0 : index
    %86 = vector.load %arg7[%c0_108, %c0_109, %c0_110] : memref<1x1x128xf32, #tpu.memory_space<vmem>>, vector<1x1x128xf32>
    %87 = vector.shape_cast %86 : vector<1x1x128xf32> to vector<1x128xf32>
    %88 = vector.shape_cast %85 : vector<1x128xf32> to vector<1x1x128xf32>
    tpu.vector_store %arg7[%c0_108, %c0_109, %c0_110], %88 {strides = array<i32>} : memref<1x1x128xf32, #tpu.memory_space<vmem>>, vector<1x1x128xf32>,
    %89 = arith.mulf %79, %79 : vector<256x128xf32>
    %cst_111 = arith.constant dense<0.000000e+00> : vector<128xf32>
    %90 = vector.multi_reduction <add>, %89, %cst_111 [0] : vector<256x128xf32> to vector<128xf32>
    %91 = vector.shape_cast %90 : vector<128xf32> to vector<1x128xf32>
    %c0_112 = arith.constant 0 : index
    %c0_113 = arith.constant 0 : index
    %c0_114 = arith.constant 0 : index
    %92 = vector.load %arg8[%c0_112, %c0_113, %c0_114] : memref<1x1x128xf32, #tpu.memory_space<vmem>>, vector<1x1x128xf32>
    %93 = vector.shape_cast %92 : vector<1x1x128xf32> to vector<1x128xf32>
    %94 = vector.shape_cast %91 : vector<1x128xf32> to vector<1x1x128xf32>
    tpu.vector_store %arg8[%c0_112, %c0_113, %c0_114], %94 {strides = array<i32>} : memref<1x1x128xf32, #tpu.memory_space<vmem>>, vector<1x1x128xf32>,
    return
  }
  func.func @transform_0(%arg0: i32) -> (i32, i32, i32) {
    %c0_i32 = arith.constant 0 : i32
    %c0_i32_0 = arith.constant 0 : i32
    %c0_i32_1 = arith.constant 0 : i32
    return %arg0, %c0_i32, %c0_i32_0 : i32, i32, i32
  }
  func.func @transform_1(%arg0: i32) -> (i32, i32) {
    %c0_i32 = arith.constant 0 : i32
    %c0_i32_0 = arith.constant 0 : i32
    %c0_i32_1 = arith.constant 0 : i32
    return %c0_i32, %c0_i32_0 : i32, i32
  }
  func.func @transform_2(%arg0: i32) -> (i32, i32) {
    %c0_i32 = arith.constant 0 : i32
    %c0_i32_0 = arith.constant 0 : i32
    %c0_i32_1 = arith.constant 0 : i32
    return %c0_i32, %c0_i32_0 : i32, i32
  }
  func.func @transform_3(%arg0: i32) -> (i32, i32) {
    %c0_i32 = arith.constant 0 : i32
    %c0_i32_0 = arith.constant 0 : i32
    %c0_i32_1 = arith.constant 0 : i32
    return %c0_i32, %c0_i32_0 : i32, i32
  }
  func.func @transform_4(%arg0: i32) -> (i32, i32) {
    %c0_i32 = arith.constant 0 : i32
    %c0_i32_0 = arith.constant 0 : i32
    %c0_i32_1 = arith.constant 0 : i32
    return %c0_i32, %c0_i32_0 : i32, i32
  }
  func.func @transform_5(%arg0: i32) -> (i32, i32, i32) {
    %c0_i32 = arith.constant 0 : i32
    %c0_i32_0 = arith.constant 0 : i32
    %c0_i32_1 = arith.constant 0 : i32
    return %arg0, %c0_i32, %c0_i32_0 : i32, i32, i32
  }
  func.func @transform_6(%arg0: i32) -> (i32, i32, i32) {
    %c0_i32 = arith.constant 0 : i32
    %c0_i32_0 = arith.constant 0 : i32
    %c0_i32_1 = arith.constant 0 : i32
    return %arg0, %c0_i32, %c0_i32_0 : i32, i32, i32
  }
  func.func @transform_7(%arg0: i32) -> (i32, i32, i32) {
    %c0_i32 = arith.constant 0 : i32
    %c0_i32_0 = arith.constant 0 : i32
    %c0_i32_1 = arith.constant 0 : i32
    return %arg0, %c0_i32, %c0_i32_0 : i32, i32, i32
  }
}

</mosaic_0001>

<llo_original>
// kernel: tpu_custom_call.1
$region0: #{tpu_custom_call.1}
  #allocation0 [shape = 'u32[]', space=smem, size = 0x4, offset = 0x4, fixed_abs, tag = 'smem constant byte address 0x4 - core index']
  #allocation1 [shape = 'u32[144,128]{1,0:T(1,128)}', space=vmem, size = 0x12000, scoped, tag = 'internal scratch']
  #allocation2 [shape = 'bf16[18,18,128]{2,1,0:T(8,128)(2,1)}', space=vmem, size = 0x1b000, scoped, tag = 'scratch operand']
  #allocation3 [shape = 'f32[256,128]{1,0:T(8,128)}', space=vmem, size = 0x20000, scoped, tag = 'scratch operand']
  %s0 = inlined_call_operand.hbm [shape: f32[2,256,128], index: 0, kind: input, shape index: {}]
  %s1 = inlined_call_operand.hbm [shape: bf16[1152,128], index: 1, kind: input, shape index: {}]
  %s2 = inlined_call_operand.vmem [shape: f32[1,128], index: 2, kind: input, shape index: {}]
  %s3 = inlined_call_operand.vmem [shape: f32[1,128], index: 3, kind: input, shape index: {}]
  %s4 = inlined_call_operand.vmem [shape: f32[1,128], index: 4, kind: input, shape index: {}]
  %s5 = inlined_call_operand.hbm [shape: bf16[2,256,128], index: 5, kind: output, shape index: {0}]
  %s6 = inlined_call_operand.hbm [shape: f32[2,1,128], index: 6, kind: output, shape index: {1}]
  %s7 = inlined_call_operand.hbm [shape: f32[2,1,128], index: 7, kind: output, shape index: {2}]
  %8 = xla_tuple %s5, %s6, %s7
  %s9 = sld [smem:[#allocation0]]
  $region77: #{tpu_custom_call.1} parent=0
    _
  %s11 = ssub.s32 1, %s9
  %s12 = scalar_select 0, %s11, %s9
  $region1: #{tpu_custom_call.1} parent=0
    #allocation4 [shape = 'u8[262144]{0}', space=vmem, size = 0x40000, scoped, tag = 'input window, operand 0']
    #allocation5 [shape = 's32[2]{0}', space=sflag, size = 0x8, scoped, tag = 'scoped memory for tpu_custom_call.1']
    #allocation6 [shape = 's32[2]{0}', space=sflag, size = 0x8, scoped, tag = 'scoped memory for tpu_custom_call.1']
    #allocation7 [shape = 'u8[294912]{0}', space=vmem, size = 0x48000, scoped, tag = 'input window, operand 1, single buffered']
    #allocation8 [shape = 's32[1]{0}', space=sflag, size = 0x4, scoped, tag = 'scoped memory for tpu_custom_call.1']
    #allocation9 [shape = 'u8[131072]{0}', space=vmem, size = 0x20000, scoped, tag = 'output window, operand 0']
    #allocation10 [shape = 'u8[1024]{0}', space=vmem, size = 0x400, scoped, tag = 'output window, operand 1']
    #allocation11 [shape = 's32[2]{0}', space=sflag, size = 0x8, scoped, tag = 'scoped memory for tpu_custom_call.1']
    #allocation12 [shape = 'u8[1024]{0}', space=vmem, size = 0x400, scoped, tag = 'output window, operand 2']
    %13 = vsyncpa [#allocation5], 0
    %s14 = scalar_lea.sflag [#allocation5], 1
    %15 = vsyncpa %s14, 0
    %16 = vsyncpa [#allocation8], 0
    %17 = vsyncpa [#allocation6], 0
    %s18 = scalar_lea.sflag [#allocation6], 1
    %19 = vsyncpa %s18, 0
    %20 = vsyncpa [#allocation11], 0
    %s21 = scalar_lea.sflag [#allocation11], 1
    %22 = vsyncpa %s21, 0
    loop: start=0, step=1, limit=4
    $region2: #{tpu_custom_call.1} parent=1 // loop_pre_header
      _
    $region3: #{tpu_custom_call.1} parent=1 // loop_header
      %s24 = sphi 0, %s28
      %p25 = scmp.ge.s32.totalorder %s24, 4
      %s34 = sphi 0, %s36
      %s37 = sphi 0, %s34
      %s38 = sphi 0, %s37
      %s54 = sphi 0, %s38
      %s58 = sphi 0, %s58
      %s60 = sphi 0, %s58
      %s61 = sphi 0, %s60
      %s75 = sphi 0, %s61
      %s79 = sphi 0, %s79
      %s81 = sphi 0, %s79
      %s82 = sphi 0, %s81
      %s96 = sphi 0, %s82
      %s100 = sphi 0, %s100
      %s102 = sphi 0, %s100
      %s103 = sphi 0, %s102
      %s117 = sphi 0, %s103
      %s121 = sphi 0, %s121
      %s123 = sphi 0, %s121
      %s124 = sphi 0, %s123
      %s138 = sphi 0, %s124
      %s144 = sphi 0, %s146
      %s147 = sphi 0, %s144
      %s148 = sphi 0, %s147
      %s164 = sphi 0, %s148
      %s170 = sphi 0, %s172
      %s173 = sphi 0, %s170
      %s174 = sphi 0, %s173
      %s190 = sphi 0, %s174
      %s196 = sphi 0, %s198
      %s199 = sphi 0, %s196
      %s200 = sphi 0, %s199
      %s216 = sphi 0, %s200
    $region4: #{tpu_custom_call.1} parent=1 // loop_header_branch
      %27 = sbr.rel (%p25) target = $region8
    $region5: #{tpu_custom_call.1} parent=1 // loop_body
      %s29 = ssub.s32 %s24, 1
      %s30 = ssub.s32 %s24, 2
      %s31 = sadd.s32 %s24, 1
      %s32 = ssub.s32 %s24, %s31
      %p33 = scmp.eq.s32.totalorder %s32, 0
      %s35 = sadd.s32 %s34, 1
      %s36 = scalar_select %p33, %s34, %s35
      %p39 = pneg %p33
      %p40 = scmp.eq.s32.totalorder %s24, 1
      %p41 = por %p39, %p40
      %p42 = scmp.ne.s32.totalorder %s34, %s37
      %p43 = scmp.eq.s32.totalorder %s24, 0
      %p44 = por %p42, %p43
      %p45 = scmp.ne.s32.totalorder %s34, %s37
      %p46 = scmp.eq.s32.totalorder %s29, 1
      %p47 = por %p45, %p46
      %p48 = scmp.ne.s32.totalorder %s37, %s38
      %p49 = scmp.eq.s32.totalorder %s29, 0
      %p50 = por %p48, %p49
      %p51 = scmp.ne.s32.totalorder %s37, %s38
      %p52 = scmp.eq.s32.totalorder %s30, 1
      %p53 = por %p51, %p52
      %p55 = scmp.ne.s32.totalorder %s38, %s54
      %p56 = scmp.eq.s32.totalorder %s30, 0
      %p57 = por %p55, %p56
      %s59 = sadd.s32 %s58, 1
      %p62 = scmp.eq.s32.totalorder %s24, 1
      %p63 = scmp.ne.s32.totalorder %s58, %s60
      %p64 = scmp.eq.s32.totalorder %s24, 0
      %p65 = por %p63, %p64
      %p66 = scmp.ne.s32.totalorder %s58, %s60
      %p67 = scmp.eq.s32.totalorder %s29, 1
      %p68 = por %p66, %p67
      %p69 = scmp.ne.s32.totalorder %s60, %s61
      %p70 = scmp.eq.s32.totalorder %s29, 0
      %p71 = por %p69, %p70
      %p72 = scmp.ne.s32.totalorder %s60, %s61
      %p73 = scmp.eq.s32.totalorder %s30, 1
      %p74 = por %p72, %p73
      %p76 = scmp.ne.s32.totalorder %s61, %s75
      %p77 = scmp.eq.s32.totalorder %s30, 0
      %p78 = por %p76, %p77
      %s80 = sadd.s32 %s79, 1
      %p83 = scmp.eq.s32.totalorder %s24, 1
      %p84 = scmp.ne.s32.totalorder %s79, %s81
      %p85 = scmp.eq.s32.totalorder %s24, 0
      %p86 = por %p84, %p85
      %p87 = scmp.ne.s32.totalorder %s79, %s81
      %p88 = scmp.eq.s32.totalorder %s29, 1
      %p89 = por %p87, %p88
      %p90 = scmp.ne.s32.totalorder %s81, %s82
      %p91 = scmp.eq.s32.totalorder %s29, 0
      %p92 = por %p90, %p91
      %p93 = scmp.ne.s32.totalorder %s81, %s82
      %p94 = scmp.eq.s32.totalorder %s30, 1
      %p95 = por %p93, %p94
      %p97 = scmp.ne.s32.totalorder %s82, %s96
      %p98 = scmp.eq.s32.totalorder %s30, 0
      %p99 = por %p97, %p98
      %s101 = sadd.s32 %s100, 1
      %p104 = scmp.eq.s32.totalorder %s24, 1
      %p105 = scmp.ne.s32.totalorder %s100, %s102
      %p106 = scmp.eq.s32.totalorder %s24, 0
      %p107 = por %p105, %p106
      %p108 = scmp.ne.s32.totalorder %s100, %s102
      %p109 = scmp.eq.s32.totalorder %s29, 1
      %p110 = por %p108, %p109
      %p111 = scmp.ne.s32.totalorder %s102, %s103
      %p112 = scmp.eq.s32.totalorder %s29, 0
      %p113 = por %p111, %p112
      %p114 = scmp.ne.s32.totalorder %s102, %s103
      %p115 = scmp.eq.s32.totalorder %s30, 1
      %p116 = por %p114, %p115
      %p118 = scmp.ne.s32.totalorder %s103, %s117
      %p119 = scmp.eq.s32.totalorder %s30, 0
      %p120 = por %p118, %p119
      %s122 = sadd.s32 %s121, 1
      %p125 = scmp.eq.s32.totalorder %s24, 1
      %p126 = scmp.ne.s32.totalorder %s121, %s123
      %p127 = scmp.eq.s32.totalorder %s24, 0
      %p128 = por %p126, %p127
      %p129 = scmp.ne.s32.totalorder %s121, %s123
      %p130 = scmp.eq.s32.totalorder %s29, 1
      %p131 = por %p129, %p130
      %p132 = scmp.ne.s32.totalorder %s123, %s124
      %p133 = scmp.eq.s32.totalorder %s29, 0
      %p134 = por %p132, %p133
      %p135 = scmp.ne.s32.totalorder %s123, %s124
      %p136 = scmp.eq.s32.totalorder %s30, 1
      %p137 = por %p135, %p136
      %p139 = scmp.ne.s32.totalorder %s124, %s138
      %p140 = scmp.eq.s32.totalorder %s30, 0
      %p141 = por %p139, %p140
      %s142 = ssub.s32 %s24, %s31
      %p143 = scmp.eq.s32.totalorder %s142, 0
      %s145 = sadd.s32 %s144, 1
      %s146 = scalar_select %p143, %s144, %s145
      %p149 = pneg %p143
      %p150 = scmp.eq.s32.totalorder %s24, 1
      %p151 = por %p149, %p150
      %p152 = scmp.ne.s32.totalorder %s144, %s147
      %p153 = scmp.eq.s32.totalorder %s24, 0
      %p154 = por %p152, %p153
      %p155 = scmp.ne.s32.totalorder %s144, %s147
      %p156 = scmp.eq.s32.totalorder %s29, 1
      %p157 = por %p155, %p156
      %p158 = scmp.ne.s32.totalorder %s147, %s148
      %p159 = scmp.eq.s32.totalorder %s29, 0
      %p160 = por %p158, %p159
      %p161 = scmp.ne.s32.totalorder %s147, %s148
      %p162 = scmp.eq.s32.totalorder %s30, 1
      %p163 = por %p161, %p162
      %p165 = scmp.ne.s32.totalorder %s148, %s164
      %p166 = scmp.eq.s32.totalorder %s30, 0
      %p167 = por %p165, %p166
      %s168 = ssub.s32 %s24, %s31
      %p169 = scmp.eq.s32.totalorder %s168, 0
      %s171 = sadd.s32 %s170, 1
      %s172 = scalar_select %p169, %s170, %s171
      %p175 = pneg %p169
      %p176 = scmp.eq.s32.totalorder %s24, 1
      %p177 = por %p175, %p176
      %p178 = scmp.ne.s32.totalorder %s170, %s173
      %p179 = scmp.eq.s32.totalorder %s24, 0
      %p180 = por %p178, %p179
      %p181 = scmp.ne.s32.totalorder %s170, %s173
      %p182 = scmp.eq.s32.totalorder %s29, 1
      %p183 = por %p181, %p182
      %p184 = scmp.ne.s32.totalorder %s173, %s174
      %p185 = scmp.eq.s32.totalorder %s29, 0
      %p186 = por %p184, %p185
      %p187 = scmp.ne.s32.totalorder %s173, %s174
      %p188 = scmp.eq.s32.totalorder %s30, 1
      %p189 = por %p187, %p188
      %p191 = scmp.ne.s32.totalorder %s174, %s190
      %p192 = scmp.eq.s32.totalorder %s30, 0
      %p193 = por %p191, %p192
      %s194 = ssub.s32 %s24, %s31
      %p195 = scmp.eq.s32.totalorder %s194, 0
      %s197 = sadd.s32 %s196, 1
      %s198 = scalar_select %p195, %s196, %s197
      %p201 = pneg %p195
      %p202 = scmp.eq.s32.totalorder %s24, 1
      %p203 = por %p201, %p202
      %p204 = scmp.ne.s32.totalorder %s196, %s199
      %p205 = scmp.eq.s32.totalorder %s24, 0
      %p206 = por %p204, %p205
      %p207 = scmp.ne.s32.totalorder %s196, %s199
      %p208 = scmp.eq.s32.totalorder %s29, 1
      %p209 = por %p207, %p208
      %p210 = scmp.ne.s32.totalorder %s199, %s200
      %p211 = scmp.eq.s32.totalorder %s29, 0
      %p212 = por %p210, %p211
      %p213 = scmp.ne.s32.totalorder %s199, %s200
      %p214 = scmp.eq.s32.totalorder %s30, 1
      %p215 = por %p213, %p214
      %p217 = scmp.ne.s32.totalorder %s200, %s216
      %p218 = scmp.eq.s32.totalorder %s30, 0
      %p219 = por %p217, %p218
      %p220 = scmp.le.s32.totalorder 1, %s24
      %p221 = scmp.lt.s32.totalorder %s24, 3
      %p222 = pnand %p220, %p221
      %p223 = pneg %p222
      // Predicated region
      $region9: #{tpu_custom_call.1} parent=5 // pred_check
        _
      $region10: #{tpu_custom_call.1} parent=5 // pred_check_branch
        %225 = sbr.rel (%p222) target = $region12
      $region11: #{tpu_custom_call.1} parent=5 // pred_region
        %s226 = ssub.s32 %s24, 1
        // Predicated region
        $region13: #{tpu_custom_call.1} parent=11 // pred_check
          %p227 = pneg %p71
        $region14: #{tpu_custom_call.1} parent=11 // pred_check_branch
          %229 = sbr.rel (%p227) target = $region16
        $region15: #{tpu_custom_call.1} parent=11 // pred_region
          %s231 = ssub.s32 9216, 9216
          %232 = vsyncadd [#allocation8], %s231
          %s233 = sshll.u32 [#allocation7], 4
          %s234 = int_to_ptr.vmem [resolvable:$true] %s233
          %239 = dma.hbm_to_vmem [thread:$0]  %s1, 9216, %s234, [#allocation8], 64, 64, 4
        $region16: #{tpu_custom_call.1} parent=11 // pred_fallthru
          _
        // Predicated region
        $region17: #{tpu_custom_call.1} parent=11 // pred_check
          %p240 = pneg %p92
        $region18: #{tpu_custom_call.1} parent=11 // pred_check_branch
          %242 = sbr.rel (%p240) target = $region20
        $region19: #{tpu_custom_call.1} parent=11 // pred_region
          _
        $region20: #{tpu_custom_call.1} parent=11 // pred_fallthru
          _
        // Predicated region
        $region21: #{tpu_custom_call.1} parent=11 // pred_check
          %p243 = pneg %p113
        $region22: #{tpu_custom_call.1} parent=11 // pred_check_branch
          %245 = sbr.rel (%p243) target = $region24
        $region23: #{tpu_custom_call.1} parent=11 // pred_region
          _
        $region24: #{tpu_custom_call.1} parent=11 // pred_fallthru
          _
        // Predicated region
        $region25: #{tpu_custom_call.1} parent=11 // pred_check
          %p246 = pneg %p134
        $region26: #{tpu_custom_call.1} parent=11 // pred_check_branch
          %248 = sbr.rel (%p246) target = $region28
        $region27: #{tpu_custom_call.1} parent=11 // pred_region
          _
        $region28: #{tpu_custom_call.1} parent=11 // pred_fallthru
          _
      $region12: #{tpu_custom_call.1} parent=5 // pred_fallthru
        _
      %p249 = scmp.lt.s32.totalorder %s24, 2
      // Predicated region
      $region29: #{tpu_custom_call.1} parent=5 // pred_check
        %p250 = pneg %p249
      $region30: #{tpu_custom_call.1} parent=5 // pred_check_branch
        %252 = sbr.rel (%p250) target = $region32
      $region31: #{tpu_custom_call.1} parent=5 // pred_region
        // Predicated region
        $region33: #{tpu_custom_call.1} parent=31 // pred_check
          %p253 = pneg %p44
        $region34: #{tpu_custom_call.1} parent=31 // pred_check_branch
          %255 = sbr.rel (%p253) target = $region36
        $region35: #{tpu_custom_call.1} parent=31 // pred_region
          %s256 = sand.u32 %s34, 1
          %s257 = scalar_lea.sflag [#allocation5], %s256
          %s258 = sand.u32 %s34, 1
          %s259 = smul.addr %s258, 256
          %s260 = scalar_lea.vmem [#allocation4], %s259
          %s262 = ssub.s32 4096, 4096
          %263 = vsyncadd %s257, %s262
          %s264 = smul.addr %s24, 32
          %s265 = smul.addr %s264, 128
          %s266 = scalar_lea.hbm %s0, %s265
          %s267 = sshll.u32 %s260, 4
          %s268 = int_to_ptr.vmem [resolvable:$true] %s267
          %273 = dma.hbm_to_vmem [thread:$0]  %s266, 4096, %s268, %s257, 128, 128, 8
        $region36: #{tpu_custom_call.1} parent=31 // pred_fallthru
          _
      $region32: #{tpu_custom_call.1} parent=5 // pred_fallthru
        _
      %p274 = scmp.le.s32.totalorder 1, %s24
      %p275 = scmp.lt.s32.totalorder %s24, 3
      %p276 = pnand %p274, %p275
      %p277 = pneg %p276
      // Predicated region
      $region37: #{tpu_custom_call.1} parent=5 // pred_check
        _
      $region38: #{tpu_custom_call.1} parent=5 // pred_check_branch
        %279 = sbr.rel (%p276) target = $region40
      $region39: #{tpu_custom_call.1} parent=5 // pred_region
        %s280 = ssub.s32 %s24, 1
        %s281 = sand.u32 %s37, 1
        %s282 = scalar_lea.sflag [#allocation5], %s281
        %s283 = sand.u32 %s37, 1
        %s284 = smul.addr %s283, 256
        %s285 = scalar_lea.vmem [#allocation4], %s284
        // Predicated region
        $region41: #{tpu_custom_call.1} parent=39 // pred_check
          %p286 = pneg %p50
        $region42: #{tpu_custom_call.1} parent=39 // pred_check_branch
          %288 = sbr.rel (%p286) target = $region44
        $region43: #{tpu_custom_call.1} parent=39 // pred_region
          %289 = dma.done %s282, 4096
        $region44: #{tpu_custom_call.1} parent=39 // pred_fallthru
          _
        // Predicated region
        $region45: #{tpu_custom_call.1} parent=39 // pred_check
          %p290 = pneg %p71
        $region46: #{tpu_custom_call.1} parent=39 // pred_check_branch
          %292 = sbr.rel (%p290) target = $region48
        $region47: #{tpu_custom_call.1} parent=39 // pred_region
          %293 = dma.done [#allocation8], 9216
        $region48: #{tpu_custom_call.1} parent=39 // pred_fallthru
          _
        %s294 = sand.u32 %s37, 1
        %s295 = scalar_lea.sflag [#allocation5], %s294
        %s296 = sand.u32 %s37, 1
        %s297 = smul.addr %s296, 256
        %s298 = scalar_lea.vmem [#allocation4], %s297
        %p299 = pneg %p50
        %p300 = pneg %p47
        %p301 = pneg %p71
        %p302 = pneg %p68
        %p303 = pneg %p92
        %p304 = pneg %p89
        %p305 = pneg %p113
        %p306 = pneg %p110
        %p307 = pneg %p134
        %p308 = pneg %p131
        %p309 = pneg %p160
        %p310 = pneg %p157
        %s311 = sand.u32 %s147, 1
        %s312 = scalar_lea.sflag [#allocation6], %s311
        %s313 = sand.u32 %s147, 1
        %s314 = smul.addr %s313, 128
        %s315 = scalar_lea.vmem [#allocation9], %s314
        %p316 = pneg %p186
        %p317 = pneg %p183
        %s318 = sand.u32 %s29, 1
        %s319 = scalar_lea.sflag [#allocation11], %s318
        %s320 = sand.u32 %s173, 1
        %s321 = scalar_lea.vmem [#allocation10], %s320
        %p322 = pneg %p212
        %p323 = pneg %p209
        %s324 = sand.u32 %s29, 1
        %s325 = scalar_lea.sflag [#allocation11], %s324
        %s326 = sand.u32 %s199, 1
        %s327 = scalar_lea.vmem [#allocation12], %s326
        %v329 = vld [vmem:[%s285] sm:$0xff]
        %v330 = vld [vmem:[%s285 + $0x8] sm:$0xff]
        %v331 = vld [vmem:[%s285 + $0x10] sm:$0xff]
        %v332 = vld [vmem:[%s285 + $0x18] sm:$0xff]
        %v333 = vld [vmem:[%s285 + $0x20] sm:$0xff]
        %v334 = vld [vmem:[%s285 + $0x28] sm:$0xff]
        %v335 = vld [vmem:[%s285 + $0x30] sm:$0xff]
        %v336 = vld [vmem:[%s285 + $0x38] sm:$0xff]
        %v337 = vld [vmem:[%s285 + $0x40] sm:$0xff]
        %v338 = vld [vmem:[%s285 + $0x48] sm:$0xff]
        %v339 = vld [vmem:[%s285 + $0x50] sm:$0xff]
        %v340 = vld [vmem:[%s285 + $0x58] sm:$0xff]
        %v341 = vld [vmem:[%s285 + $0x60] sm:$0xff]
        %v342 = vld [vmem:[%s285 + $0x68] sm:$0xff]
        %v343 = vld [vmem:[%s285 + $0x70] sm:$0xff]
        %v344 = vld [vmem:[%s285 + $0x78] sm:$0xff]
        %v345 = vld [vmem:[%s285 + $0x80] sm:$0xff]
        %v346 = vld [vmem:[%s285 + $0x88] sm:$0xff]
        %v347 = vld [vmem:[%s285 + $0x90] sm:$0xff]
        %v348 = vld [vmem:[%s285 + $0x98] sm:$0xff]
        %v349 = vld [vmem:[%s285 + $0xa0] sm:$0xff]
        %v350 = vld [vmem:[%s285 + $0xa8] sm:$0xff]
        %v351 = vld [vmem:[%s285 + $0xb0] sm:$0xff]
        %v352 = vld [vmem:[%s285 + $0xb8] sm:$0xff]
        %v353 = vld [vmem:[%s285 + $0xc0] sm:$0xff]
        %v354 = vld [vmem:[%s285 + $0xc8] sm:$0xff]
        %v355 = vld [vmem:[%s285 + $0xd0] sm:$0xff]
        %v356 = vld [vmem:[%s285 + $0xd8] sm:$0xff]
        %v357 = vld [vmem:[%s285 + $0xe0] sm:$0xff]
        %v358 = vld [vmem:[%s285 + $0xe8] sm:$0xff]
        %v359 = vld [vmem:[%s285 + $0xf0] sm:$0xff]
        %v360 = vld [vmem:[%s285 + $0xf8] sm:$0xff]
        %v361 = vpack.c.bf16 %v330, %v329
        %v362 = vpack.c.bf16 %v332, %v331
        %v363 = vpack.c.bf16 %v334, %v333
        %v364 = vpack.c.bf16 %v336, %v335
        %v365 = vpack.c.bf16 %v338, %v337
        %v366 = vpack.c.bf16 %v340, %v339
        %v367 = vpack.c.bf16 %v342, %v341
        %v368 = vpack.c.bf16 %v344, %v343
        %v369 = vpack.c.bf16 %v346, %v345
        %v370 = vpack.c.bf16 %v348, %v347
        %v371 = vpack.c.bf16 %v350, %v349
        %v372 = vpack.c.bf16 %v352, %v351
        %v373 = vpack.c.bf16 %v354, %v353
        %v374 = vpack.c.bf16 %v356, %v355
        %v375 = vpack.c.bf16 %v358, %v357
        %v376 = vpack.c.bf16 %v360, %v359
        %377 = vst [vmem:[#allocation2] sm:$0xf] 0
        %378 = vst [vmem:[#allocation2 + $0x4] sm:$0xf] 0
        %379 = vst [vmem:[#allocation2 + $0x8] sm:$0x1] 0
        %s380 = scalar_lea.vmem [#allocation2], 204
        %381 = vst [vmem:[%s380] sm:$0xf] 0
        %382 = vst [vmem:[%s380 + $0x4] sm:$0xf] 0
        %383 = vst [vmem:[%s380 + $0x8] sm:$0x1] 0
        %vm384 = vcmask 1040384
        %vm385 = vsmask.f32 256
        %vm386 = vmand %vm384, %vm385
        %v387 = vld [vmem:[#allocation2] sm:$0x1]
        %v388 = vsel %vm386, 0, %v387
        %389 = vst [vmem:[#allocation2] sm:$0x1] %v388
        %v390 = vld [vmem:[#allocation2 + $0xc] sm:$0x1]
        %v391 = vsel %vm386, 0, %v390
        %392 = vst [vmem:[#allocation2 + $0xc] sm:$0x1] %v391
        %v393 = vld [vmem:[#allocation2 + $0x18] sm:$0x1]
        %v394 = vsel %vm386, 0, %v393
        %395 = vst [vmem:[#allocation2 + $0x18] sm:$0x1] %v394
        %v396 = vld [vmem:[#allocation2 + $0x24] sm:$0x1]
        %v397 = vsel %vm386, 0, %v396
        %398 = vst [vmem:[#allocation2 + $0x24] sm:$0x1] %v397
        %v399 = vld [vmem:[#allocation2 + $0x30] sm:$0x1]
        %v400 = vsel %vm386, 0, %v399
        %401 = vst [vmem:[#allocation2 + $0x30] sm:$0x1] %v400
        %v402 = vld [vmem:[#allocation2 + $0x3c] sm:$0x1]
        %v403 = vsel %vm386, 0, %v402
        %404 = vst [vmem:[#allocation2 + $0x3c] sm:$0x1] %v403
        %v405 = vld [vmem:[#allocation2 + $0x48] sm:$0x1]
        %v406 = vsel %vm386, 0, %v405
        %407 = vst [vmem:[#allocation2 + $0x48] sm:$0x1] %v406
        %v408 = vld [vmem:[#allocation2 + $0x54] sm:$0x1]
        %v409 = vsel %vm386, 0, %v408
        %410 = vst [vmem:[#allocation2 + $0x54] sm:$0x1] %v409
        %v411 = vld [vmem:[#allocation2 + $0x60] sm:$0x1]
        %v412 = vsel %vm386, 0, %v411
        %413 = vst [vmem:[#allocation2 + $0x60] sm:$0x1] %v412
        %v414 = vld [vmem:[#allocation2 + $0x6c] sm:$0x1]
        %v415 = vsel %vm386, 0, %v414
        %416 = vst [vmem:[#allocation2 + $0x6c] sm:$0x1] %v415
        %v417 = vld [vmem:[#allocation2 + $0x78] sm:$0x1]
        %v418 = vsel %vm386, 0, %v417
        %419 = vst [vmem:[#allocation2 + $0x78] sm:$0x1] %v418
        %v420 = vld [vmem:[#allocation2 + $0x84] sm:$0x1]
        %v421 = vsel %vm386, 0, %v420
        %422 = vst [vmem:[#allocation2 + $0x84] sm:$0x1] %v421
        %v423 = vld [vmem:[#allocation2 + $0x90] sm:$0x1]
        %v424 = vsel %vm386, 0, %v423
        %425 = vst [vmem:[#allocation2 + $0x90] sm:$0x1] %v424
        %v426 = vld [vmem:[#allocation2 + $0x9c] sm:$0x1]
        %v427 = vsel %vm386, 0, %v426
        %428 = vst [vmem:[#allocation2 + $0x9c] sm:$0x1] %v427
        %v429 = vld [vmem:[#allocation2 + $0xa8] sm:$0x1]
        %v430 = vsel %vm386, 0, %v429
        %431 = vst [vmem:[#allocation2 + $0xa8] sm:$0x1] %v430
        %v432 = vld [vmem:[#allocation2 + $0xb4] sm:$0x1]
        %v433 = vsel %vm386, 0, %v432
        %434 = vst [vmem:[#allocation2 + $0xb4] sm:$0x1] %v433
        %v435 = vld [vmem:[#allocation2 + $0xc0] sm:$0x1]
        %v436 = vsel %vm386, 0, %v435
        %437 = vst [vmem:[#allocation2 + $0xc0] sm:$0x1] %v436
        %v438 = vld [vmem:[#allocation2 + $0xcc] sm:$0x1]
        %v439 = vsel %vm386, 0, %v438
        %440 = vst [vmem:[#allocation2 + $0xcc] sm:$0x1] %v439
        %vm441 = vsmask.f32 7938
        %vm442 = vmand %vm384, %vm441
        %v443 = vld [vmem:[#allocation2 + $0x8] sm:$0x1]
        %v444 = vsel %vm442, 0, %v443
        %445 = vst [vmem:[#allocation2 + $0x8] sm:$0x1] %v444
        %v446 = vld [vmem:[#allocation2 + $0x14] sm:$0x1]
        %v447 = vsel %vm442, 0, %v446
        %448 = vst [vmem:[#allocation2 + $0x14] sm:$0x1] %v447
        %v449 = vld [vmem:[#allocation2 + $0x20] sm:$0x1]
        %v450 = vsel %vm442, 0, %v449
        %451 = vst [vmem:[#allocation2 + $0x20] sm:$0x1] %v450
        %v452 = vld [vmem:[#allocation2 + $0x2c] sm:$0x1]
        %v453 = vsel %vm442, 0, %v452
        %454 = vst [vmem:[#allocation2 + $0x2c] sm:$0x1] %v453
        %v455 = vld [vmem:[#allocation2 + $0x38] sm:$0x1]
        %v456 = vsel %vm442, 0, %v455
        %457 = vst [vmem:[#allocation2 + $0x38] sm:$0x1] %v456
        %v458 = vld [vmem:[#allocation2 + $0x44] sm:$0x1]
        %v459 = vsel %vm442, 0, %v458
        %460 = vst [vmem:[#allocation2 + $0x44] sm:$0x1] %v459
        %v461 = vld [vmem:[#allocation2 + $0x50] sm:$0x1]
        %v462 = vsel %vm442, 0, %v461
        %463 = vst [vmem:[#allocation2 + $0x50] sm:$0x1] %v462
        %v464 = vld [vmem:[#allocation2 + $0x5c] sm:$0x1]
        %v465 = vsel %vm442, 0, %v464
        %466 = vst [vmem:[#allocation2 + $0x5c] sm:$0x1] %v465
        %v467 = vld [vmem:[#allocation2 + $0x68] sm:$0x1]
        %v468 = vsel %vm442, 0, %v467
        %469 = vst [vmem:[#allocation2 + $0x68] sm:$0x1] %v468
        %v470 = vld [vmem:[#allocation2 + $0x74] sm:$0x1]
        %v471 = vsel %vm442, 0, %v470
        %472 = vst [vmem:[#allocation2 + $0x74] sm:$0x1] %v471
        %v473 = vld [vmem:[#allocation2 + $0x80] sm:$0x1]
        %v474 = vsel %vm442, 0, %v473
        %475 = vst [vmem:[#allocation2 + $0x80] sm:$0x1] %v474
        %v476 = vld [vmem:[#allocation2 + $0x8c] sm:$0x1]
        %v477 = vsel %vm442, 0, %v476
        %478 = vst [vmem:[#allocation2 + $0x8c] sm:$0x1] %v477
        %v479 = vld [vmem:[#allocation2 + $0x98] sm:$0x1]
        %v480 = vsel %vm442, 0, %v479
        %481 = vst [vmem:[#allocation2 + $0x98] sm:$0x1] %v480
        %v482 = vld [vmem:[#allocation2 + $0xa4] sm:$0x1]
        %v483 = vsel %vm442, 0, %v482
        %484 = vst [vmem:[#allocation2 + $0xa4] sm:$0x1] %v483
        %v485 = vld [vmem:[#allocation2 + $0xb0] sm:$0x1]
        %v486 = vsel %vm442, 0, %v485
        %487 = vst [vmem:[#allocation2 + $0xb0] sm:$0x1] %v486
        %v488 = vld [vmem:[#allocation2 + $0xbc] sm:$0x1]
        %v489 = vsel %vm442, 0, %v488
        %490 = vst [vmem:[#allocation2 + $0xbc] sm:$0x1] %v489
        %v491 = vld [vmem:[#allocation2 + $0xc8] sm:$0x1]
        %v492 = vsel %vm442, 0, %v491
        %493 = vst [vmem:[#allocation2 + $0xc8] sm:$0x1] %v492
        %v494 = vld [vmem:[#allocation2 + $0xd4] sm:$0x1]
        %v495 = vsel %vm442, 0, %v494
        %496 = vst [vmem:[#allocation2 + $0xd4] sm:$0x1] %v495
        %v513 = vunpack.c.l.b16 %v361
        %v514 = vunpack.c.h.b16 %v361
        %v515 = vunpack.c.l.b16 %v362
        %v516 = vunpack.c.h.b16 %v362
        %v517 = vunpack.c.l.b16 %v363
        %v518 = vunpack.c.h.b16 %v363
        %v519 = vunpack.c.l.b16 %v364
        %v520 = vunpack.c.h.b16 %v364
        %v521 = vunpack.c.l.b16 %v365
        %v522 = vunpack.c.h.b16 %v365
        %v523 = vunpack.c.l.b16 %v366
        %v524 = vunpack.c.h.b16 %v366
        %v525 = vunpack.c.l.b16 %v367
        %v526 = vunpack.c.h.b16 %v367
        %v527 = vunpack.c.l.b16 %v368
        %v528 = vunpack.c.h.b16 %v368
        %v529 = vunpack.c.l.b16 %v369
        %v530 = vunpack.c.h.b16 %v369
        %v531 = vunpack.c.l.b16 %v370
        %v532 = vunpack.c.h.b16 %v370
        %v533 = vunpack.c.l.b16 %v371
        %v534 = vunpack.c.h.b16 %v371
        %v535 = vunpack.c.l.b16 %v372
        %v536 = vunpack.c.h.b16 %v372
        %v537 = vunpack.c.l.b16 %v373
        %v538 = vunpack.c.h.b16 %v373
        %v539 = vunpack.c.l.b16 %v374
        %v540 = vunpack.c.h.b16 %v374
        %v541 = vunpack.c.l.b16 %v375
        %v542 = vunpack.c.h.b16 %v375
        %v543 = vunpack.c.l.b16 %v376
        %v544 = vunpack.c.h.b16 %v376
        %v545 = vpack.c.b16 %v513, %v513
        %v546 = vpack.c.b16 %v514, %v514
        %v547 = vpack.c.b16 %v515, %v515
        %v548 = vpack.c.b16 %v516, %v516
        %v549 = vpack.c.b16 %v517, %v517
        %v550 = vpack.c.b16 %v518, %v518
        %v551 = vpack.c.b16 %v519, %v519
        %v552 = vpack.c.b16 %v520, %v520
        %v553 = vpack.c.b16 %v521, %v521
        %v554 = vpack.c.b16 %v522, %v522
        %v555 = vpack.c.b16 %v523, %v523
        %v556 = vpack.c.b16 %v524, %v524
        %v557 = vpack.c.b16 %v525, %v525
        %v558 = vpack.c.b16 %v526, %v526
        %v559 = vpack.c.b16 %v527, %v527
        %v560 = vpack.c.b16 %v528, %v528
        %v561 = vpack.c.b16 %v529, %v529
        %v562 = vpack.c.b16 %v530, %v530
        %v563 = vpack.c.b16 %v531, %v531
        %v564 = vpack.c.b16 %v532, %v532
        %v565 = vpack.c.b16 %v533, %v533
        %v566 = vpack.c.b16 %v534, %v534
        %v567 = vpack.c.b16 %v535, %v535
        %v568 = vpack.c.b16 %v536, %v536
        %v569 = vpack.c.b16 %v537, %v537
        %v570 = vpack.c.b16 %v538, %v538
        %v571 = vpack.c.b16 %v539, %v539
        %v572 = vpack.c.b16 %v540, %v540
        %v573 = vpack.c.b16 %v541, %v541
        %v574 = vpack.c.b16 %v542, %v542
        %v575 = vpack.c.b16 %v543, %v543
        %v576 = vpack.c.b16 %v544, %v544
        %vm577 = vsmask.f32 4368
        %vm578 = vmor %vm385, %vm577
        %v580 = vshrl.u32 %v545, 16
        %v582 = vrot.slane %v580, 7
        %v583 = vshll.u32 %v545, 16
        %v585 = vor.u32 %v582, %v583
        %v586 = vrot.slane %v582, 4
        %v588 = vshrl.u32 %v546, 16
        %v590 = vrot.slane %v588, 7
        %v591 = vshll.u32 %v546, 16
        %v593 = vor.u32 %v590, %v591
        %v594 = vsel %vm578, %v586, %v593
        %v595 = vrot.slane %v590, 4
        %v597 = vshrl.u32 %v547, 16
        %v599 = vrot.slane %v597, 7
        %v600 = vshll.u32 %v547, 16
        %v602 = vor.u32 %v599, %v600
        %v603 = vrot.slane %v599, 4
        %v605 = vshrl.u32 %v548, 16
        %v607 = vrot.slane %v605, 7
        %v608 = vshll.u32 %v548, 16
        %v610 = vor.u32 %v607, %v608
        %v611 = vsel %vm578, %v603, %v610
        %v612 = vrot.slane %v607, 4
        %v614 = vshrl.u32 %v549, 16
        %v616 = vrot.slane %v614, 7
        %v617 = vshll.u32 %v549, 16
        %v619 = vor.u32 %v616, %v617
        %v620 = vrot.slane %v616, 4
        %v622 = vshrl.u32 %v550, 16
        %v624 = vrot.slane %v622, 7
        %v625 = vshll.u32 %v550, 16
        %v627 = vor.u32 %v624, %v625
        %v628 = vsel %vm578, %v620, %v627
        %v629 = vrot.slane %v624, 4
        %v631 = vshrl.u32 %v551, 16
        %v633 = vrot.slane %v631, 7
        %v634 = vshll.u32 %v551, 16
        %v636 = vor.u32 %v633, %v634
        %v637 = vrot.slane %v633, 4
        %v639 = vshrl.u32 %v552, 16
        %v641 = vrot.slane %v639, 7
        %v642 = vshll.u32 %v552, 16
        %v644 = vor.u32 %v641, %v642
        %v645 = vsel %vm578, %v637, %v644
        %v646 = vrot.slane %v641, 4
        %v648 = vshrl.u32 %v553, 16
        %v650 = vrot.slane %v648, 7
        %v651 = vshll.u32 %v553, 16
        %v653 = vor.u32 %v650, %v651
        %v654 = vrot.slane %v650, 4
        %v656 = vshrl.u32 %v554, 16
        %v658 = vrot.slane %v656, 7
        %v659 = vshll.u32 %v554, 16
        %v661 = vor.u32 %v658, %v659
        %v662 = vsel %vm578, %v654, %v661
        %v663 = vrot.slane %v658, 4
        %v665 = vshrl.u32 %v555, 16
        %v667 = vrot.slane %v665, 7
        %v668 = vshll.u32 %v555, 16
        %v670 = vor.u32 %v667, %v668
        %v671 = vrot.slane %v667, 4
        %v673 = vshrl.u32 %v556, 16
        %v675 = vrot.slane %v673, 7
        %v676 = vshll.u32 %v556, 16
        %v678 = vor.u32 %v675, %v676
        %v679 = vsel %vm578, %v671, %v678
        %v680 = vrot.slane %v675, 4
        %v682 = vshrl.u32 %v557, 16
        %v684 = vrot.slane %v682, 7
        %v685 = vshll.u32 %v557, 16
        %v687 = vor.u32 %v684, %v685
        %v688 = vrot.slane %v684, 4
        %v690 = vshrl.u32 %v558, 16
        %v692 = vrot.slane %v690, 7
        %v693 = vshll.u32 %v558, 16
        %v695 = vor.u32 %v692, %v693
        %v696 = vsel %vm578, %v688, %v695
        %v697 = vrot.slane %v692, 4
        %v699 = vshrl.u32 %v559, 16
        %v701 = vrot.slane %v699, 7
        %v702 = vshll.u32 %v559, 16
        %v704 = vor.u32 %v701, %v702
        %v705 = vrot.slane %v701, 4
        %v707 = vshrl.u32 %v560, 16
        %v709 = vrot.slane %v707, 7
        %v710 = vshll.u32 %v560, 16
        %v712 = vor.u32 %v709, %v710
        %v713 = vsel %vm578, %v705, %v712
        %v714 = vrot.slane %v709, 4
        %v716 = vshrl.u32 %v561, 16
        %v718 = vrot.slane %v716, 7
        %v719 = vshll.u32 %v561, 16
        %v721 = vor.u32 %v718, %v719
        %v722 = vrot.slane %v718, 4
        %v724 = vshrl.u32 %v562, 16
        %v726 = vrot.slane %v724, 7
        %v727 = vshll.u32 %v562, 16
        %v729 = vor.u32 %v726, %v727
        %v730 = vsel %vm578, %v722, %v729
        %v731 = vrot.slane %v726, 4
        %v733 = vshrl.u32 %v563, 16
        %v735 = vrot.slane %v733, 7
        %v736 = vshll.u32 %v563, 16
        %v738 = vor.u32 %v735, %v736
        %v739 = vrot.slane %v735, 4
        %v741 = vshrl.u32 %v564, 16
        %v743 = vrot.slane %v741, 7
        %v744 = vshll.u32 %v564, 16
        %v746 = vor.u32 %v743, %v744
        %v747 = vsel %vm578, %v739, %v746
        %v748 = vrot.slane %v743, 4
        %v750 = vshrl.u32 %v565, 16
        %v752 = vrot.slane %v750, 7
        %v753 = vshll.u32 %v565, 16
        %v755 = vor.u32 %v752, %v753
        %v756 = vrot.slane %v752, 4
        %v758 = vshrl.u32 %v566, 16
        %v760 = vrot.slane %v758, 7
        %v761 = vshll.u32 %v566, 16
        %v763 = vor.u32 %v760, %v761
        %v764 = vsel %vm578, %v756, %v763
        %v765 = vrot.slane %v760, 4
        %v767 = vshrl.u32 %v567, 16
        %v769 = vrot.slane %v767, 7
        %v770 = vshll.u32 %v567, 16
        %v772 = vor.u32 %v769, %v770
        %v773 = vrot.slane %v769, 4
        %v775 = vshrl.u32 %v568, 16
        %v777 = vrot.slane %v775, 7
        %v778 = vshll.u32 %v568, 16
        %v780 = vor.u32 %v777, %v778
        %v781 = vsel %vm578, %v773, %v780
        %v782 = vrot.slane %v777, 4
        %v784 = vshrl.u32 %v569, 16
        %v786 = vrot.slane %v784, 7
        %v787 = vshll.u32 %v569, 16
        %v789 = vor.u32 %v786, %v787
        %v790 = vrot.slane %v786, 4
        %v792 = vshrl.u32 %v570, 16
        %v794 = vrot.slane %v792, 7
        %v795 = vshll.u32 %v570, 16
        %v797 = vor.u32 %v794, %v795
        %v798 = vsel %vm578, %v790, %v797
        %v799 = vrot.slane %v794, 4
        %v801 = vshrl.u32 %v571, 16
        %v803 = vrot.slane %v801, 7
        %v804 = vshll.u32 %v571, 16
        %v806 = vor.u32 %v803, %v804
        %v807 = vrot.slane %v803, 4
        %v809 = vshrl.u32 %v572, 16
        %v811 = vrot.slane %v809, 7
        %v812 = vshll.u32 %v572, 16
        %v814 = vor.u32 %v811, %v812
        %v815 = vsel %vm578, %v807, %v814
        %v816 = vrot.slane %v811, 4
        %v818 = vshrl.u32 %v573, 16
        %v820 = vrot.slane %v818, 7
        %v821 = vshll.u32 %v573, 16
        %v823 = vor.u32 %v820, %v821
        %v824 = vrot.slane %v820, 4
        %v826 = vshrl.u32 %v574, 16
        %v828 = vrot.slane %v826, 7
        %v829 = vshll.u32 %v574, 16
        %v831 = vor.u32 %v828, %v829
        %v832 = vsel %vm578, %v824, %v831
        %v833 = vrot.slane %v828, 4
        %v835 = vshrl.u32 %v575, 16
        %v837 = vrot.slane %v835, 7
        %v838 = vshll.u32 %v575, 16
        %v840 = vor.u32 %v837, %v838
        %v841 = vrot.slane %v837, 4
        %v843 = vshrl.u32 %v576, 16
        %v845 = vrot.slane %v843, 7
        %v846 = vshll.u32 %v576, 16
        %v848 = vor.u32 %v845, %v846
        %v849 = vsel %vm578, %v841, %v848
        %v850 = vrot.slane %v845, 4
        %s899 = scalar_lea.vmem [#allocation2], 12
        %vm900 = vcmask 1043456
        %vm901 = vmand %vm900, %vm441
        %v902 = vld [vmem:[%s899] sm:$0xf]
        %v903 = vsel %vm901, %v585, %v902
        %904 = vst [vmem:[%s899] sm:$0xf] %v903
        %905 = vst [vmem:[%s899 + $0x4] sm:$0xf] %v594
        %v906 = vld [vmem:[%s899 + $0x8] sm:$0x1]
        %v907 = vsel %vm386, %v595, %v906
        %908 = vst [vmem:[%s899 + $0x8] sm:$0x1] %v907
        %v909 = vld [vmem:[%s899 + $0xc] sm:$0xf]
        %v910 = vsel %vm901, %v602, %v909
        %911 = vst [vmem:[%s899 + $0xc] sm:$0xf] %v910
        %912 = vst [vmem:[%s899 + $0x10] sm:$0xf] %v611
        %v913 = vld [vmem:[%s899 + $0x14] sm:$0x1]
        %v914 = vsel %vm386, %v612, %v913
        %915 = vst [vmem:[%s899 + $0x14] sm:$0x1] %v914
        %v916 = vld [vmem:[%s899 + $0x18] sm:$0xf]
        %v917 = vsel %vm901, %v619, %v916
        %918 = vst [vmem:[%s899 + $0x18] sm:$0xf] %v917
        %919 = vst [vmem:[%s899 + $0x1c] sm:$0xf] %v628
        %v920 = vld [vmem:[%s899 + $0x20] sm:$0x1]
        %v921 = vsel %vm386, %v629, %v920
        %922 = vst [vmem:[%s899 + $0x20] sm:$0x1] %v921
        %v923 = vld [vmem:[%s899 + $0x24] sm:$0xf]
        %v924 = vsel %vm901, %v636, %v923
        %925 = vst [vmem:[%s899 + $0x24] sm:$0xf] %v924
        %926 = vst [vmem:[%s899 + $0x28] sm:$0xf] %v645
        %v927 = vld [vmem:[%s899 + $0x2c] sm:$0x1]
        %v928 = vsel %vm386, %v646, %v927
        %929 = vst [vmem:[%s899 + $0x2c] sm:$0x1] %v928
        %v930 = vld [vmem:[%s899 + $0x30] sm:$0xf]
        %v931 = vsel %vm901, %v653, %v930
        %932 = vst [vmem:[%s899 + $0x30] sm:$0xf] %v931
        %933 = vst [vmem:[%s899 + $0x34] sm:$0xf] %v662
        %v934 = vld [vmem:[%s899 + $0x38] sm:$0x1]
        %v935 = vsel %vm386, %v663, %v934
        %936 = vst [vmem:[%s899 + $0x38] sm:$0x1] %v935
        %v937 = vld [vmem:[%s899 + $0x3c] sm:$0xf]
        %v938 = vsel %vm901, %v670, %v937
        %939 = vst [vmem:[%s899 + $0x3c] sm:$0xf] %v938
        %940 = vst [vmem:[%s899 + $0x40] sm:$0xf] %v679
        %v941 = vld [vmem:[%s899 + $0x44] sm:$0x1]
        %v942 = vsel %vm386, %v680, %v941
        %943 = vst [vmem:[%s899 + $0x44] sm:$0x1] %v942
        %v944 = vld [vmem:[%s899 + $0x48] sm:$0xf]
        %v945 = vsel %vm901, %v687, %v944
        %946 = vst [vmem:[%s899 + $0x48] sm:$0xf] %v945
        %947 = vst [vmem:[%s899 + $0x4c] sm:$0xf] %v696
        %v948 = vld [vmem:[%s899 + $0x50] sm:$0x1]
        %v949 = vsel %vm386, %v697, %v948
        %950 = vst [vmem:[%s899 + $0x50] sm:$0x1] %v949
        %v951 = vld [vmem:[%s899 + $0x54] sm:$0xf]
        %v952 = vsel %vm901, %v704, %v951
        %953 = vst [vmem:[%s899 + $0x54] sm:$0xf] %v952
        %954 = vst [vmem:[%s899 + $0x58] sm:$0xf] %v713
        %v955 = vld [vmem:[%s899 + $0x5c] sm:$0x1]
        %v956 = vsel %vm386, %v714, %v955
        %957 = vst [vmem:[%s899 + $0x5c] sm:$0x1] %v956
        %v958 = vld [vmem:[%s899 + $0x60] sm:$0xf]
        %v959 = vsel %vm901, %v721, %v958
        %960 = vst [vmem:[%s899 + $0x60] sm:$0xf] %v959
        %961 = vst [vmem:[%s899 + $0x64] sm:$0xf] %v730
        %v962 = vld [vmem:[%s899 + $0x68] sm:$0x1]
        %v963 = vsel %vm386, %v731, %v962
        %964 = vst [vmem:[%s899 + $0x68] sm:$0x1] %v963
        %v965 = vld [vmem:[%s899 + $0x6c] sm:$0xf]
        %v966 = vsel %vm901, %v738, %v965
        %967 = vst [vmem:[%s899 + $0x6c] sm:$0xf] %v966
        %968 = vst [vmem:[%s899 + $0x70] sm:$0xf] %v747
        %v969 = vld [vmem:[%s899 + $0x74] sm:$0x1]
        %v970 = vsel %vm386, %v748, %v969
        %971 = vst [vmem:[%s899 + $0x74] sm:$0x1] %v970
        %v972 = vld [vmem:[%s899 + $0x78] sm:$0xf]
        %v973 = vsel %vm901, %v755, %v972
        %974 = vst [vmem:[%s899 + $0x78] sm:$0xf] %v973
        %975 = vst [vmem:[%s899 + $0x7c] sm:$0xf] %v764
        %v976 = vld [vmem:[%s899 + $0x80] sm:$0x1]
        %v977 = vsel %vm386, %v765, %v976
        %978 = vst [vmem:[%s899 + $0x80] sm:$0x1] %v977
        %v979 = vld [vmem:[%s899 + $0x84] sm:$0xf]
        %v980 = vsel %vm901, %v772, %v979
        %981 = vst [vmem:[%s899 + $0x84] sm:$0xf] %v980
        %982 = vst [vmem:[%s899 + $0x88] sm:$0xf] %v781
        %v983 = vld [vmem:[%s899 + $0x8c] sm:$0x1]
        %v984 = vsel %vm386, %v782, %v983
        %985 = vst [vmem:[%s899 + $0x8c] sm:$0x1] %v984
        %v986 = vld [vmem:[%s899 + $0x90] sm:$0xf]
        %v987 = vsel %vm901, %v789, %v986
        %988 = vst [vmem:[%s899 + $0x90] sm:$0xf] %v987
        %989 = vst [vmem:[%s899 + $0x94] sm:$0xf] %v798
        %v990 = vld [vmem:[%s899 + $0x98] sm:$0x1]
        %v991 = vsel %vm386, %v799, %v990
        %992 = vst [vmem:[%s899 + $0x98] sm:$0x1] %v991
        %v993 = vld [vmem:[%s899 + $0x9c] sm:$0xf]
        %v994 = vsel %vm901, %v806, %v993
        %995 = vst [vmem:[%s899 + $0x9c] sm:$0xf] %v994
        %996 = vst [vmem:[%s899 + $0xa0] sm:$0xf] %v815
        %v997 = vld [vmem:[%s899 + $0xa4] sm:$0x1]
        %v998 = vsel %vm386, %v816, %v997
        %999 = vst [vmem:[%s899 + $0xa4] sm:$0x1] %v998
        %v1000 = vld [vmem:[%s899 + $0xa8] sm:$0xf]
        %v1001 = vsel %vm901, %v823, %v1000
        %1002 = vst [vmem:[%s899 + $0xa8] sm:$0xf] %v1001
        %1003 = vst [vmem:[%s899 + $0xac] sm:$0xf] %v832
        %v1004 = vld [vmem:[%s899 + $0xb0] sm:$0x1]
        %v1005 = vsel %vm386, %v833, %v1004
        %1006 = vst [vmem:[%s899 + $0xb0] sm:$0x1] %v1005
        %v1007 = vld [vmem:[%s899 + $0xb4] sm:$0xf]
        %v1008 = vsel %vm901, %v840, %v1007
        %1009 = vst [vmem:[%s899 + $0xb4] sm:$0xf] %v1008
        %1010 = vst [vmem:[%s899 + $0xb8] sm:$0xf] %v849
        %v1011 = vld [vmem:[%s899 + $0xbc] sm:$0x1]
        %v1012 = vsel %vm386, %v850, %v1011
        %1013 = vst [vmem:[%s899 + $0xbc] sm:$0x1] %v1012
        %1014 = vst [vmem:[#allocation3] sm:$0xff] 0.0
        %1015 = vst [vmem:[#allocation3 + $0x8] sm:$0xff] 0.0
        %1016 = vst [vmem:[#allocation3 + $0x10] sm:$0xff] 0.0
        %1017 = vst [vmem:[#allocation3 + $0x18] sm:$0xff] 0.0
        %1018 = vst [vmem:[#allocation3 + $0x20] sm:$0xff] 0.0
        %1019 = vst [vmem:[#allocation3 + $0x28] sm:$0xff] 0.0
        %1020 = vst [vmem:[#allocation3 + $0x30] sm:$0xff] 0.0
        %1021 = vst [vmem:[#allocation3 + $0x38] sm:$0xff] 0.0
        %1022 = vst [vmem:[#allocation3 + $0x40] sm:$0xff] 0.0
        %1023 = vst [vmem:[#allocation3 + $0x48] sm:$0xff] 0.0
        %1024 = vst [vmem:[#allocation3 + $0x50] sm:$0xff] 0.0
        %1025 = vst [vmem:[#allocation3 + $0x58] sm:$0xff] 0.0
        %1026 = vst [vmem:[#allocation3 + $0x60] sm:$0xff] 0.0
        %1027 = vst [vmem:[#allocation3 + $0x68] sm:$0xff] 0.0
        %1028 = vst [vmem:[#allocation3 + $0x70] sm:$0xff] 0.0
        %1029 = vst [vmem:[#allocation3 + $0x78] sm:$0xff] 0.0
        %1030 = vst [vmem:[#allocation3 + $0x80] sm:$0xff] 0.0
        %1031 = vst [vmem:[#allocation3 + $0x88] sm:$0xff] 0.0
        %1032 = vst [vmem:[#allocation3 + $0x90] sm:$0xff] 0.0
        %1033 = vst [vmem:[#allocation3 + $0x98] sm:$0xff] 0.0
        %1034 = vst [vmem:[#allocation3 + $0xa0] sm:$0xff] 0.0
        %1035 = vst [vmem:[#allocation3 + $0xa8] sm:$0xff] 0.0
        %1036 = vst [vmem:[#allocation3 + $0xb0] sm:$0xff] 0.0
        %1037 = vst [vmem:[#allocation3 + $0xb8] sm:$0xff] 0.0
        %1038 = vst [vmem:[#allocation3 + $0xc0] sm:$0xff] 0.0
        %1039 = vst [vmem:[#allocation3 + $0xc8] sm:$0xff] 0.0
        %1040 = vst [vmem:[#allocation3 + $0xd0] sm:$0xff] 0.0
        %1041 = vst [vmem:[#allocation3 + $0xd8] sm:$0xff] 0.0
        %1042 = vst [vmem:[#allocation3 + $0xe0] sm:$0xff] 0.0
        %1043 = vst [vmem:[#allocation3 + $0xe8] sm:$0xff] 0.0
        %1044 = vst [vmem:[#allocation3 + $0xf0] sm:$0xff] 0.0
        %1045 = vst [vmem:[#allocation3 + $0xf8] sm:$0xff] 0.0
        %v1046 = vld [vmem:[#allocation2] sm:$0xf]
        %v1047 = vld [vmem:[#allocation2 + $0x4] sm:$0xf]
        %v1048 = vld [vmem:[#allocation2 + $0xc] sm:$0xf]
        %v1049 = vld [vmem:[#allocation2 + $0x10] sm:$0xf]
        %v1050 = vld [vmem:[#allocation2 + $0x18] sm:$0xf]
        %v1051 = vld [vmem:[#allocation2 + $0x1c] sm:$0xf]
        %v1052 = vld [vmem:[#allocation2 + $0x24] sm:$0xf]
        %v1053 = vld [vmem:[#allocation2 + $0x28] sm:$0xf]
        %v1054 = vld [vmem:[#allocation2 + $0x30] sm:$0xf]
        %v1055 = vld [vmem:[#allocation2 + $0x34] sm:$0xf]
        %v1056 = vld [vmem:[#allocation2 + $0x3c] sm:$0xf]
        %v1057 = vld [vmem:[#allocation2 + $0x40] sm:$0xf]
        %v1058 = vld [vmem:[#allocation2 + $0x48] sm:$0xf]
        %v1059 = vld [vmem:[#allocation2 + $0x4c] sm:$0xf]
        %v1060 = vld [vmem:[#allocation2 + $0x54] sm:$0xf]
        %v1061 = vld [vmem:[#allocation2 + $0x58] sm:$0xf]
        %v1062 = vld [vmem:[#allocation2 + $0x60] sm:$0xf]
        %v1063 = vld [vmem:[#allocation2 + $0x64] sm:$0xf]
        %v1064 = vld [vmem:[#allocation2 + $0x6c] sm:$0xf]
        %v1065 = vld [vmem:[#allocation2 + $0x70] sm:$0xf]
        %v1066 = vld [vmem:[#allocation2 + $0x78] sm:$0xf]
        %v1067 = vld [vmem:[#allocation2 + $0x7c] sm:$0xf]
        %v1068 = vld [vmem:[#allocation2 + $0x84] sm:$0xf]
        %v1069 = vld [vmem:[#allocation2 + $0x88] sm:$0xf]
        %v1070 = vld [vmem:[#allocation2 + $0x90] sm:$0xf]
        %v1071 = vld [vmem:[#allocation2 + $0x94] sm:$0xf]
        %v1072 = vld [vmem:[#allocation2 + $0x9c] sm:$0xf]
        %v1073 = vld [vmem:[#allocation2 + $0xa0] sm:$0xf]
        %v1074 = vld [vmem:[#allocation2 + $0xa8] sm:$0xf]
        %v1075 = vld [vmem:[#allocation2 + $0xac] sm:$0xf]
        %v1076 = vld [vmem:[#allocation2 + $0xb4] sm:$0xf]
        %v1077 = vld [vmem:[#allocation2 + $0xb8] sm:$0xf]
        %v1078 = vld [vmem:[#allocation3] sm:$0xff]
        %v1079 = vld [vmem:[#allocation3 + $0x8] sm:$0xff]
        %v1080 = vld [vmem:[#allocation3 + $0x10] sm:$0xff]
        %v1081 = vld [vmem:[#allocation3 + $0x18] sm:$0xff]
        %v1082 = vld [vmem:[#allocation3 + $0x20] sm:$0xff]
        %v1083 = vld [vmem:[#allocation3 + $0x28] sm:$0xff]
        %v1084 = vld [vmem:[#allocation3 + $0x30] sm:$0xff]
        %v1085 = vld [vmem:[#allocation3 + $0x38] sm:$0xff]
        %v1086 = vld [vmem:[#allocation3 + $0x40] sm:$0xff]
        %v1087 = vld [vmem:[#allocation3 + $0x48] sm:$0xff]
        %v1088 = vld [vmem:[#allocation3 + $0x50] sm:$0xff]
        %v1089 = vld [vmem:[#allocation3 + $0x58] sm:$0xff]
        %v1090 = vld [vmem:[#allocation3 + $0x60] sm:$0xff]
        %v1091 = vld [vmem:[#allocation3 + $0x68] sm:$0xff]
        %v1092 = vld [vmem:[#allocation3 + $0x70] sm:$0xff]
        %v1093 = vld [vmem:[#allocation3 + $0x78] sm:$0xff]
        %v1094 = vld [vmem:[#allocation3 + $0x80] sm:$0xff]
        %v1095 = vld [vmem:[#allocation3 + $0x88] sm:$0xff]
        %v1096 = vld [vmem:[#allocation3 + $0x90] sm:$0xff]
        %v1097 = vld [vmem:[#allocation3 + $0x98] sm:$0xff]
        %v1098 = vld [vmem:[#allocation3 + $0xa0] sm:$0xff]
        %v1099 = vld [vmem:[#allocation3 + $0xa8] sm:$0xff]
        %v1100 = vld [vmem:[#allocation3 + $0xb0] sm:$0xff]
        %v1101 = vld [vmem:[#allocation3 + $0xb8] sm:$0xff]
        %v1102 = vld [vmem:[#allocation3 + $0xc0] sm:$0xff]
        %v1103 = vld [vmem:[#allocation3 + $0xc8] sm:$0xff]
        %v1104 = vld [vmem:[#allocation3 + $0xd0] sm:$0xff]
        %v1105 = vld [vmem:[#allocation3 + $0xd8] sm:$0xff]
        %v1106 = vld [vmem:[#allocation3 + $0xe0] sm:$0xff]
        %v1107 = vld [vmem:[#allocation3 + $0xe8] sm:$0xff]
        %v1108 = vld [vmem:[#allocation3 + $0xf0] sm:$0xff]
        %v1109 = vld [vmem:[#allocation3 + $0xf8] sm:$0xff]
        %v1110 = vld [vmem:[#allocation7] sm:$0xf]
        %v1111 = vld [vmem:[#allocation7 + $0x4] sm:$0xf]
        %v1112 = vld [vmem:[#allocation7 + $0x8] sm:$0xf]
        %v1113 = vld [vmem:[#allocation7 + $0xc] sm:$0xf]
        %v1114 = vld [vmem:[#allocation7 + $0x10] sm:$0xf]
        %v1115 = vld [vmem:[#allocation7 + $0x14] sm:$0xf]
        %v1116 = vld [vmem:[#allocation7 + $0x18] sm:$0xf]
        %v1117 = vld [vmem:[#allocation7 + $0x1c] sm:$0xf]
        %v1118 = vld [vmem:[#allocation7 + $0x20] sm:$0xf]
        %v1119 = vld [vmem:[#allocation7 + $0x24] sm:$0xf]
        %v1120 = vld [vmem:[#allocation7 + $0x28] sm:$0xf]
        %v1121 = vld [vmem:[#allocation7 + $0x2c] sm:$0xf]
        %v1122 = vld [vmem:[#allocation7 + $0x30] sm:$0xf]
        %v1123 = vld [vmem:[#allocation7 + $0x34] sm:$0xf]
        %v1124 = vld [vmem:[#allocation7 + $0x38] sm:$0xf]
        %v1125 = vld [vmem:[#allocation7 + $0x3c] sm:$0xf]
        %v1158 = vunpack.c.l.b16 %v1046
        %v1159 = vunpack.c.l.b16 %v1047
        %v1160 = vunpack.c.l.b16 %v1048
        %v1161 = vunpack.c.l.b16 %v1049
        %v1162 = vunpack.c.l.b16 %v1050
        %v1163 = vunpack.c.l.b16 %v1051
        %v1164 = vunpack.c.l.b16 %v1052
        %v1165 = vunpack.c.l.b16 %v1053
        %v1166 = vunpack.c.l.b16 %v1054
        %v1167 = vunpack.c.l.b16 %v1055
        %v1168 = vunpack.c.l.b16 %v1056
        %v1169 = vunpack.c.l.b16 %v1057
        %v1170 = vunpack.c.l.b16 %v1058
        %v1171 = vunpack.c.l.b16 %v1059
        %v1172 = vunpack.c.l.b16 %v1060
        %v1173 = vunpack.c.l.b16 %v1061
        %v1174 = vunpack.c.l.b16 %v1062
        %v1175 = vunpack.c.l.b16 %v1063
        %v1176 = vunpack.c.l.b16 %v1064
        %v1177 = vunpack.c.l.b16 %v1065
        %v1178 = vunpack.c.l.b16 %v1066
        %v1179 = vunpack.c.l.b16 %v1067
        %v1180 = vunpack.c.l.b16 %v1068
        %v1181 = vunpack.c.l.b16 %v1069
        %v1182 = vunpack.c.l.b16 %v1070
        %v1183 = vunpack.c.l.b16 %v1071
        %v1184 = vunpack.c.l.b16 %v1072
        %v1185 = vunpack.c.l.b16 %v1073
        %v1186 = vunpack.c.l.b16 %v1074
        %v1187 = vunpack.c.l.b16 %v1075
        %v1188 = vunpack.c.l.b16 %v1076
        %v1189 = vunpack.c.l.b16 %v1077
        %v1190 = vpack.c.b16 %v1159, %v1158
        %v1191 = vpack.c.b16 %v1161, %v1160
        %v1192 = vpack.c.b16 %v1163, %v1162
        %v1193 = vpack.c.b16 %v1165, %v1164
        %v1194 = vpack.c.b16 %v1167, %v1166
        %v1195 = vpack.c.b16 %v1169, %v1168
        %v1196 = vpack.c.b16 %v1171, %v1170
        %v1197 = vpack.c.b16 %v1173, %v1172
        %v1198 = vpack.c.b16 %v1175, %v1174
        %v1199 = vpack.c.b16 %v1177, %v1176
        %v1200 = vpack.c.b16 %v1179, %v1178
        %v1201 = vpack.c.b16 %v1181, %v1180
        %v1202 = vpack.c.b16 %v1183, %v1182
        %v1203 = vpack.c.b16 %v1185, %v1184
        %v1204 = vpack.c.b16 %v1187, %v1186
        %v1205 = vpack.c.b16 %v1189, %v1188
        %v1238 = vunpack.c.l.b16 %v1110
        %v1239 = vunpack.c.l.b16 %v1111
        %v1240 = vunpack.c.l.b16 %v1112
        %v1241 = vunpack.c.l.b16 %v1113
        %v1242 = vunpack.c.l.b16 %v1114
        %v1243 = vunpack.c.l.b16 %v1115
        %v1244 = vunpack.c.l.b16 %v1116
        %v1245 = vunpack.c.l.b16 %v1117
        %v1246 = vunpack.c.l.b16 %v1118
        %v1247 = vunpack.c.l.b16 %v1119
        %v1248 = vunpack.c.l.b16 %v1120
        %v1249 = vunpack.c.l.b16 %v1121
        %v1250 = vunpack.c.l.b16 %v1122
        %v1251 = vunpack.c.l.b16 %v1123
        %v1252 = vunpack.c.l.b16 %v1124
        %v1253 = vunpack.c.l.b16 %v1125
        %v1254 = vpack.c.b16 %v1239, %v1238
        %v1255 = vpack.c.b16 %v1241, %v1240
        %v1256 = vpack.c.b16 %v1243, %v1242
        %v1257 = vpack.c.b16 %v1245, %v1244
        %v1258 = vpack.c.b16 %v1247, %v1246
        %v1259 = vpack.c.b16 %v1249, %v1248
        %v1260 = vpack.c.b16 %v1251, %v1250
        %v1261 = vpack.c.b16 %v1253, %v1252
        %1270 = vmatprep.subr.bf16.mxu0 0
        %1271 = vmatpush1.bf16.msra.mxu0 %v1254
        %1272 = vmatprep.subr.bf16.mxu0 0
        %1273 = vmatpush1.bf16.msra.mxu0 %v1255
        %1274 = vmatprep.subr.bf16.mxu0 0
        %1275 = vmatpush1.bf16.msra.mxu0 %v1256
        %1276 = vmatprep.subr.bf16.mxu0 0
        %1277 = vmatpush1.bf16.msra.mxu0 %v1257
        %1278 = vmatprep.subr.bf16.mxu0 0
        %1279 = vmatpush1.bf16.msra.mxu0 %v1258
        %1280 = vmatprep.subr.bf16.mxu0 0
        %1281 = vmatpush1.bf16.msra.mxu0 %v1259
        %1282 = vmatprep.subr.bf16.mxu0 0
        %1283 = vmatpush1.bf16.msra.mxu0 %v1260
        %1284 = vmatprep.subr.bf16.mxu0 0
        %1285 = vmatpush1.bf16.msra.mxu0 %v1261
        %1286 = vmatprep.subr.bf16.mxu0 0
        %1287 = vmatpush1.bf16.msra.mxu0 0
        %1288 = vmatprep.subr.bf16.mxu0 0
        %1289 = vmatpush1.bf16.msra.mxu0 0
        %1290 = vmatprep.subr.bf16.mxu0 0
        %1291 = vmatpush1.bf16.msra.mxu0 0
        %1292 = vmatprep.subr.bf16.mxu0 0
        %1293 = vmatpush1.bf16.msra.mxu0 0
        %1294 = vmatprep.subr.bf16.mxu0 0
        %1295 = vmatpush1.bf16.msra.mxu0 0
        %1296 = vmatprep.subr.bf16.mxu0 0
        %1297 = vmatpush1.bf16.msra.mxu0 0
        %1298 = vmatprep.subr.bf16.mxu0 0
        %1299 = vmatpush1.bf16.msra.mxu0 0
        %1300 = vmatprep.subr.bf16.mxu0 0
        %1301 = vmatpush1.bf16.msra.mxu0 0
        %1302 = vmatprep.mubr.bf16.mxu0 0
        %1303 = vmatmul.mubr.bf16.gmra.mrb[0].mxu0 %v1190
        %v1304 = vpop.f32.mrb[0].mxu0
        %v1305 = vadd.f32 0.0, %v1304
        %v1306 = vpop.f32.mrb[0].mxu0
        %v1307 = vpop.f32.mrb[0].mxu0
        %v1308 = vadd.f32 0.0, %v1307
        %v1309 = vpop.f32.mrb[0].mxu0
        %1310 = vmatprep.mubr.bf16.mxu0 0
        %1311 = vmatmul.mubr.bf16.gmra.mrb[0].mxu0 %v1191
        %v1312 = vpop.f32.mrb[0].mxu0
        %v1313 = vadd.f32 0.0, %v1312
        %v1314 = vpop.f32.mrb[0].mxu0
        %v1315 = vpop.f32.mrb[0].mxu0
        %v1316 = vadd.f32 0.0, %v1315
        %v1317 = vpop.f32.mrb[0].mxu0
        %1318 = vmatprep.mubr.bf16.mxu0 0
        %1319 = vmatmul.mubr.bf16.gmra.mrb[0].mxu0 %v1192
        %v1320 = vpop.f32.mrb[0].mxu0
        %v1321 = vadd.f32 0.0, %v1320
        %v1322 = vpop.f32.mrb[0].mxu0
        %v1323 = vpop.f32.mrb[0].mxu0
        %v1324 = vadd.f32 0.0, %v1323
        %v1325 = vpop.f32.mrb[0].mxu0
        %1326 = vmatprep.mubr.bf16.mxu0 0
        %1327 = vmatmul.mubr.bf16.gmra.mrb[0].mxu0 %v1193
        %v1328 = vpop.f32.mrb[0].mxu0
        %v1329 = vadd.f32 0.0, %v1328
        %v1330 = vpop.f32.mrb[0].mxu0
        %v1331 = vpop.f32.mrb[0].mxu0
        %v1332 = vadd.f32 0.0, %v1331
        %v1333 = vpop.f32.mrb[0].mxu0
        %1334 = vmatprep.mubr.bf16.mxu0 0
        %1335 = vmatmul.mubr.bf16.gmra.mrb[0].mxu0 %v1194
        %v1336 = vpop.f32.mrb[0].mxu0
        %v1337 = vadd.f32 0.0, %v1336
        %v1338 = vpop.f32.mrb[0].mxu0
        %v1339 = vpop.f32.mrb[0].mxu0
        %v1340 = vadd.f32 0.0, %v1339
        %v1341 = vpop.f32.mrb[0].mxu0
        %1342 = vmatprep.mubr.bf16.mxu0 0
        %1343 = vmatmul.mubr.bf16.gmra.mrb[0].mxu0 %v1195
        %v1344 = vpop.f32.mrb[0].mxu0
        %v1345 = vadd.f32 0.0, %v1344
        %v1346 = vpop.f32.mrb[0].mxu0
        %v1347 = vpop.f32.mrb[0].mxu0
        %v1348 = vadd.f32 0.0, %v1347
        %v1349 = vpop.f32.mrb[0].mxu0
        %1350 = vmatprep.mubr.bf16.mxu0 0
        %1351 = vmatmul.mubr.bf16.gmra.mrb[0].mxu0 %v1196
        %v1352 = vpop.f32.mrb[0].mxu0
        %v1353 = vadd.f32 0.0, %v1352
        %v1354 = vpop.f32.mrb[0].mxu0
        %v1355 = vpop.f32.mrb[0].mxu0
        %v1356 = vadd.f32 0.0, %v1355
        %v1357 = vpop.f32.mrb[0].mxu0
        %1358 = vmatprep.mubr.bf16.mxu0 0
        %1359 = vmatmul.mubr.bf16.gmra.mrb[0].mxu0 %v1197
        %v1360 = vpop.f32.mrb[0].mxu0
        %v1361 = vadd.f32 0.0, %v1360
        %v1362 = vpop.f32.mrb[0].mxu0
        %v1363 = vpop.f32.mrb[0].mxu0
        %v1364 = vadd.f32 0.0, %v1363
        %v1365 = vpop.f32.mrb[0].mxu0
        %1366 = vmatprep.mubr.bf16.mxu0 0
        %1367 = vmatmul.mubr.bf16.gmra.mrb[0].mxu0 %v1198
        %v1368 = vpop.f32.mrb[0].mxu0
        %v1369 = vadd.f32 0.0, %v1368
        %v1370 = vpop.f32.mrb[0].mxu0
        %v1371 = vpop.f32.mrb[0].mxu0
        %v1372 = vadd.f32 0.0, %v1371
        %v1373 = vpop.f32.mrb[0].mxu0
        %1374 = vmatprep.mubr.bf16.mxu0 0
        %1375 = vmatmul.mubr.bf16.gmra.mrb[0].mxu0 %v1199
        %v1376 = vpop.f32.mrb[0].mxu0
        %v1377 = vadd.f32 0.0, %v1376
        %v1378 = vpop.f32.mrb[0].mxu0
        %v1379 = vpop.f32.mrb[0].mxu0
        %v1380 = vadd.f32 0.0, %v1379
        %v1381 = vpop.f32.mrb[0].mxu0
        %1382 = vmatprep.mubr.bf16.mxu0 0
        %1383 = vmatmul.mubr.bf16.gmra.mrb[0].mxu0 %v1200
        %v1384 = vpop.f32.mrb[0].mxu0
        %v1385 = vadd.f32 0.0, %v1384
        %v1386 = vpop.f32.mrb[0].mxu0
        %v1387 = vpop.f32.mrb[0].mxu0
        %v1388 = vadd.f32 0.0, %v1387
        %v1389 = vpop.f32.mrb[0].mxu0
        %1390 = vmatprep.mubr.bf16.mxu0 0
        %1391 = vmatmul.mubr.bf16.gmra.mrb[0].mxu0 %v1201
        %v1392 = vpop.f32.mrb[0].mxu0
        %v1393 = vadd.f32 0.0, %v1392
        %v1394 = vpop.f32.mrb[0].mxu0
        %v1395 = vpop.f32.mrb[0].mxu0
        %v1396 = vadd.f32 0.0, %v1395
        %v1397 = vpop.f32.mrb[0].mxu0
        %1398 = vmatprep.mubr.bf16.mxu0 0
        %1399 = vmatmul.mubr.bf16.gmra.mrb[0].mxu0 %v1202
        %v1400 = vpop.f32.mrb[0].mxu0
        %v1401 = vadd.f32 0.0, %v1400
        %v1402 = vpop.f32.mrb[0].mxu0
        %v1403 = vpop.f32.mrb[0].mxu0
        %v1404 = vadd.f32 0.0, %v1403
        %v1405 = vpop.f32.mrb[0].mxu0
        %1406 = vmatprep.mubr.bf16.mxu0 0
        %1407 = vmatmul.mubr.bf16.gmra.mrb[0].mxu0 %v1203
        %v1408 = vpop.f32.mrb[0].mxu0
        %v1409 = vadd.f32 0.0, %v1408
        %v1410 = vpop.f32.mrb[0].mxu0
        %v1411 = vpop.f32.mrb[0].mxu0
        %v1412 = vadd.f32 0.0, %v1411
        %v1413 = vpop.f32.mrb[0].mxu0
        %1414 = vmatprep.mubr.bf16.mxu0 0
        %1415 = vmatmul.mubr.bf16.gmra.mrb[0].mxu0 %v1204
        %v1416 = vpop.f32.mrb[0].mxu0
        %v1417 = vadd.f32 0.0, %v1416
        %v1418 = vpop.f32.mrb[0].mxu0
        %v1419 = vpop.f32.mrb[0].mxu0
        %v1420 = vadd.f32 0.0, %v1419
        %v1421 = vpop.f32.mrb[0].mxu0
        %1422 = vmatprep.mubr.bf16.mxu0 0
        %1423 = vmatmul.mubr.bf16.gmra.mrb[0].mxu0 %v1205
        %v1424 = vpop.f32.mrb[0].mxu0
        %v1425 = vadd.f32 0.0, %v1424
        %v1426 = vpop.f32.mrb[0].mxu0
        %v1427 = vpop.f32.mrb[0].mxu0
        %v1428 = vadd.f32 0.0, %v1427
        %v1429 = vpop.f32.mrb[0].mxu0
        %1430 = vdwg.mxu0
        %v1431 = vadd.f32 %v1078, %v1305
        %v1432 = vadd.f32 %v1079, %v1308
        %v1433 = vadd.f32 %v1080, %v1313
        %v1434 = vadd.f32 %v1081, %v1316
        %v1435 = vadd.f32 %v1082, %v1321
        %v1436 = vadd.f32 %v1083, %v1324
        %v1437 = vadd.f32 %v1084, %v1329
        %v1438 = vadd.f32 %v1085, %v1332
        %v1439 = vadd.f32 %v1086, %v1337
        %v1440 = vadd.f32 %v1087, %v1340
        %v1441 = vadd.f32 %v1088, %v1345
        %v1442 = vadd.f32 %v1089, %v1348
        %v1443 = vadd.f32 %v1090, %v1353
        %v1444 = vadd.f32 %v1091, %v1356
        %v1445 = vadd.f32 %v1092, %v1361
        %v1446 = vadd.f32 %v1093, %v1364
        %v1447 = vadd.f32 %v1094, %v1369
        %v1448 = vadd.f32 %v1095, %v1372
        %v1449 = vadd.f32 %v1096, %v1377
        %v1450 = vadd.f32 %v1097, %v1380
        %v1451 = vadd.f32 %v1098, %v1385
        %v1452 = vadd.f32 %v1099, %v1388
        %v1453 = vadd.f32 %v1100, %v1393
        %v1454 = vadd.f32 %v1101, %v1396
        %v1455 = vadd.f32 %v1102, %v1401
        %v1456 = vadd.f32 %v1103, %v1404
        %v1457 = vadd.f32 %v1104, %v1409
        %v1458 = vadd.f32 %v1105, %v1412
        %v1459 = vadd.f32 %v1106, %v1417
        %v1460 = vadd.f32 %v1107, %v1420
        %v1461 = vadd.f32 %v1108, %v1425
        %v1462 = vadd.f32 %v1109, %v1428
        %1463 = vst [vmem:[#allocation3] sm:$0xff] %v1431
        %1464 = vst [vmem:[#allocation3 + $0x8] sm:$0xff] %v1432
        %1465 = vst [vmem:[#allocation3 + $0x10] sm:$0xff] %v1433
        %1466 = vst [vmem:[#allocation3 + $0x18] sm:$0xff] %v1434
        %1467 = vst [vmem:[#allocation3 + $0x20] sm:$0xff] %v1435
        %1468 = vst [vmem:[#allocation3 + $0x28] sm:$0xff] %v1436
        %1469 = vst [vmem:[#allocation3 + $0x30] sm:$0xff] %v1437
        %1470 = vst [vmem:[#allocation3 + $0x38] sm:$0xff] %v1438
        %1471 = vst [vmem:[#allocation3 + $0x40] sm:$0xff] %v1439
        %1472 = vst [vmem:[#allocation3 + $0x48] sm:$0xff] %v1440
        %1473 = vst [vmem:[#allocation3 + $0x50] sm:$0xff] %v1441
        %1474 = vst [vmem:[#allocation3 + $0x58] sm:$0xff] %v1442
        %1475 = vst [vmem:[#allocation3 + $0x60] sm:$0xff] %v1443
        %1476 = vst [vmem:[#allocation3 + $0x68] sm:$0xff] %v1444
        %1477 = vst [vmem:[#allocation3 + $0x70] sm:$0xff] %v1445
        %1478 = vst [vmem:[#allocation3 + $0x78] sm:$0xff] %v1446
        %1479 = vst [vmem:[#allocation3 + $0x80] sm:$0xff] %v1447
        %1480 = vst [vmem:[#allocation3 + $0x88] sm:$0xff] %v1448
        %1481 = vst [vmem:[#allocation3 + $0x90] sm:$0xff] %v1449
        %1482 = vst [vmem:[#allocation3 + $0x98] sm:$0xff] %v1450
        %1483 = vst [vmem:[#allocation3 + $0xa0] sm:$0xff] %v1451
        %1484 = vst [vmem:[#allocation3 + $0xa8] sm:$0xff] %v1452
        %1485 = vst [vmem:[#allocation3 + $0xb0] sm:$0xff] %v1453
        %1486 = vst [vmem:[#allocation3 + $0xb8] sm:$0xff] %v1454
        %1487 = vst [vmem:[#allocation3 + $0xc0] sm:$0xff] %v1455
        %1488 = vst [vmem:[#allocation3 + $0xc8] sm:$0xff] %v1456
        %1489 = vst [vmem:[#allocation3 + $0xd0] sm:$0xff] %v1457
        %1490 = vst [vmem:[#allocation3 + $0xd8] sm:$0xff] %v1458
        %1491 = vst [vmem:[#allocation3 + $0xe0] sm:$0xff] %v1459
        %1492 = vst [vmem:[#allocation3 + $0xe8] sm:$0xff] %v1460
        %1493 = vst [vmem:[#allocation3 + $0xf0] sm:$0xff] %v1461
        %1494 = vst [vmem:[#allocation3 + $0xf8] sm:$0xff] %v1462
        %v1495 = vld [vmem:[#allocation2] sm:$0xf]
        %v1496 = vld [vmem:[#allocation2 + $0x4] sm:$0xf]
        %v1497 = vld [vmem:[#allocation2 + $0x8] sm:$0x1]
        %v1498 = vld [vmem:[#allocation2 + $0xc] sm:$0xf]
        %v1499 = vld [vmem:[#allocation2 + $0x10] sm:$0xf]
        %v1500 = vld [vmem:[#allocation2 + $0x14] sm:$0x1]
        %v1501 = vld [vmem:[#allocation2 + $0x18] sm:$0xf]
        %v1502 = vld [vmem:[#allocation2 + $0x1c] sm:$0xf]
        %v1503 = vld [vmem:[#allocation2 + $0x20] sm:$0x1]
        %v1504 = vld [vmem:[#allocation2 + $0x24] sm:$0xf]
        %v1505 = vld [vmem:[#allocation2 + $0x28] sm:$0xf]
        %v1506 = vld [vmem:[#allocation2 + $0x2c] sm:$0x1]
        %v1507 = vld [vmem:[#allocation2 + $0x30] sm:$0xf]
        %v1508 = vld [vmem:[#allocation2 + $0x34] sm:$0xf]
        %v1509 = vld [vmem:[#allocation2 + $0x38] sm:$0x1]
        %v1510 = vld [vmem:[#allocation2 + $0x3c] sm:$0xf]
        %v1511 = vld [vmem:[#allocation2 + $0x40] sm:$0xf]
        %v1512 = vld [vmem:[#allocation2 + $0x44] sm:$0x1]
        %v1513 = vld [vmem:[#allocation2 + $0x48] sm:$0xf]
        %v1514 = vld [vmem:[#allocation2 + $0x4c] sm:$0xf]
        %v1515 = vld [vmem:[#allocation2 + $0x50] sm:$0x1]
        %v1516 = vld [vmem:[#allocation2 + $0x54] sm:$0xf]
        %v1517 = vld [vmem:[#allocation2 + $0x58] sm:$0xf]
        %v1518 = vld [vmem:[#allocation2 + $0x5c] sm:$0x1]
        %v1519 = vld [vmem:[#allocation2 + $0x60] sm:$0xf]
        %v1520 = vld [vmem:[#allocation2 + $0x64] sm:$0xf]
        %v1521 = vld [vmem:[#allocation2 + $0x68] sm:$0x1]
        %v1522 = vld [vmem:[#allocation2 + $0x6c] sm:$0xf]
        %v1523 = vld [vmem:[#allocation2 + $0x70] sm:$0xf]
        %v1524 = vld [vmem:[#allocation2 + $0x74] sm:$0x1]
        %v1525 = vld [vmem:[#allocation2 + $0x78] sm:$0xf]
        %v1526 = vld [vmem:[#allocation2 + $0x7c] sm:$0xf]
        %v1527 = vld [vmem:[#allocation2 + $0x80] sm:$0x1]
        %v1528 = vld [vmem:[#allocation2 + $0x84] sm:$0xf]
        %v1529 = vld [vmem:[#allocation2 + $0x88] sm:$0xf]
        %v1530 = vld [vmem:[#allocation2 + $0x8c] sm:$0x1]
        %v1531 = vld [vmem:[#allocation2 + $0x90] sm:$0xf]
        %v1532 = vld [vmem:[#allocation2 + $0x94] sm:$0xf]
        %v1533 = vld [vmem:[#allocation2 + $0x98] sm:$0x1]
        %v1534 = vld [vmem:[#allocation2 + $0x9c] sm:$0xf]
        %v1535 = vld [vmem:[#allocation2 + $0xa0] sm:$0xf]
        %v1536 = vld [vmem:[#allocation2 + $0xa4] sm:$0x1]
        %v1537 = vld [vmem:[#allocation2 + $0xa8] sm:$0xf]
        %v1538 = vld [vmem:[#allocation2 + $0xac] sm:$0xf]
        %v1539 = vld [vmem:[#allocation2 + $0xb0] sm:$0x1]
        %v1540 = vld [vmem:[#allocation2 + $0xb4] sm:$0xf]
        %v1541 = vld [vmem:[#allocation2 + $0xb8] sm:$0xf]
        %v1542 = vld [vmem:[#allocation2 + $0xbc] sm:$0x1]
        %vm1543 = vsmask.f32 3328
        %vm1544 = vsmask.f32 7440
        %vm1545 = vmor %vm1543, %vm1544
        %v1547 = vshrl.u32 %v1495, 16
        %v1549 = vrot.slane %v1547, 4
        %v1550 = vshll.u32 %v1495, 16
        %v1552 = vrot.slane %v1550, 5
        %v1553 = vor.u32 %v1549, %v1552
        %v1554 = vrot.slane %v1553, 4
        %v1556 = vshll.u32 %v1496, 16
        %v1558 = vrot.slane %v1556, 5
        %v1559 = vsel %vm1545, %v1554, %v1558
        %v1560 = vshrl.u32 %v1496, 16
        %v1562 = vrot.slane %v1560, 4
        %v1563 = vor.u32 %v1562, %v1558
        %v1564 = vrot.slane %v1563, 4
        %v1566 = vshll.u32 %v1497, 16
        %v1568 = vrot.slane %v1566, 5
        %v1569 = vsel %vm1545, %v1564, %v1568
        %v1571 = vshrl.u32 %v1498, 16
        %v1573 = vrot.slane %v1571, 4
        %v1574 = vshll.u32 %v1498, 16
        %v1576 = vrot.slane %v1574, 5
        %v1577 = vor.u32 %v1573, %v1576
        %v1578 = vrot.slane %v1577, 4
        %v1580 = vshll.u32 %v1499, 16
        %v1582 = vrot.slane %v1580, 5
        %v1583 = vsel %vm1545, %v1578, %v1582
        %v1584 = vshrl.u32 %v1499, 16
        %v1586 = vrot.slane %v1584, 4
        %v1587 = vor.u32 %v1586, %v1582
        %v1588 = vrot.slane %v1587, 4
        %v1590 = vshll.u32 %v1500, 16
        %v1592 = vrot.slane %v1590, 5
        %v1593 = vsel %vm1545, %v1588, %v1592
        %v1595 = vshrl.u32 %v1501, 16
        %v1597 = vrot.slane %v1595, 4
        %v1598 = vshll.u32 %v1501, 16
        %v1600 = vrot.slane %v1598, 5
        %v1601 = vor.u32 %v1597, %v1600
        %v1602 = vrot.slane %v1601, 4
        %v1604 = vshll.u32 %v1502, 16
        %v1606 = vrot.slane %v1604, 5
        %v1607 = vsel %vm1545, %v1602, %v1606
        %v1608 = vshrl.u32 %v1502, 16
        %v1610 = vrot.slane %v1608, 4
        %v1611 = vor.u32 %v1610, %v1606
        %v1612 = vrot.slane %v1611, 4
        %v1614 = vshll.u32 %v1503, 16
        %v1616 = vrot.slane %v1614, 5
        %v1617 = vsel %vm1545, %v1612, %v1616
        %v1619 = vshrl.u32 %v1504, 16
        %v1621 = vrot.slane %v1619, 4
        %v1622 = vshll.u32 %v1504, 16
        %v1624 = vrot.slane %v1622, 5
        %v1625 = vor.u32 %v1621, %v1624
        %v1626 = vrot.slane %v1625, 4
        %v1628 = vshll.u32 %v1505, 16
        %v1630 = vrot.slane %v1628, 5
        %v1631 = vsel %vm1545, %v1626, %v1630
        %v1632 = vshrl.u32 %v1505, 16
        %v1634 = vrot.slane %v1632, 4
        %v1635 = vor.u32 %v1634, %v1630
        %v1636 = vrot.slane %v1635, 4
        %v1638 = vshll.u32 %v1506, 16
        %v1640 = vrot.slane %v1638, 5
        %v1641 = vsel %vm1545, %v1636, %v1640
        %v1643 = vshrl.u32 %v1507, 16
        %v1645 = vrot.slane %v1643, 4
        %v1646 = vshll.u32 %v1507, 16
        %v1648 = vrot.slane %v1646, 5
        %v1649 = vor.u32 %v1645, %v1648
        %v1650 = vrot.slane %v1649, 4
        %v1652 = vshll.u32 %v1508, 16
        %v1654 = vrot.slane %v1652, 5
        %v1655 = vsel %vm1545, %v1650, %v1654
        %v1656 = vshrl.u32 %v1508, 16
        %v1658 = vrot.slane %v1656, 4
        %v1659 = vor.u32 %v1658, %v1654
        %v1660 = vrot.slane %v1659, 4
        %v1662 = vshll.u32 %v1509, 16
        %v1664 = vrot.slane %v1662, 5
        %v1665 = vsel %vm1545, %v1660, %v1664
        %v1667 = vshrl.u32 %v1510, 16
        %v1669 = vrot.slane %v1667, 4
        %v1670 = vshll.u32 %v1510, 16
        %v1672 = vrot.slane %v1670, 5
        %v1673 = vor.u32 %v1669, %v1672
        %v1674 = vrot.slane %v1673, 4
        %v1676 = vshll.u32 %v1511, 16
        %v1678 = vrot.slane %v1676, 5
        %v1679 = vsel %vm1545, %v1674, %v1678
        %v1680 = vshrl.u32 %v1511, 16
        %v1682 = vrot.slane %v1680, 4
        %v1683 = vor.u32 %v1682, %v1678
        %v1684 = vrot.slane %v1683, 4
        %v1686 = vshll.u32 %v1512, 16
        %v1688 = vrot.slane %v1686, 5
        %v1689 = vsel %vm1545, %v1684, %v1688
        %v1691 = vshrl.u32 %v1513, 16
        %v1693 = vrot.slane %v1691, 4
        %v1694 = vshll.u32 %v1513, 16
        %v1696 = vrot.slane %v1694, 5
        %v1697 = vor.u32 %v1693, %v1696
        %v1698 = vrot.slane %v1697, 4
        %v1700 = vshll.u32 %v1514, 16
        %v1702 = vrot.slane %v1700, 5
        %v1703 = vsel %vm1545, %v1698, %v1702
        %v1704 = vshrl.u32 %v1514, 16
        %v1706 = vrot.slane %v1704, 4
        %v1707 = vor.u32 %v1706, %v1702
        %v1708 = vrot.slane %v1707, 4
        %v1710 = vshll.u32 %v1515, 16
        %v1712 = vrot.slane %v1710, 5
        %v1713 = vsel %vm1545, %v1708, %v1712
        %v1715 = vshrl.u32 %v1516, 16
        %v1717 = vrot.slane %v1715, 4
        %v1718 = vshll.u32 %v1516, 16
        %v1720 = vrot.slane %v1718, 5
        %v1721 = vor.u32 %v1717, %v1720
        %v1722 = vrot.slane %v1721, 4
        %v1724 = vshll.u32 %v1517, 16
        %v1726 = vrot.slane %v1724, 5
        %v1727 = vsel %vm1545, %v1722, %v1726
        %v1728 = vshrl.u32 %v1517, 16
        %v1730 = vrot.slane %v1728, 4
        %v1731 = vor.u32 %v1730, %v1726
        %v1732 = vrot.slane %v1731, 4
        %v1734 = vshll.u32 %v1518, 16
        %v1736 = vrot.slane %v1734, 5
        %v1737 = vsel %vm1545, %v1732, %v1736
        %v1739 = vshrl.u32 %v1519, 16
        %v1741 = vrot.slane %v1739, 4
        %v1742 = vshll.u32 %v1519, 16
        %v1744 = vrot.slane %v1742, 5
        %v1745 = vor.u32 %v1741, %v1744
        %v1746 = vrot.slane %v1745, 4
        %v1748 = vshll.u32 %v1520, 16
        %v1750 = vrot.slane %v1748, 5
        %v1751 = vsel %vm1545, %v1746, %v1750
        %v1752 = vshrl.u32 %v1520, 16
        %v1754 = vrot.slane %v1752, 4
        %v1755 = vor.u32 %v1754, %v1750
        %v1756 = vrot.slane %v1755, 4
        %v1758 = vshll.u32 %v1521, 16
        %v1760 = vrot.slane %v1758, 5
        %v1761 = vsel %vm1545, %v1756, %v1760
        %v1763 = vshrl.u32 %v1522, 16
        %v1765 = vrot.slane %v1763, 4
        %v1766 = vshll.u32 %v1522, 16
        %v1768 = vrot.slane %v1766, 5
        %v1769 = vor.u32 %v1765, %v1768
        %v1770 = vrot.slane %v1769, 4
        %v1772 = vshll.u32 %v1523, 16
        %v1774 = vrot.slane %v1772, 5
        %v1775 = vsel %vm1545, %v1770, %v1774
        %v1776 = vshrl.u32 %v1523, 16
        %v1778 = vrot.slane %v1776, 4
        %v1779 = vor.u32 %v1778, %v1774
        %v1780 = vrot.slane %v1779, 4
        %v1782 = vshll.u32 %v1524, 16
        %v1784 = vrot.slane %v1782, 5
        %v1785 = vsel %vm1545, %v1780, %v1784
        %v1787 = vshrl.u32 %v1525, 16
        %v1789 = vrot.slane %v1787, 4
        %v1790 = vshll.u32 %v1525, 16
        %v1792 = vrot.slane %v1790, 5
        %v1793 = vor.u32 %v1789, %v1792
        %v1794 = vrot.slane %v1793, 4
        %v1796 = vshll.u32 %v1526, 16
        %v1798 = vrot.slane %v1796, 5
        %v1799 = vsel %vm1545, %v1794, %v1798
        %v1800 = vshrl.u32 %v1526, 16
        %v1802 = vrot.slane %v1800, 4
        %v1803 = vor.u32 %v1802, %v1798
        %v1804 = vrot.slane %v1803, 4
        %v1806 = vshll.u32 %v1527, 16
        %v1808 = vrot.slane %v1806, 5
        %v1809 = vsel %vm1545, %v1804, %v1808
        %v1811 = vshrl.u32 %v1528, 16
        %v1813 = vrot.slane %v1811, 4
        %v1814 = vshll.u32 %v1528, 16
        %v1816 = vrot.slane %v1814, 5
        %v1817 = vor.u32 %v1813, %v1816
        %v1818 = vrot.slane %v1817, 4
        %v1820 = vshll.u32 %v1529, 16
        %v1822 = vrot.slane %v1820, 5
        %v1823 = vsel %vm1545, %v1818, %v1822
        %v1824 = vshrl.u32 %v1529, 16
        %v1826 = vrot.slane %v1824, 4
        %v1827 = vor.u32 %v1826, %v1822
        %v1828 = vrot.slane %v1827, 4
        %v1830 = vshll.u32 %v1530, 16
        %v1832 = vrot.slane %v1830, 5
        %v1833 = vsel %vm1545, %v1828, %v1832
        %v1835 = vshrl.u32 %v1531, 16
        %v1837 = vrot.slane %v1835, 4
        %v1838 = vshll.u32 %v1531, 16
        %v1840 = vrot.slane %v1838, 5
        %v1841 = vor.u32 %v1837, %v1840
        %v1842 = vrot.slane %v1841, 4
        %v1844 = vshll.u32 %v1532, 16
        %v1846 = vrot.slane %v1844, 5
        %v1847 = vsel %vm1545, %v1842, %v1846
        %v1848 = vshrl.u32 %v1532, 16
        %v1850 = vrot.slane %v1848, 4
        %v1851 = vor.u32 %v1850, %v1846
        %v1852 = vrot.slane %v1851, 4
        %v1854 = vshll.u32 %v1533, 16
        %v1856 = vrot.slane %v1854, 5
        %v1857 = vsel %vm1545, %v1852, %v1856
        %v1859 = vshrl.u32 %v1534, 16
        %v1861 = vrot.slane %v1859, 4
        %v1862 = vshll.u32 %v1534, 16
        %v1864 = vrot.slane %v1862, 5
        %v1865 = vor.u32 %v1861, %v1864
        %v1866 = vrot.slane %v1865, 4
        %v1868 = vshll.u32 %v1535, 16
        %v1870 = vrot.slane %v1868, 5
        %v1871 = vsel %vm1545, %v1866, %v1870
        %v1872 = vshrl.u32 %v1535, 16
        %v1874 = vrot.slane %v1872, 4
        %v1875 = vor.u32 %v1874, %v1870
        %v1876 = vrot.slane %v1875, 4
        %v1878 = vshll.u32 %v1536, 16
        %v1880 = vrot.slane %v1878, 5
        %v1881 = vsel %vm1545, %v1876, %v1880
        %v1883 = vshrl.u32 %v1537, 16
        %v1885 = vrot.slane %v1883, 4
        %v1886 = vshll.u32 %v1537, 16
        %v1888 = vrot.slane %v1886, 5
        %v1889 = vor.u32 %v1885, %v1888
        %v1890 = vrot.slane %v1889, 4
        %v1892 = vshll.u32 %v1538, 16
        %v1894 = vrot.slane %v1892, 5
        %v1895 = vsel %vm1545, %v1890, %v1894
        %v1896 = vshrl.u32 %v1538, 16
        %v1898 = vrot.slane %v1896, 4
        %v1899 = vor.u32 %v1898, %v1894
        %v1900 = vrot.slane %v1899, 4
        %v1902 = vshll.u32 %v1539, 16
        %v1904 = vrot.slane %v1902, 5
        %v1905 = vsel %vm1545, %v1900, %v1904
        %v1907 = vshrl.u32 %v1540, 16
        %v1909 = vrot.slane %v1907, 4
        %v1910 = vshll.u32 %v1540, 16
        %v1912 = vrot.slane %v1910, 5
        %v1913 = vor.u32 %v1909, %v1912
        %v1914 = vrot.slane %v1913, 4
        %v1916 = vshll.u32 %v1541, 16
        %v1918 = vrot.slane %v1916, 5
        %v1919 = vsel %vm1545, %v1914, %v1918
        %v1920 = vshrl.u32 %v1541, 16
        %v1922 = vrot.slane %v1920, 4
        %v1923 = vor.u32 %v1922, %v1918
        %v1924 = vrot.slane %v1923, 4
        %v1926 = vshll.u32 %v1542, 16
        %v1928 = vrot.slane %v1926, 5
        %v1929 = vsel %vm1545, %v1924, %v1928
        %v1930 = vld [vmem:[#allocation3] sm:$0xff]
        %v1931 = vld [vmem:[#allocation3 + $0x8] sm:$0xff]
        %v1932 = vld [vmem:[#allocation3 + $0x10] sm:$0xff]
        %v1933 = vld [vmem:[#allocation3 + $0x18] sm:$0xff]
        %v1934 = vld [vmem:[#allocation3 + $0x20] sm:$0xff]
        %v1935 = vld [vmem:[#allocation3 + $0x28] sm:$0xff]
        %v1936 = vld [vmem:[#allocation3 + $0x30] sm:$0xff]
        %v1937 = vld [vmem:[#allocation3 + $0x38] sm:$0xff]
        %v1938 = vld [vmem:[#allocation3 + $0x40] sm:$0xff]
        %v1939 = vld [vmem:[#allocation3 + $0x48] sm:$0xff]
        %v1940 = vld [vmem:[#allocation3 + $0x50] sm:$0xff]
        %v1941 = vld [vmem:[#allocation3 + $0x58] sm:$0xff]
        %v1942 = vld [vmem:[#allocation3 + $0x60] sm:$0xff]
        %v1943 = vld [vmem:[#allocation3 + $0x68] sm:$0xff]
        %v1944 = vld [vmem:[#allocation3 + $0x70] sm:$0xff]
        %v1945 = vld [vmem:[#allocation3 + $0x78] sm:$0xff]
        %v1946 = vld [vmem:[#allocation3 + $0x80] sm:$0xff]
        %v1947 = vld [vmem:[#allocation3 + $0x88] sm:$0xff]
        %v1948 = vld [vmem:[#allocation3 + $0x90] sm:$0xff]
        %v1949 = vld [vmem:[#allocation3 + $0x98] sm:$0xff]
        %v1950 = vld [vmem:[#allocation3 + $0xa0] sm:$0xff]
        %v1951 = vld [vmem:[#allocation3 + $0xa8] sm:$0xff]
        %v1952 = vld [vmem:[#allocation3 + $0xb0] sm:$0xff]
        %v1953 = vld [vmem:[#allocation3 + $0xb8] sm:$0xff]
        %v1954 = vld [vmem:[#allocation3 + $0xc0] sm:$0xff]
        %v1955 = vld [vmem:[#allocation3 + $0xc8] sm:$0xff]
        %v1956 = vld [vmem:[#allocation3 + $0xd0] sm:$0xff]
        %v1957 = vld [vmem:[#allocation3 + $0xd8] sm:$0xff]
        %v1958 = vld [vmem:[#allocation3 + $0xe0] sm:$0xff]
        %v1959 = vld [vmem:[#allocation3 + $0xe8] sm:$0xff]
        %v1960 = vld [vmem:[#allocation3 + $0xf0] sm:$0xff]
        %v1961 = vld [vmem:[#allocation3 + $0xf8] sm:$0xff]
        %v1962 = vld [vmem:[#allocation7 + $0x40] sm:$0xf]
        %v1963 = vld [vmem:[#allocation7 + $0x44] sm:$0xf]
        %v1964 = vld [vmem:[#allocation7 + $0x48] sm:$0xf]
        %v1965 = vld [vmem:[#allocation7 + $0x4c] sm:$0xf]
        %v1966 = vld [vmem:[#allocation7 + $0x50] sm:$0xf]
        %v1967 = vld [vmem:[#allocation7 + $0x54] sm:$0xf]
        %v1968 = vld [vmem:[#allocation7 + $0x58] sm:$0xf]
        %v1969 = vld [vmem:[#allocation7 + $0x5c] sm:$0xf]
        %v1970 = vld [vmem:[#allocation7 + $0x60] sm:$0xf]
        %v1971 = vld [vmem:[#allocation7 + $0x64] sm:$0xf]
        %v1972 = vld [vmem:[#allocation7 + $0x68] sm:$0xf]
        %v1973 = vld [vmem:[#allocation7 + $0x6c] sm:$0xf]
        %v1974 = vld [vmem:[#allocation7 + $0x70] sm:$0xf]
        %v1975 = vld [vmem:[#allocation7 + $0x74] sm:$0xf]
        %v1976 = vld [vmem:[#allocation7 + $0x78] sm:$0xf]
        %v1977 = vld [vmem:[#allocation7 + $0x7c] sm:$0xf]
        %v1978 = vunpack.c.l.b16 %v1559
        %v1979 = vunpack.c.l.b16 %v1569
        %v1980 = vunpack.c.l.b16 %v1583
        %v1981 = vunpack.c.l.b16 %v1593
        %v1982 = vunpack.c.l.b16 %v1607
        %v1983 = vunpack.c.l.b16 %v1617
        %v1984 = vunpack.c.l.b16 %v1631
        %v1985 = vunpack.c.l.b16 %v1641
        %v1986 = vunpack.c.l.b16 %v1655
        %v1987 = vunpack.c.l.b16 %v1665
        %v1988 = vunpack.c.l.b16 %v1679
        %v1989 = vunpack.c.l.b16 %v1689
        %v1990 = vunpack.c.l.b16 %v1703
        %v1991 = vunpack.c.l.b16 %v1713
        %v1992 = vunpack.c.l.b16 %v1727
        %v1993 = vunpack.c.l.b16 %v1737
        %v1994 = vunpack.c.l.b16 %v1751
        %v1995 = vunpack.c.l.b16 %v1761
        %v1996 = vunpack.c.l.b16 %v1775
        %v1997 = vunpack.c.l.b16 %v1785
        %v1998 = vunpack.c.l.b16 %v1799
        %v1999 = vunpack.c.l.b16 %v1809
        %v2000 = vunpack.c.l.b16 %v1823
        %v2001 = vunpack.c.l.b16 %v1833
        %v2002 = vunpack.c.l.b16 %v1847
        %v2003 = vunpack.c.l.b16 %v1857
        %v2004 = vunpack.c.l.b16 %v1871
        %v2005 = vunpack.c.l.b16 %v1881
        %v2006 = vunpack.c.l.b16 %v1895
        %v2007 = vunpack.c.l.b16 %v1905
        %v2008 = vunpack.c.l.b16 %v1919
        %v2009 = vunpack.c.l.b16 %v1929
        %v2010 = vpack.c.b16 %v1979, %v1978
        %v2011 = vpack.c.b16 %v1981, %v1980
        %v2012 = vpack.c.b16 %v1983, %v1982
        %v2013 = vpack.c.b16 %v1985, %v1984
        %v2014 = vpack.c.b16 %v1987, %v1986
        %v2015 = vpack.c.b16 %v1989, %v1988
        %v2016 = vpack.c.b16 %v1991, %v1990
        %v2017 = vpack.c.b16 %v1993, %v1992
        %v2018 = vpack.c.b16 %v1995, %v1994
        %v2019 = vpack.c.b16 %v1997, %v1996
        %v2020 = vpack.c.b16 %v1999, %v1998
        %v2021 = vpack.c.b16 %v2001, %v2000
        %v2022 = vpack.c.b16 %v2003, %v2002
        %v2023 = vpack.c.b16 %v2005, %v2004
        %v2024 = vpack.c.b16 %v2007, %v2006
        %v2025 = vpack.c.b16 %v2009, %v2008
        %v2058 = vunpack.c.l.b16 %v1962
        %v2059 = vunpack.c.l.b16 %v1963
        %v2060 = vunpack.c.l.b16 %v1964
        %v2061 = vunpack.c.l.b16 %v1965
        %v2062 = vunpack.c.l.b16 %v1966
        %v2063 = vunpack.c.l.b16 %v1967
        %v2064 = vunpack.c.l.b16 %v1968
        %v2065 = vunpack.c.l.b16 %v1969
        %v2066 = vunpack.c.l.b16 %v1970
        %v2067 = vunpack.c.l.b16 %v1971
        %v2068 = vunpack.c.l.b16 %v1972
        %v2069 = vunpack.c.l.b16 %v1973
        %v2070 = vunpack.c.l.b16 %v1974
        %v2071 = vunpack.c.l.b16 %v1975
        %v2072 = vunpack.c.l.b16 %v1976
        %v2073 = vunpack.c.l.b16 %v1977
        %v2074 = vpack.c.b16 %v2059, %v2058
        %v2075 = vpack.c.b16 %v2061, %v2060
        %v2076 = vpack.c.b16 %v2063, %v2062
        %v2077 = vpack.c.b16 %v2065, %v2064
        %v2078 = vpack.c.b16 %v2067, %v2066
        %v2079 = vpack.c.b16 %v2069, %v2068
        %v2080 = vpack.c.b16 %v2071, %v2070
        %v2081 = vpack.c.b16 %v2073, %v2072
        %2090 = vmatprep.subr.bf16.mxu0 0
        %2091 = vmatpush1.bf16.msra.mxu0 %v2074
        %2092 = vmatprep.subr.bf16.mxu0 0
        %2093 = vmatpush1.bf16.msra.mxu0 %v2075
        %2094 = vmatprep.subr.bf16.mxu0 0
        %2095 = vmatpush1.bf16.msra.mxu0 %v2076
        %2096 = vmatprep.subr.bf16.mxu0 0
        %2097 = vmatpush1.bf16.msra.mxu0 %v2077
        %2098 = vmatprep.subr.bf16.mxu0 0
        %2099 = vmatpush1.bf16.msra.mxu0 %v2078
        %2100 = vmatprep.subr.bf16.mxu0 0
        %2101 = vmatpush1.bf16.msra.mxu0 %v2079
        %2102 = vmatprep.subr.bf16.mxu0 0
        %2103 = vmatpush1.bf16.msra.mxu0 %v2080
        %2104 = vmatprep.subr.bf16.mxu0 0
        %2105 = vmatpush1.bf16.msra.mxu0 %v2081
        %2106 = vmatprep.subr.bf16.mxu0 0
        %2107 = vmatpush1.bf16.msra.mxu0 0
        %2108 = vmatprep.subr.bf16.mxu0 0
        %2109 = vmatpush1.bf16.msra.mxu0 0
        %2110 = vmatprep.subr.bf16.mxu0 0
        %2111 = vmatpush1.bf16.msra.mxu0 0
        %2112 = vmatprep.subr.bf16.mxu0 0
        %2113 = vmatpush1.bf16.msra.mxu0 0
        %2114 = vmatprep.subr.bf16.mxu0 0
        %2115 = vmatpush1.bf16.msra.mxu0 0
        %2116 = vmatprep.subr.bf16.mxu0 0
        %2117 = vmatpush1.bf16.msra.mxu0 0
        %2118 = vmatprep.subr.bf16.mxu0 0
        %2119 = vmatpush1.bf16.msra.mxu0 0
        %2120 = vmatprep.subr.bf16.mxu0 0
        %2121 = vmatpush1.bf16.msra.mxu0 0
        %2122 = vmatprep.mubr.bf16.mxu0 0
        %2123 = vmatmul.mubr.bf16.gmra.mrb[0].mxu0 %v2010
        %v2124 = vpop.f32.mrb[0].mxu0
        %v2125 = vadd.f32 0.0, %v2124
        %v2126 = vpop.f32.mrb[0].mxu0
        %v2127 = vpop.f32.mrb[0].mxu0
        %v2128 = vadd.f32 0.0, %v2127
        %v2129 = vpop.f32.mrb[0].mxu0
        %2130 = vmatprep.mubr.bf16.mxu0 0
        %2131 = vmatmul.mubr.bf16.gmra.mrb[0].mxu0 %v2011
        %v2132 = vpop.f32.mrb[0].mxu0
        %v2133 = vadd.f32 0.0, %v2132
        %v2134 = vpop.f32.mrb[0].mxu0
        %v2135 = vpop.f32.mrb[0].mxu0
        %v2136 = vadd.f32 0.0, %v2135
        %v2137 = vpop.f32.mrb[0].mxu0
        %2138 = vmatprep.mubr.bf16.mxu0 0
        %2139 = vmatmul.mubr.bf16.gmra.mrb[0].mxu0 %v2012
        %v2140 = vpop.f32.mrb[0].mxu0
        %v2141 = vadd.f32 0.0, %v2140
        %v2142 = vpop.f32.mrb[0].mxu0
        %v2143 = vpop.f32.mrb[0].mxu0
        %v2144 = vadd.f32 0.0, %v2143
        %v2145 = vpop.f32.mrb[0].mxu0
        %2146 = vmatprep.mubr.bf16.mxu0 0
        %2147 = vmatmul.mubr.bf16.gmra.mrb[0].mxu0 %v2013
        %v2148 = vpop.f32.mrb[0].mxu0
        %v2149 = vadd.f32 0.0, %v2148
        %v2150 = vpop.f32.mrb[0].mxu0
        %v2151 = vpop.f32.mrb[0].mxu0
        %v2152 = vadd.f32 0.0, %v2151
        %v2153 = vpop.f32.mrb[0].mxu0
        %2154 = vmatprep.mubr.bf16.mxu0 0
        %2155 = vmatmul.mubr.bf16.gmra.mrb[0].mxu0 %v2014
        %v2156 = vpop.f32.mrb[0].mxu0
        %v2157 = vadd.f32 0.0, %v2156
        %v2158 = vpop.f32.mrb[0].mxu0
        %v2159 = vpop.f32.mrb[0].mxu0
        %v2160 = vadd.f32 0.0, %v2159
        %v2161 = vpop.f32.mrb[0].mxu0
        %2162 = vmatprep.mubr.bf16.mxu0 0
        %2163 = vmatmul.mubr.bf16.gmra.mrb[0].mxu0 %v2015
        %v2164 = vpop.f32.mrb[0].mxu0
        %v2165 = vadd.f32 0.0, %v2164
        %v2166 = vpop.f32.mrb[0].mxu0
        %v2167 = vpop.f32.mrb[0].mxu0
        %v2168 = vadd.f32 0.0, %v2167
        %v2169 = vpop.f32.mrb[0].mxu0
        %2170 = vmatprep.mubr.bf16.mxu0 0
        %2171 = vmatmul.mubr.bf16.gmra.mrb[0].mxu0 %v2016
        %v2172 = vpop.f32.mrb[0].mxu0
        %v2173 = vadd.f32 0.0, %v2172
        %v2174 = vpop.f32.mrb[0].mxu0
        %v2175 = vpop.f32.mrb[0].mxu0
        %v2176 = vadd.f32 0.0, %v2175
        %v2177 = vpop.f32.mrb[0].mxu0
        %2178 = vmatprep.mubr.bf16.mxu0 0
        %2179 = vmatmul.mubr.bf16.gmra.mrb[0].mxu0 %v2017
        %v2180 = vpop.f32.mrb[0].mxu0
        %v2181 = vadd.f32 0.0, %v2180
        %v2182 = vpop.f32.mrb[0].mxu0
        %v2183 = vpop.f32.mrb[0].mxu0
        %v2184 = vadd.f32 0.0, %v2183
        %v2185 = vpop.f32.mrb[0].mxu0
        %2186 = vmatprep.mubr.bf16.mxu0 0
        %2187 = vmatmul.mubr.bf16.gmra.mrb[0].mxu0 %v2018
        %v2188 = vpop.f32.mrb[0].mxu0
        %v2189 = vadd.f32 0.0, %v2188
        %v2190 = vpop.f32.mrb[0].mxu0
        %v2191 = vpop.f32.mrb[0].mxu0
        %v2192 = vadd.f32 0.0, %v2191
        %v2193 = vpop.f32.mrb[0].mxu0
        %2194 = vmatprep.mubr.bf16.mxu0 0
        %2195 = vmatmul.mubr.bf16.gmra.mrb[0].mxu0 %v2019
        %v2196 = vpop.f32.mrb[0].mxu0
        %v2197 = vadd.f32 0.0, %v2196
        %v2198 = vpop.f32.mrb[0].mxu0
        %v2199 = vpop.f32.mrb[0].mxu0
        %v2200 = vadd.f32 0.0, %v2199
        %v2201 = vpop.f32.mrb[0].mxu0
        %2202 = vmatprep.mubr.bf16.mxu0 0
        %2203 = vmatmul.mubr.bf16.gmra.mrb[0].mxu0 %v2020
        %v2204 = vpop.f32.mrb[0].mxu0
        %v2205 = vadd.f32 0.0, %v2204
        %v2206 = vpop.f32.mrb[0].mxu0
        %v2207 = vpop.f32.mrb[0].mxu0
        %v2208 = vadd.f32 0.0, %v2207
        %v2209 = vpop.f32.mrb[0].mxu0
        %2210 = vmatprep.mubr.bf16.mxu0 0
        %2211 = vmatmul.mubr.bf16.gmra.mrb[0].mxu0 %v2021
        %v2212 = vpop.f32.mrb[0].mxu0
        %v2213 = vadd.f32 0.0, %v2212
        %v2214 = vpop.f32.mrb[0].mxu0
        %v2215 = vpop.f32.mrb[0].mxu0
        %v2216 = vadd.f32 0.0, %v2215
        %v2217 = vpop.f32.mrb[0].mxu0
        %2218 = vmatprep.mubr.bf16.mxu0 0
        %2219 = vmatmul.mubr.bf16.gmra.mrb[0].mxu0 %v2022
        %v2220 = vpop.f32.mrb[0].mxu0
        %v2221 = vadd.f32 0.0, %v2220
        %v2222 = vpop.f32.mrb[0].mxu0
        %v2223 = vpop.f32.mrb[0].mxu0
        %v2224 = vadd.f32 0.0, %v2223
        %v2225 = vpop.f32.mrb[0].mxu0
        %2226 = vmatprep.mubr.bf16.mxu0 0
        %2227 = vmatmul.mubr.bf16.gmra.mrb[0].mxu0 %v2023
        %v2228 = vpop.f32.mrb[0].mxu0
        %v2229 = vadd.f32 0.0, %v2228
        %v2230 = vpop.f32.mrb[0].mxu0
        %v2231 = vpop.f32.mrb[0].mxu0
        %v2232 = vadd.f32 0.0, %v2231
        %v2233 = vpop.f32.mrb[0].mxu0
        %2234 = vmatprep.mubr.bf16.mxu0 0
        %2235 = vmatmul.mubr.bf16.gmra.mrb[0].mxu0 %v2024
        %v2236 = vpop.f32.mrb[0].mxu0
        %v2237 = vadd.f32 0.0, %v2236
        %v2238 = vpop.f32.mrb[0].mxu0
        %v2239 = vpop.f32.mrb[0].mxu0
        %v2240 = vadd.f32 0.0, %v2239
        %v2241 = vpop.f32.mrb[0].mxu0
        %2242 = vmatprep.mubr.bf16.mxu0 0
        %2243 = vmatmul.mubr.bf16.gmra.mrb[0].mxu0 %v2025
        %v2244 = vpop.f32.mrb[0].mxu0
        %v2245 = vadd.f32 0.0, %v2244
        %v2246 = vpop.f32.mrb[0].mxu0
        %v2247 = vpop.f32.mrb[0].mxu0
        %v2248 = vadd.f32 0.0, %v2247
        %v2249 = vpop.f32.mrb[0].mxu0
        %2250 = vdwg.mxu0
        %v2251 = vadd.f32 %v1930, %v2125
        %v2252 = vadd.f32 %v1931, %v2128
        %v2253 = vadd.f32 %v1932, %v2133
        %v2254 = vadd.f32 %v1933, %v2136
        %v2255 = vadd.f32 %v1934, %v2141
        %v2256 = vadd.f32 %v1935, %v2144
        %v2257 = vadd.f32 %v1936, %v2149
        %v2258 = vadd.f32 %v1937, %v2152
        %v2259 = vadd.f32 %v1938, %v2157
        %v2260 = vadd.f32 %v1939, %v2160
        %v2261 = vadd.f32 %v1940, %v2165
        %v2262 = vadd.f32 %v1941, %v2168
        %v2263 = vadd.f32 %v1942, %v2173
        %v2264 = vadd.f32 %v1943, %v2176
        %v2265 = vadd.f32 %v1944, %v2181
        %v2266 = vadd.f32 %v1945, %v2184
        %v2267 = vadd.f32 %v1946, %v2189
        %v2268 = vadd.f32 %v1947, %v2192
        %v2269 = vadd.f32 %v1948, %v2197
        %v2270 = vadd.f32 %v1949, %v2200
        %v2271 = vadd.f32 %v1950, %v2205
        %v2272 = vadd.f32 %v1951, %v2208
        %v2273 = vadd.f32 %v1952, %v2213
        %v2274 = vadd.f32 %v1953, %v2216
        %v2275 = vadd.f32 %v1954, %v2221
        %v2276 = vadd.f32 %v1955, %v2224
        %v2277 = vadd.f32 %v1956, %v2229
        %v2278 = vadd.f32 %v1957, %v2232
        %v2279 = vadd.f32 %v1958, %v2237
        %v2280 = vadd.f32 %v1959, %v2240
        %v2281 = vadd.f32 %v1960, %v2245
        %v2282 = vadd.f32 %v1961, %v2248
        %2283 = vst [vmem:[#allocation3] sm:$0xff] %v2251
        %2284 = vst [vmem:[#allocation3 + $0x8] sm:$0xff] %v2252
        %2285 = vst [vmem:[#allocation3 + $0x10] sm:$0xff] %v2253
        %2286 = vst [vmem:[#allocation3 + $0x18] sm:$0xff] %v2254
        %2287 = vst [vmem:[#allocation3 + $0x20] sm:$0xff] %v2255
        %2288 = vst [vmem:[#allocation3 + $0x28] sm:$0xff] %v2256
        %2289 = vst [vmem:[#allocation3 + $0x30] sm:$0xff] %v2257
        %2290 = vst [vmem:[#allocation3 + $0x38] sm:$0xff] %v2258
        %2291 = vst [vmem:[#allocation3 + $0x40] sm:$0xff] %v2259
        %2292 = vst [vmem:[#allocation3 + $0x48] sm:$0xff] %v2260
        %2293 = vst [vmem:[#allocation3 + $0x50] sm:$0xff] %v2261
        %2294 = vst [vmem:[#allocation3 + $0x58] sm:$0xff] %v2262
        %2295 = vst [vmem:[#allocation3 + $0x60] sm:$0xff] %v2263
        %2296 = vst [vmem:[#allocation3 + $0x68] sm:$0xff] %v2264
        %2297 = vst [vmem:[#allocation3 + $0x70] sm:$0xff] %v2265
        %2298 = vst [vmem:[#allocation3 + $0x78] sm:$0xff] %v2266
        %2299 = vst [vmem:[#allocation3 + $0x80] sm:$0xff] %v2267
        %2300 = vst [vmem:[#allocation3 + $0x88] sm:$0xff] %v2268
        %2301 = vst [vmem:[#allocation3 + $0x90] sm:$0xff] %v2269
        %2302 = vst [vmem:[#allocation3 + $0x98] sm:$0xff] %v2270
        %2303 = vst [vmem:[#allocation3 + $0xa0] sm:$0xff] %v2271
        %2304 = vst [vmem:[#allocation3 + $0xa8] sm:$0xff] %v2272
        %2305 = vst [vmem:[#allocation3 + $0xb0] sm:$0xff] %v2273
        %2306 = vst [vmem:[#allocation3 + $0xb8] sm:$0xff] %v2274
        %2307 = vst [vmem:[#allocation3 + $0xc0] sm:$0xff] %v2275
        %2308 = vst [vmem:[#allocation3 + $0xc8] sm:$0xff] %v2276
        %2309 = vst [vmem:[#allocation3 + $0xd0] sm:$0xff] %v2277
        %2310 = vst [vmem:[#allocation3 + $0xd8] sm:$0xff] %v2278
        %2311 = vst [vmem:[#allocation3 + $0xe0] sm:$0xff] %v2279
        %2312 = vst [vmem:[#allocation3 + $0xe8] sm:$0xff] %v2280
        %2313 = vst [vmem:[#allocation3 + $0xf0] sm:$0xff] %v2281
        %2314 = vst [vmem:[#allocation3 + $0xf8] sm:$0xff] %v2282
        %v2315 = vld [vmem:[#allocation2] sm:$0xe]
        %v2316 = vld [vmem:[#allocation2 + $0x4] sm:$0xf]
        %v2317 = vld [vmem:[#allocation2 + $0x8] sm:$0x1]
        %v2318 = vld [vmem:[#allocation2 + $0xc] sm:$0xe]
        %v2319 = vld [vmem:[#allocation2 + $0x10] sm:$0xf]
        %v2320 = vld [vmem:[#allocation2 + $0x14] sm:$0x1]
        %v2321 = vld [vmem:[#allocation2 + $0x18] sm:$0xe]
        %v2322 = vld [vmem:[#allocation2 + $0x1c] sm:$0xf]
        %v2323 = vld [vmem:[#allocation2 + $0x20] sm:$0x1]
        %v2324 = vld [vmem:[#allocation2 + $0x24] sm:$0xe]
        %v2325 = vld [vmem:[#allocation2 + $0x28] sm:$0xf]
        %v2326 = vld [vmem:[#allocation2 + $0x2c] sm:$0x1]
        %v2327 = vld [vmem:[#allocation2 + $0x30] sm:$0xe]
        %v2328 = vld [vmem:[#allocation2 + $0x34] sm:$0xf]
        %v2329 = vld [vmem:[#allocation2 + $0x38] sm:$0x1]
        %v2330 = vld [vmem:[#allocation2 + $0x3c] sm:$0xe]
        %v2331 = vld [vmem:[#allocation2 + $0x40] sm:$0xf]
        %v2332 = vld [vmem:[#allocation2 + $0x44] sm:$0x1]
        %v2333 = vld [vmem:[#allocation2 + $0x48] sm:$0xe]
        %v2334 = vld [vmem:[#allocation2 + $0x4c] sm:$0xf]
        %v2335 = vld [vmem:[#allocation2 + $0x50] sm:$0x1]
        %v2336 = vld [vmem:[#allocation2 + $0x54] sm:$0xe]
        %v2337 = vld [vmem:[#allocation2 + $0x58] sm:$0xf]
        %v2338 = vld [vmem:[#allocation2 + $0x5c] sm:$0x1]
        %v2339 = vld [vmem:[#allocation2 + $0x60] sm:$0xe]
        %v2340 = vld [vmem:[#allocation2 + $0x64] sm:$0xf]
        %v2341 = vld [vmem:[#allocation2 + $0x68] sm:$0x1]
        %v2342 = vld [vmem:[#allocation2 + $0x6c] sm:$0xe]
        %v2343 = vld [vmem:[#allocation2 + $0x70] sm:$0xf]
        %v2344 = vld [vmem:[#allocation2 + $0x74] sm:$0x1]
        %v2345 = vld [vmem:[#allocation2 + $0x78] sm:$0xe]
        %v2346 = vld [vmem:[#allocation2 + $0x7c] sm:$0xf]
        %v2347 = vld [vmem:[#allocation2 + $0x80] sm:$0x1]
        %v2348 = vld [vmem:[#allocation2 + $0x84] sm:$0xe]
        %v2349 = vld [vmem:[#allocation2 + $0x88] sm:$0xf]
        %v2350 = vld [vmem:[#allocation2 + $0x8c] sm:$0x1]
        %v2351 = vld [vmem:[#allocation2 + $0x90] sm:$0xe]
        %v2352 = vld [vmem:[#allocation2 + $0x94] sm:$0xf]
        %v2353 = vld [vmem:[#allocation2 + $0x98] sm:$0x1]
        %v2354 = vld [vmem:[#allocation2 + $0x9c] sm:$0xe]
        %v2355 = vld [vmem:[#allocation2 + $0xa0] sm:$0xf]
        %v2356 = vld [vmem:[#allocation2 + $0xa4] sm:$0x1]
        %v2357 = vld [vmem:[#allocation2 + $0xa8] sm:$0xe]
        %v2358 = vld [vmem:[#allocation2 + $0xac] sm:$0xf]
        %v2359 = vld [vmem:[#allocation2 + $0xb0] sm:$0x1]
        %v2360 = vld [vmem:[#allocation2 + $0xb4] sm:$0xe]
        %v2361 = vld [vmem:[#allocation2 + $0xb8] sm:$0xf]
        %v2362 = vld [vmem:[#allocation2 + $0xbc] sm:$0x1]
        %vm2411 = vcmask 1042432
        %vm2412 = vcmask 1046532
        %vm2413 = vmor %vm2411, %vm2412
        %v2414 = vrot.slane %v2315, 5
        %v2415 = vrot.slane %v2414, 4
        %v2416 = vrot.slane %v2316, 5
        %v2417 = vsel %vm2413, %v2415, %v2416
        %v2418 = vrot.slane %v2416, 4
        %v2419 = vrot.slane %v2317, 5
        %v2420 = vsel %vm2413, %v2418, %v2419
        %v2421 = vrot.slane %v2318, 5
        %v2422 = vrot.slane %v2421, 4
        %v2423 = vrot.slane %v2319, 5
        %v2424 = vsel %vm2413, %v2422, %v2423
        %v2425 = vrot.slane %v2423, 4
        %v2426 = vrot.slane %v2320, 5
        %v2427 = vsel %vm2413, %v2425, %v2426
        %v2428 = vrot.slane %v2321, 5
        %v2429 = vrot.slane %v2428, 4
        %v2430 = vrot.slane %v2322, 5
        %v2431 = vsel %vm2413, %v2429, %v2430
        %v2432 = vrot.slane %v2430, 4
        %v2433 = vrot.slane %v2323, 5
        %v2434 = vsel %vm2413, %v2432, %v2433
        %v2435 = vrot.slane %v2324, 5
        %v2436 = vrot.slane %v2435, 4
        %v2437 = vrot.slane %v2325, 5
        %v2438 = vsel %vm2413, %v2436, %v2437
        %v2439 = vrot.slane %v2437, 4
        %v2440 = vrot.slane %v2326, 5
        %v2441 = vsel %vm2413, %v2439, %v2440
        %v2442 = vrot.slane %v2327, 5
        %v2443 = vrot.slane %v2442, 4
        %v2444 = vrot.slane %v2328, 5
        %v2445 = vsel %vm2413, %v2443, %v2444
        %v2446 = vrot.slane %v2444, 4
        %v2447 = vrot.slane %v2329, 5
        %v2448 = vsel %vm2413, %v2446, %v2447
        %v2449 = vrot.slane %v2330, 5
        %v2450 = vrot.slane %v2449, 4
        %v2451 = vrot.slane %v2331, 5
        %v2452 = vsel %vm2413, %v2450, %v2451
        %v2453 = vrot.slane %v2451, 4
        %v2454 = vrot.slane %v2332, 5
        %v2455 = vsel %vm2413, %v2453, %v2454
        %v2456 = vrot.slane %v2333, 5
        %v2457 = vrot.slane %v2456, 4
        %v2458 = vrot.slane %v2334, 5
        %v2459 = vsel %vm2413, %v2457, %v2458
        %v2460 = vrot.slane %v2458, 4
        %v2461 = vrot.slane %v2335, 5
        %v2462 = vsel %vm2413, %v2460, %v2461
        %v2463 = vrot.slane %v2336, 5
        %v2464 = vrot.slane %v2463, 4
        %v2465 = vrot.slane %v2337, 5
        %v2466 = vsel %vm2413, %v2464, %v2465
        %v2467 = vrot.slane %v2465, 4
        %v2468 = vrot.slane %v2338, 5
        %v2469 = vsel %vm2413, %v2467, %v2468
        %v2470 = vrot.slane %v2339, 5
        %v2471 = vrot.slane %v2470, 4
        %v2472 = vrot.slane %v2340, 5
        %v2473 = vsel %vm2413, %v2471, %v2472
        %v2474 = vrot.slane %v2472, 4
        %v2475 = vrot.slane %v2341, 5
        %v2476 = vsel %vm2413, %v2474, %v2475
        %v2477 = vrot.slane %v2342, 5
        %v2478 = vrot.slane %v2477, 4
        %v2479 = vrot.slane %v2343, 5
        %v2480 = vsel %vm2413, %v2478, %v2479
        %v2481 = vrot.slane %v2479, 4
        %v2482 = vrot.slane %v2344, 5
        %v2483 = vsel %vm2413, %v2481, %v2482
        %v2484 = vrot.slane %v2345, 5
        %v2485 = vrot.slane %v2484, 4
        %v2486 = vrot.slane %v2346, 5
        %v2487 = vsel %vm2413, %v2485, %v2486
        %v2488 = vrot.slane %v2486, 4
        %v2489 = vrot.slane %v2347, 5
        %v2490 = vsel %vm2413, %v2488, %v2489
        %v2491 = vrot.slane %v2348, 5
        %v2492 = vrot.slane %v2491, 4
        %v2493 = vrot.slane %v2349, 5
        %v2494 = vsel %vm2413, %v2492, %v2493
        %v2495 = vrot.slane %v2493, 4
        %v2496 = vrot.slane %v2350, 5
        %v2497 = vsel %vm2413, %v2495, %v2496
        %v2498 = vrot.slane %v2351, 5
        %v2499 = vrot.slane %v2498, 4
        %v2500 = vrot.slane %v2352, 5
        %v2501 = vsel %vm2413, %v2499, %v2500
        %v2502 = vrot.slane %v2500, 4
        %v2503 = vrot.slane %v2353, 5
        %v2504 = vsel %vm2413, %v2502, %v2503
        %v2505 = vrot.slane %v2354, 5
        %v2506 = vrot.slane %v2505, 4
        %v2507 = vrot.slane %v2355, 5
        %v2508 = vsel %vm2413, %v2506, %v2507
        %v2509 = vrot.slane %v2507, 4
        %v2510 = vrot.slane %v2356, 5
        %v2511 = vsel %vm2413, %v2509, %v2510
        %v2512 = vrot.slane %v2357, 5
        %v2513 = vrot.slane %v2512, 4
        %v2514 = vrot.slane %v2358, 5
        %v2515 = vsel %vm2413, %v2513, %v2514
        %v2516 = vrot.slane %v2514, 4
        %v2517 = vrot.slane %v2359, 5
        %v2518 = vsel %vm2413, %v2516, %v2517
        %v2519 = vrot.slane %v2360, 5
        %v2520 = vrot.slane %v2519, 4
        %v2521 = vrot.slane %v2361, 5
        %v2522 = vsel %vm2413, %v2520, %v2521
        %v2523 = vrot.slane %v2521, 4
        %v2524 = vrot.slane %v2362, 5
        %v2525 = vsel %vm2413, %v2523, %v2524
        %v2526 = vld [vmem:[#allocation3] sm:$0xff]
        %v2527 = vld [vmem:[#allocation3 + $0x8] sm:$0xff]
        %v2528 = vld [vmem:[#allocation3 + $0x10] sm:$0xff]
        %v2529 = vld [vmem:[#allocation3 + $0x18] sm:$0xff]
        %v2530 = vld [vmem:[#allocation3 + $0x20] sm:$0xff]
        %v2531 = vld [vmem:[#allocation3 + $0x28] sm:$0xff]
        %v2532 = vld [vmem:[#allocation3 + $0x30] sm:$0xff]
        %v2533 = vld [vmem:[#allocation3 + $0x38] sm:$0xff]
        %v2534 = vld [vmem:[#allocation3 + $0x40] sm:$0xff]
        %v2535 = vld [vmem:[#allocation3 + $0x48] sm:$0xff]
        %v2536 = vld [vmem:[#allocation3 + $0x50] sm:$0xff]
        %v2537 = vld [vmem:[#allocation3 + $0x58] sm:$0xff]
        %v2538 = vld [vmem:[#allocation3 + $0x60] sm:$0xff]
        %v2539 = vld [vmem:[#allocation3 + $0x68] sm:$0xff]
        %v2540 = vld [vmem:[#allocation3 + $0x70] sm:$0xff]
        %v2541 = vld [vmem:[#allocation3 + $0x78] sm:$0xff]
        %v2542 = vld [vmem:[#allocation3 + $0x80] sm:$0xff]
        %v2543 = vld [vmem:[#allocation3 + $0x88] sm:$0xff]
        %v2544 = vld [vmem:[#allocation3 + $0x90] sm:$0xff]
        %v2545 = vld [vmem:[#allocation3 + $0x98] sm:$0xff]
        %v2546 = vld [vmem:[#allocation3 + $0xa0] sm:$0xff]
        %v2547 = vld [vmem:[#allocation3 + $0xa8] sm:$0xff]
        %v2548 = vld [vmem:[#allocation3 + $0xb0] sm:$0xff]
        %v2549 = vld [vmem:[#allocation3 + $0xb8] sm:$0xff]
        %v2550 = vld [vmem:[#allocation3 + $0xc0] sm:$0xff]
        %v2551 = vld [vmem:[#allocation3 + $0xc8] sm:$0xff]
        %v2552 = vld [vmem:[#allocation3 + $0xd0] sm:$0xff]
        %v2553 = vld [vmem:[#allocation3 + $0xd8] sm:$0xff]
        %v2554 = vld [vmem:[#allocation3 + $0xe0] sm:$0xff]
        %v2555 = vld [vmem:[#allocation3 + $0xe8] sm:$0xff]
        %v2556 = vld [vmem:[#allocation3 + $0xf0] sm:$0xff]
        %v2557 = vld [vmem:[#allocation3 + $0xf8] sm:$0xff]
        %v2558 = vld [vmem:[#allocation7 + $0x80] sm:$0xf]
        %v2559 = vld [vmem:[#allocation7 + $0x84] sm:$0xf]
        %v2560 = vld [vmem:[#allocation7 + $0x88] sm:$0xf]
        %v2561 = vld [vmem:[#allocation7 + $0x8c] sm:$0xf]
        %v2562 = vld [vmem:[#allocation7 + $0x90] sm:$0xf]
        %v2563 = vld [vmem:[#allocation7 + $0x94] sm:$0xf]
        %v2564 = vld [vmem:[#allocation7 + $0x98] sm:$0xf]
        %v2565 = vld [vmem:[#allocation7 + $0x9c] sm:$0xf]
        %v2566 = vld [vmem:[#allocation7 + $0xa0] sm:$0xf]
        %v2567 = vld [vmem:[#allocation7 + $0xa4] sm:$0xf]
        %v2568 = vld [vmem:[#allocation7 + $0xa8] sm:$0xf]
        %v2569 = vld [vmem:[#allocation7 + $0xac] sm:$0xf]
        %v2570 = vld [vmem:[#allocation7 + $0xb0] sm:$0xf]
        %v2571 = vld [vmem:[#allocation7 + $0xb4] sm:$0xf]
        %v2572 = vld [vmem:[#allocation7 + $0xb8] sm:$0xf]
        %v2573 = vld [vmem:[#allocation7 + $0xbc] sm:$0xf]
        %v2574 = vunpack.c.l.b16 %v2417
        %v2575 = vunpack.c.l.b16 %v2420
        %v2576 = vunpack.c.l.b16 %v2424
        %v2577 = vunpack.c.l.b16 %v2427
        %v2578 = vunpack.c.l.b16 %v2431
        %v2579 = vunpack.c.l.b16 %v2434
        %v2580 = vunpack.c.l.b16 %v2438
        %v2581 = vunpack.c.l.b16 %v2441
        %v2582 = vunpack.c.l.b16 %v2445
        %v2583 = vunpack.c.l.b16 %v2448
        %v2584 = vunpack.c.l.b16 %v2452
        %v2585 = vunpack.c.l.b16 %v2455
        %v2586 = vunpack.c.l.b16 %v2459
        %v2587 = vunpack.c.l.b16 %v2462
        %v2588 = vunpack.c.l.b16 %v2466
        %v2589 = vunpack.c.l.b16 %v2469
        %v2590 = vunpack.c.l.b16 %v2473
        %v2591 = vunpack.c.l.b16 %v2476
        %v2592 = vunpack.c.l.b16 %v2480
        %v2593 = vunpack.c.l.b16 %v2483
        %v2594 = vunpack.c.l.b16 %v2487
        %v2595 = vunpack.c.l.b16 %v2490
        %v2596 = vunpack.c.l.b16 %v2494
        %v2597 = vunpack.c.l.b16 %v2497
        %v2598 = vunpack.c.l.b16 %v2501
        %v2599 = vunpack.c.l.b16 %v2504
        %v2600 = vunpack.c.l.b16 %v2508
        %v2601 = vunpack.c.l.b16 %v2511
        %v2602 = vunpack.c.l.b16 %v2515
        %v2603 = vunpack.c.l.b16 %v2518
        %v2604 = vunpack.c.l.b16 %v2522
        %v2605 = vunpack.c.l.b16 %v2525
        %v2606 = vpack.c.b16 %v2575, %v2574
        %v2607 = vpack.c.b16 %v2577, %v2576
        %v2608 = vpack.c.b16 %v2579, %v2578
        %v2609 = vpack.c.b16 %v2581, %v2580
        %v2610 = vpack.c.b16 %v2583, %v2582
        %v2611 = vpack.c.b16 %v2585, %v2584
        %v2612 = vpack.c.b16 %v2587, %v2586
        %v2613 = vpack.c.b16 %v2589, %v2588
        %v2614 = vpack.c.b16 %v2591, %v2590
        %v2615 = vpack.c.b16 %v2593, %v2592
        %v2616 = vpack.c.b16 %v2595, %v2594
        %v2617 = vpack.c.b16 %v2597, %v2596
        %v2618 = vpack.c.b16 %v2599, %v2598
        %v2619 = vpack.c.b16 %v2601, %v2600
        %v2620 = vpack.c.b16 %v2603, %v2602
        %v2621 = vpack.c.b16 %v2605, %v2604
        %v2654 = vunpack.c.l.b16 %v2558
        %v2655 = vunpack.c.l.b16 %v2559
        %v2656 = vunpack.c.l.b16 %v2560
        %v2657 = vunpack.c.l.b16 %v2561
        %v2658 = vunpack.c.l.b16 %v2562
        %v2659 = vunpack.c.l.b16 %v2563
        %v2660 = vunpack.c.l.b16 %v2564
        %v2661 = vunpack.c.l.b16 %v2565
        %v2662 = vunpack.c.l.b16 %v2566
        %v2663 = vunpack.c.l.b16 %v2567
        %v2664 = vunpack.c.l.b16 %v2568
        %v2665 = vunpack.c.l.b16 %v2569
        %v2666 = vunpack.c.l.b16 %v2570
        %v2667 = vunpack.c.l.b16 %v2571
        %v2668 = vunpack.c.l.b16 %v2572
        %v2669 = vunpack.c.l.b16 %v2573
        %v2670 = vpack.c.b16 %v2655, %v2654
        %v2671 = vpack.c.b16 %v2657, %v2656
        %v2672 = vpack.c.b16 %v2659, %v2658
        %v2673 = vpack.c.b16 %v2661, %v2660
        %v2674 = vpack.c.b16 %v2663, %v2662
        %v2675 = vpack.c.b16 %v2665, %v2664
        %v2676 = vpack.c.b16 %v2667, %v2666
        %v2677 = vpack.c.b16 %v2669, %v2668
        %2686 = vmatprep.subr.bf16.mxu0 0
        %2687 = vmatpush1.bf16.msra.mxu0 %v2670
        %2688 = vmatprep.subr.bf16.mxu0 0
        %2689 = vmatpush1.bf16.msra.mxu0 %v2671
        %2690 = vmatprep.subr.bf16.mxu0 0
        %2691 = vmatpush1.bf16.msra.mxu0 %v2672
        %2692 = vmatprep.subr.bf16.mxu0 0
        %2693 = vmatpush1.bf16.msra.mxu0 %v2673
        %2694 = vmatprep.subr.bf16.mxu0 0
        %2695 = vmatpush1.bf16.msra.mxu0 %v2674
        %2696 = vmatprep.subr.bf16.mxu0 0
        %2697 = vmatpush1.bf16.msra.mxu0 %v2675
        %2698 = vmatprep.subr.bf16.mxu0 0
        %2699 = vmatpush1.bf16.msra.mxu0 %v2676
        %2700 = vmatprep.subr.bf16.mxu0 0
        %2701 = vmatpush1.bf16.msra.mxu0 %v2677
        %2702 = vmatprep.subr.bf16.mxu0 0
        %2703 = vmatpush1.bf16.msra.mxu0 0
        %2704 = vmatprep.subr.bf16.mxu0 0
        %2705 = vmatpush1.bf16.msra.mxu0 0
        %2706 = vmatprep.subr.bf16.mxu0 0
        %2707 = vmatpush1.bf16.msra.mxu0 0
        %2708 = vmatprep.subr.bf16.mxu0 0
        %2709 = vmatpush1.bf16.msra.mxu0 0
        %2710 = vmatprep.subr.bf16.mxu0 0
        %2711 = vmatpush1.bf16.msra.mxu0 0
        %2712 = vmatprep.subr.bf16.mxu0 0
        %2713 = vmatpush1.bf16.msra.mxu0 0
        %2714 = vmatprep.subr.bf16.mxu0 0
        %2715 = vmatpush1.bf16.msra.mxu0 0
        %2716 = vmatprep.subr.bf16.mxu0 0
        %2717 = vmatpush1.bf16.msra.mxu0 0
        %2718 = vmatprep.mubr.bf16.mxu0 0
        %2719 = vmatmul.mubr.bf16.gmra.mrb[0].mxu0 %v2606
        %v2720 = vpop.f32.mrb[0].mxu0
        %v2721 = vadd.f32 0.0, %v2720
        %v2722 = vpop.f32.mrb[0].mxu0
        %v2723 = vpop.f32.mrb[0].mxu0
        %v2724 = vadd.f32 0.0, %v2723
        %v2725 = vpop.f32.mrb[0].mxu0
        %2726 = vmatprep.mubr.bf16.mxu0 0
        %2727 = vmatmul.mubr.bf16.gmra.mrb[0].mxu0 %v2607
        %v2728 = vpop.f32.mrb[0].mxu0
        %v2729 = vadd.f32 0.0, %v2728
        %v2730 = vpop.f32.mrb[0].mxu0
        %v2731 = vpop.f32.mrb[0].mxu0
        %v2732 = vadd.f32 0.0, %v2731
        %v2733 = vpop.f32.mrb[0].mxu0
        %2734 = vmatprep.mubr.bf16.mxu0 0
        %2735 = vmatmul.mubr.bf16.gmra.mrb[0].mxu0 %v2608
        %v2736 = vpop.f32.mrb[0].mxu0
        %v2737 = vadd.f32 0.0, %v2736
        %v2738 = vpop.f32.mrb[0].mxu0
        %v2739 = vpop.f32.mrb[0].mxu0
        %v2740 = vadd.f32 0.0, %v2739
        %v2741 = vpop.f32.mrb[0].mxu0
        %2742 = vmatprep.mubr.bf16.mxu0 0
        %2743 = vmatmul.mubr.bf16.gmra.mrb[0].mxu0 %v2609
        %v2744 = vpop.f32.mrb[0].mxu0
        %v2745 = vadd.f32 0.0, %v2744
        %v2746 = vpop.f32.mrb[0].mxu0
        %v2747 = vpop.f32.mrb[0].mxu0
        %v2748 = vadd.f32 0.0, %v2747
        %v2749 = vpop.f32.mrb[0].mxu0
        %2750 = vmatprep.mubr.bf16.mxu0 0
        %2751 = vmatmul.mubr.bf16.gmra.mrb[0].mxu0 %v2610
        %v2752 = vpop.f32.mrb[0].mxu0
        %v2753 = vadd.f32 0.0, %v2752
        %v2754 = vpop.f32.mrb[0].mxu0
        %v2755 = vpop.f32.mrb[0].mxu0
        %v2756 = vadd.f32 0.0, %v2755
        %v2757 = vpop.f32.mrb[0].mxu0
        %2758 = vmatprep.mubr.bf16.mxu0 0
        %2759 = vmatmul.mubr.bf16.gmra.mrb[0].mxu0 %v2611
        %v2760 = vpop.f32.mrb[0].mxu0
        %v2761 = vadd.f32 0.0, %v2760
        %v2762 = vpop.f32.mrb[0].mxu0
        %v2763 = vpop.f32.mrb[0].mxu0
        %v2764 = vadd.f32 0.0, %v2763
        %v2765 = vpop.f32.mrb[0].mxu0
        %2766 = vmatprep.mubr.bf16.mxu0 0
        %2767 = vmatmul.mubr.bf16.gmra.mrb[0].mxu0 %v2612
        %v2768 = vpop.f32.mrb[0].mxu0
        %v2769 = vadd.f32 0.0, %v2768
        %v2770 = vpop.f32.mrb[0].mxu0
        %v2771 = vpop.f32.mrb[0].mxu0
        %v2772 = vadd.f32 0.0, %v2771
        %v2773 = vpop.f32.mrb[0].mxu0
        %2774 = vmatprep.mubr.bf16.mxu0 0
        %2775 = vmatmul.mubr.bf16.gmra.mrb[0].mxu0 %v2613
        %v2776 = vpop.f32.mrb[0].mxu0
        %v2777 = vadd.f32 0.0, %v2776
        %v2778 = vpop.f32.mrb[0].mxu0
        %v2779 = vpop.f32.mrb[0].mxu0
        %v2780 = vadd.f32 0.0, %v2779
        %v2781 = vpop.f32.mrb[0].mxu0
        %2782 = vmatprep.mubr.bf16.mxu0 0
        %2783 = vmatmul.mubr.bf16.gmra.mrb[0].mxu0 %v2614
        %v2784 = vpop.f32.mrb[0].mxu0
        %v2785 = vadd.f32 0.0, %v2784
        %v2786 = vpop.f32.mrb[0].mxu0
        %v2787 = vpop.f32.mrb[0].mxu0
        %v2788 = vadd.f32 0.0, %v2787
        %v2789 = vpop.f32.mrb[0].mxu0
        %2790 = vmatprep.mubr.bf16.mxu0 0
        %2791 = vmatmul.mubr.bf16.gmra.mrb[0].mxu0 %v2615
        %v2792 = vpop.f32.mrb[0].mxu0
        %v2793 = vadd.f32 0.0, %v2792
        %v2794 = vpop.f32.mrb[0].mxu0
        %v2795 = vpop.f32.mrb[0].mxu0
        %v2796 = vadd.f32 0.0, %v2795
        %v2797 = vpop.f32.mrb[0].mxu0
        %2798 = vmatprep.mubr.bf16.mxu0 0
        %2799 = vmatmul.mubr.bf16.gmra.mrb[0].mxu0 %v2616
        %v2800 = vpop.f32.mrb[0].mxu0
        %v2801 = vadd.f32 0.0, %v2800
        %v2802 = vpop.f32.mrb[0].mxu0
        %v2803 = vpop.f32.mrb[0].mxu0
        %v2804 = vadd.f32 0.0, %v2803
        %v2805 = vpop.f32.mrb[0].mxu0
        %2806 = vmatprep.mubr.bf16.mxu0 0
        %2807 = vmatmul.mubr.bf16.gmra.mrb[0].mxu0 %v2617
        %v2808 = vpop.f32.mrb[0].mxu0
        %v2809 = vadd.f32 0.0, %v2808
        %v2810 = vpop.f32.mrb[0].mxu0
        %v2811 = vpop.f32.mrb[0].mxu0
        %v2812 = vadd.f32 0.0, %v2811
        %v2813 = vpop.f32.mrb[0].mxu0
        %2814 = vmatprep.mubr.bf16.mxu0 0
        %2815 = vmatmul.mubr.bf16.gmra.mrb[0].mxu0 %v2618
        %v2816 = vpop.f32.mrb[0].mxu0
        %v2817 = vadd.f32 0.0, %v2816
        %v2818 = vpop.f32.mrb[0].mxu0
        %v2819 = vpop.f32.mrb[0].mxu0
        %v2820 = vadd.f32 0.0, %v2819
        %v2821 = vpop.f32.mrb[0].mxu0
        %2822 = vmatprep.mubr.bf16.mxu0 0
        %2823 = vmatmul.mubr.bf16.gmra.mrb[0].mxu0 %v2619
        %v2824 = vpop.f32.mrb[0].mxu0
        %v2825 = vadd.f32 0.0, %v2824
        %v2826 = vpop.f32.mrb[0].mxu0
        %v2827 = vpop.f32.mrb[0].mxu0
        %v2828 = vadd.f32 0.0, %v2827
        %v2829 = vpop.f32.mrb[0].mxu0
        %2830 = vmatprep.mubr.bf16.mxu0 0
        %2831 = vmatmul.mubr.bf16.gmra.mrb[0].mxu0 %v2620
        %v2832 = vpop.f32.mrb[0].mxu0
        %v2833 = vadd.f32 0.0, %v2832
        %v2834 = vpop.f32.mrb[0].mxu0
        %v2835 = vpop.f32.mrb[0].mxu0
        %v2836 = vadd.f32 0.0, %v2835
        %v2837 = vpop.f32.mrb[0].mxu0
        %2838 = vmatprep.mubr.bf16.mxu0 0
        %2839 = vmatmul.mubr.bf16.gmra.mrb[0].mxu0 %v2621
        %v2840 = vpop.f32.mrb[0].mxu0
        %v2841 = vadd.f32 0.0, %v2840
        %v2842 = vpop.f32.mrb[0].mxu0
        %v2843 = vpop.f32.mrb[0].mxu0
        %v2844 = vadd.f32 0.0, %v2843
        %v2845 = vpop.f32.mrb[0].mxu0
        %2846 = vdwg.mxu0
        %v2847 = vadd.f32 %v2526, %v2721
        %v2848 = vadd.f32 %v2527, %v2724
        %v2849 = vadd.f32 %v2528, %v2729
        %v2850 = vadd.f32 %v2529, %v2732
        %v2851 = vadd.f32 %v2530, %v2737
        %v2852 = vadd.f32 %v2531, %v2740
        %v2853 = vadd.f32 %v2532, %v2745
        %v2854 = vadd.f32 %v2533, %v2748
        %v2855 = vadd.f32 %v2534, %v2753
        %v2856 = vadd.f32 %v2535, %v2756
        %v2857 = vadd.f32 %v2536, %v2761
        %v2858 = vadd.f32 %v2537, %v2764
        %v2859 = vadd.f32 %v2538, %v2769
        %v2860 = vadd.f32 %v2539, %v2772
        %v2861 = vadd.f32 %v2540, %v2777
        %v2862 = vadd.f32 %v2541, %v2780
        %v2863 = vadd.f32 %v2542, %v2785
        %v2864 = vadd.f32 %v2543, %v2788
        %v2865 = vadd.f32 %v2544, %v2793
        %v2866 = vadd.f32 %v2545, %v2796
        %v2867 = vadd.f32 %v2546, %v2801
        %v2868 = vadd.f32 %v2547, %v2804
        %v2869 = vadd.f32 %v2548, %v2809
        %v2870 = vadd.f32 %v2549, %v2812
        %v2871 = vadd.f32 %v2550, %v2817
        %v2872 = vadd.f32 %v2551, %v2820
        %v2873 = vadd.f32 %v2552, %v2825
        %v2874 = vadd.f32 %v2553, %v2828
        %v2875 = vadd.f32 %v2554, %v2833
        %v2876 = vadd.f32 %v2555, %v2836
        %v2877 = vadd.f32 %v2556, %v2841
        %v2878 = vadd.f32 %v2557, %v2844
        %2879 = vst [vmem:[#allocation3] sm:$0xff] %v2847
        %2880 = vst [vmem:[#allocation3 + $0x8] sm:$0xff] %v2848
        %2881 = vst [vmem:[#allocation3 + $0x10] sm:$0xff] %v2849
        %2882 = vst [vmem:[#allocation3 + $0x18] sm:$0xff] %v2850
        %2883 = vst [vmem:[#allocation3 + $0x20] sm:$0xff] %v2851
        %2884 = vst [vmem:[#allocation3 + $0x28] sm:$0xff] %v2852
        %2885 = vst [vmem:[#allocation3 + $0x30] sm:$0xff] %v2853
        %2886 = vst [vmem:[#allocation3 + $0x38] sm:$0xff] %v2854
        %2887 = vst [vmem:[#allocation3 + $0x40] sm:$0xff] %v2855
        %2888 = vst [vmem:[#allocation3 + $0x48] sm:$0xff] %v2856
        %2889 = vst [vmem:[#allocation3 + $0x50] sm:$0xff] %v2857
        %2890 = vst [vmem:[#allocation3 + $0x58] sm:$0xff] %v2858
        %2891 = vst [vmem:[#allocation3 + $0x60] sm:$0xff] %v2859
        %2892 = vst [vmem:[#allocation3 + $0x68] sm:$0xff] %v2860
        %2893 = vst [vmem:[#allocation3 + $0x70] sm:$0xff] %v2861
        %2894 = vst [vmem:[#allocation3 + $0x78] sm:$0xff] %v2862
        %2895 = vst [vmem:[#allocation3 + $0x80] sm:$0xff] %v2863
        %2896 = vst [vmem:[#allocation3 + $0x88] sm:$0xff] %v2864
        %2897 = vst [vmem:[#allocation3 + $0x90] sm:$0xff] %v2865
        %2898 = vst [vmem:[#allocation3 + $0x98] sm:$0xff] %v2866
        %2899 = vst [vmem:[#allocation3 + $0xa0] sm:$0xff] %v2867
        %2900 = vst [vmem:[#allocation3 + $0xa8] sm:$0xff] %v2868
        %2901 = vst [vmem:[#allocation3 + $0xb0] sm:$0xff] %v2869
        %2902 = vst [vmem:[#allocation3 + $0xb8] sm:$0xff] %v2870
        %2903 = vst [vmem:[#allocation3 + $0xc0] sm:$0xff] %v2871
        %2904 = vst [vmem:[#allocation3 + $0xc8] sm:$0xff] %v2872
        %2905 = vst [vmem:[#allocation3 + $0xd0] sm:$0xff] %v2873
        %2906 = vst [vmem:[#allocation3 + $0xd8] sm:$0xff] %v2874
        %2907 = vst [vmem:[#allocation3 + $0xe0] sm:$0xff] %v2875
        %2908 = vst [vmem:[#allocation3 + $0xe8] sm:$0xff] %v2876
        %2909 = vst [vmem:[#allocation3 + $0xf0] sm:$0xff] %v2877
        %2910 = vst [vmem:[#allocation3 + $0xf8] sm:$0xff] %v2878
        %v2911 = vld [vmem:[%s899] sm:$0xf]
        %v2912 = vld [vmem:[%s899 + $0x4] sm:$0xf]
        %v2913 = vld [vmem:[%s899 + $0xc] sm:$0xf]
        %v2914 = vld [vmem:[%s899 + $0x10] sm:$0xf]
        %v2915 = vld [vmem:[%s899 + $0x18] sm:$0xf]
        %v2916 = vld [vmem:[%s899 + $0x1c] sm:$0xf]
        %v2917 = vld [vmem:[%s899 + $0x24] sm:$0xf]
        %v2918 = vld [vmem:[%s899 + $0x28] sm:$0xf]
        %v2919 = vld [vmem:[%s899 + $0x30] sm:$0xf]
        %v2920 = vld [vmem:[%s899 + $0x34] sm:$0xf]
        %v2921 = vld [vmem:[%s899 + $0x3c] sm:$0xf]
        %v2922 = vld [vmem:[%s899 + $0x40] sm:$0xf]
        %v2923 = vld [vmem:[%s899 + $0x48] sm:$0xf]
        %v2924 = vld [vmem:[%s899 + $0x4c] sm:$0xf]
        %v2925 = vld [vmem:[%s899 + $0x54] sm:$0xf]
        %v2926 = vld [vmem:[%s899 + $0x58] sm:$0xf]
        %v2927 = vld [vmem:[%s899 + $0x60] sm:$0xf]
        %v2928 = vld [vmem:[%s899 + $0x64] sm:$0xf]
        %v2929 = vld [vmem:[%s899 + $0x6c] sm:$0xf]
        %v2930 = vld [vmem:[%s899 + $0x70] sm:$0xf]
        %v2931 = vld [vmem:[%s899 + $0x78] sm:$0xf]
        %v2932 = vld [vmem:[%s899 + $0x7c] sm:$0xf]
        %v2933 = vld [vmem:[%s899 + $0x84] sm:$0xf]
        %v2934 = vld [vmem:[%s899 + $0x88] sm:$0xf]
        %v2935 = vld [vmem:[%s899 + $0x90] sm:$0xf]
        %v2936 = vld [vmem:[%s899 + $0x94] sm:$0xf]
        %v2937 = vld [vmem:[%s899 + $0x9c] sm:$0xf]
        %v2938 = vld [vmem:[%s899 + $0xa0] sm:$0xf]
        %v2939 = vld [vmem:[%s899 + $0xa8] sm:$0xf]
        %v2940 = vld [vmem:[%s899 + $0xac] sm:$0xf]
        %v2941 = vld [vmem:[%s899 + $0xb4] sm:$0xf]
        %v2942 = vld [vmem:[%s899 + $0xb8] sm:$0xf]
        %v2943 = vld [vmem:[#allocation3] sm:$0xff]
        %v2944 = vld [vmem:[#allocation3 + $0x8] sm:$0xff]
        %v2945 = vld [vmem:[#allocation3 + $0x10] sm:$0xff]
        %v2946 = vld [vmem:[#allocation3 + $0x18] sm:$0xff]
        %v2947 = vld [vmem:[#allocation3 + $0x20] sm:$0xff]
        %v2948 = vld [vmem:[#allocation3 + $0x28] sm:$0xff]
        %v2949 = vld [vmem:[#allocation3 + $0x30] sm:$0xff]
        %v2950 = vld [vmem:[#allocation3 + $0x38] sm:$0xff]
        %v2951 = vld [vmem:[#allocation3 + $0x40] sm:$0xff]
        %v2952 = vld [vmem:[#allocation3 + $0x48] sm:$0xff]
        %v2953 = vld [vmem:[#allocation3 + $0x50] sm:$0xff]
        %v2954 = vld [vmem:[#allocation3 + $0x58] sm:$0xff]
        %v2955 = vld [vmem:[#allocation3 + $0x60] sm:$0xff]
        %v2956 = vld [vmem:[#allocation3 + $0x68] sm:$0xff]
        %v2957 = vld [vmem:[#allocation3 + $0x70] sm:$0xff]
        %v2958 = vld [vmem:[#allocation3 + $0x78] sm:$0xff]
        %v2959 = vld [vmem:[#allocation3 + $0x80] sm:$0xff]
        %v2960 = vld [vmem:[#allocation3 + $0x88] sm:$0xff]
        %v2961 = vld [vmem:[#allocation3 + $0x90] sm:$0xff]
        %v2962 = vld [vmem:[#allocation3 + $0x98] sm:$0xff]
        %v2963 = vld [vmem:[#allocation3 + $0xa0] sm:$0xff]
        %v2964 = vld [vmem:[#allocation3 + $0xa8] sm:$0xff]
        %v2965 = vld [vmem:[#allocation3 + $0xb0] sm:$0xff]
        %v2966 = vld [vmem:[#allocation3 + $0xb8] sm:$0xff]
        %v2967 = vld [vmem:[#allocation3 + $0xc0] sm:$0xff]
        %v2968 = vld [vmem:[#allocation3 + $0xc8] sm:$0xff]
        %v2969 = vld [vmem:[#allocation3 + $0xd0] sm:$0xff]
        %v2970 = vld [vmem:[#allocation3 + $0xd8] sm:$0xff]
        %v2971 = vld [vmem:[#allocation3 + $0xe0] sm:$0xff]
        %v2972 = vld [vmem:[#allocation3 + $0xe8] sm:$0xff]
        %v2973 = vld [vmem:[#allocation3 + $0xf0] sm:$0xff]
        %v2974 = vld [vmem:[#allocation3 + $0xf8] sm:$0xff]
        %v2975 = vld [vmem:[#allocation7 + $0xc0] sm:$0xf]
        %v2976 = vld [vmem:[#allocation7 + $0xc4] sm:$0xf]
        %v2977 = vld [vmem:[#allocation7 + $0xc8] sm:$0xf]
        %v2978 = vld [vmem:[#allocation7 + $0xcc] sm:$0xf]
        %v2979 = vld [vmem:[#allocation7 + $0xd0] sm:$0xf]
        %v2980 = vld [vmem:[#allocation7 + $0xd4] sm:$0xf]
        %v2981 = vld [vmem:[#allocation7 + $0xd8] sm:$0xf]
        %v2982 = vld [vmem:[#allocation7 + $0xdc] sm:$0xf]
        %v2983 = vld [vmem:[#allocation7 + $0xe0] sm:$0xf]
        %v2984 = vld [vmem:[#allocation7 + $0xe4] sm:$0xf]
        %v2985 = vld [vmem:[#allocation7 + $0xe8] sm:$0xf]
        %v2986 = vld [vmem:[#allocation7 + $0xec] sm:$0xf]
        %v2987 = vld [vmem:[#allocation7 + $0xf0] sm:$0xf]
        %v2988 = vld [vmem:[#allocation7 + $0xf4] sm:$0xf]
        %v2989 = vld [vmem:[#allocation7 + $0xf8] sm:$0xf]
        %v2990 = vld [vmem:[#allocation7 + $0xfc] sm:$0xf]
        %v3023 = vunpack.c.l.b16 %v2911
        %v3024 = vunpack.c.l.b16 %v2912
        %v3025 = vunpack.c.l.b16 %v2913
        %v3026 = vunpack.c.l.b16 %v2914
        %v3027 = vunpack.c.l.b16 %v2915
        %v3028 = vunpack.c.l.b16 %v2916
        %v3029 = vunpack.c.l.b16 %v2917
        %v3030 = vunpack.c.l.b16 %v2918
        %v3031 = vunpack.c.l.b16 %v2919
        %v3032 = vunpack.c.l.b16 %v2920
        %v3033 = vunpack.c.l.b16 %v2921
        %v3034 = vunpack.c.l.b16 %v2922
        %v3035 = vunpack.c.l.b16 %v2923
        %v3036 = vunpack.c.l.b16 %v2924
        %v3037 = vunpack.c.l.b16 %v2925
        %v3038 = vunpack.c.l.b16 %v2926
        %v3039 = vunpack.c.l.b16 %v2927
        %v3040 = vunpack.c.l.b16 %v2928
        %v3041 = vunpack.c.l.b16 %v2929
        %v3042 = vunpack.c.l.b16 %v2930
        %v3043 = vunpack.c.l.b16 %v2931
        %v3044 = vunpack.c.l.b16 %v2932
        %v3045 = vunpack.c.l.b16 %v2933
        %v3046 = vunpack.c.l.b16 %v2934
        %v3047 = vunpack.c.l.b16 %v2935
        %v3048 = vunpack.c.l.b16 %v2936
        %v3049 = vunpack.c.l.b16 %v2937
        %v3050 = vunpack.c.l.b16 %v2938
        %v3051 = vunpack.c.l.b16 %v2939
        %v3052 = vunpack.c.l.b16 %v2940
        %v3053 = vunpack.c.l.b16 %v2941
        %v3054 = vunpack.c.l.b16 %v2942
        %v3055 = vpack.c.b16 %v3024, %v3023
        %v3056 = vpack.c.b16 %v3026, %v3025
        %v3057 = vpack.c.b16 %v3028, %v3027
        %v3058 = vpack.c.b16 %v3030, %v3029
        %v3059 = vpack.c.b16 %v3032, %v3031
        %v3060 = vpack.c.b16 %v3034, %v3033
        %v3061 = vpack.c.b16 %v3036, %v3035
        %v3062 = vpack.c.b16 %v3038, %v3037
        %v3063 = vpack.c.b16 %v3040, %v3039
        %v3064 = vpack.c.b16 %v3042, %v3041
        %v3065 = vpack.c.b16 %v3044, %v3043
        %v3066 = vpack.c.b16 %v3046, %v3045
        %v3067 = vpack.c.b16 %v3048, %v3047
        %v3068 = vpack.c.b16 %v3050, %v3049
        %v3069 = vpack.c.b16 %v3052, %v3051
        %v3070 = vpack.c.b16 %v3054, %v3053
        %v3103 = vunpack.c.l.b16 %v2975
        %v3104 = vunpack.c.l.b16 %v2976
        %v3105 = vunpack.c.l.b16 %v2977
        %v3106 = vunpack.c.l.b16 %v2978
        %v3107 = vunpack.c.l.b16 %v2979
        %v3108 = vunpack.c.l.b16 %v2980
        %v3109 = vunpack.c.l.b16 %v2981
        %v3110 = vunpack.c.l.b16 %v2982
        %v3111 = vunpack.c.l.b16 %v2983
        %v3112 = vunpack.c.l.b16 %v2984
        %v3113 = vunpack.c.l.b16 %v2985
        %v3114 = vunpack.c.l.b16 %v2986
        %v3115 = vunpack.c.l.b16 %v2987
        %v3116 = vunpack.c.l.b16 %v2988
        %v3117 = vunpack.c.l.b16 %v2989
        %v3118 = vunpack.c.l.b16 %v2990
        %v3119 = vpack.c.b16 %v3104, %v3103
        %v3120 = vpack.c.b16 %v3106, %v3105
        %v3121 = vpack.c.b16 %v3108, %v3107
        %v3122 = vpack.c.b16 %v3110, %v3109
        %v3123 = vpack.c.b16 %v3112, %v3111
        %v3124 = vpack.c.b16 %v3114, %v3113
        %v3125 = vpack.c.b16 %v3116, %v3115
        %v3126 = vpack.c.b16 %v3118, %v3117
        %3135 = vmatprep.subr.bf16.mxu0 0
        %3136 = vmatpush1.bf16.msra.mxu0 %v3119
        %3137 = vmatprep.subr.bf16.mxu0 0
        %3138 = vmatpush1.bf16.msra.mxu0 %v3120
        %3139 = vmatprep.subr.bf16.mxu0 0
        %3140 = vmatpush1.bf16.msra.mxu0 %v3121
        %3141 = vmatprep.subr.bf16.mxu0 0
        %3142 = vmatpush1.bf16.msra.mxu0 %v3122
        %3143 = vmatprep.subr.bf16.mxu0 0
        %3144 = vmatpush1.bf16.msra.mxu0 %v3123
        %3145 = vmatprep.subr.bf16.mxu0 0
        %3146 = vmatpush1.bf16.msra.mxu0 %v3124
        %3147 = vmatprep.subr.bf16.mxu0 0
        %3148 = vmatpush1.bf16.msra.mxu0 %v3125
        %3149 = vmatprep.subr.bf16.mxu0 0
        %3150 = vmatpush1.bf16.msra.mxu0 %v3126
        %3151 = vmatprep.subr.bf16.mxu0 0
        %3152 = vmatpush1.bf16.msra.mxu0 0
        %3153 = vmatprep.subr.bf16.mxu0 0
        %3154 = vmatpush1.bf16.msra.mxu0 0
        %3155 = vmatprep.subr.bf16.mxu0 0
        %3156 = vmatpush1.bf16.msra.mxu0 0
        %3157 = vmatprep.subr.bf16.mxu0 0
        %3158 = vmatpush1.bf16.msra.mxu0 0
        %3159 = vmatprep.subr.bf16.mxu0 0
        %3160 = vmatpush1.bf16.msra.mxu0 0
        %3161 = vmatprep.subr.bf16.mxu0 0
        %3162 = vmatpush1.bf16.msra.mxu0 0
        %3163 = vmatprep.subr.bf16.mxu0 0
        %3164 = vmatpush1.bf16.msra.mxu0 0
        %3165 = vmatprep.subr.bf16.mxu0 0
        %3166 = vmatpush1.bf16.msra.mxu0 0
        %3167 = vmatprep.mubr.bf16.mxu0 0
        %3168 = vmatmul.mubr.bf16.gmra.mrb[0].mxu0 %v3055
        %v3169 = vpop.f32.mrb[0].mxu0
        %v3170 = vadd.f32 0.0, %v3169
        %v3171 = vpop.f32.mrb[0].mxu0
        %v3172 = vpop.f32.mrb[0].mxu0
        %v3173 = vadd.f32 0.0, %v3172
        %v3174 = vpop.f32.mrb[0].mxu0
        %3175 = vmatprep.mubr.bf16.mxu0 0
        %3176 = vmatmul.mubr.bf16.gmra.mrb[0].mxu0 %v3056
        %v3177 = vpop.f32.mrb[0].mxu0
        %v3178 = vadd.f32 0.0, %v3177
        %v3179 = vpop.f32.mrb[0].mxu0
        %v3180 = vpop.f32.mrb[0].mxu0
        %v3181 = vadd.f32 0.0, %v3180
        %v3182 = vpop.f32.mrb[0].mxu0
        %3183 = vmatprep.mubr.bf16.mxu0 0
        %3184 = vmatmul.mubr.bf16.gmra.mrb[0].mxu0 %v3057
        %v3185 = vpop.f32.mrb[0].mxu0
        %v3186 = vadd.f32 0.0, %v3185
        %v3187 = vpop.f32.mrb[0].mxu0
        %v3188 = vpop.f32.mrb[0].mxu0
        %v3189 = vadd.f32 0.0, %v3188
        %v3190 = vpop.f32.mrb[0].mxu0
        %3191 = vmatprep.mubr.bf16.mxu0 0
        %3192 = vmatmul.mubr.bf16.gmra.mrb[0].mxu0 %v3058
        %v3193 = vpop.f32.mrb[0].mxu0
        %v3194 = vadd.f32 0.0, %v3193
        %v3195 = vpop.f32.mrb[0].mxu0
        %v3196 = vpop.f32.mrb[0].mxu0
        %v3197 = vadd.f32 0.0, %v3196
        %v3198 = vpop.f32.mrb[0].mxu0
        %3199 = vmatprep.mubr.bf16.mxu0 0
        %3200 = vmatmul.mubr.bf16.gmra.mrb[0].mxu0 %v3059
        %v3201 = vpop.f32.mrb[0].mxu0
        %v3202 = vadd.f32 0.0, %v3201
        %v3203 = vpop.f32.mrb[0].mxu0
        %v3204 = vpop.f32.mrb[0].mxu0
        %v3205 = vadd.f32 0.0, %v3204
        %v3206 = vpop.f32.mrb[0].mxu0
        %3207 = vmatprep.mubr.bf16.mxu0 0
        %3208 = vmatmul.mubr.bf16.gmra.mrb[0].mxu0 %v3060
        %v3209 = vpop.f32.mrb[0].mxu0
        %v3210 = vadd.f32 0.0, %v3209
        %v3211 = vpop.f32.mrb[0].mxu0
        %v3212 = vpop.f32.mrb[0].mxu0
        %v3213 = vadd.f32 0.0, %v3212
        %v3214 = vpop.f32.mrb[0].mxu0
        %3215 = vmatprep.mubr.bf16.mxu0 0
        %3216 = vmatmul.mubr.bf16.gmra.mrb[0].mxu0 %v3061
        %v3217 = vpop.f32.mrb[0].mxu0
        %v3218 = vadd.f32 0.0, %v3217
        %v3219 = vpop.f32.mrb[0].mxu0
        %v3220 = vpop.f32.mrb[0].mxu0
        %v3221 = vadd.f32 0.0, %v3220
        %v3222 = vpop.f32.mrb[0].mxu0
        %3223 = vmatprep.mubr.bf16.mxu0 0
        %3224 = vmatmul.mubr.bf16.gmra.mrb[0].mxu0 %v3062
        %v3225 = vpop.f32.mrb[0].mxu0
        %v3226 = vadd.f32 0.0, %v3225
        %v3227 = vpop.f32.mrb[0].mxu0
        %v3228 = vpop.f32.mrb[0].mxu0
        %v3229 = vadd.f32 0.0, %v3228
        %v3230 = vpop.f32.mrb[0].mxu0
        %3231 = vmatprep.mubr.bf16.mxu0 0
        %3232 = vmatmul.mubr.bf16.gmra.mrb[0].mxu0 %v3063
        %v3233 = vpop.f32.mrb[0].mxu0
        %v3234 = vadd.f32 0.0, %v3233
        %v3235 = vpop.f32.mrb[0].mxu0
        %v3236 = vpop.f32.mrb[0].mxu0
        %v3237 = vadd.f32 0.0, %v3236
        %v3238 = vpop.f32.mrb[0].mxu0
        %3239 = vmatprep.mubr.bf16.mxu0 0
        %3240 = vmatmul.mubr.bf16.gmra.mrb[0].mxu0 %v3064
        %v3241 = vpop.f32.mrb[0].mxu0
        %v3242 = vadd.f32 0.0, %v3241
        %v3243 = vpop.f32.mrb[0].mxu0
        %v3244 = vpop.f32.mrb[0].mxu0
        %v3245 = vadd.f32 0.0, %v3244
        %v3246 = vpop.f32.mrb[0].mxu0
        %3247 = vmatprep.mubr.bf16.mxu0 0
        %3248 = vmatmul.mubr.bf16.gmra.mrb[0].mxu0 %v3065
        %v3249 = vpop.f32.mrb[0].mxu0
        %v3250 = vadd.f32 0.0, %v3249
        %v3251 = vpop.f32.mrb[0].mxu0
        %v3252 = vpop.f32.mrb[0].mxu0
        %v3253 = vadd.f32 0.0, %v3252
        %v3254 = vpop.f32.mrb[0].mxu0
        %3255 = vmatprep.mubr.bf16.mxu0 0
        %3256 = vmatmul.mubr.bf16.gmra.mrb[0].mxu0 %v3066
        %v3257 = vpop.f32.mrb[0].mxu0
        %v3258 = vadd.f32 0.0, %v3257
        %v3259 = vpop.f32.mrb[0].mxu0
        %v3260 = vpop.f32.mrb[0].mxu0
        %v3261 = vadd.f32 0.0, %v3260
        %v3262 = vpop.f32.mrb[0].mxu0
        %3263 = vmatprep.mubr.bf16.mxu0 0
        %3264 = vmatmul.mubr.bf16.gmra.mrb[0].mxu0 %v3067
        %v3265 = vpop.f32.mrb[0].mxu0
        %v3266 = vadd.f32 0.0, %v3265
        %v3267 = vpop.f32.mrb[0].mxu0
        %v3268 = vpop.f32.mrb[0].mxu0
        %v3269 = vadd.f32 0.0, %v3268
        %v3270 = vpop.f32.mrb[0].mxu0
        %3271 = vmatprep.mubr.bf16.mxu0 0
        %3272 = vmatmul.mubr.bf16.gmra.mrb[0].mxu0 %v3068
        %v3273 = vpop.f32.mrb[0].mxu0
        %v3274 = vadd.f32 0.0, %v3273
        %v3275 = vpop.f32.mrb[0].mxu0
        %v3276 = vpop.f32.mrb[0].mxu0
        %v3277 = vadd.f32 0.0, %v3276
        %v3278 = vpop.f32.mrb[0].mxu0
        %3279 = vmatprep.mubr.bf16.mxu0 0
        %3280 = vmatmul.mubr.bf16.gmra.mrb[0].mxu0 %v3069
        %v3281 = vpop.f32.mrb[0].mxu0
        %v3282 = vadd.f32 0.0, %v3281
        %v3283 = vpop.f32.mrb[0].mxu0
        %v3284 = vpop.f32.mrb[0].mxu0
        %v3285 = vadd.f32 0.0, %v3284
        %v3286 = vpop.f32.mrb[0].mxu0
        %3287 = vmatprep.mubr.bf16.mxu0 0
        %3288 = vmatmul.mubr.bf16.gmra.mrb[0].mxu0 %v3070
        %v3289 = vpop.f32.mrb[0].mxu0
        %v3290 = vadd.f32 0.0, %v3289
        %v3291 = vpop.f32.mrb[0].mxu0
        %v3292 = vpop.f32.mrb[0].mxu0
        %v3293 = vadd.f32 0.0, %v3292
        %v3294 = vpop.f32.mrb[0].mxu0
        %3295 = vdwg.mxu0
        %v3296 = vadd.f32 %v2943, %v3170
        %v3297 = vadd.f32 %v2944, %v3173
        %v3298 = vadd.f32 %v2945, %v3178
        %v3299 = vadd.f32 %v2946, %v3181
        %v3300 = vadd.f32 %v2947, %v3186
        %v3301 = vadd.f32 %v2948, %v3189
        %v3302 = vadd.f32 %v2949, %v3194
        %v3303 = vadd.f32 %v2950, %v3197
        %v3304 = vadd.f32 %v2951, %v3202
        %v3305 = vadd.f32 %v2952, %v3205
        %v3306 = vadd.f32 %v2953, %v3210
        %v3307 = vadd.f32 %v2954, %v3213
        %v3308 = vadd.f32 %v2955, %v3218
        %v3309 = vadd.f32 %v2956, %v3221
        %v3310 = vadd.f32 %v2957, %v3226
        %v3311 = vadd.f32 %v2958, %v3229
        %v3312 = vadd.f32 %v2959, %v3234
        %v3313 = vadd.f32 %v2960, %v3237
        %v3314 = vadd.f32 %v2961, %v3242
        %v3315 = vadd.f32 %v2962, %v3245
        %v3316 = vadd.f32 %v2963, %v3250
        %v3317 = vadd.f32 %v2964, %v3253
        %v3318 = vadd.f32 %v2965, %v3258
        %v3319 = vadd.f32 %v2966, %v3261
        %v3320 = vadd.f32 %v2967, %v3266
        %v3321 = vadd.f32 %v2968, %v3269
        %v3322 = vadd.f32 %v2969, %v3274
        %v3323 = vadd.f32 %v2970, %v3277
        %v3324 = vadd.f32 %v2971, %v3282
        %v3325 = vadd.f32 %v2972, %v3285
        %v3326 = vadd.f32 %v2973, %v3290
        %v3327 = vadd.f32 %v2974, %v3293
        %3328 = vst [vmem:[#allocation3] sm:$0xff] %v3296
        %3329 = vst [vmem:[#allocation3 + $0x8] sm:$0xff] %v3297
        %3330 = vst [vmem:[#allocation3 + $0x10] sm:$0xff] %v3298
        %3331 = vst [vmem:[#allocation3 + $0x18] sm:$0xff] %v3299
        %3332 = vst [vmem:[#allocation3 + $0x20] sm:$0xff] %v3300
        %3333 = vst [vmem:[#allocation3 + $0x28] sm:$0xff] %v3301
        %3334 = vst [vmem:[#allocation3 + $0x30] sm:$0xff] %v3302
        %3335 = vst [vmem:[#allocation3 + $0x38] sm:$0xff] %v3303
        %3336 = vst [vmem:[#allocation3 + $0x40] sm:$0xff] %v3304
        %3337 = vst [vmem:[#allocation3 + $0x48] sm:$0xff] %v3305
        %3338 = vst [vmem:[#allocation3 + $0x50] sm:$0xff] %v3306
        %3339 = vst [vmem:[#allocation3 + $0x58] sm:$0xff] %v3307
        %3340 = vst [vmem:[#allocation3 + $0x60] sm:$0xff] %v3308
        %3341 = vst [vmem:[#allocation3 + $0x68] sm:$0xff] %v3309
        %3342 = vst [vmem:[#allocation3 + $0x70] sm:$0xff] %v3310
        %3343 = vst [vmem:[#allocation3 + $0x78] sm:$0xff] %v3311
        %3344 = vst [vmem:[#allocation3 + $0x80] sm:$0xff] %v3312
        %3345 = vst [vmem:[#allocation3 + $0x88] sm:$0xff] %v3313
        %3346 = vst [vmem:[#allocation3 + $0x90] sm:$0xff] %v3314
        %3347 = vst [vmem:[#allocation3 + $0x98] sm:$0xff] %v3315
        %3348 = vst [vmem:[#allocation3 + $0xa0] sm:$0xff] %v3316
        %3349 = vst [vmem:[#allocation3 + $0xa8] sm:$0xff] %v3317
        %3350 = vst [vmem:[#allocation3 + $0xb0] sm:$0xff] %v3318
        %3351 = vst [vmem:[#allocation3 + $0xb8] sm:$0xff] %v3319
        %3352 = vst [vmem:[#allocation3 + $0xc0] sm:$0xff] %v3320
        %3353 = vst [vmem:[#allocation3 + $0xc8] sm:$0xff] %v3321
        %3354 = vst [vmem:[#allocation3 + $0xd0] sm:$0xff] %v3322
        %3355 = vst [vmem:[#allocation3 + $0xd8] sm:$0xff] %v3323
        %3356 = vst [vmem:[#allocation3 + $0xe0] sm:$0xff] %v3324
        %3357 = vst [vmem:[#allocation3 + $0xe8] sm:$0xff] %v3325
        %3358 = vst [vmem:[#allocation3 + $0xf0] sm:$0xff] %v3326
        %3359 = vst [vmem:[#allocation3 + $0xf8] sm:$0xff] %v3327
        %v3360 = vld [vmem:[%s899] sm:$0xf]
        %v3361 = vld [vmem:[%s899 + $0x4] sm:$0xf]
        %v3362 = vld [vmem:[%s899 + $0x8] sm:$0x1]
        %v3363 = vld [vmem:[%s899 + $0xc] sm:$0xf]
        %v3364 = vld [vmem:[%s899 + $0x10] sm:$0xf]
        %v3365 = vld [vmem:[%s899 + $0x14] sm:$0x1]
        %v3366 = vld [vmem:[%s899 + $0x18] sm:$0xf]
        %v3367 = vld [vmem:[%s899 + $0x1c] sm:$0xf]
        %v3368 = vld [vmem:[%s899 + $0x20] sm:$0x1]
        %v3369 = vld [vmem:[%s899 + $0x24] sm:$0xf]
        %v3370 = vld [vmem:[%s899 + $0x28] sm:$0xf]
        %v3371 = vld [vmem:[%s899 + $0x2c] sm:$0x1]
        %v3372 = vld [vmem:[%s899 + $0x30] sm:$0xf]
        %v3373 = vld [vmem:[%s899 + $0x34] sm:$0xf]
        %v3374 = vld [vmem:[%s899 + $0x38] sm:$0x1]
        %v3375 = vld [vmem:[%s899 + $0x3c] sm:$0xf]
        %v3376 = vld [vmem:[%s899 + $0x40] sm:$0xf]
        %v3377 = vld [vmem:[%s899 + $0x44] sm:$0x1]
        %v3378 = vld [vmem:[%s899 + $0x48] sm:$0xf]
        %v3379 = vld [vmem:[%s899 + $0x4c] sm:$0xf]
        %v3380 = vld [vmem:[%s899 + $0x50] sm:$0x1]
        %v3381 = vld [vmem:[%s899 + $0x54] sm:$0xf]
        %v3382 = vld [vmem:[%s899 + $0x58] sm:$0xf]
        %v3383 = vld [vmem:[%s899 + $0x5c] sm:$0x1]
        %v3384 = vld [vmem:[%s899 + $0x60] sm:$0xf]
        %v3385 = vld [vmem:[%s899 + $0x64] sm:$0xf]
        %v3386 = vld [vmem:[%s899 + $0x68] sm:$0x1]
        %v3387 = vld [vmem:[%s899 + $0x6c] sm:$0xf]
        %v3388 = vld [vmem:[%s899 + $0x70] sm:$0xf]
        %v3389 = vld [vmem:[%s899 + $0x74] sm:$0x1]
        %v3390 = vld [vmem:[%s899 + $0x78] sm:$0xf]
        %v3391 = vld [vmem:[%s899 + $0x7c] sm:$0xf]
        %v3392 = vld [vmem:[%s899 + $0x80] sm:$0x1]
        %v3393 = vld [vmem:[%s899 + $0x84] sm:$0xf]
        %v3394 = vld [vmem:[%s899 + $0x88] sm:$0xf]
        %v3395 = vld [vmem:[%s899 + $0x8c] sm:$0x1]
        %v3396 = vld [vmem:[%s899 + $0x90] sm:$0xf]
        %v3397 = vld [vmem:[%s899 + $0x94] sm:$0xf]
        %v3398 = vld [vmem:[%s899 + $0x98] sm:$0x1]
        %v3399 = vld [vmem:[%s899 + $0x9c] sm:$0xf]
        %v3400 = vld [vmem:[%s899 + $0xa0] sm:$0xf]
        %v3401 = vld [vmem:[%s899 + $0xa4] sm:$0x1]
        %v3402 = vld [vmem:[%s899 + $0xa8] sm:$0xf]
        %v3403 = vld [vmem:[%s899 + $0xac] sm:$0xf]
        %v3404 = vld [vmem:[%s899 + $0xb0] sm:$0x1]
        %v3405 = vld [vmem:[%s899 + $0xb4] sm:$0xf]
        %v3406 = vld [vmem:[%s899 + $0xb8] sm:$0xf]
        %v3407 = vld [vmem:[%s899 + $0xbc] sm:$0x1]
        %v3409 = vshrl.u32 %v3360, 16
        %v3411 = vrot.slane %v3409, 4
        %v3412 = vshll.u32 %v3360, 16
        %v3414 = vrot.slane %v3412, 5
        %v3415 = vor.u32 %v3411, %v3414
        %v3416 = vrot.slane %v3415, 4
        %v3418 = vshll.u32 %v3361, 16
        %v3420 = vrot.slane %v3418, 5
        %v3421 = vsel %vm1545, %v3416, %v3420
        %v3422 = vshrl.u32 %v3361, 16
        %v3424 = vrot.slane %v3422, 4
        %v3425 = vor.u32 %v3424, %v3420
        %v3426 = vrot.slane %v3425, 4
        %v3428 = vshll.u32 %v3362, 16
        %v3430 = vrot.slane %v3428, 5
        %v3431 = vsel %vm1545, %v3426, %v3430
        %v3433 = vshrl.u32 %v3363, 16
        %v3435 = vrot.slane %v3433, 4
        %v3436 = vshll.u32 %v3363, 16
        %v3438 = vrot.slane %v3436, 5
        %v3439 = vor.u32 %v3435, %v3438
        %v3440 = vrot.slane %v3439, 4
        %v3442 = vshll.u32 %v3364, 16
        %v3444 = vrot.slane %v3442, 5
        %v3445 = vsel %vm1545, %v3440, %v3444
        %v3446 = vshrl.u32 %v3364, 16
        %v3448 = vrot.slane %v3446, 4
        %v3449 = vor.u32 %v3448, %v3444
        %v3450 = vrot.slane %v3449, 4
        %v3452 = vshll.u32 %v3365, 16
        %v3454 = vrot.slane %v3452, 5
        %v3455 = vsel %vm1545, %v3450, %v3454
        %v3457 = vshrl.u32 %v3366, 16
        %v3459 = vrot.slane %v3457, 4
        %v3460 = vshll.u32 %v3366, 16
        %v3462 = vrot.slane %v3460, 5
        %v3463 = vor.u32 %v3459, %v3462
        %v3464 = vrot.slane %v3463, 4
        %v3466 = vshll.u32 %v3367, 16
        %v3468 = vrot.slane %v3466, 5
        %v3469 = vsel %vm1545, %v3464, %v3468
        %v3470 = vshrl.u32 %v3367, 16
        %v3472 = vrot.slane %v3470, 4
        %v3473 = vor.u32 %v3472, %v3468
        %v3474 = vrot.slane %v3473, 4
        %v3476 = vshll.u32 %v3368, 16
        %v3478 = vrot.slane %v3476, 5
        %v3479 = vsel %vm1545, %v3474, %v3478
        %v3481 = vshrl.u32 %v3369, 16
        %v3483 = vrot.slane %v3481, 4
        %v3484 = vshll.u32 %v3369, 16
        %v3486 = vrot.slane %v3484, 5
        %v3487 = vor.u32 %v3483, %v3486
        %v3488 = vrot.slane %v3487, 4
        %v3490 = vshll.u32 %v3370, 16
        %v3492 = vrot.slane %v3490, 5
        %v3493 = vsel %vm1545, %v3488, %v3492
        %v3494 = vshrl.u32 %v3370, 16
        %v3496 = vrot.slane %v3494, 4
        %v3497 = vor.u32 %v3496, %v3492
        %v3498 = vrot.slane %v3497, 4
        %v3500 = vshll.u32 %v3371, 16
        %v3502 = vrot.slane %v3500, 5
        %v3503 = vsel %vm1545, %v3498, %v3502
        %v3505 = vshrl.u32 %v3372, 16
        %v3507 = vrot.slane %v3505, 4
        %v3508 = vshll.u32 %v3372, 16
        %v3510 = vrot.slane %v3508, 5
        %v3511 = vor.u32 %v3507, %v3510
        %v3512 = vrot.slane %v3511, 4
        %v3514 = vshll.u32 %v3373, 16
        %v3516 = vrot.slane %v3514, 5
        %v3517 = vsel %vm1545, %v3512, %v3516
        %v3518 = vshrl.u32 %v3373, 16
        %v3520 = vrot.slane %v3518, 4
        %v3521 = vor.u32 %v3520, %v3516
        %v3522 = vrot.slane %v3521, 4
        %v3524 = vshll.u32 %v3374, 16
        %v3526 = vrot.slane %v3524, 5
        %v3527 = vsel %vm1545, %v3522, %v3526
        %v3529 = vshrl.u32 %v3375, 16
        %v3531 = vrot.slane %v3529, 4
        %v3532 = vshll.u32 %v3375, 16
        %v3534 = vrot.slane %v3532, 5
        %v3535 = vor.u32 %v3531, %v3534
        %v3536 = vrot.slane %v3535, 4
        %v3538 = vshll.u32 %v3376, 16
        %v3540 = vrot.slane %v3538, 5
        %v3541 = vsel %vm1545, %v3536, %v3540
        %v3542 = vshrl.u32 %v3376, 16
        %v3544 = vrot.slane %v3542, 4
        %v3545 = vor.u32 %v3544, %v3540
        %v3546 = vrot.slane %v3545, 4
        %v3548 = vshll.u32 %v3377, 16
        %v3550 = vrot.slane %v3548, 5
        %v3551 = vsel %vm1545, %v3546, %v3550
        %v3553 = vshrl.u32 %v3378, 16
        %v3555 = vrot.slane %v3553, 4
        %v3556 = vshll.u32 %v3378, 16
        %v3558 = vrot.slane %v3556, 5
        %v3559 = vor.u32 %v3555, %v3558
        %v3560 = vrot.slane %v3559, 4
        %v3562 = vshll.u32 %v3379, 16
        %v3564 = vrot.slane %v3562, 5
        %v3565 = vsel %vm1545, %v3560, %v3564
        %v3566 = vshrl.u32 %v3379, 16
        %v3568 = vrot.slane %v3566, 4
        %v3569 = vor.u32 %v3568, %v3564
        %v3570 = vrot.slane %v3569, 4
        %v3572 = vshll.u32 %v3380, 16
        %v3574 = vrot.slane %v3572, 5
        %v3575 = vsel %vm1545, %v3570, %v3574
        %v3577 = vshrl.u32 %v3381, 16
        %v3579 = vrot.slane %v3577, 4
        %v3580 = vshll.u32 %v3381, 16
        %v3582 = vrot.slane %v3580, 5
        %v3583 = vor.u32 %v3579, %v3582
        %v3584 = vrot.slane %v3583, 4
        %v3586 = vshll.u32 %v3382, 16
        %v3588 = vrot.slane %v3586, 5
        %v3589 = vsel %vm1545, %v3584, %v3588
        %v3590 = vshrl.u32 %v3382, 16
        %v3592 = vrot.slane %v3590, 4
        %v3593 = vor.u32 %v3592, %v3588
        %v3594 = vrot.slane %v3593, 4
        %v3596 = vshll.u32 %v3383, 16
        %v3598 = vrot.slane %v3596, 5
        %v3599 = vsel %vm1545, %v3594, %v3598
        %v3601 = vshrl.u32 %v3384, 16
        %v3603 = vrot.slane %v3601, 4
        %v3604 = vshll.u32 %v3384, 16
        %v3606 = vrot.slane %v3604, 5
        %v3607 = vor.u32 %v3603, %v3606
        %v3608 = vrot.slane %v3607, 4
        %v3610 = vshll.u32 %v3385, 16
        %v3612 = vrot.slane %v3610, 5
        %v3613 = vsel %vm1545, %v3608, %v3612
        %v3614 = vshrl.u32 %v3385, 16
        %v3616 = vrot.slane %v3614, 4
        %v3617 = vor.u32 %v3616, %v3612
        %v3618 = vrot.slane %v3617, 4
        %v3620 = vshll.u32 %v3386, 16
        %v3622 = vrot.slane %v3620, 5
        %v3623 = vsel %vm1545, %v3618, %v3622
        %v3625 = vshrl.u32 %v3387, 16
        %v3627 = vrot.slane %v3625, 4
        %v3628 = vshll.u32 %v3387, 16
        %v3630 = vrot.slane %v3628, 5
        %v3631 = vor.u32 %v3627, %v3630
        %v3632 = vrot.slane %v3631, 4
        %v3634 = vshll.u32 %v3388, 16
        %v3636 = vrot.slane %v3634, 5
        %v3637 = vsel %vm1545, %v3632, %v3636
        %v3638 = vshrl.u32 %v3388, 16
        %v3640 = vrot.slane %v3638, 4
        %v3641 = vor.u32 %v3640, %v3636
        %v3642 = vrot.slane %v3641, 4
        %v3644 = vshll.u32 %v3389, 16
        %v3646 = vrot.slane %v3644, 5
        %v3647 = vsel %vm1545, %v3642, %v3646
        %v3649 = vshrl.u32 %v3390, 16
        %v3651 = vrot.slane %v3649, 4
        %v3652 = vshll.u32 %v3390, 16
        %v3654 = vrot.slane %v3652, 5
        %v3655 = vor.u32 %v3651, %v3654
        %v3656 = vrot.slane %v3655, 4
        %v3658 = vshll.u32 %v3391, 16
        %v3660 = vrot.slane %v3658, 5
        %v3661 = vsel %vm1545, %v3656, %v3660
        %v3662 = vshrl.u32 %v3391, 16
        %v3664 = vrot.slane %v3662, 4
        %v3665 = vor.u32 %v3664, %v3660
        %v3666 = vrot.slane %v3665, 4
        %v3668 = vshll.u32 %v3392, 16
        %v3670 = vrot.slane %v3668, 5
        %v3671 = vsel %vm1545, %v3666, %v3670
        %v3673 = vshrl.u32 %v3393, 16
        %v3675 = vrot.slane %v3673, 4
        %v3676 = vshll.u32 %v3393, 16
        %v3678 = vrot.slane %v3676, 5
        %v3679 = vor.u32 %v3675, %v3678
        %v3680 = vrot.slane %v3679, 4
        %v3682 = vshll.u32 %v3394, 16
        %v3684 = vrot.slane %v3682, 5
        %v3685 = vsel %vm1545, %v3680, %v3684
        %v3686 = vshrl.u32 %v3394, 16
        %v3688 = vrot.slane %v3686, 4
        %v3689 = vor.u32 %v3688, %v3684
        %v3690 = vrot.slane %v3689, 4
        %v3692 = vshll.u32 %v3395, 16
        %v3694 = vrot.slane %v3692, 5
        %v3695 = vsel %vm1545, %v3690, %v3694
        %v3697 = vshrl.u32 %v3396, 16
        %v3699 = vrot.slane %v3697, 4
        %v3700 = vshll.u32 %v3396, 16
        %v3702 = vrot.slane %v3700, 5
        %v3703 = vor.u32 %v3699, %v3702
        %v3704 = vrot.slane %v3703, 4
        %v3706 = vshll.u32 %v3397, 16
        %v3708 = vrot.slane %v3706, 5
        %v3709 = vsel %vm1545, %v3704, %v3708
        %v3710 = vshrl.u32 %v3397, 16
        %v3712 = vrot.slane %v3710, 4
        %v3713 = vor.u32 %v3712, %v3708
        %v3714 = vrot.slane %v3713, 4
        %v3716 = vshll.u32 %v3398, 16
        %v3718 = vrot.slane %v3716, 5
        %v3719 = vsel %vm1545, %v3714, %v3718
        %v3721 = vshrl.u32 %v3399, 16
        %v3723 = vrot.slane %v3721, 4
        %v3724 = vshll.u32 %v3399, 16
        %v3726 = vrot.slane %v3724, 5
        %v3727 = vor.u32 %v3723, %v3726
        %v3728 = vrot.slane %v3727, 4
        %v3730 = vshll.u32 %v3400, 16
        %v3732 = vrot.slane %v3730, 5
        %v3733 = vsel %vm1545, %v3728, %v3732
        %v3734 = vshrl.u32 %v3400, 16
        %v3736 = vrot.slane %v3734, 4
        %v3737 = vor.u32 %v3736, %v3732
        %v3738 = vrot.slane %v3737, 4
        %v3740 = vshll.u32 %v3401, 16
        %v3742 = vrot.slane %v3740, 5
        %v3743 = vsel %vm1545, %v3738, %v3742
        %v3745 = vshrl.u32 %v3402, 16
        %v3747 = vrot.slane %v3745, 4
        %v3748 = vshll.u32 %v3402, 16
        %v3750 = vrot.slane %v3748, 5
        %v3751 = vor.u32 %v3747, %v3750
        %v3752 = vrot.slane %v3751, 4
        %v3754 = vshll.u32 %v3403, 16
        %v3756 = vrot.slane %v3754, 5
        %v3757 = vsel %vm1545, %v3752, %v3756
        %v3758 = vshrl.u32 %v3403, 16
        %v3760 = vrot.slane %v3758, 4
        %v3761 = vor.u32 %v3760, %v3756
        %v3762 = vrot.slane %v3761, 4
        %v3764 = vshll.u32 %v3404, 16
        %v3766 = vrot.slane %v3764, 5
        %v3767 = vsel %vm1545, %v3762, %v3766
        %v3769 = vshrl.u32 %v3405, 16
        %v3771 = vrot.slane %v3769, 4
        %v3772 = vshll.u32 %v3405, 16
        %v3774 = vrot.slane %v3772, 5
        %v3775 = vor.u32 %v3771, %v3774
        %v3776 = vrot.slane %v3775, 4
        %v3778 = vshll.u32 %v3406, 16
        %v3780 = vrot.slane %v3778, 5
        %v3781 = vsel %vm1545, %v3776, %v3780
        %v3782 = vshrl.u32 %v3406, 16
        %v3784 = vrot.slane %v3782, 4
        %v3785 = vor.u32 %v3784, %v3780
        %v3786 = vrot.slane %v3785, 4
        %v3788 = vshll.u32 %v3407, 16
        %v3790 = vrot.slane %v3788, 5
        %v3791 = vsel %vm1545, %v3786, %v3790
        %v3792 = vld [vmem:[#allocation3] sm:$0xff]
        %v3793 = vld [vmem:[#allocation3 + $0x8] sm:$0xff]
        %v3794 = vld [vmem:[#allocation3 + $0x10] sm:$0xff]
        %v3795 = vld [vmem:[#allocation3 + $0x18] sm:$0xff]
        %v3796 = vld [vmem:[#allocation3 + $0x20] sm:$0xff]
        %v3797 = vld [vmem:[#allocation3 + $0x28] sm:$0xff]
        %v3798 = vld [vmem:[#allocation3 + $0x30] sm:$0xff]
        %v3799 = vld [vmem:[#allocation3 + $0x38] sm:$0xff]
        %v3800 = vld [vmem:[#allocation3 + $0x40] sm:$0xff]
        %v3801 = vld [vmem:[#allocation3 + $0x48] sm:$0xff]
        %v3802 = vld [vmem:[#allocation3 + $0x50] sm:$0xff]
        %v3803 = vld [vmem:[#allocation3 + $0x58] sm:$0xff]
        %v3804 = vld [vmem:[#allocation3 + $0x60] sm:$0xff]
        %v3805 = vld [vmem:[#allocation3 + $0x68] sm:$0xff]
        %v3806 = vld [vmem:[#allocation3 + $0x70] sm:$0xff]
        %v3807 = vld [vmem:[#allocation3 + $0x78] sm:$0xff]
        %v3808 = vld [vmem:[#allocation3 + $0x80] sm:$0xff]
        %v3809 = vld [vmem:[#allocation3 + $0x88] sm:$0xff]
        %v3810 = vld [vmem:[#allocation3 + $0x90] sm:$0xff]
        %v3811 = vld [vmem:[#allocation3 + $0x98] sm:$0xff]
        %v3812 = vld [vmem:[#allocation3 + $0xa0] sm:$0xff]
        %v3813 = vld [vmem:[#allocation3 + $0xa8] sm:$0xff]
        %v3814 = vld [vmem:[#allocation3 + $0xb0] sm:$0xff]
        %v3815 = vld [vmem:[#allocation3 + $0xb8] sm:$0xff]
        %v3816 = vld [vmem:[#allocation3 + $0xc0] sm:$0xff]
        %v3817 = vld [vmem:[#allocation3 + $0xc8] sm:$0xff]
        %v3818 = vld [vmem:[#allocation3 + $0xd0] sm:$0xff]
        %v3819 = vld [vmem:[#allocation3 + $0xd8] sm:$0xff]
        %v3820 = vld [vmem:[#allocation3 + $0xe0] sm:$0xff]
        %v3821 = vld [vmem:[#allocation3 + $0xe8] sm:$0xff]
        %v3822 = vld [vmem:[#allocation3 + $0xf0] sm:$0xff]
        %v3823 = vld [vmem:[#allocation3 + $0xf8] sm:$0xff]
        %v3824 = vld [vmem:[#allocation7 + $0x100] sm:$0xf]
        %v3825 = vld [vmem:[#allocation7 + $0x104] sm:$0xf]
        %v3826 = vld [vmem:[#allocation7 + $0x108] sm:$0xf]
        %v3827 = vld [vmem:[#allocation7 + $0x10c] sm:$0xf]
        %v3828 = vld [vmem:[#allocation7 + $0x110] sm:$0xf]
        %v3829 = vld [vmem:[#allocation7 + $0x114] sm:$0xf]
        %v3830 = vld [vmem:[#allocation7 + $0x118] sm:$0xf]
        %v3831 = vld [vmem:[#allocation7 + $0x11c] sm:$0xf]
        %v3832 = vld [vmem:[#allocation7 + $0x120] sm:$0xf]
        %v3833 = vld [vmem:[#allocation7 + $0x124] sm:$0xf]
        %v3834 = vld [vmem:[#allocation7 + $0x128] sm:$0xf]
        %v3835 = vld [vmem:[#allocation7 + $0x12c] sm:$0xf]
        %v3836 = vld [vmem:[#allocation7 + $0x130] sm:$0xf]
        %v3837 = vld [vmem:[#allocation7 + $0x134] sm:$0xf]
        %v3838 = vld [vmem:[#allocation7 + $0x138] sm:$0xf]
        %v3839 = vld [vmem:[#allocation7 + $0x13c] sm:$0xf]
        %v3840 = vunpack.c.l.b16 %v3421
        %v3841 = vunpack.c.l.b16 %v3431
        %v3842 = vunpack.c.l.b16 %v3445
        %v3843 = vunpack.c.l.b16 %v3455
        %v3844 = vunpack.c.l.b16 %v3469
        %v3845 = vunpack.c.l.b16 %v3479
        %v3846 = vunpack.c.l.b16 %v3493
        %v3847 = vunpack.c.l.b16 %v3503
        %v3848 = vunpack.c.l.b16 %v3517
        %v3849 = vunpack.c.l.b16 %v3527
        %v3850 = vunpack.c.l.b16 %v3541
        %v3851 = vunpack.c.l.b16 %v3551
        %v3852 = vunpack.c.l.b16 %v3565
        %v3853 = vunpack.c.l.b16 %v3575
        %v3854 = vunpack.c.l.b16 %v3589
        %v3855 = vunpack.c.l.b16 %v3599
        %v3856 = vunpack.c.l.b16 %v3613
        %v3857 = vunpack.c.l.b16 %v3623
        %v3858 = vunpack.c.l.b16 %v3637
        %v3859 = vunpack.c.l.b16 %v3647
        %v3860 = vunpack.c.l.b16 %v3661
        %v3861 = vunpack.c.l.b16 %v3671
        %v3862 = vunpack.c.l.b16 %v3685
        %v3863 = vunpack.c.l.b16 %v3695
        %v3864 = vunpack.c.l.b16 %v3709
        %v3865 = vunpack.c.l.b16 %v3719
        %v3866 = vunpack.c.l.b16 %v3733
        %v3867 = vunpack.c.l.b16 %v3743
        %v3868 = vunpack.c.l.b16 %v3757
        %v3869 = vunpack.c.l.b16 %v3767
        %v3870 = vunpack.c.l.b16 %v3781
        %v3871 = vunpack.c.l.b16 %v3791
        %v3872 = vpack.c.b16 %v3841, %v3840
        %v3873 = vpack.c.b16 %v3843, %v3842
        %v3874 = vpack.c.b16 %v3845, %v3844
        %v3875 = vpack.c.b16 %v3847, %v3846
        %v3876 = vpack.c.b16 %v3849, %v3848
        %v3877 = vpack.c.b16 %v3851, %v3850
        %v3878 = vpack.c.b16 %v3853, %v3852
        %v3879 = vpack.c.b16 %v3855, %v3854
        %v3880 = vpack.c.b16 %v3857, %v3856
        %v3881 = vpack.c.b16 %v3859, %v3858
        %v3882 = vpack.c.b16 %v3861, %v3860
        %v3883 = vpack.c.b16 %v3863, %v3862
        %v3884 = vpack.c.b16 %v3865, %v3864
        %v3885 = vpack.c.b16 %v3867, %v3866
        %v3886 = vpack.c.b16 %v3869, %v3868
        %v3887 = vpack.c.b16 %v3871, %v3870
        %v3920 = vunpack.c.l.b16 %v3824
        %v3921 = vunpack.c.l.b16 %v3825
        %v3922 = vunpack.c.l.b16 %v3826
        %v3923 = vunpack.c.l.b16 %v3827
        %v3924 = vunpack.c.l.b16 %v3828
        %v3925 = vunpack.c.l.b16 %v3829
        %v3926 = vunpack.c.l.b16 %v3830
        %v3927 = vunpack.c.l.b16 %v3831
        %v3928 = vunpack.c.l.b16 %v3832
        %v3929 = vunpack.c.l.b16 %v3833
        %v3930 = vunpack.c.l.b16 %v3834
        %v3931 = vunpack.c.l.b16 %v3835
        %v3932 = vunpack.c.l.b16 %v3836
        %v3933 = vunpack.c.l.b16 %v3837
        %v3934 = vunpack.c.l.b16 %v3838
        %v3935 = vunpack.c.l.b16 %v3839
        %v3936 = vpack.c.b16 %v3921, %v3920
        %v3937 = vpack.c.b16 %v3923, %v3922
        %v3938 = vpack.c.b16 %v3925, %v3924
        %v3939 = vpack.c.b16 %v3927, %v3926
        %v3940 = vpack.c.b16 %v3929, %v3928
        %v3941 = vpack.c.b16 %v3931, %v3930
        %v3942 = vpack.c.b16 %v3933, %v3932
        %v3943 = vpack.c.b16 %v3935, %v3934
        %3952 = vmatprep.subr.bf16.mxu0 0
        %3953 = vmatpush1.bf16.msra.mxu0 %v3936
        %3954 = vmatprep.subr.bf16.mxu0 0
        %3955 = vmatpush1.bf16.msra.mxu0 %v3937
        %3956 = vmatprep.subr.bf16.mxu0 0
        %3957 = vmatpush1.bf16.msra.mxu0 %v3938
        %3958 = vmatprep.subr.bf16.mxu0 0
        %3959 = vmatpush1.bf16.msra.mxu0 %v3939
        %3960 = vmatprep.subr.bf16.mxu0 0
        %3961 = vmatpush1.bf16.msra.mxu0 %v3940
        %3962 = vmatprep.subr.bf16.mxu0 0
        %3963 = vmatpush1.bf16.msra.mxu0 %v3941
        %3964 = vmatprep.subr.bf16.mxu0 0
        %3965 = vmatpush1.bf16.msra.mxu0 %v3942
        %3966 = vmatprep.subr.bf16.mxu0 0
        %3967 = vmatpush1.bf16.msra.mxu0 %v3943
        %3968 = vmatprep.subr.bf16.mxu0 0
        %3969 = vmatpush1.bf16.msra.mxu0 0
        %3970 = vmatprep.subr.bf16.mxu0 0
        %3971 = vmatpush1.bf16.msra.mxu0 0
        %3972 = vmatprep.subr.bf16.mxu0 0
        %3973 = vmatpush1.bf16.msra.mxu0 0
        %3974 = vmatprep.subr.bf16.mxu0 0
        %3975 = vmatpush1.bf16.msra.mxu0 0
        %3976 = vmatprep.subr.bf16.mxu0 0
        %3977 = vmatpush1.bf16.msra.mxu0 0
        %3978 = vmatprep.subr.bf16.mxu0 0
        %3979 = vmatpush1.bf16.msra.mxu0 0
        %3980 = vmatprep.subr.bf16.mxu0 0
        %3981 = vmatpush1.bf16.msra.mxu0 0
        %3982 = vmatprep.subr.bf16.mxu0 0
        %3983 = vmatpush1.bf16.msra.mxu0 0
        %3984 = vmatprep.mubr.bf16.mxu0 0
        %3985 = vmatmul.mubr.bf16.gmra.mrb[0].mxu0 %v3872
        %v3986 = vpop.f32.mrb[0].mxu0
        %v3987 = vadd.f32 0.0, %v3986
        %v3988 = vpop.f32.mrb[0].mxu0
        %v3989 = vpop.f32.mrb[0].mxu0
        %v3990 = vadd.f32 0.0, %v3989
        %v3991 = vpop.f32.mrb[0].mxu0
        %3992 = vmatprep.mubr.bf16.mxu0 0
        %3993 = vmatmul.mubr.bf16.gmra.mrb[0].mxu0 %v3873
        %v3994 = vpop.f32.mrb[0].mxu0
        %v3995 = vadd.f32 0.0, %v3994
        %v3996 = vpop.f32.mrb[0].mxu0
        %v3997 = vpop.f32.mrb[0].mxu0
        %v3998 = vadd.f32 0.0, %v3997
        %v3999 = vpop.f32.mrb[0].mxu0
        %4000 = vmatprep.mubr.bf16.mxu0 0
        %4001 = vmatmul.mubr.bf16.gmra.mrb[0].mxu0 %v3874
        %v4002 = vpop.f32.mrb[0].mxu0
        %v4003 = vadd.f32 0.0, %v4002
        %v4004 = vpop.f32.mrb[0].mxu0
        %v4005 = vpop.f32.mrb[0].mxu0
        %v4006 = vadd.f32 0.0, %v4005
        %v4007 = vpop.f32.mrb[0].mxu0
        %4008 = vmatprep.mubr.bf16.mxu0 0
        %4009 = vmatmul.mubr.bf16.gmra.mrb[0].mxu0 %v3875
        %v4010 = vpop.f32.mrb[0].mxu0
        %v4011 = vadd.f32 0.0, %v4010
        %v4012 = vpop.f32.mrb[0].mxu0
        %v4013 = vpop.f32.mrb[0].mxu0
        %v4014 = vadd.f32 0.0, %v4013
        %v4015 = vpop.f32.mrb[0].mxu0
        %4016 = vmatprep.mubr.bf16.mxu0 0
        %4017 = vmatmul.mubr.bf16.gmra.mrb[0].mxu0 %v3876
        %v4018 = vpop.f32.mrb[0].mxu0
        %v4019 = vadd.f32 0.0, %v4018
        %v4020 = vpop.f32.mrb[0].mxu0
        %v4021 = vpop.f32.mrb[0].mxu0
        %v4022 = vadd.f32 0.0, %v4021
        %v4023 = vpop.f32.mrb[0].mxu0
        %4024 = vmatprep.mubr.bf16.mxu0 0
        %4025 = vmatmul.mubr.bf16.gmra.mrb[0].mxu0 %v3877
        %v4026 = vpop.f32.mrb[0].mxu0
        %v4027 = vadd.f32 0.0, %v4026
        %v4028 = vpop.f32.mrb[0].mxu0
        %v4029 = vpop.f32.mrb[0].mxu0
        %v4030 = vadd.f32 0.0, %v4029
        %v4031 = vpop.f32.mrb[0].mxu0
        %4032 = vmatprep.mubr.bf16.mxu0 0
        %4033 = vmatmul.mubr.bf16.gmra.mrb[0].mxu0 %v3878
        %v4034 = vpop.f32.mrb[0].mxu0
        %v4035 = vadd.f32 0.0, %v4034
        %v4036 = vpop.f32.mrb[0].mxu0
        %v4037 = vpop.f32.mrb[0].mxu0
        %v4038 = vadd.f32 0.0, %v4037
        %v4039 = vpop.f32.mrb[0].mxu0
        %4040 = vmatprep.mubr.bf16.mxu0 0
        %4041 = vmatmul.mubr.bf16.gmra.mrb[0].mxu0 %v3879
        %v4042 = vpop.f32.mrb[0].mxu0
        %v4043 = vadd.f32 0.0, %v4042
        %v4044 = vpop.f32.mrb[0].mxu0
        %v4045 = vpop.f32.mrb[0].mxu0
        %v4046 = vadd.f32 0.0, %v4045
        %v4047 = vpop.f32.mrb[0].mxu0
        %4048 = vmatprep.mubr.bf16.mxu0 0
        %4049 = vmatmul.mubr.bf16.gmra.mrb[0].mxu0 %v3880
        %v4050 = vpop.f32.mrb[0].mxu0
        %v4051 = vadd.f32 0.0, %v4050
        %v4052 = vpop.f32.mrb[0].mxu0
        %v4053 = vpop.f32.mrb[0].mxu0
        %v4054 = vadd.f32 0.0, %v4053
        %v4055 = vpop.f32.mrb[0].mxu0
        %4056 = vmatprep.mubr.bf16.mxu0 0
        %4057 = vmatmul.mubr.bf16.gmra.mrb[0].mxu0 %v3881
        %v4058 = vpop.f32.mrb[0].mxu0
        %v4059 = vadd.f32 0.0, %v4058
        %v4060 = vpop.f32.mrb[0].mxu0
        %v4061 = vpop.f32.mrb[0].mxu0
        %v4062 = vadd.f32 0.0, %v4061
        %v4063 = vpop.f32.mrb[0].mxu0
        %4064 = vmatprep.mubr.bf16.mxu0 0
        %4065 = vmatmul.mubr.bf16.gmra.mrb[0].mxu0 %v3882
        %v4066 = vpop.f32.mrb[0].mxu0
        %v4067 = vadd.f32 0.0, %v4066
        %v4068 = vpop.f32.mrb[0].mxu0
        %v4069 = vpop.f32.mrb[0].mxu0
        %v4070 = vadd.f32 0.0, %v4069
        %v4071 = vpop.f32.mrb[0].mxu0
        %4072 = vmatprep.mubr.bf16.mxu0 0
        %4073 = vmatmul.mubr.bf16.gmra.mrb[0].mxu0 %v3883
        %v4074 = vpop.f32.mrb[0].mxu0
        %v4075 = vadd.f32 0.0, %v4074
        %v4076 = vpop.f32.mrb[0].mxu0
        %v4077 = vpop.f32.mrb[0].mxu0
        %v4078 = vadd.f32 0.0, %v4077
        %v4079 = vpop.f32.mrb[0].mxu0
        %4080 = vmatprep.mubr.bf16.mxu0 0
        %4081 = vmatmul.mubr.bf16.gmra.mrb[0].mxu0 %v3884
        %v4082 = vpop.f32.mrb[0].mxu0
        %v4083 = vadd.f32 0.0, %v4082
        %v4084 = vpop.f32.mrb[0].mxu0
        %v4085 = vpop.f32.mrb[0].mxu0
        %v4086 = vadd.f32 0.0, %v4085
        %v4087 = vpop.f32.mrb[0].mxu0
        %4088 = vmatprep.mubr.bf16.mxu0 0
        %4089 = vmatmul.mubr.bf16.gmra.mrb[0].mxu0 %v3885
        %v4090 = vpop.f32.mrb[0].mxu0
        %v4091 = vadd.f32 0.0, %v4090
        %v4092 = vpop.f32.mrb[0].mxu0
        %v4093 = vpop.f32.mrb[0].mxu0
        %v4094 = vadd.f32 0.0, %v4093
        %v4095 = vpop.f32.mrb[0].mxu0
        %4096 = vmatprep.mubr.bf16.mxu0 0
        %4097 = vmatmul.mubr.bf16.gmra.mrb[0].mxu0 %v3886
        %v4098 = vpop.f32.mrb[0].mxu0
        %v4099 = vadd.f32 0.0, %v4098
        %v4100 = vpop.f32.mrb[0].mxu0
        %v4101 = vpop.f32.mrb[0].mxu0
        %v4102 = vadd.f32 0.0, %v4101
        %v4103 = vpop.f32.mrb[0].mxu0
        %4104 = vmatprep.mubr.bf16.mxu0 0
        %4105 = vmatmul.mubr.bf16.gmra.mrb[0].mxu0 %v3887
        %v4106 = vpop.f32.mrb[0].mxu0
        %v4107 = vadd.f32 0.0, %v4106
        %v4108 = vpop.f32.mrb[0].mxu0
        %v4109 = vpop.f32.mrb[0].mxu0
        %v4110 = vadd.f32 0.0, %v4109
        %v4111 = vpop.f32.mrb[0].mxu0
        %4112 = vdwg.mxu0
        %v4113 = vadd.f32 %v3792, %v3987
        %v4114 = vadd.f32 %v3793, %v3990
        %v4115 = vadd.f32 %v3794, %v3995
        %v4116 = vadd.f32 %v3795, %v3998
        %v4117 = vadd.f32 %v3796, %v4003
        %v4118 = vadd.f32 %v3797, %v4006
        %v4119 = vadd.f32 %v3798, %v4011
        %v4120 = vadd.f32 %v3799, %v4014
        %v4121 = vadd.f32 %v3800, %v4019
        %v4122 = vadd.f32 %v3801, %v4022
        %v4123 = vadd.f32 %v3802, %v4027
        %v4124 = vadd.f32 %v3803, %v4030
        %v4125 = vadd.f32 %v3804, %v4035
        %v4126 = vadd.f32 %v3805, %v4038
        %v4127 = vadd.f32 %v3806, %v4043
        %v4128 = vadd.f32 %v3807, %v4046
        %v4129 = vadd.f32 %v3808, %v4051
        %v4130 = vadd.f32 %v3809, %v4054
        %v4131 = vadd.f32 %v3810, %v4059
        %v4132 = vadd.f32 %v3811, %v4062
        %v4133 = vadd.f32 %v3812, %v4067
        %v4134 = vadd.f32 %v3813, %v4070
        %v4135 = vadd.f32 %v3814, %v4075
        %v4136 = vadd.f32 %v3815, %v4078
        %v4137 = vadd.f32 %v3816, %v4083
        %v4138 = vadd.f32 %v3817, %v4086
        %v4139 = vadd.f32 %v3818, %v4091
        %v4140 = vadd.f32 %v3819, %v4094
        %v4141 = vadd.f32 %v3820, %v4099
        %v4142 = vadd.f32 %v3821, %v4102
        %v4143 = vadd.f32 %v3822, %v4107
        %v4144 = vadd.f32 %v3823, %v4110
        %4145 = vst [vmem:[#allocation3] sm:$0xff] %v4113
        %4146 = vst [vmem:[#allocation3 + $0x8] sm:$0xff] %v4114
        %4147 = vst [vmem:[#allocation3 + $0x10] sm:$0xff] %v4115
        %4148 = vst [vmem:[#allocation3 + $0x18] sm:$0xff] %v4116
        %4149 = vst [vmem:[#allocation3 + $0x20] sm:$0xff] %v4117
        %4150 = vst [vmem:[#allocation3 + $0x28] sm:$0xff] %v4118
        %4151 = vst [vmem:[#allocation3 + $0x30] sm:$0xff] %v4119
        %4152 = vst [vmem:[#allocation3 + $0x38] sm:$0xff] %v4120
        %4153 = vst [vmem:[#allocation3 + $0x40] sm:$0xff] %v4121
        %4154 = vst [vmem:[#allocation3 + $0x48] sm:$0xff] %v4122
        %4155 = vst [vmem:[#allocation3 + $0x50] sm:$0xff] %v4123
        %4156 = vst [vmem:[#allocation3 + $0x58] sm:$0xff] %v4124
        %4157 = vst [vmem:[#allocation3 + $0x60] sm:$0xff] %v4125
        %4158 = vst [vmem:[#allocation3 + $0x68] sm:$0xff] %v4126
        %4159 = vst [vmem:[#allocation3 + $0x70] sm:$0xff] %v4127
        %4160 = vst [vmem:[#allocation3 + $0x78] sm:$0xff] %v4128
        %4161 = vst [vmem:[#allocation3 + $0x80] sm:$0xff] %v4129
        %4162 = vst [vmem:[#allocation3 + $0x88] sm:$0xff] %v4130
        %4163 = vst [vmem:[#allocation3 + $0x90] sm:$0xff] %v4131
        %4164 = vst [vmem:[#allocation3 + $0x98] sm:$0xff] %v4132
        %4165 = vst [vmem:[#allocation3 + $0xa0] sm:$0xff] %v4133
        %4166 = vst [vmem:[#allocation3 + $0xa8] sm:$0xff] %v4134
        %4167 = vst [vmem:[#allocation3 + $0xb0] sm:$0xff] %v4135
        %4168 = vst [vmem:[#allocation3 + $0xb8] sm:$0xff] %v4136
        %4169 = vst [vmem:[#allocation3 + $0xc0] sm:$0xff] %v4137
        %4170 = vst [vmem:[#allocation3 + $0xc8] sm:$0xff] %v4138
        %4171 = vst [vmem:[#allocation3 + $0xd0] sm:$0xff] %v4139
        %4172 = vst [vmem:[#allocation3 + $0xd8] sm:$0xff] %v4140
        %4173 = vst [vmem:[#allocation3 + $0xe0] sm:$0xff] %v4141
        %4174 = vst [vmem:[#allocation3 + $0xe8] sm:$0xff] %v4142
        %4175 = vst [vmem:[#allocation3 + $0xf0] sm:$0xff] %v4143
        %4176 = vst [vmem:[#allocation3 + $0xf8] sm:$0xff] %v4144
        %v4177 = vld [vmem:[%s899] sm:$0xe]
        %v4178 = vld [vmem:[%s899 + $0x4] sm:$0xf]
        %v4179 = vld [vmem:[%s899 + $0x8] sm:$0x1]
        %v4180 = vld [vmem:[%s899 + $0xc] sm:$0xe]
        %v4181 = vld [vmem:[%s899 + $0x10] sm:$0xf]
        %v4182 = vld [vmem:[%s899 + $0x14] sm:$0x1]
        %v4183 = vld [vmem:[%s899 + $0x18] sm:$0xe]
        %v4184 = vld [vmem:[%s899 + $0x1c] sm:$0xf]
        %v4185 = vld [vmem:[%s899 + $0x20] sm:$0x1]
        %v4186 = vld [vmem:[%s899 + $0x24] sm:$0xe]
        %v4187 = vld [vmem:[%s899 + $0x28] sm:$0xf]
        %v4188 = vld [vmem:[%s899 + $0x2c] sm:$0x1]
        %v4189 = vld [vmem:[%s899 + $0x30] sm:$0xe]
        %v4190 = vld [vmem:[%s899 + $0x34] sm:$0xf]
        %v4191 = vld [vmem:[%s899 + $0x38] sm:$0x1]
        %v4192 = vld [vmem:[%s899 + $0x3c] sm:$0xe]
        %v4193 = vld [vmem:[%s899 + $0x40] sm:$0xf]
        %v4194 = vld [vmem:[%s899 + $0x44] sm:$0x1]
        %v4195 = vld [vmem:[%s899 + $0x48] sm:$0xe]
        %v4196 = vld [vmem:[%s899 + $0x4c] sm:$0xf]
        %v4197 = vld [vmem:[%s899 + $0x50] sm:$0x1]
        %v4198 = vld [vmem:[%s899 + $0x54] sm:$0xe]
        %v4199 = vld [vmem:[%s899 + $0x58] sm:$0xf]
        %v4200 = vld [vmem:[%s899 + $0x5c] sm:$0x1]
        %v4201 = vld [vmem:[%s899 + $0x60] sm:$0xe]
        %v4202 = vld [vmem:[%s899 + $0x64] sm:$0xf]
        %v4203 = vld [vmem:[%s899 + $0x68] sm:$0x1]
        %v4204 = vld [vmem:[%s899 + $0x6c] sm:$0xe]
        %v4205 = vld [vmem:[%s899 + $0x70] sm:$0xf]
        %v4206 = vld [vmem:[%s899 + $0x74] sm:$0x1]
        %v4207 = vld [vmem:[%s899 + $0x78] sm:$0xe]
        %v4208 = vld [vmem:[%s899 + $0x7c] sm:$0xf]
        %v4209 = vld [vmem:[%s899 + $0x80] sm:$0x1]
        %v4210 = vld [vmem:[%s899 + $0x84] sm:$0xe]
        %v4211 = vld [vmem:[%s899 + $0x88] sm:$0xf]
        %v4212 = vld [vmem:[%s899 + $0x8c] sm:$0x1]
        %v4213 = vld [vmem:[%s899 + $0x90] sm:$0xe]
        %v4214 = vld [vmem:[%s899 + $0x94] sm:$0xf]
        %v4215 = vld [vmem:[%s899 + $0x98] sm:$0x1]
        %v4216 = vld [vmem:[%s899 + $0x9c] sm:$0xe]
        %v4217 = vld [vmem:[%s899 + $0xa0] sm:$0xf]
        %v4218 = vld [vmem:[%s899 + $0xa4] sm:$0x1]
        %v4219 = vld [vmem:[%s899 + $0xa8] sm:$0xe]
        %v4220 = vld [vmem:[%s899 + $0xac] sm:$0xf]
        %v4221 = vld [vmem:[%s899 + $0xb0] sm:$0x1]
        %v4222 = vld [vmem:[%s899 + $0xb4] sm:$0xe]
        %v4223 = vld [vmem:[%s899 + $0xb8] sm:$0xf]
        %v4224 = vld [vmem:[%s899 + $0xbc] sm:$0x1]
        %v4273 = vrot.slane %v4177, 5
        %v4274 = vrot.slane %v4273, 4
        %v4275 = vrot.slane %v4178, 5
        %v4276 = vsel %vm2413, %v4274, %v4275
        %v4277 = vrot.slane %v4275, 4
        %v4278 = vrot.slane %v4179, 5
        %v4279 = vsel %vm2413, %v4277, %v4278
        %v4280 = vrot.slane %v4180, 5
        %v4281 = vrot.slane %v4280, 4
        %v4282 = vrot.slane %v4181, 5
        %v4283 = vsel %vm2413, %v4281, %v4282
        %v4284 = vrot.slane %v4282, 4
        %v4285 = vrot.slane %v4182, 5
        %v4286 = vsel %vm2413, %v4284, %v4285
        %v4287 = vrot.slane %v4183, 5
        %v4288 = vrot.slane %v4287, 4
        %v4289 = vrot.slane %v4184, 5
        %v4290 = vsel %vm2413, %v4288, %v4289
        %v4291 = vrot.slane %v4289, 4
        %v4292 = vrot.slane %v4185, 5
        %v4293 = vsel %vm2413, %v4291, %v4292
        %v4294 = vrot.slane %v4186, 5
        %v4295 = vrot.slane %v4294, 4
        %v4296 = vrot.slane %v4187, 5
        %v4297 = vsel %vm2413, %v4295, %v4296
        %v4298 = vrot.slane %v4296, 4
        %v4299 = vrot.slane %v4188, 5
        %v4300 = vsel %vm2413, %v4298, %v4299
        %v4301 = vrot.slane %v4189, 5
        %v4302 = vrot.slane %v4301, 4
        %v4303 = vrot.slane %v4190, 5
        %v4304 = vsel %vm2413, %v4302, %v4303
        %v4305 = vrot.slane %v4303, 4
        %v4306 = vrot.slane %v4191, 5
        %v4307 = vsel %vm2413, %v4305, %v4306
        %v4308 = vrot.slane %v4192, 5
        %v4309 = vrot.slane %v4308, 4
        %v4310 = vrot.slane %v4193, 5
        %v4311 = vsel %vm2413, %v4309, %v4310
        %v4312 = vrot.slane %v4310, 4
        %v4313 = vrot.slane %v4194, 5
        %v4314 = vsel %vm2413, %v4312, %v4313
        %v4315 = vrot.slane %v4195, 5
        %v4316 = vrot.slane %v4315, 4
        %v4317 = vrot.slane %v4196, 5
        %v4318 = vsel %vm2413, %v4316, %v4317
        %v4319 = vrot.slane %v4317, 4
        %v4320 = vrot.slane %v4197, 5
        %v4321 = vsel %vm2413, %v4319, %v4320
        %v4322 = vrot.slane %v4198, 5
        %v4323 = vrot.slane %v4322, 4
        %v4324 = vrot.slane %v4199, 5
        %v4325 = vsel %vm2413, %v4323, %v4324
        %v4326 = vrot.slane %v4324, 4
        %v4327 = vrot.slane %v4200, 5
        %v4328 = vsel %vm2413, %v4326, %v4327
        %v4329 = vrot.slane %v4201, 5
        %v4330 = vrot.slane %v4329, 4
        %v4331 = vrot.slane %v4202, 5
        %v4332 = vsel %vm2413, %v4330, %v4331
        %v4333 = vrot.slane %v4331, 4
        %v4334 = vrot.slane %v4203, 5
        %v4335 = vsel %vm2413, %v4333, %v4334
        %v4336 = vrot.slane %v4204, 5
        %v4337 = vrot.slane %v4336, 4
        %v4338 = vrot.slane %v4205, 5
        %v4339 = vsel %vm2413, %v4337, %v4338
        %v4340 = vrot.slane %v4338, 4
        %v4341 = vrot.slane %v4206, 5
        %v4342 = vsel %vm2413, %v4340, %v4341
        %v4343 = vrot.slane %v4207, 5
        %v4344 = vrot.slane %v4343, 4
        %v4345 = vrot.slane %v4208, 5
        %v4346 = vsel %vm2413, %v4344, %v4345
        %v4347 = vrot.slane %v4345, 4
        %v4348 = vrot.slane %v4209, 5
        %v4349 = vsel %vm2413, %v4347, %v4348
        %v4350 = vrot.slane %v4210, 5
        %v4351 = vrot.slane %v4350, 4
        %v4352 = vrot.slane %v4211, 5
        %v4353 = vsel %vm2413, %v4351, %v4352
        %v4354 = vrot.slane %v4352, 4
        %v4355 = vrot.slane %v4212, 5
        %v4356 = vsel %vm2413, %v4354, %v4355
        %v4357 = vrot.slane %v4213, 5
        %v4358 = vrot.slane %v4357, 4
        %v4359 = vrot.slane %v4214, 5
        %v4360 = vsel %vm2413, %v4358, %v4359
        %v4361 = vrot.slane %v4359, 4
        %v4362 = vrot.slane %v4215, 5
        %v4363 = vsel %vm2413, %v4361, %v4362
        %v4364 = vrot.slane %v4216, 5
        %v4365 = vrot.slane %v4364, 4
        %v4366 = vrot.slane %v4217, 5
        %v4367 = vsel %vm2413, %v4365, %v4366
        %v4368 = vrot.slane %v4366, 4
        %v4369 = vrot.slane %v4218, 5
        %v4370 = vsel %vm2413, %v4368, %v4369
        %v4371 = vrot.slane %v4219, 5
        %v4372 = vrot.slane %v4371, 4
        %v4373 = vrot.slane %v4220, 5
        %v4374 = vsel %vm2413, %v4372, %v4373
        %v4375 = vrot.slane %v4373, 4
        %v4376 = vrot.slane %v4221, 5
        %v4377 = vsel %vm2413, %v4375, %v4376
        %v4378 = vrot.slane %v4222, 5
        %v4379 = vrot.slane %v4378, 4
        %v4380 = vrot.slane %v4223, 5
        %v4381 = vsel %vm2413, %v4379, %v4380
        %v4382 = vrot.slane %v4380, 4
        %v4383 = vrot.slane %v4224, 5
        %v4384 = vsel %vm2413, %v4382, %v4383
        %v4385 = vld [vmem:[#allocation3] sm:$0xff]
        %v4386 = vld [vmem:[#allocation3 + $0x8] sm:$0xff]
        %v4387 = vld [vmem:[#allocation3 + $0x10] sm:$0xff]
        %v4388 = vld [vmem:[#allocation3 + $0x18] sm:$0xff]
        %v4389 = vld [vmem:[#allocation3 + $0x20] sm:$0xff]
        %v4390 = vld [vmem:[#allocation3 + $0x28] sm:$0xff]
        %v4391 = vld [vmem:[#allocation3 + $0x30] sm:$0xff]
        %v4392 = vld [vmem:[#allocation3 + $0x38] sm:$0xff]
        %v4393 = vld [vmem:[#allocation3 + $0x40] sm:$0xff]
        %v4394 = vld [vmem:[#allocation3 + $0x48] sm:$0xff]
        %v4395 = vld [vmem:[#allocation3 + $0x50] sm:$0xff]
        %v4396 = vld [vmem:[#allocation3 + $0x58] sm:$0xff]
        %v4397 = vld [vmem:[#allocation3 + $0x60] sm:$0xff]
        %v4398 = vld [vmem:[#allocation3 + $0x68] sm:$0xff]
        %v4399 = vld [vmem:[#allocation3 + $0x70] sm:$0xff]
        %v4400 = vld [vmem:[#allocation3 + $0x78] sm:$0xff]
        %v4401 = vld [vmem:[#allocation3 + $0x80] sm:$0xff]
        %v4402 = vld [vmem:[#allocation3 + $0x88] sm:$0xff]
        %v4403 = vld [vmem:[#allocation3 + $0x90] sm:$0xff]
        %v4404 = vld [vmem:[#allocation3 + $0x98] sm:$0xff]
        %v4405 = vld [vmem:[#allocation3 + $0xa0] sm:$0xff]
        %v4406 = vld [vmem:[#allocation3 + $0xa8] sm:$0xff]
        %v4407 = vld [vmem:[#allocation3 + $0xb0] sm:$0xff]
        %v4408 = vld [vmem:[#allocation3 + $0xb8] sm:$0xff]
        %v4409 = vld [vmem:[#allocation3 + $0xc0] sm:$0xff]
        %v4410 = vld [vmem:[#allocation3 + $0xc8] sm:$0xff]
        %v4411 = vld [vmem:[#allocation3 + $0xd0] sm:$0xff]
        %v4412 = vld [vmem:[#allocation3 + $0xd8] sm:$0xff]
        %v4413 = vld [vmem:[#allocation3 + $0xe0] sm:$0xff]
        %v4414 = vld [vmem:[#allocation3 + $0xe8] sm:$0xff]
        %v4415 = vld [vmem:[#allocation3 + $0xf0] sm:$0xff]
        %v4416 = vld [vmem:[#allocation3 + $0xf8] sm:$0xff]
        %v4417 = vld [vmem:[#allocation7 + $0x140] sm:$0xf]
        %v4418 = vld [vmem:[#allocation7 + $0x144] sm:$0xf]
        %v4419 = vld [vmem:[#allocation7 + $0x148] sm:$0xf]
        %v4420 = vld [vmem:[#allocation7 + $0x14c] sm:$0xf]
        %v4421 = vld [vmem:[#allocation7 + $0x150] sm:$0xf]
        %v4422 = vld [vmem:[#allocation7 + $0x154] sm:$0xf]
        %v4423 = vld [vmem:[#allocation7 + $0x158] sm:$0xf]
        %v4424 = vld [vmem:[#allocation7 + $0x15c] sm:$0xf]
        %v4425 = vld [vmem:[#allocation7 + $0x160] sm:$0xf]
        %v4426 = vld [vmem:[#allocation7 + $0x164] sm:$0xf]
        %v4427 = vld [vmem:[#allocation7 + $0x168] sm:$0xf]
        %v4428 = vld [vmem:[#allocation7 + $0x16c] sm:$0xf]
        %v4429 = vld [vmem:[#allocation7 + $0x170] sm:$0xf]
        %v4430 = vld [vmem:[#allocation7 + $0x174] sm:$0xf]
        %v4431 = vld [vmem:[#allocation7 + $0x178] sm:$0xf]
        %v4432 = vld [vmem:[#allocation7 + $0x17c] sm:$0xf]
        %v4433 = vunpack.c.l.b16 %v4276
        %v4434 = vunpack.c.l.b16 %v4279
        %v4435 = vunpack.c.l.b16 %v4283
        %v4436 = vunpack.c.l.b16 %v4286
        %v4437 = vunpack.c.l.b16 %v4290
        %v4438 = vunpack.c.l.b16 %v4293
        %v4439 = vunpack.c.l.b16 %v4297
        %v4440 = vunpack.c.l.b16 %v4300
        %v4441 = vunpack.c.l.b16 %v4304
        %v4442 = vunpack.c.l.b16 %v4307
        %v4443 = vunpack.c.l.b16 %v4311
        %v4444 = vunpack.c.l.b16 %v4314
        %v4445 = vunpack.c.l.b16 %v4318
        %v4446 = vunpack.c.l.b16 %v4321
        %v4447 = vunpack.c.l.b16 %v4325
        %v4448 = vunpack.c.l.b16 %v4328
        %v4449 = vunpack.c.l.b16 %v4332
        %v4450 = vunpack.c.l.b16 %v4335
        %v4451 = vunpack.c.l.b16 %v4339
        %v4452 = vunpack.c.l.b16 %v4342
        %v4453 = vunpack.c.l.b16 %v4346
        %v4454 = vunpack.c.l.b16 %v4349
        %v4455 = vunpack.c.l.b16 %v4353
        %v4456 = vunpack.c.l.b16 %v4356
        %v4457 = vunpack.c.l.b16 %v4360
        %v4458 = vunpack.c.l.b16 %v4363
        %v4459 = vunpack.c.l.b16 %v4367
        %v4460 = vunpack.c.l.b16 %v4370
        %v4461 = vunpack.c.l.b16 %v4374
        %v4462 = vunpack.c.l.b16 %v4377
        %v4463 = vunpack.c.l.b16 %v4381
        %v4464 = vunpack.c.l.b16 %v4384
        %v4465 = vpack.c.b16 %v4434, %v4433
        %v4466 = vpack.c.b16 %v4436, %v4435
        %v4467 = vpack.c.b16 %v4438, %v4437
        %v4468 = vpack.c.b16 %v4440, %v4439
        %v4469 = vpack.c.b16 %v4442, %v4441
        %v4470 = vpack.c.b16 %v4444, %v4443
        %v4471 = vpack.c.b16 %v4446, %v4445
        %v4472 = vpack.c.b16 %v4448, %v4447
        %v4473 = vpack.c.b16 %v4450, %v4449
        %v4474 = vpack.c.b16 %v4452, %v4451
        %v4475 = vpack.c.b16 %v4454, %v4453
        %v4476 = vpack.c.b16 %v4456, %v4455
        %v4477 = vpack.c.b16 %v4458, %v4457
        %v4478 = vpack.c.b16 %v4460, %v4459
        %v4479 = vpack.c.b16 %v4462, %v4461
        %v4480 = vpack.c.b16 %v4464, %v4463
        %v4513 = vunpack.c.l.b16 %v4417
        %v4514 = vunpack.c.l.b16 %v4418
        %v4515 = vunpack.c.l.b16 %v4419
        %v4516 = vunpack.c.l.b16 %v4420
        %v4517 = vunpack.c.l.b16 %v4421
        %v4518 = vunpack.c.l.b16 %v4422
        %v4519 = vunpack.c.l.b16 %v4423
        %v4520 = vunpack.c.l.b16 %v4424
        %v4521 = vunpack.c.l.b16 %v4425
        %v4522 = vunpack.c.l.b16 %v4426
        %v4523 = vunpack.c.l.b16 %v4427
        %v4524 = vunpack.c.l.b16 %v4428
        %v4525 = vunpack.c.l.b16 %v4429
        %v4526 = vunpack.c.l.b16 %v4430
        %v4527 = vunpack.c.l.b16 %v4431
        %v4528 = vunpack.c.l.b16 %v4432
        %v4529 = vpack.c.b16 %v4514, %v4513
        %v4530 = vpack.c.b16 %v4516, %v4515
        %v4531 = vpack.c.b16 %v4518, %v4517
        %v4532 = vpack.c.b16 %v4520, %v4519
        %v4533 = vpack.c.b16 %v4522, %v4521
        %v4534 = vpack.c.b16 %v4524, %v4523
        %v4535 = vpack.c.b16 %v4526, %v4525
        %v4536 = vpack.c.b16 %v4528, %v4527
        %4545 = vmatprep.subr.bf16.mxu0 0
        %4546 = vmatpush1.bf16.msra.mxu0 %v4529
        %4547 = vmatprep.subr.bf16.mxu0 0
        %4548 = vmatpush1.bf16.msra.mxu0 %v4530
        %4549 = vmatprep.subr.bf16.mxu0 0
        %4550 = vmatpush1.bf16.msra.mxu0 %v4531
        %4551 = vmatprep.subr.bf16.mxu0 0
        %4552 = vmatpush1.bf16.msra.mxu0 %v4532
        %4553 = vmatprep.subr.bf16.mxu0 0
        %4554 = vmatpush1.bf16.msra.mxu0 %v4533
        %4555 = vmatprep.subr.bf16.mxu0 0
        %4556 = vmatpush1.bf16.msra.mxu0 %v4534
        %4557 = vmatprep.subr.bf16.mxu0 0
        %4558 = vmatpush1.bf16.msra.mxu0 %v4535
        %4559 = vmatprep.subr.bf16.mxu0 0
        %4560 = vmatpush1.bf16.msra.mxu0 %v4536
        %4561 = vmatprep.subr.bf16.mxu0 0
        %4562 = vmatpush1.bf16.msra.mxu0 0
        %4563 = vmatprep.subr.bf16.mxu0 0
        %4564 = vmatpush1.bf16.msra.mxu0 0
        %4565 = vmatprep.subr.bf16.mxu0 0
        %4566 = vmatpush1.bf16.msra.mxu0 0
        %4567 = vmatprep.subr.bf16.mxu0 0
        %4568 = vmatpush1.bf16.msra.mxu0 0
        %4569 = vmatprep.subr.bf16.mxu0 0
        %4570 = vmatpush1.bf16.msra.mxu0 0
        %4571 = vmatprep.subr.bf16.mxu0 0
        %4572 = vmatpush1.bf16.msra.mxu0 0
        %4573 = vmatprep.subr.bf16.mxu0 0
        %4574 = vmatpush1.bf16.msra.mxu0 0
        %4575 = vmatprep.subr.bf16.mxu0 0
        %4576 = vmatpush1.bf16.msra.mxu0 0
        %4577 = vmatprep.mubr.bf16.mxu0 0
        %4578 = vmatmul.mubr.bf16.gmra.mrb[0].mxu0 %v4465
        %v4579 = vpop.f32.mrb[0].mxu0
        %v4580 = vadd.f32 0.0, %v4579
        %v4581 = vpop.f32.mrb[0].mxu0
        %v4582 = vpop.f32.mrb[0].mxu0
        %v4583 = vadd.f32 0.0, %v4582
        %v4584 = vpop.f32.mrb[0].mxu0
        %4585 = vmatprep.mubr.bf16.mxu0 0
        %4586 = vmatmul.mubr.bf16.gmra.mrb[0].mxu0 %v4466
        %v4587 = vpop.f32.mrb[0].mxu0
        %v4588 = vadd.f32 0.0, %v4587
        %v4589 = vpop.f32.mrb[0].mxu0
        %v4590 = vpop.f32.mrb[0].mxu0
        %v4591 = vadd.f32 0.0, %v4590
        %v4592 = vpop.f32.mrb[0].mxu0
        %4593 = vmatprep.mubr.bf16.mxu0 0
        %4594 = vmatmul.mubr.bf16.gmra.mrb[0].mxu0 %v4467
        %v4595 = vpop.f32.mrb[0].mxu0
        %v4596 = vadd.f32 0.0, %v4595
        %v4597 = vpop.f32.mrb[0].mxu0
        %v4598 = vpop.f32.mrb[0].mxu0
        %v4599 = vadd.f32 0.0, %v4598
        %v4600 = vpop.f32.mrb[0].mxu0
        %4601 = vmatprep.mubr.bf16.mxu0 0
        %4602 = vmatmul.mubr.bf16.gmra.mrb[0].mxu0 %v4468
        %v4603 = vpop.f32.mrb[0].mxu0
        %v4604 = vadd.f32 0.0, %v4603
        %v4605 = vpop.f32.mrb[0].mxu0
        %v4606 = vpop.f32.mrb[0].mxu0
        %v4607 = vadd.f32 0.0, %v4606
        %v4608 = vpop.f32.mrb[0].mxu0
        %4609 = vmatprep.mubr.bf16.mxu0 0
        %4610 = vmatmul.mubr.bf16.gmra.mrb[0].mxu0 %v4469
        %v4611 = vpop.f32.mrb[0].mxu0
        %v4612 = vadd.f32 0.0, %v4611
        %v4613 = vpop.f32.mrb[0].mxu0
        %v4614 = vpop.f32.mrb[0].mxu0
        %v4615 = vadd.f32 0.0, %v4614
        %v4616 = vpop.f32.mrb[0].mxu0
        %4617 = vmatprep.mubr.bf16.mxu0 0
        %4618 = vmatmul.mubr.bf16.gmra.mrb[0].mxu0 %v4470
        %v4619 = vpop.f32.mrb[0].mxu0
        %v4620 = vadd.f32 0.0, %v4619
        %v4621 = vpop.f32.mrb[0].mxu0
        %v4622 = vpop.f32.mrb[0].mxu0
        %v4623 = vadd.f32 0.0, %v4622
        %v4624 = vpop.f32.mrb[0].mxu0
        %4625 = vmatprep.mubr.bf16.mxu0 0
        %4626 = vmatmul.mubr.bf16.gmra.mrb[0].mxu0 %v4471
        %v4627 = vpop.f32.mrb[0].mxu0
        %v4628 = vadd.f32 0.0, %v4627
        %v4629 = vpop.f32.mrb[0].mxu0
        %v4630 = vpop.f32.mrb[0].mxu0
        %v4631 = vadd.f32 0.0, %v4630
        %v4632 = vpop.f32.mrb[0].mxu0
        %4633 = vmatprep.mubr.bf16.mxu0 0
        %4634 = vmatmul.mubr.bf16.gmra.mrb[0].mxu0 %v4472
        %v4635 = vpop.f32.mrb[0].mxu0
        %v4636 = vadd.f32 0.0, %v4635
        %v4637 = vpop.f32.mrb[0].mxu0
        %v4638 = vpop.f32.mrb[0].mxu0
        %v4639 = vadd.f32 0.0, %v4638
        %v4640 = vpop.f32.mrb[0].mxu0
        %4641 = vmatprep.mubr.bf16.mxu0 0
        %4642 = vmatmul.mubr.bf16.gmra.mrb[0].mxu0 %v4473
        %v4643 = vpop.f32.mrb[0].mxu0
        %v4644 = vadd.f32 0.0, %v4643
        %v4645 = vpop.f32.mrb[0].mxu0
        %v4646 = vpop.f32.mrb[0].mxu0
        %v4647 = vadd.f32 0.0, %v4646
        %v4648 = vpop.f32.mrb[0].mxu0
        %4649 = vmatprep.mubr.bf16.mxu0 0
        %4650 = vmatmul.mubr.bf16.gmra.mrb[0].mxu0 %v4474
        %v4651 = vpop.f32.mrb[0].mxu0
        %v4652 = vadd.f32 0.0, %v4651
        %v4653 = vpop.f32.mrb[0].mxu0
        %v4654 = vpop.f32.mrb[0].mxu0
        %v4655 = vadd.f32 0.0, %v4654
        %v4656 = vpop.f32.mrb[0].mxu0
        %4657 = vmatprep.mubr.bf16.mxu0 0
        %4658 = vmatmul.mubr.bf16.gmra.mrb[0].mxu0 %v4475
        %v4659 = vpop.f32.mrb[0].mxu0
        %v4660 = vadd.f32 0.0, %v4659
        %v4661 = vpop.f32.mrb[0].mxu0
        %v4662 = vpop.f32.mrb[0].mxu0
        %v4663 = vadd.f32 0.0, %v4662
        %v4664 = vpop.f32.mrb[0].mxu0
        %4665 = vmatprep.mubr.bf16.mxu0 0
        %4666 = vmatmul.mubr.bf16.gmra.mrb[0].mxu0 %v4476
        %v4667 = vpop.f32.mrb[0].mxu0
        %v4668 = vadd.f32 0.0, %v4667
        %v4669 = vpop.f32.mrb[0].mxu0
        %v4670 = vpop.f32.mrb[0].mxu0
        %v4671 = vadd.f32 0.0, %v4670
        %v4672 = vpop.f32.mrb[0].mxu0
        %4673 = vmatprep.mubr.bf16.mxu0 0
        %4674 = vmatmul.mubr.bf16.gmra.mrb[0].mxu0 %v4477
        %v4675 = vpop.f32.mrb[0].mxu0
        %v4676 = vadd.f32 0.0, %v4675
        %v4677 = vpop.f32.mrb[0].mxu0
        %v4678 = vpop.f32.mrb[0].mxu0
        %v4679 = vadd.f32 0.0, %v4678
        %v4680 = vpop.f32.mrb[0].mxu0
        %4681 = vmatprep.mubr.bf16.mxu0 0
        %4682 = vmatmul.mubr.bf16.gmra.mrb[0].mxu0 %v4478
        %v4683 = vpop.f32.mrb[0].mxu0
        %v4684 = vadd.f32 0.0, %v4683
        %v4685 = vpop.f32.mrb[0].mxu0
        %v4686 = vpop.f32.mrb[0].mxu0
        %v4687 = vadd.f32 0.0, %v4686
        %v4688 = vpop.f32.mrb[0].mxu0
        %4689 = vmatprep.mubr.bf16.mxu0 0
        %4690 = vmatmul.mubr.bf16.gmra.mrb[0].mxu0 %v4479
        %v4691 = vpop.f32.mrb[0].mxu0
        %v4692 = vadd.f32 0.0, %v4691
        %v4693 = vpop.f32.mrb[0].mxu0
        %v4694 = vpop.f32.mrb[0].mxu0
        %v4695 = vadd.f32 0.0, %v4694
        %v4696 = vpop.f32.mrb[0].mxu0
        %4697 = vmatprep.mubr.bf16.mxu0 0
        %4698 = vmatmul.mubr.bf16.gmra.mrb[0].mxu0 %v4480
        %v4699 = vpop.f32.mrb[0].mxu0
        %v4700 = vadd.f32 0.0, %v4699
        %v4701 = vpop.f32.mrb[0].mxu0
        %v4702 = vpop.f32.mrb[0].mxu0
        %v4703 = vadd.f32 0.0, %v4702
        %v4704 = vpop.f32.mrb[0].mxu0
        %4705 = vdwg.mxu0
        %v4706 = vadd.f32 %v4385, %v4580
        %v4707 = vadd.f32 %v4386, %v4583
        %v4708 = vadd.f32 %v4387, %v4588
        %v4709 = vadd.f32 %v4388, %v4591
        %v4710 = vadd.f32 %v4389, %v4596
        %v4711 = vadd.f32 %v4390, %v4599
        %v4712 = vadd.f32 %v4391, %v4604
        %v4713 = vadd.f32 %v4392, %v4607
        %v4714 = vadd.f32 %v4393, %v4612
        %v4715 = vadd.f32 %v4394, %v4615
        %v4716 = vadd.f32 %v4395, %v4620
        %v4717 = vadd.f32 %v4396, %v4623
        %v4718 = vadd.f32 %v4397, %v4628
        %v4719 = vadd.f32 %v4398, %v4631
        %v4720 = vadd.f32 %v4399, %v4636
        %v4721 = vadd.f32 %v4400, %v4639
        %v4722 = vadd.f32 %v4401, %v4644
        %v4723 = vadd.f32 %v4402, %v4647
        %v4724 = vadd.f32 %v4403, %v4652
        %v4725 = vadd.f32 %v4404, %v4655
        %v4726 = vadd.f32 %v4405, %v4660
        %v4727 = vadd.f32 %v4406, %v4663
        %v4728 = vadd.f32 %v4407, %v4668
        %v4729 = vadd.f32 %v4408, %v4671
        %v4730 = vadd.f32 %v4409, %v4676
        %v4731 = vadd.f32 %v4410, %v4679
        %v4732 = vadd.f32 %v4411, %v4684
        %v4733 = vadd.f32 %v4412, %v4687
        %v4734 = vadd.f32 %v4413, %v4692
        %v4735 = vadd.f32 %v4414, %v4695
        %v4736 = vadd.f32 %v4415, %v4700
        %v4737 = vadd.f32 %v4416, %v4703
        %4738 = vst [vmem:[#allocation3] sm:$0xff] %v4706
        %4739 = vst [vmem:[#allocation3 + $0x8] sm:$0xff] %v4707
        %4740 = vst [vmem:[#allocation3 + $0x10] sm:$0xff] %v4708
        %4741 = vst [vmem:[#allocation3 + $0x18] sm:$0xff] %v4709
        %4742 = vst [vmem:[#allocation3 + $0x20] sm:$0xff] %v4710
        %4743 = vst [vmem:[#allocation3 + $0x28] sm:$0xff] %v4711
        %4744 = vst [vmem:[#allocation3 + $0x30] sm:$0xff] %v4712
        %4745 = vst [vmem:[#allocation3 + $0x38] sm:$0xff] %v4713
        %4746 = vst [vmem:[#allocation3 + $0x40] sm:$0xff] %v4714
        %4747 = vst [vmem:[#allocation3 + $0x48] sm:$0xff] %v4715
        %4748 = vst [vmem:[#allocation3 + $0x50] sm:$0xff] %v4716
        %4749 = vst [vmem:[#allocation3 + $0x58] sm:$0xff] %v4717
        %4750 = vst [vmem:[#allocation3 + $0x60] sm:$0xff] %v4718
        %4751 = vst [vmem:[#allocation3 + $0x68] sm:$0xff] %v4719
        %4752 = vst [vmem:[#allocation3 + $0x70] sm:$0xff] %v4720
        %4753 = vst [vmem:[#allocation3 + $0x78] sm:$0xff] %v4721
        %4754 = vst [vmem:[#allocation3 + $0x80] sm:$0xff] %v4722
        %4755 = vst [vmem:[#allocation3 + $0x88] sm:$0xff] %v4723
        %4756 = vst [vmem:[#allocation3 + $0x90] sm:$0xff] %v4724
        %4757 = vst [vmem:[#allocation3 + $0x98] sm:$0xff] %v4725
        %4758 = vst [vmem:[#allocation3 + $0xa0] sm:$0xff] %v4726
        %4759 = vst [vmem:[#allocation3 + $0xa8] sm:$0xff] %v4727
        %4760 = vst [vmem:[#allocation3 + $0xb0] sm:$0xff] %v4728
        %4761 = vst [vmem:[#allocation3 + $0xb8] sm:$0xff] %v4729
        %4762 = vst [vmem:[#allocation3 + $0xc0] sm:$0xff] %v4730
        %4763 = vst [vmem:[#allocation3 + $0xc8] sm:$0xff] %v4731
        %4764 = vst [vmem:[#allocation3 + $0xd0] sm:$0xff] %v4732
        %4765 = vst [vmem:[#allocation3 + $0xd8] sm:$0xff] %v4733
        %4766 = vst [vmem:[#allocation3 + $0xe0] sm:$0xff] %v4734
        %4767 = vst [vmem:[#allocation3 + $0xe8] sm:$0xff] %v4735
        %4768 = vst [vmem:[#allocation3 + $0xf0] sm:$0xff] %v4736
        %4769 = vst [vmem:[#allocation3 + $0xf8] sm:$0xff] %v4737
        %s4770 = scalar_lea.vmem [#allocation2], 24
        %v4771 = vld [vmem:[%s4770] sm:$0xf]
        %v4772 = vld [vmem:[%s4770 + $0x4] sm:$0xf]
        %v4773 = vld [vmem:[%s4770 + $0xc] sm:$0xf]
        %v4774 = vld [vmem:[%s4770 + $0x10] sm:$0xf]
        %v4775 = vld [vmem:[%s4770 + $0x18] sm:$0xf]
        %v4776 = vld [vmem:[%s4770 + $0x1c] sm:$0xf]
        %v4777 = vld [vmem:[%s4770 + $0x24] sm:$0xf]
        %v4778 = vld [vmem:[%s4770 + $0x28] sm:$0xf]
        %v4779 = vld [vmem:[%s4770 + $0x30] sm:$0xf]
        %v4780 = vld [vmem:[%s4770 + $0x34] sm:$0xf]
        %v4781 = vld [vmem:[%s4770 + $0x3c] sm:$0xf]
        %v4782 = vld [vmem:[%s4770 + $0x40] sm:$0xf]
        %v4783 = vld [vmem:[%s4770 + $0x48] sm:$0xf]
        %v4784 = vld [vmem:[%s4770 + $0x4c] sm:$0xf]
        %v4785 = vld [vmem:[%s4770 + $0x54] sm:$0xf]
        %v4786 = vld [vmem:[%s4770 + $0x58] sm:$0xf]
        %v4787 = vld [vmem:[%s4770 + $0x60] sm:$0xf]
        %v4788 = vld [vmem:[%s4770 + $0x64] sm:$0xf]
        %v4789 = vld [vmem:[%s4770 + $0x6c] sm:$0xf]
        %v4790 = vld [vmem:[%s4770 + $0x70] sm:$0xf]
        %v4791 = vld [vmem:[%s4770 + $0x78] sm:$0xf]
        %v4792 = vld [vmem:[%s4770 + $0x7c] sm:$0xf]
        %v4793 = vld [vmem:[%s4770 + $0x84] sm:$0xf]
        %v4794 = vld [vmem:[%s4770 + $0x88] sm:$0xf]
        %v4795 = vld [vmem:[%s4770 + $0x90] sm:$0xf]
        %v4796 = vld [vmem:[%s4770 + $0x94] sm:$0xf]
        %v4797 = vld [vmem:[%s4770 + $0x9c] sm:$0xf]
        %v4798 = vld [vmem:[%s4770 + $0xa0] sm:$0xf]
        %v4799 = vld [vmem:[%s4770 + $0xa8] sm:$0xf]
        %v4800 = vld [vmem:[%s4770 + $0xac] sm:$0xf]
        %v4801 = vld [vmem:[%s4770 + $0xb4] sm:$0xf]
        %v4802 = vld [vmem:[%s4770 + $0xb8] sm:$0xf]
        %v4803 = vld [vmem:[#allocation3] sm:$0xff]
        %v4804 = vld [vmem:[#allocation3 + $0x8] sm:$0xff]
        %v4805 = vld [vmem:[#allocation3 + $0x10] sm:$0xff]
        %v4806 = vld [vmem:[#allocation3 + $0x18] sm:$0xff]
        %v4807 = vld [vmem:[#allocation3 + $0x20] sm:$0xff]
        %v4808 = vld [vmem:[#allocation3 + $0x28] sm:$0xff]
        %v4809 = vld [vmem:[#allocation3 + $0x30] sm:$0xff]
        %v4810 = vld [vmem:[#allocation3 + $0x38] sm:$0xff]
        %v4811 = vld [vmem:[#allocation3 + $0x40] sm:$0xff]
        %v4812 = vld [vmem:[#allocation3 + $0x48] sm:$0xff]
        %v4813 = vld [vmem:[#allocation3 + $0x50] sm:$0xff]
        %v4814 = vld [vmem:[#allocation3 + $0x58] sm:$0xff]
        %v4815 = vld [vmem:[#allocation3 + $0x60] sm:$0xff]
        %v4816 = vld [vmem:[#allocation3 + $0x68] sm:$0xff]
        %v4817 = vld [vmem:[#allocation3 + $0x70] sm:$0xff]
        %v4818 = vld [vmem:[#allocation3 + $0x78] sm:$0xff]
        %v4819 = vld [vmem:[#allocation3 + $0x80] sm:$0xff]
        %v4820 = vld [vmem:[#allocation3 + $0x88] sm:$0xff]
        %v4821 = vld [vmem:[#allocation3 + $0x90] sm:$0xff]
        %v4822 = vld [vmem:[#allocation3 + $0x98] sm:$0xff]
        %v4823 = vld [vmem:[#allocation3 + $0xa0] sm:$0xff]
        %v4824 = vld [vmem:[#allocation3 + $0xa8] sm:$0xff]
        %v4825 = vld [vmem:[#allocation3 + $0xb0] sm:$0xff]
        %v4826 = vld [vmem:[#allocation3 + $0xb8] sm:$0xff]
        %v4827 = vld [vmem:[#allocation3 + $0xc0] sm:$0xff]
        %v4828 = vld [vmem:[#allocation3 + $0xc8] sm:$0xff]
        %v4829 = vld [vmem:[#allocation3 + $0xd0] sm:$0xff]
        %v4830 = vld [vmem:[#allocation3 + $0xd8] sm:$0xff]
        %v4831 = vld [vmem:[#allocation3 + $0xe0] sm:$0xff]
        %v4832 = vld [vmem:[#allocation3 + $0xe8] sm:$0xff]
        %v4833 = vld [vmem:[#allocation3 + $0xf0] sm:$0xff]
        %v4834 = vld [vmem:[#allocation3 + $0xf8] sm:$0xff]
        %v4835 = vld [vmem:[#allocation7 + $0x180] sm:$0xf]
        %v4836 = vld [vmem:[#allocation7 + $0x184] sm:$0xf]
        %v4837 = vld [vmem:[#allocation7 + $0x188] sm:$0xf]
        %v4838 = vld [vmem:[#allocation7 + $0x18c] sm:$0xf]
        %v4839 = vld [vmem:[#allocation7 + $0x190] sm:$0xf]
        %v4840 = vld [vmem:[#allocation7 + $0x194] sm:$0xf]
        %v4841 = vld [vmem:[#allocation7 + $0x198] sm:$0xf]
        %v4842 = vld [vmem:[#allocation7 + $0x19c] sm:$0xf]
        %v4843 = vld [vmem:[#allocation7 + $0x1a0] sm:$0xf]
        %v4844 = vld [vmem:[#allocation7 + $0x1a4] sm:$0xf]
        %v4845 = vld [vmem:[#allocation7 + $0x1a8] sm:$0xf]
        %v4846 = vld [vmem:[#allocation7 + $0x1ac] sm:$0xf]
        %v4847 = vld [vmem:[#allocation7 + $0x1b0] sm:$0xf]
        %v4848 = vld [vmem:[#allocation7 + $0x1b4] sm:$0xf]
        %v4849 = vld [vmem:[#allocation7 + $0x1b8] sm:$0xf]
        %v4850 = vld [vmem:[#allocation7 + $0x1bc] sm:$0xf]
        %v4883 = vunpack.c.l.b16 %v4771
        %v4884 = vunpack.c.l.b16 %v4772
        %v4885 = vunpack.c.l.b16 %v4773
        %v4886 = vunpack.c.l.b16 %v4774
        %v4887 = vunpack.c.l.b16 %v4775
        %v4888 = vunpack.c.l.b16 %v4776
        %v4889 = vunpack.c.l.b16 %v4777
        %v4890 = vunpack.c.l.b16 %v4778
        %v4891 = vunpack.c.l.b16 %v4779
        %v4892 = vunpack.c.l.b16 %v4780
        %v4893 = vunpack.c.l.b16 %v4781
        %v4894 = vunpack.c.l.b16 %v4782
        %v4895 = vunpack.c.l.b16 %v4783
        %v4896 = vunpack.c.l.b16 %v4784
        %v4897 = vunpack.c.l.b16 %v4785
        %v4898 = vunpack.c.l.b16 %v4786
        %v4899 = vunpack.c.l.b16 %v4787
        %v4900 = vunpack.c.l.b16 %v4788
        %v4901 = vunpack.c.l.b16 %v4789
        %v4902 = vunpack.c.l.b16 %v4790
        %v4903 = vunpack.c.l.b16 %v4791
        %v4904 = vunpack.c.l.b16 %v4792
        %v4905 = vunpack.c.l.b16 %v4793
        %v4906 = vunpack.c.l.b16 %v4794
        %v4907 = vunpack.c.l.b16 %v4795
        %v4908 = vunpack.c.l.b16 %v4796
        %v4909 = vunpack.c.l.b16 %v4797
        %v4910 = vunpack.c.l.b16 %v4798
        %v4911 = vunpack.c.l.b16 %v4799
        %v4912 = vunpack.c.l.b16 %v4800
        %v4913 = vunpack.c.l.b16 %v4801
        %v4914 = vunpack.c.l.b16 %v4802
        %v4915 = vpack.c.b16 %v4884, %v4883
        %v4916 = vpack.c.b16 %v4886, %v4885
        %v4917 = vpack.c.b16 %v4888, %v4887
        %v4918 = vpack.c.b16 %v4890, %v4889
        %v4919 = vpack.c.b16 %v4892, %v4891
        %v4920 = vpack.c.b16 %v4894, %v4893
        %v4921 = vpack.c.b16 %v4896, %v4895
        %v4922 = vpack.c.b16 %v4898, %v4897
        %v4923 = vpack.c.b16 %v4900, %v4899
        %v4924 = vpack.c.b16 %v4902, %v4901
        %v4925 = vpack.c.b16 %v4904, %v4903
        %v4926 = vpack.c.b16 %v4906, %v4905
        %v4927 = vpack.c.b16 %v4908, %v4907
        %v4928 = vpack.c.b16 %v4910, %v4909
        %v4929 = vpack.c.b16 %v4912, %v4911
        %v4930 = vpack.c.b16 %v4914, %v4913
        %v4963 = vunpack.c.l.b16 %v4835
        %v4964 = vunpack.c.l.b16 %v4836
        %v4965 = vunpack.c.l.b16 %v4837
        %v4966 = vunpack.c.l.b16 %v4838
        %v4967 = vunpack.c.l.b16 %v4839
        %v4968 = vunpack.c.l.b16 %v4840
        %v4969 = vunpack.c.l.b16 %v4841
        %v4970 = vunpack.c.l.b16 %v4842
        %v4971 = vunpack.c.l.b16 %v4843
        %v4972 = vunpack.c.l.b16 %v4844
        %v4973 = vunpack.c.l.b16 %v4845
        %v4974 = vunpack.c.l.b16 %v4846
        %v4975 = vunpack.c.l.b16 %v4847
        %v4976 = vunpack.c.l.b16 %v4848
        %v4977 = vunpack.c.l.b16 %v4849
        %v4978 = vunpack.c.l.b16 %v4850
        %v4979 = vpack.c.b16 %v4964, %v4963
        %v4980 = vpack.c.b16 %v4966, %v4965
        %v4981 = vpack.c.b16 %v4968, %v4967
        %v4982 = vpack.c.b16 %v4970, %v4969
        %v4983 = vpack.c.b16 %v4972, %v4971
        %v4984 = vpack.c.b16 %v4974, %v4973
        %v4985 = vpack.c.b16 %v4976, %v4975
        %v4986 = vpack.c.b16 %v4978, %v4977
        %4995 = vmatprep.subr.bf16.mxu0 0
        %4996 = vmatpush1.bf16.msra.mxu0 %v4979
        %4997 = vmatprep.subr.bf16.mxu0 0
        %4998 = vmatpush1.bf16.msra.mxu0 %v4980
        %4999 = vmatprep.subr.bf16.mxu0 0
        %5000 = vmatpush1.bf16.msra.mxu0 %v4981
        %5001 = vmatprep.subr.bf16.mxu0 0
        %5002 = vmatpush1.bf16.msra.mxu0 %v4982
        %5003 = vmatprep.subr.bf16.mxu0 0
        %5004 = vmatpush1.bf16.msra.mxu0 %v4983
        %5005 = vmatprep.subr.bf16.mxu0 0
        %5006 = vmatpush1.bf16.msra.mxu0 %v4984
        %5007 = vmatprep.subr.bf16.mxu0 0
        %5008 = vmatpush1.bf16.msra.mxu0 %v4985
        %5009 = vmatprep.subr.bf16.mxu0 0
        %5010 = vmatpush1.bf16.msra.mxu0 %v4986
        %5011 = vmatprep.subr.bf16.mxu0 0
        %5012 = vmatpush1.bf16.msra.mxu0 0
        %5013 = vmatprep.subr.bf16.mxu0 0
        %5014 = vmatpush1.bf16.msra.mxu0 0
        %5015 = vmatprep.subr.bf16.mxu0 0
        %5016 = vmatpush1.bf16.msra.mxu0 0
        %5017 = vmatprep.subr.bf16.mxu0 0
        %5018 = vmatpush1.bf16.msra.mxu0 0
        %5019 = vmatprep.subr.bf16.mxu0 0
        %5020 = vmatpush1.bf16.msra.mxu0 0
        %5021 = vmatprep.subr.bf16.mxu0 0
        %5022 = vmatpush1.bf16.msra.mxu0 0
        %5023 = vmatprep.subr.bf16.mxu0 0
        %5024 = vmatpush1.bf16.msra.mxu0 0
        %5025 = vmatprep.subr.bf16.mxu0 0
        %5026 = vmatpush1.bf16.msra.mxu0 0
        %5027 = vmatprep.mubr.bf16.mxu0 0
        %5028 = vmatmul.mubr.bf16.gmra.mrb[0].mxu0 %v4915
        %v5029 = vpop.f32.mrb[0].mxu0
        %v5030 = vadd.f32 0.0, %v5029
        %v5031 = vpop.f32.mrb[0].mxu0
        %v5032 = vpop.f32.mrb[0].mxu0
        %v5033 = vadd.f32 0.0, %v5032
        %v5034 = vpop.f32.mrb[0].mxu0
        %5035 = vmatprep.mubr.bf16.mxu0 0
        %5036 = vmatmul.mubr.bf16.gmra.mrb[0].mxu0 %v4916
        %v5037 = vpop.f32.mrb[0].mxu0
        %v5038 = vadd.f32 0.0, %v5037
        %v5039 = vpop.f32.mrb[0].mxu0
        %v5040 = vpop.f32.mrb[0].mxu0
        %v5041 = vadd.f32 0.0, %v5040
        %v5042 = vpop.f32.mrb[0].mxu0
        %5043 = vmatprep.mubr.bf16.mxu0 0
        %5044 = vmatmul.mubr.bf16.gmra.mrb[0].mxu0 %v4917
        %v5045 = vpop.f32.mrb[0].mxu0
        %v5046 = vadd.f32 0.0, %v5045
        %v5047 = vpop.f32.mrb[0].mxu0
        %v5048 = vpop.f32.mrb[0].mxu0
        %v5049 = vadd.f32 0.0, %v5048
        %v5050 = vpop.f32.mrb[0].mxu0
        %5051 = vmatprep.mubr.bf16.mxu0 0
        %5052 = vmatmul.mubr.bf16.gmra.mrb[0].mxu0 %v4918
        %v5053 = vpop.f32.mrb[0].mxu0
        %v5054 = vadd.f32 0.0, %v5053
        %v5055 = vpop.f32.mrb[0].mxu0
        %v5056 = vpop.f32.mrb[0].mxu0
        %v5057 = vadd.f32 0.0, %v5056
        %v5058 = vpop.f32.mrb[0].mxu0
        %5059 = vmatprep.mubr.bf16.mxu0 0
        %5060 = vmatmul.mubr.bf16.gmra.mrb[0].mxu0 %v4919
        %v5061 = vpop.f32.mrb[0].mxu0
        %v5062 = vadd.f32 0.0, %v5061
        %v5063 = vpop.f32.mrb[0].mxu0
        %v5064 = vpop.f32.mrb[0].mxu0
        %v5065 = vadd.f32 0.0, %v5064
        %v5066 = vpop.f32.mrb[0].mxu0
        %5067 = vmatprep.mubr.bf16.mxu0 0
        %5068 = vmatmul.mubr.bf16.gmra.mrb[0].mxu0 %v4920
        %v5069 = vpop.f32.mrb[0].mxu0
        %v5070 = vadd.f32 0.0, %v5069
        %v5071 = vpop.f32.mrb[0].mxu0
        %v5072 = vpop.f32.mrb[0].mxu0
        %v5073 = vadd.f32 0.0, %v5072
        %v5074 = vpop.f32.mrb[0].mxu0
        %5075 = vmatprep.mubr.bf16.mxu0 0
        %5076 = vmatmul.mubr.bf16.gmra.mrb[0].mxu0 %v4921
        %v5077 = vpop.f32.mrb[0].mxu0
        %v5078 = vadd.f32 0.0, %v5077
        %v5079 = vpop.f32.mrb[0].mxu0
        %v5080 = vpop.f32.mrb[0].mxu0
        %v5081 = vadd.f32 0.0, %v5080
        %v5082 = vpop.f32.mrb[0].mxu0
        %5083 = vmatprep.mubr.bf16.mxu0 0
        %5084 = vmatmul.mubr.bf16.gmra.mrb[0].mxu0 %v4922
        %v5085 = vpop.f32.mrb[0].mxu0
        %v5086 = vadd.f32 0.0, %v5085
        %v5087 = vpop.f32.mrb[0].mxu0
        %v5088 = vpop.f32.mrb[0].mxu0
        %v5089 = vadd.f32 0.0, %v5088
        %v5090 = vpop.f32.mrb[0].mxu0
        %5091 = vmatprep.mubr.bf16.mxu0 0
        %5092 = vmatmul.mubr.bf16.gmra.mrb[0].mxu0 %v4923
        %v5093 = vpop.f32.mrb[0].mxu0
        %v5094 = vadd.f32 0.0, %v5093
        %v5095 = vpop.f32.mrb[0].mxu0
        %v5096 = vpop.f32.mrb[0].mxu0
        %v5097 = vadd.f32 0.0, %v5096
        %v5098 = vpop.f32.mrb[0].mxu0
        %5099 = vmatprep.mubr.bf16.mxu0 0
        %5100 = vmatmul.mubr.bf16.gmra.mrb[0].mxu0 %v4924
        %v5101 = vpop.f32.mrb[0].mxu0
        %v5102 = vadd.f32 0.0, %v5101
        %v5103 = vpop.f32.mrb[0].mxu0
        %v5104 = vpop.f32.mrb[0].mxu0
        %v5105 = vadd.f32 0.0, %v5104
        %v5106 = vpop.f32.mrb[0].mxu0
        %5107 = vmatprep.mubr.bf16.mxu0 0
        %5108 = vmatmul.mubr.bf16.gmra.mrb[0].mxu0 %v4925
        %v5109 = vpop.f32.mrb[0].mxu0
        %v5110 = vadd.f32 0.0, %v5109
        %v5111 = vpop.f32.mrb[0].mxu0
        %v5112 = vpop.f32.mrb[0].mxu0
        %v5113 = vadd.f32 0.0, %v5112
        %v5114 = vpop.f32.mrb[0].mxu0
        %5115 = vmatprep.mubr.bf16.mxu0 0
        %5116 = vmatmul.mubr.bf16.gmra.mrb[0].mxu0 %v4926
        %v5117 = vpop.f32.mrb[0].mxu0
        %v5118 = vadd.f32 0.0, %v5117
        %v5119 = vpop.f32.mrb[0].mxu0
        %v5120 = vpop.f32.mrb[0].mxu0
        %v5121 = vadd.f32 0.0, %v5120
        %v5122 = vpop.f32.mrb[0].mxu0
        %5123 = vmatprep.mubr.bf16.mxu0 0
        %5124 = vmatmul.mubr.bf16.gmra.mrb[0].mxu0 %v4927
        %v5125 = vpop.f32.mrb[0].mxu0
        %v5126 = vadd.f32 0.0, %v5125
        %v5127 = vpop.f32.mrb[0].mxu0
        %v5128 = vpop.f32.mrb[0].mxu0
        %v5129 = vadd.f32 0.0, %v5128
        %v5130 = vpop.f32.mrb[0].mxu0
        %5131 = vmatprep.mubr.bf16.mxu0 0
        %5132 = vmatmul.mubr.bf16.gmra.mrb[0].mxu0 %v4928
        %v5133 = vpop.f32.mrb[0].mxu0
        %v5134 = vadd.f32 0.0, %v5133
        %v5135 = vpop.f32.mrb[0].mxu0
        %v5136 = vpop.f32.mrb[0].mxu0
        %v5137 = vadd.f32 0.0, %v5136
        %v5138 = vpop.f32.mrb[0].mxu0
        %5139 = vmatprep.mubr.bf16.mxu0 0
        %5140 = vmatmul.mubr.bf16.gmra.mrb[0].mxu0 %v4929
        %v5141 = vpop.f32.mrb[0].mxu0
        %v5142 = vadd.f32 0.0, %v5141
        %v5143 = vpop.f32.mrb[0].mxu0
        %v5144 = vpop.f32.mrb[0].mxu0
        %v5145 = vadd.f32 0.0, %v5144
        %v5146 = vpop.f32.mrb[0].mxu0
        %5147 = vmatprep.mubr.bf16.mxu0 0
        %5148 = vmatmul.mubr.bf16.gmra.mrb[0].mxu0 %v4930
        %v5149 = vpop.f32.mrb[0].mxu0
        %v5150 = vadd.f32 0.0, %v5149
        %v5151 = vpop.f32.mrb[0].mxu0
        %v5152 = vpop.f32.mrb[0].mxu0
        %v5153 = vadd.f32 0.0, %v5152
        %v5154 = vpop.f32.mrb[0].mxu0
        %5155 = vdwg.mxu0
        %v5156 = vadd.f32 %v4803, %v5030
        %v5157 = vadd.f32 %v4804, %v5033
        %v5158 = vadd.f32 %v4805, %v5038
        %v5159 = vadd.f32 %v4806, %v5041
        %v5160 = vadd.f32 %v4807, %v5046
        %v5161 = vadd.f32 %v4808, %v5049
        %v5162 = vadd.f32 %v4809, %v5054
        %v5163 = vadd.f32 %v4810, %v5057
        %v5164 = vadd.f32 %v4811, %v5062
        %v5165 = vadd.f32 %v4812, %v5065
        %v5166 = vadd.f32 %v4813, %v5070
        %v5167 = vadd.f32 %v4814, %v5073
        %v5168 = vadd.f32 %v4815, %v5078
        %v5169 = vadd.f32 %v4816, %v5081
        %v5170 = vadd.f32 %v4817, %v5086
        %v5171 = vadd.f32 %v4818, %v5089
        %v5172 = vadd.f32 %v4819, %v5094
        %v5173 = vadd.f32 %v4820, %v5097
        %v5174 = vadd.f32 %v4821, %v5102
        %v5175 = vadd.f32 %v4822, %v5105
        %v5176 = vadd.f32 %v4823, %v5110
        %v5177 = vadd.f32 %v4824, %v5113
        %v5178 = vadd.f32 %v4825, %v5118
        %v5179 = vadd.f32 %v4826, %v5121
        %v5180 = vadd.f32 %v4827, %v5126
        %v5181 = vadd.f32 %v4828, %v5129
        %v5182 = vadd.f32 %v4829, %v5134
        %v5183 = vadd.f32 %v4830, %v5137
        %v5184 = vadd.f32 %v4831, %v5142
        %v5185 = vadd.f32 %v4832, %v5145
        %v5186 = vadd.f32 %v4833, %v5150
        %v5187 = vadd.f32 %v4834, %v5153
        %5188 = vst [vmem:[#allocation3] sm:$0xff] %v5156
        %5189 = vst [vmem:[#allocation3 + $0x8] sm:$0xff] %v5157
        %5190 = vst [vmem:[#allocation3 + $0x10] sm:$0xff] %v5158
        %5191 = vst [vmem:[#allocation3 + $0x18] sm:$0xff] %v5159
        %5192 = vst [vmem:[#allocation3 + $0x20] sm:$0xff] %v5160
        %5193 = vst [vmem:[#allocation3 + $0x28] sm:$0xff] %v5161
        %5194 = vst [vmem:[#allocation3 + $0x30] sm:$0xff] %v5162
        %5195 = vst [vmem:[#allocation3 + $0x38] sm:$0xff] %v5163
        %5196 = vst [vmem:[#allocation3 + $0x40] sm:$0xff] %v5164
        %5197 = vst [vmem:[#allocation3 + $0x48] sm:$0xff] %v5165
        %5198 = vst [vmem:[#allocation3 + $0x50] sm:$0xff] %v5166
        %5199 = vst [vmem:[#allocation3 + $0x58] sm:$0xff] %v5167
        %5200 = vst [vmem:[#allocation3 + $0x60] sm:$0xff] %v5168
        %5201 = vst [vmem:[#allocation3 + $0x68] sm:$0xff] %v5169
        %5202 = vst [vmem:[#allocation3 + $0x70] sm:$0xff] %v5170
        %5203 = vst [vmem:[#allocation3 + $0x78] sm:$0xff] %v5171
        %5204 = vst [vmem:[#allocation3 + $0x80] sm:$0xff] %v5172
        %5205 = vst [vmem:[#allocation3 + $0x88] sm:$0xff] %v5173
        %5206 = vst [vmem:[#allocation3 + $0x90] sm:$0xff] %v5174
        %5207 = vst [vmem:[#allocation3 + $0x98] sm:$0xff] %v5175
        %5208 = vst [vmem:[#allocation3 + $0xa0] sm:$0xff] %v5176
        %5209 = vst [vmem:[#allocation3 + $0xa8] sm:$0xff] %v5177
        %5210 = vst [vmem:[#allocation3 + $0xb0] sm:$0xff] %v5178
        %5211 = vst [vmem:[#allocation3 + $0xb8] sm:$0xff] %v5179
        %5212 = vst [vmem:[#allocation3 + $0xc0] sm:$0xff] %v5180
        %5213 = vst [vmem:[#allocation3 + $0xc8] sm:$0xff] %v5181
        %5214 = vst [vmem:[#allocation3 + $0xd0] sm:$0xff] %v5182
        %5215 = vst [vmem:[#allocation3 + $0xd8] sm:$0xff] %v5183
        %5216 = vst [vmem:[#allocation3 + $0xe0] sm:$0xff] %v5184
        %5217 = vst [vmem:[#allocation3 + $0xe8] sm:$0xff] %v5185
        %5218 = vst [vmem:[#allocation3 + $0xf0] sm:$0xff] %v5186
        %5219 = vst [vmem:[#allocation3 + $0xf8] sm:$0xff] %v5187
        %v5220 = vld [vmem:[%s4770] sm:$0xf]
        %v5221 = vld [vmem:[%s4770 + $0x4] sm:$0xf]
        %v5222 = vld [vmem:[%s4770 + $0x8] sm:$0x1]
        %v5223 = vld [vmem:[%s4770 + $0xc] sm:$0xf]
        %v5224 = vld [vmem:[%s4770 + $0x10] sm:$0xf]
        %v5225 = vld [vmem:[%s4770 + $0x14] sm:$0x1]
        %v5226 = vld [vmem:[%s4770 + $0x18] sm:$0xf]
        %v5227 = vld [vmem:[%s4770 + $0x1c] sm:$0xf]
        %v5228 = vld [vmem:[%s4770 + $0x20] sm:$0x1]
        %v5229 = vld [vmem:[%s4770 + $0x24] sm:$0xf]
        %v5230 = vld [vmem:[%s4770 + $0x28] sm:$0xf]
        %v5231 = vld [vmem:[%s4770 + $0x2c] sm:$0x1]
        %v5232 = vld [vmem:[%s4770 + $0x30] sm:$0xf]
        %v5233 = vld [vmem:[%s4770 + $0x34] sm:$0xf]
        %v5234 = vld [vmem:[%s4770 + $0x38] sm:$0x1]
        %v5235 = vld [vmem:[%s4770 + $0x3c] sm:$0xf]
        %v5236 = vld [vmem:[%s4770 + $0x40] sm:$0xf]
        %v5237 = vld [vmem:[%s4770 + $0x44] sm:$0x1]
        %v5238 = vld [vmem:[%s4770 + $0x48] sm:$0xf]
        %v5239 = vld [vmem:[%s4770 + $0x4c] sm:$0xf]
        %v5240 = vld [vmem:[%s4770 + $0x50] sm:$0x1]
        %v5241 = vld [vmem:[%s4770 + $0x54] sm:$0xf]
        %v5242 = vld [vmem:[%s4770 + $0x58] sm:$0xf]
        %v5243 = vld [vmem:[%s4770 + $0x5c] sm:$0x1]
        %v5244 = vld [vmem:[%s4770 + $0x60] sm:$0xf]
        %v5245 = vld [vmem:[%s4770 + $0x64] sm:$0xf]
        %v5246 = vld [vmem:[%s4770 + $0x68] sm:$0x1]
        %v5247 = vld [vmem:[%s4770 + $0x6c] sm:$0xf]
        %v5248 = vld [vmem:[%s4770 + $0x70] sm:$0xf]
        %v5249 = vld [vmem:[%s4770 + $0x74] sm:$0x1]
        %v5250 = vld [vmem:[%s4770 + $0x78] sm:$0xf]
        %v5251 = vld [vmem:[%s4770 + $0x7c] sm:$0xf]
        %v5252 = vld [vmem:[%s4770 + $0x80] sm:$0x1]
        %v5253 = vld [vmem:[%s4770 + $0x84] sm:$0xf]
        %v5254 = vld [vmem:[%s4770 + $0x88] sm:$0xf]
        %v5255 = vld [vmem:[%s4770 + $0x8c] sm:$0x1]
        %v5256 = vld [vmem:[%s4770 + $0x90] sm:$0xf]
        %v5257 = vld [vmem:[%s4770 + $0x94] sm:$0xf]
        %v5258 = vld [vmem:[%s4770 + $0x98] sm:$0x1]
        %v5259 = vld [vmem:[%s4770 + $0x9c] sm:$0xf]
        %v5260 = vld [vmem:[%s4770 + $0xa0] sm:$0xf]
        %v5261 = vld [vmem:[%s4770 + $0xa4] sm:$0x1]
        %v5262 = vld [vmem:[%s4770 + $0xa8] sm:$0xf]
        %v5263 = vld [vmem:[%s4770 + $0xac] sm:$0xf]
        %v5264 = vld [vmem:[%s4770 + $0xb0] sm:$0x1]
        %v5265 = vld [vmem:[%s4770 + $0xb4] sm:$0xf]
        %v5266 = vld [vmem:[%s4770 + $0xb8] sm:$0xf]
        %v5267 = vld [vmem:[%s4770 + $0xbc] sm:$0x1]
        %v5269 = vshrl.u32 %v5220, 16
        %v5271 = vrot.slane %v5269, 4
        %v5272 = vshll.u32 %v5220, 16
        %v5274 = vrot.slane %v5272, 5
        %v5275 = vor.u32 %v5271, %v5274
        %v5276 = vrot.slane %v5275, 4
        %v5278 = vshll.u32 %v5221, 16
        %v5280 = vrot.slane %v5278, 5
        %v5281 = vsel %vm1545, %v5276, %v5280
        %v5282 = vshrl.u32 %v5221, 16
        %v5284 = vrot.slane %v5282, 4
        %v5285 = vor.u32 %v5284, %v5280
        %v5286 = vrot.slane %v5285, 4
        %v5288 = vshll.u32 %v5222, 16
        %v5290 = vrot.slane %v5288, 5
        %v5291 = vsel %vm1545, %v5286, %v5290
        %v5293 = vshrl.u32 %v5223, 16
        %v5295 = vrot.slane %v5293, 4
        %v5296 = vshll.u32 %v5223, 16
        %v5298 = vrot.slane %v5296, 5
        %v5299 = vor.u32 %v5295, %v5298
        %v5300 = vrot.slane %v5299, 4
        %v5302 = vshll.u32 %v5224, 16
        %v5304 = vrot.slane %v5302, 5
        %v5305 = vsel %vm1545, %v5300, %v5304
        %v5306 = vshrl.u32 %v5224, 16
        %v5308 = vrot.slane %v5306, 4
        %v5309 = vor.u32 %v5308, %v5304
        %v5310 = vrot.slane %v5309, 4
        %v5312 = vshll.u32 %v5225, 16
        %v5314 = vrot.slane %v5312, 5
        %v5315 = vsel %vm1545, %v5310, %v5314
        %v5317 = vshrl.u32 %v5226, 16
        %v5319 = vrot.slane %v5317, 4
        %v5320 = vshll.u32 %v5226, 16
        %v5322 = vrot.slane %v5320, 5
        %v5323 = vor.u32 %v5319, %v5322
        %v5324 = vrot.slane %v5323, 4
        %v5326 = vshll.u32 %v5227, 16
        %v5328 = vrot.slane %v5326, 5
        %v5329 = vsel %vm1545, %v5324, %v5328
        %v5330 = vshrl.u32 %v5227, 16
        %v5332 = vrot.slane %v5330, 4
        %v5333 = vor.u32 %v5332, %v5328
        %v5334 = vrot.slane %v5333, 4
        %v5336 = vshll.u32 %v5228, 16
        %v5338 = vrot.slane %v5336, 5
        %v5339 = vsel %vm1545, %v5334, %v5338
        %v5341 = vshrl.u32 %v5229, 16
        %v5343 = vrot.slane %v5341, 4
        %v5344 = vshll.u32 %v5229, 16
        %v5346 = vrot.slane %v5344, 5
        %v5347 = vor.u32 %v5343, %v5346
        %v5348 = vrot.slane %v5347, 4
        %v5350 = vshll.u32 %v5230, 16
        %v5352 = vrot.slane %v5350, 5
        %v5353 = vsel %vm1545, %v5348, %v5352
        %v5354 = vshrl.u32 %v5230, 16
        %v5356 = vrot.slane %v5354, 4
        %v5357 = vor.u32 %v5356, %v5352
        %v5358 = vrot.slane %v5357, 4
        %v5360 = vshll.u32 %v5231, 16
        %v5362 = vrot.slane %v5360, 5
        %v5363 = vsel %vm1545, %v5358, %v5362
        %v5365 = vshrl.u32 %v5232, 16
        %v5367 = vrot.slane %v5365, 4
        %v5368 = vshll.u32 %v5232, 16
        %v5370 = vrot.slane %v5368, 5
        %v5371 = vor.u32 %v5367, %v5370
        %v5372 = vrot.slane %v5371, 4
        %v5374 = vshll.u32 %v5233, 16
        %v5376 = vrot.slane %v5374, 5
        %v5377 = vsel %vm1545, %v5372, %v5376
        %v5378 = vshrl.u32 %v5233, 16
        %v5380 = vrot.slane %v5378, 4
        %v5381 = vor.u32 %v5380, %v5376
        %v5382 = vrot.slane %v5381, 4
        %v5384 = vshll.u32 %v5234, 16
        %v5386 = vrot.slane %v5384, 5
        %v5387 = vsel %vm1545, %v5382, %v5386
        %v5389 = vshrl.u32 %v5235, 16
        %v5391 = vrot.slane %v5389, 4
        %v5392 = vshll.u32 %v5235, 16
        %v5394 = vrot.slane %v5392, 5
        %v5395 = vor.u32 %v5391, %v5394
        %v5396 = vrot.slane %v5395, 4
        %v5398 = vshll.u32 %v5236, 16
        %v5400 = vrot.slane %v5398, 5
        %v5401 = vsel %vm1545, %v5396, %v5400
        %v5402 = vshrl.u32 %v5236, 16
        %v5404 = vrot.slane %v5402, 4
        %v5405 = vor.u32 %v5404, %v5400
        %v5406 = vrot.slane %v5405, 4
        %v5408 = vshll.u32 %v5237, 16
        %v5410 = vrot.slane %v5408, 5
        %v5411 = vsel %vm1545, %v5406, %v5410
        %v5413 = vshrl.u32 %v5238, 16
        %v5415 = vrot.slane %v5413, 4
        %v5416 = vshll.u32 %v5238, 16
        %v5418 = vrot.slane %v5416, 5
        %v5419 = vor.u32 %v5415, %v5418
        %v5420 = vrot.slane %v5419, 4
        %v5422 = vshll.u32 %v5239, 16
        %v5424 = vrot.slane %v5422, 5
        %v5425 = vsel %vm1545, %v5420, %v5424
        %v5426 = vshrl.u32 %v5239, 16
        %v5428 = vrot.slane %v5426, 4
        %v5429 = vor.u32 %v5428, %v5424
        %v5430 = vrot.slane %v5429, 4
        %v5432 = vshll.u32 %v5240, 16
        %v5434 = vrot.slane %v5432, 5
        %v5435 = vsel %vm1545, %v5430, %v5434
        %v5437 = vshrl.u32 %v5241, 16
        %v5439 = vrot.slane %v5437, 4
        %v5440 = vshll.u32 %v5241, 16
        %v5442 = vrot.slane %v5440, 5
        %v5443 = vor.u32 %v5439, %v5442
        %v5444 = vrot.slane %v5443, 4
        %v5446 = vshll.u32 %v5242, 16
        %v5448 = vrot.slane %v5446, 5
        %v5449 = vsel %vm1545, %v5444, %v5448
        %v5450 = vshrl.u32 %v5242, 16
        %v5452 = vrot.slane %v5450, 4
        %v5453 = vor.u32 %v5452, %v5448
        %v5454 = vrot.slane %v5453, 4
        %v5456 = vshll.u32 %v5243, 16
        %v5458 = vrot.slane %v5456, 5
        %v5459 = vsel %vm1545, %v5454, %v5458
        %v5461 = vshrl.u32 %v5244, 16
        %v5463 = vrot.slane %v5461, 4
        %v5464 = vshll.u32 %v5244, 16
        %v5466 = vrot.slane %v5464, 5
        %v5467 = vor.u32 %v5463, %v5466
        %v5468 = vrot.slane %v5467, 4
        %v5470 = vshll.u32 %v5245, 16
        %v5472 = vrot.slane %v5470, 5
        %v5473 = vsel %vm1545, %v5468, %v5472
        %v5474 = vshrl.u32 %v5245, 16
        %v5476 = vrot.slane %v5474, 4
        %v5477 = vor.u32 %v5476, %v5472
        %v5478 = vrot.slane %v5477, 4
        %v5480 = vshll.u32 %v5246, 16
        %v5482 = vrot.slane %v5480, 5
        %v5483 = vsel %vm1545, %v5478, %v5482
        %v5485 = vshrl.u32 %v5247, 16
        %v5487 = vrot.slane %v5485, 4
        %v5488 = vshll.u32 %v5247, 16
        %v5490 = vrot.slane %v5488, 5
        %v5491 = vor.u32 %v5487, %v5490
        %v5492 = vrot.slane %v5491, 4
        %v5494 = vshll.u32 %v5248, 16
        %v5496 = vrot.slane %v5494, 5
        %v5497 = vsel %vm1545, %v5492, %v5496
        %v5498 = vshrl.u32 %v5248, 16
        %v5500 = vrot.slane %v5498, 4
        %v5501 = vor.u32 %v5500, %v5496
        %v5502 = vrot.slane %v5501, 4
        %v5504 = vshll.u32 %v5249, 16
        %v5506 = vrot.slane %v5504, 5
        %v5507 = vsel %vm1545, %v5502, %v5506
        %v5509 = vshrl.u32 %v5250, 16
        %v5511 = vrot.slane %v5509, 4
        %v5512 = vshll.u32 %v5250, 16
        %v5514 = vrot.slane %v5512, 5
        %v5515 = vor.u32 %v5511, %v5514
        %v5516 = vrot.slane %v5515, 4
        %v5518 = vshll.u32 %v5251, 16
        %v5520 = vrot.slane %v5518, 5
        %v5521 = vsel %vm1545, %v5516, %v5520
        %v5522 = vshrl.u32 %v5251, 16
        %v5524 = vrot.slane %v5522, 4
        %v5525 = vor.u32 %v5524, %v5520
        %v5526 = vrot.slane %v5525, 4
        %v5528 = vshll.u32 %v5252, 16
        %v5530 = vrot.slane %v5528, 5
        %v5531 = vsel %vm1545, %v5526, %v5530
        %v5533 = vshrl.u32 %v5253, 16
        %v5535 = vrot.slane %v5533, 4
        %v5536 = vshll.u32 %v5253, 16
        %v5538 = vrot.slane %v5536, 5
        %v5539 = vor.u32 %v5535, %v5538
        %v5540 = vrot.slane %v5539, 4
        %v5542 = vshll.u32 %v5254, 16
        %v5544 = vrot.slane %v5542, 5
        %v5545 = vsel %vm1545, %v5540, %v5544
        %v5546 = vshrl.u32 %v5254, 16
        %v5548 = vrot.slane %v5546, 4
        %v5549 = vor.u32 %v5548, %v5544
        %v5550 = vrot.slane %v5549, 4
        %v5552 = vshll.u32 %v5255, 16
        %v5554 = vrot.slane %v5552, 5
        %v5555 = vsel %vm1545, %v5550, %v5554
        %v5557 = vshrl.u32 %v5256, 16
        %v5559 = vrot.slane %v5557, 4
        %v5560 = vshll.u32 %v5256, 16
        %v5562 = vrot.slane %v5560, 5
        %v5563 = vor.u32 %v5559, %v5562
        %v5564 = vrot.slane %v5563, 4
        %v5566 = vshll.u32 %v5257, 16
        %v5568 = vrot.slane %v5566, 5
        %v5569 = vsel %vm1545, %v5564, %v5568
        %v5570 = vshrl.u32 %v5257, 16
        %v5572 = vrot.slane %v5570, 4
        %v5573 = vor.u32 %v5572, %v5568
        %v5574 = vrot.slane %v5573, 4
        %v5576 = vshll.u32 %v5258, 16
        %v5578 = vrot.slane %v5576, 5
        %v5579 = vsel %vm1545, %v5574, %v5578
        %v5581 = vshrl.u32 %v5259, 16
        %v5583 = vrot.slane %v5581, 4
        %v5584 = vshll.u32 %v5259, 16
        %v5586 = vrot.slane %v5584, 5
        %v5587 = vor.u32 %v5583, %v5586
        %v5588 = vrot.slane %v5587, 4
        %v5590 = vshll.u32 %v5260, 16
        %v5592 = vrot.slane %v5590, 5
        %v5593 = vsel %vm1545, %v5588, %v5592
        %v5594 = vshrl.u32 %v5260, 16
        %v5596 = vrot.slane %v5594, 4
        %v5597 = vor.u32 %v5596, %v5592
        %v5598 = vrot.slane %v5597, 4
        %v5600 = vshll.u32 %v5261, 16
        %v5602 = vrot.slane %v5600, 5
        %v5603 = vsel %vm1545, %v5598, %v5602
        %v5605 = vshrl.u32 %v5262, 16
        %v5607 = vrot.slane %v5605, 4
        %v5608 = vshll.u32 %v5262, 16
        %v5610 = vrot.slane %v5608, 5
        %v5611 = vor.u32 %v5607, %v5610
        %v5612 = vrot.slane %v5611, 4
        %v5614 = vshll.u32 %v5263, 16
        %v5616 = vrot.slane %v5614, 5
        %v5617 = vsel %vm1545, %v5612, %v5616
        %v5618 = vshrl.u32 %v5263, 16
        %v5620 = vrot.slane %v5618, 4
        %v5621 = vor.u32 %v5620, %v5616
        %v5622 = vrot.slane %v5621, 4
        %v5624 = vshll.u32 %v5264, 16
        %v5626 = vrot.slane %v5624, 5
        %v5627 = vsel %vm1545, %v5622, %v5626
        %v5629 = vshrl.u32 %v5265, 16
        %v5631 = vrot.slane %v5629, 4
        %v5632 = vshll.u32 %v5265, 16
        %v5634 = vrot.slane %v5632, 5
        %v5635 = vor.u32 %v5631, %v5634
        %v5636 = vrot.slane %v5635, 4
        %v5638 = vshll.u32 %v5266, 16
        %v5640 = vrot.slane %v5638, 5
        %v5641 = vsel %vm1545, %v5636, %v5640
        %v5642 = vshrl.u32 %v5266, 16
        %v5644 = vrot.slane %v5642, 4
        %v5645 = vor.u32 %v5644, %v5640
        %v5646 = vrot.slane %v5645, 4
        %v5648 = vshll.u32 %v5267, 16
        %v5650 = vrot.slane %v5648, 5
        %v5651 = vsel %vm1545, %v5646, %v5650
        %v5652 = vld [vmem:[#allocation3] sm:$0xff]
        %v5653 = vld [vmem:[#allocation3 + $0x8] sm:$0xff]
        %v5654 = vld [vmem:[#allocation3 + $0x10] sm:$0xff]
        %v5655 = vld [vmem:[#allocation3 + $0x18] sm:$0xff]
        %v5656 = vld [vmem:[#allocation3 + $0x20] sm:$0xff]
        %v5657 = vld [vmem:[#allocation3 + $0x28] sm:$0xff]
        %v5658 = vld [vmem:[#allocation3 + $0x30] sm:$0xff]
        %v5659 = vld [vmem:[#allocation3 + $0x38] sm:$0xff]
        %v5660 = vld [vmem:[#allocation3 + $0x40] sm:$0xff]
        %v5661 = vld [vmem:[#allocation3 + $0x48] sm:$0xff]
        %v5662 = vld [vmem:[#allocation3 + $0x50] sm:$0xff]
        %v5663 = vld [vmem:[#allocation3 + $0x58] sm:$0xff]
        %v5664 = vld [vmem:[#allocation3 + $0x60] sm:$0xff]
        %v5665 = vld [vmem:[#allocation3 + $0x68] sm:$0xff]
        %v5666 = vld [vmem:[#allocation3 + $0x70] sm:$0xff]
        %v5667 = vld [vmem:[#allocation3 + $0x78] sm:$0xff]
        %v5668 = vld [vmem:[#allocation3 + $0x80] sm:$0xff]
        %v5669 = vld [vmem:[#allocation3 + $0x88] sm:$0xff]
        %v5670 = vld [vmem:[#allocation3 + $0x90] sm:$0xff]
        %v5671 = vld [vmem:[#allocation3 + $0x98] sm:$0xff]
        %v5672 = vld [vmem:[#allocation3 + $0xa0] sm:$0xff]
        %v5673 = vld [vmem:[#allocation3 + $0xa8] sm:$0xff]
        %v5674 = vld [vmem:[#allocation3 + $0xb0] sm:$0xff]
        %v5675 = vld [vmem:[#allocation3 + $0xb8] sm:$0xff]
        %v5676 = vld [vmem:[#allocation3 + $0xc0] sm:$0xff]
        %v5677 = vld [vmem:[#allocation3 + $0xc8] sm:$0xff]
        %v5678 = vld [vmem:[#allocation3 + $0xd0] sm:$0xff]
        %v5679 = vld [vmem:[#allocation3 + $0xd8] sm:$0xff]
        %v5680 = vld [vmem:[#allocation3 + $0xe0] sm:$0xff]
        %v5681 = vld [vmem:[#allocation3 + $0xe8] sm:$0xff]
        %v5682 = vld [vmem:[#allocation3 + $0xf0] sm:$0xff]
        %v5683 = vld [vmem:[#allocation3 + $0xf8] sm:$0xff]
        %v5684 = vld [vmem:[#allocation7 + $0x1c0] sm:$0xf]
        %v5685 = vld [vmem:[#allocation7 + $0x1c4] sm:$0xf]
        %v5686 = vld [vmem:[#allocation7 + $0x1c8] sm:$0xf]
        %v5687 = vld [vmem:[#allocation7 + $0x1cc] sm:$0xf]
        %v5688 = vld [vmem:[#allocation7 + $0x1d0] sm:$0xf]
        %v5689 = vld [vmem:[#allocation7 + $0x1d4] sm:$0xf]
        %v5690 = vld [vmem:[#allocation7 + $0x1d8] sm:$0xf]
        %v5691 = vld [vmem:[#allocation7 + $0x1dc] sm:$0xf]
        %v5692 = vld [vmem:[#allocation7 + $0x1e0] sm:$0xf]
        %v5693 = vld [vmem:[#allocation7 + $0x1e4] sm:$0xf]
        %v5694 = vld [vmem:[#allocation7 + $0x1e8] sm:$0xf]
        %v5695 = vld [vmem:[#allocation7 + $0x1ec] sm:$0xf]
        %v5696 = vld [vmem:[#allocation7 + $0x1f0] sm:$0xf]
        %v5697 = vld [vmem:[#allocation7 + $0x1f4] sm:$0xf]
        %v5698 = vld [vmem:[#allocation7 + $0x1f8] sm:$0xf]
        %v5699 = vld [vmem:[#allocation7 + $0x1fc] sm:$0xf]
        %v5700 = vunpack.c.l.b16 %v5281
        %v5701 = vunpack.c.l.b16 %v5291
        %v5702 = vunpack.c.l.b16 %v5305
        %v5703 = vunpack.c.l.b16 %v5315
        %v5704 = vunpack.c.l.b16 %v5329
        %v5705 = vunpack.c.l.b16 %v5339
        %v5706 = vunpack.c.l.b16 %v5353
        %v5707 = vunpack.c.l.b16 %v5363
        %v5708 = vunpack.c.l.b16 %v5377
        %v5709 = vunpack.c.l.b16 %v5387
        %v5710 = vunpack.c.l.b16 %v5401
        %v5711 = vunpack.c.l.b16 %v5411
        %v5712 = vunpack.c.l.b16 %v5425
        %v5713 = vunpack.c.l.b16 %v5435
        %v5714 = vunpack.c.l.b16 %v5449
        %v5715 = vunpack.c.l.b16 %v5459
        %v5716 = vunpack.c.l.b16 %v5473
        %v5717 = vunpack.c.l.b16 %v5483
        %v5718 = vunpack.c.l.b16 %v5497
        %v5719 = vunpack.c.l.b16 %v5507
        %v5720 = vunpack.c.l.b16 %v5521
        %v5721 = vunpack.c.l.b16 %v5531
        %v5722 = vunpack.c.l.b16 %v5545
        %v5723 = vunpack.c.l.b16 %v5555
        %v5724 = vunpack.c.l.b16 %v5569
        %v5725 = vunpack.c.l.b16 %v5579
        %v5726 = vunpack.c.l.b16 %v5593
        %v5727 = vunpack.c.l.b16 %v5603
        %v5728 = vunpack.c.l.b16 %v5617
        %v5729 = vunpack.c.l.b16 %v5627
        %v5730 = vunpack.c.l.b16 %v5641
        %v5731 = vunpack.c.l.b16 %v5651
        %v5732 = vpack.c.b16 %v5701, %v5700
        %v5733 = vpack.c.b16 %v5703, %v5702
        %v5734 = vpack.c.b16 %v5705, %v5704
        %v5735 = vpack.c.b16 %v5707, %v5706
        %v5736 = vpack.c.b16 %v5709, %v5708
        %v5737 = vpack.c.b16 %v5711, %v5710
        %v5738 = vpack.c.b16 %v5713, %v5712
        %v5739 = vpack.c.b16 %v5715, %v5714
        %v5740 = vpack.c.b16 %v5717, %v5716
        %v5741 = vpack.c.b16 %v5719, %v5718
        %v5742 = vpack.c.b16 %v5721, %v5720
        %v5743 = vpack.c.b16 %v5723, %v5722
        %v5744 = vpack.c.b16 %v5725, %v5724
        %v5745 = vpack.c.b16 %v5727, %v5726
        %v5746 = vpack.c.b16 %v5729, %v5728
        %v5747 = vpack.c.b16 %v5731, %v5730
        %v5780 = vunpack.c.l.b16 %v5684
        %v5781 = vunpack.c.l.b16 %v5685
        %v5782 = vunpack.c.l.b16 %v5686
        %v5783 = vunpack.c.l.b16 %v5687
        %v5784 = vunpack.c.l.b16 %v5688
        %v5785 = vunpack.c.l.b16 %v5689
        %v5786 = vunpack.c.l.b16 %v5690
        %v5787 = vunpack.c.l.b16 %v5691
        %v5788 = vunpack.c.l.b16 %v5692
        %v5789 = vunpack.c.l.b16 %v5693
        %v5790 = vunpack.c.l.b16 %v5694
        %v5791 = vunpack.c.l.b16 %v5695
        %v5792 = vunpack.c.l.b16 %v5696
        %v5793 = vunpack.c.l.b16 %v5697
        %v5794 = vunpack.c.l.b16 %v5698
        %v5795 = vunpack.c.l.b16 %v5699
        %v5796 = vpack.c.b16 %v5781, %v5780
        %v5797 = vpack.c.b16 %v5783, %v5782
        %v5798 = vpack.c.b16 %v5785, %v5784
        %v5799 = vpack.c.b16 %v5787, %v5786
        %v5800 = vpack.c.b16 %v5789, %v5788
        %v5801 = vpack.c.b16 %v5791, %v5790
        %v5802 = vpack.c.b16 %v5793, %v5792
        %v5803 = vpack.c.b16 %v5795, %v5794
        %5812 = vmatprep.subr.bf16.mxu0 0
        %5813 = vmatpush1.bf16.msra.mxu0 %v5796
        %5814 = vmatprep.subr.bf16.mxu0 0
        %5815 = vmatpush1.bf16.msra.mxu0 %v5797
        %5816 = vmatprep.subr.bf16.mxu0 0
        %5817 = vmatpush1.bf16.msra.mxu0 %v5798
        %5818 = vmatprep.subr.bf16.mxu0 0
        %5819 = vmatpush1.bf16.msra.mxu0 %v5799
        %5820 = vmatprep.subr.bf16.mxu0 0
        %5821 = vmatpush1.bf16.msra.mxu0 %v5800
        %5822 = vmatprep.subr.bf16.mxu0 0
        %5823 = vmatpush1.bf16.msra.mxu0 %v5801
        %5824 = vmatprep.subr.bf16.mxu0 0
        %5825 = vmatpush1.bf16.msra.mxu0 %v5802
        %5826 = vmatprep.subr.bf16.mxu0 0
        %5827 = vmatpush1.bf16.msra.mxu0 %v5803
        %5828 = vmatprep.subr.bf16.mxu0 0
        %5829 = vmatpush1.bf16.msra.mxu0 0
        %5830 = vmatprep.subr.bf16.mxu0 0
        %5831 = vmatpush1.bf16.msra.mxu0 0
        %5832 = vmatprep.subr.bf16.mxu0 0
        %5833 = vmatpush1.bf16.msra.mxu0 0
        %5834 = vmatprep.subr.bf16.mxu0 0
        %5835 = vmatpush1.bf16.msra.mxu0 0
        %5836 = vmatprep.subr.bf16.mxu0 0
        %5837 = vmatpush1.bf16.msra.mxu0 0
        %5838 = vmatprep.subr.bf16.mxu0 0
        %5839 = vmatpush1.bf16.msra.mxu0 0
        %5840 = vmatprep.subr.bf16.mxu0 0
        %5841 = vmatpush1.bf16.msra.mxu0 0
        %5842 = vmatprep.subr.bf16.mxu0 0
        %5843 = vmatpush1.bf16.msra.mxu0 0
        %5844 = vmatprep.mubr.bf16.mxu0 0
        %5845 = vmatmul.mubr.bf16.gmra.mrb[0].mxu0 %v5732
        %v5846 = vpop.f32.mrb[0].mxu0
        %v5847 = vadd.f32 0.0, %v5846
        %v5848 = vpop.f32.mrb[0].mxu0
        %v5849 = vpop.f32.mrb[0].mxu0
        %v5850 = vadd.f32 0.0, %v5849
        %v5851 = vpop.f32.mrb[0].mxu0
        %5852 = vmatprep.mubr.bf16.mxu0 0
        %5853 = vmatmul.mubr.bf16.gmra.mrb[0].mxu0 %v5733
        %v5854 = vpop.f32.mrb[0].mxu0
        %v5855 = vadd.f32 0.0, %v5854
        %v5856 = vpop.f32.mrb[0].mxu0
        %v5857 = vpop.f32.mrb[0].mxu0
        %v5858 = vadd.f32 0.0, %v5857
        %v5859 = vpop.f32.mrb[0].mxu0
        %5860 = vmatprep.mubr.bf16.mxu0 0
        %5861 = vmatmul.mubr.bf16.gmra.mrb[0].mxu0 %v5734
        %v5862 = vpop.f32.mrb[0].mxu0
        %v5863 = vadd.f32 0.0, %v5862
        %v5864 = vpop.f32.mrb[0].mxu0
        %v5865 = vpop.f32.mrb[0].mxu0
        %v5866 = vadd.f32 0.0, %v5865
        %v5867 = vpop.f32.mrb[0].mxu0
        %5868 = vmatprep.mubr.bf16.mxu0 0
        %5869 = vmatmul.mubr.bf16.gmra.mrb[0].mxu0 %v5735
        %v5870 = vpop.f32.mrb[0].mxu0
        %v5871 = vadd.f32 0.0, %v5870
        %v5872 = vpop.f32.mrb[0].mxu0
        %v5873 = vpop.f32.mrb[0].mxu0
        %v5874 = vadd.f32 0.0, %v5873
        %v5875 = vpop.f32.mrb[0].mxu0
        %5876 = vmatprep.mubr.bf16.mxu0 0
        %5877 = vmatmul.mubr.bf16.gmra.mrb[0].mxu0 %v5736
        %v5878 = vpop.f32.mrb[0].mxu0
        %v5879 = vadd.f32 0.0, %v5878
        %v5880 = vpop.f32.mrb[0].mxu0
        %v5881 = vpop.f32.mrb[0].mxu0
        %v5882 = vadd.f32 0.0, %v5881
        %v5883 = vpop.f32.mrb[0].mxu0
        %5884 = vmatprep.mubr.bf16.mxu0 0
        %5885 = vmatmul.mubr.bf16.gmra.mrb[0].mxu0 %v5737
        %v5886 = vpop.f32.mrb[0].mxu0
        %v5887 = vadd.f32 0.0, %v5886
        %v5888 = vpop.f32.mrb[0].mxu0
        %v5889 = vpop.f32.mrb[0].mxu0
        %v5890 = vadd.f32 0.0, %v5889
        %v5891 = vpop.f32.mrb[0].mxu0
        %5892 = vmatprep.mubr.bf16.mxu0 0
        %5893 = vmatmul.mubr.bf16.gmra.mrb[0].mxu0 %v5738
        %v5894 = vpop.f32.mrb[0].mxu0
        %v5895 = vadd.f32 0.0, %v5894
        %v5896 = vpop.f32.mrb[0].mxu0
        %v5897 = vpop.f32.mrb[0].mxu0
        %v5898 = vadd.f32 0.0, %v5897
        %v5899 = vpop.f32.mrb[0].mxu0
        %5900 = vmatprep.mubr.bf16.mxu0 0
        %5901 = vmatmul.mubr.bf16.gmra.mrb[0].mxu0 %v5739
        %v5902 = vpop.f32.mrb[0].mxu0
        %v5903 = vadd.f32 0.0, %v5902
        %v5904 = vpop.f32.mrb[0].mxu0
        %v5905 = vpop.f32.mrb[0].mxu0
        %v5906 = vadd.f32 0.0, %v5905
        %v5907 = vpop.f32.mrb[0].mxu0
        %5908 = vmatprep.mubr.bf16.mxu0 0
        %5909 = vmatmul.mubr.bf16.gmra.mrb[0].mxu0 %v5740
        %v5910 = vpop.f32.mrb[0].mxu0
        %v5911 = vadd.f32 0.0, %v5910
        %v5912 = vpop.f32.mrb[0].mxu0
        %v5913 = vpop.f32.mrb[0].mxu0
        %v5914 = vadd.f32 0.0, %v5913
        %v5915 = vpop.f32.mrb[0].mxu0
        %5916 = vmatprep.mubr.bf16.mxu0 0
        %5917 = vmatmul.mubr.bf16.gmra.mrb[0].mxu0 %v5741
        %v5918 = vpop.f32.mrb[0].mxu0
        %v5919 = vadd.f32 0.0, %v5918
        %v5920 = vpop.f32.mrb[0].mxu0
        %v5921 = vpop.f32.mrb[0].mxu0
        %v5922 = vadd.f32 0.0, %v5921
        %v5923 = vpop.f32.mrb[0].mxu0
        %5924 = vmatprep.mubr.bf16.mxu0 0
        %5925 = vmatmul.mubr.bf16.gmra.mrb[0].mxu0 %v5742
        %v5926 = vpop.f32.mrb[0].mxu0
        %v5927 = vadd.f32 0.0, %v5926
        %v5928 = vpop.f32.mrb[0].mxu0
        %v5929 = vpop.f32.mrb[0].mxu0
        %v5930 = vadd.f32 0.0, %v5929
        %v5931 = vpop.f32.mrb[0].mxu0
        %5932 = vmatprep.mubr.bf16.mxu0 0
        %5933 = vmatmul.mubr.bf16.gmra.mrb[0].mxu0 %v5743
        %v5934 = vpop.f32.mrb[0].mxu0
        %v5935 = vadd.f32 0.0, %v5934
        %v5936 = vpop.f32.mrb[0].mxu0
        %v5937 = vpop.f32.mrb[0].mxu0
        %v5938 = vadd.f32 0.0, %v5937
        %v5939 = vpop.f32.mrb[0].mxu0
        %5940 = vmatprep.mubr.bf16.mxu0 0
        %5941 = vmatmul.mubr.bf16.gmra.mrb[0].mxu0 %v5744
        %v5942 = vpop.f32.mrb[0].mxu0
        %v5943 = vadd.f32 0.0, %v5942
        %v5944 = vpop.f32.mrb[0].mxu0
        %v5945 = vpop.f32.mrb[0].mxu0
        %v5946 = vadd.f32 0.0, %v5945
        %v5947 = vpop.f32.mrb[0].mxu0
        %5948 = vmatprep.mubr.bf16.mxu0 0
        %5949 = vmatmul.mubr.bf16.gmra.mrb[0].mxu0 %v5745
        %v5950 = vpop.f32.mrb[0].mxu0
        %v5951 = vadd.f32 0.0, %v5950
        %v5952 = vpop.f32.mrb[0].mxu0
        %v5953 = vpop.f32.mrb[0].mxu0
        %v5954 = vadd.f32 0.0, %v5953
        %v5955 = vpop.f32.mrb[0].mxu0
        %5956 = vmatprep.mubr.bf16.mxu0 0
        %5957 = vmatmul.mubr.bf16.gmra.mrb[0].mxu0 %v5746
        %v5958 = vpop.f32.mrb[0].mxu0
        %v5959 = vadd.f32 0.0, %v5958
        %v5960 = vpop.f32.mrb[0].mxu0
        %v5961 = vpop.f32.mrb[0].mxu0
        %v5962 = vadd.f32 0.0, %v5961
        %v5963 = vpop.f32.mrb[0].mxu0
        %5964 = vmatprep.mubr.bf16.mxu0 0
        %5965 = vmatmul.mubr.bf16.gmra.mrb[0].mxu0 %v5747
        %v5966 = vpop.f32.mrb[0].mxu0
        %v5967 = vadd.f32 0.0, %v5966
        %v5968 = vpop.f32.mrb[0].mxu0
        %v5969 = vpop.f32.mrb[0].mxu0
        %v5970 = vadd.f32 0.0, %v5969
        %v5971 = vpop.f32.mrb[0].mxu0
        %5972 = vdwg.mxu0
        %v5973 = vadd.f32 %v5652, %v5847
        %v5974 = vadd.f32 %v5653, %v5850
        %v5975 = vadd.f32 %v5654, %v5855
        %v5976 = vadd.f32 %v5655, %v5858
        %v5977 = vadd.f32 %v5656, %v5863
        %v5978 = vadd.f32 %v5657, %v5866
        %v5979 = vadd.f32 %v5658, %v5871
        %v5980 = vadd.f32 %v5659, %v5874
        %v5981 = vadd.f32 %v5660, %v5879
        %v5982 = vadd.f32 %v5661, %v5882
        %v5983 = vadd.f32 %v5662, %v5887
        %v5984 = vadd.f32 %v5663, %v5890
        %v5985 = vadd.f32 %v5664, %v5895
        %v5986 = vadd.f32 %v5665, %v5898
        %v5987 = vadd.f32 %v5666, %v5903
        %v5988 = vadd.f32 %v5667, %v5906
        %v5989 = vadd.f32 %v5668, %v5911
        %v5990 = vadd.f32 %v5669, %v5914
        %v5991 = vadd.f32 %v5670, %v5919
        %v5992 = vadd.f32 %v5671, %v5922
        %v5993 = vadd.f32 %v5672, %v5927
        %v5994 = vadd.f32 %v5673, %v5930
        %v5995 = vadd.f32 %v5674, %v5935
        %v5996 = vadd.f32 %v5675, %v5938
        %v5997 = vadd.f32 %v5676, %v5943
        %v5998 = vadd.f32 %v5677, %v5946
        %v5999 = vadd.f32 %v5678, %v5951
        %v6000 = vadd.f32 %v5679, %v5954
        %v6001 = vadd.f32 %v5680, %v5959
        %v6002 = vadd.f32 %v5681, %v5962
        %v6003 = vadd.f32 %v5682, %v5967
        %v6004 = vadd.f32 %v5683, %v5970
        %6005 = vst [vmem:[#allocation3] sm:$0xff] %v5973
        %6006 = vst [vmem:[#allocation3 + $0x8] sm:$0xff] %v5974
        %6007 = vst [vmem:[#allocation3 + $0x10] sm:$0xff] %v5975
        %6008 = vst [vmem:[#allocation3 + $0x18] sm:$0xff] %v5976
        %6009 = vst [vmem:[#allocation3 + $0x20] sm:$0xff] %v5977
        %6010 = vst [vmem:[#allocation3 + $0x28] sm:$0xff] %v5978
        %6011 = vst [vmem:[#allocation3 + $0x30] sm:$0xff] %v5979
        %6012 = vst [vmem:[#allocation3 + $0x38] sm:$0xff] %v5980
        %6013 = vst [vmem:[#allocation3 + $0x40] sm:$0xff] %v5981
        %6014 = vst [vmem:[#allocation3 + $0x48] sm:$0xff] %v5982
        %6015 = vst [vmem:[#allocation3 + $0x50] sm:$0xff] %v5983
        %6016 = vst [vmem:[#allocation3 + $0x58] sm:$0xff] %v5984
        %6017 = vst [vmem:[#allocation3 + $0x60] sm:$0xff] %v5985
        %6018 = vst [vmem:[#allocation3 + $0x68] sm:$0xff] %v5986
        %6019 = vst [vmem:[#allocation3 + $0x70] sm:$0xff] %v5987
        %6020 = vst [vmem:[#allocation3 + $0x78] sm:$0xff] %v5988
        %6021 = vst [vmem:[#allocation3 + $0x80] sm:$0xff] %v5989
        %6022 = vst [vmem:[#allocation3 + $0x88] sm:$0xff] %v5990
        %6023 = vst [vmem:[#allocation3 + $0x90] sm:$0xff] %v5991
        %6024 = vst [vmem:[#allocation3 + $0x98] sm:$0xff] %v5992
        %6025 = vst [vmem:[#allocation3 + $0xa0] sm:$0xff] %v5993
        %6026 = vst [vmem:[#allocation3 + $0xa8] sm:$0xff] %v5994
        %6027 = vst [vmem:[#allocation3 + $0xb0] sm:$0xff] %v5995
        %6028 = vst [vmem:[#allocation3 + $0xb8] sm:$0xff] %v5996
        %6029 = vst [vmem:[#allocation3 + $0xc0] sm:$0xff] %v5997
        %6030 = vst [vmem:[#allocation3 + $0xc8] sm:$0xff] %v5998
        %6031 = vst [vmem:[#allocation3 + $0xd0] sm:$0xff] %v5999
        %6032 = vst [vmem:[#allocation3 + $0xd8] sm:$0xff] %v6000
        %6033 = vst [vmem:[#allocation3 + $0xe0] sm:$0xff] %v6001
        %6034 = vst [vmem:[#allocation3 + $0xe8] sm:$0xff] %v6002
        %6035 = vst [vmem:[#allocation3 + $0xf0] sm:$0xff] %v6003
        %6036 = vst [vmem:[#allocation3 + $0xf8] sm:$0xff] %v6004
        %v6037 = vld [vmem:[%s4770] sm:$0xe]
        %v6038 = vld [vmem:[%s4770 + $0x4] sm:$0xf]
        %v6039 = vld [vmem:[%s4770 + $0x8] sm:$0x1]
        %v6040 = vld [vmem:[%s4770 + $0xc] sm:$0xe]
        %v6041 = vld [vmem:[%s4770 + $0x10] sm:$0xf]
        %v6042 = vld [vmem:[%s4770 + $0x14] sm:$0x1]
        %v6043 = vld [vmem:[%s4770 + $0x18] sm:$0xe]
        %v6044 = vld [vmem:[%s4770 + $0x1c] sm:$0xf]
        %v6045 = vld [vmem:[%s4770 + $0x20] sm:$0x1]
        %v6046 = vld [vmem:[%s4770 + $0x24] sm:$0xe]
        %v6047 = vld [vmem:[%s4770 + $0x28] sm:$0xf]
        %v6048 = vld [vmem:[%s4770 + $0x2c] sm:$0x1]
        %v6049 = vld [vmem:[%s4770 + $0x30] sm:$0xe]
        %v6050 = vld [vmem:[%s4770 + $0x34] sm:$0xf]
        %v6051 = vld [vmem:[%s4770 + $0x38] sm:$0x1]
        %v6052 = vld [vmem:[%s4770 + $0x3c] sm:$0xe]
        %v6053 = vld [vmem:[%s4770 + $0x40] sm:$0xf]
        %v6054 = vld [vmem:[%s4770 + $0x44] sm:$0x1]
        %v6055 = vld [vmem:[%s4770 + $0x48] sm:$0xe]
        %v6056 = vld [vmem:[%s4770 + $0x4c] sm:$0xf]
        %v6057 = vld [vmem:[%s4770 + $0x50] sm:$0x1]
        %v6058 = vld [vmem:[%s4770 + $0x54] sm:$0xe]
        %v6059 = vld [vmem:[%s4770 + $0x58] sm:$0xf]
        %v6060 = vld [vmem:[%s4770 + $0x5c] sm:$0x1]
        %v6061 = vld [vmem:[%s4770 + $0x60] sm:$0xe]
        %v6062 = vld [vmem:[%s4770 + $0x64] sm:$0xf]
        %v6063 = vld [vmem:[%s4770 + $0x68] sm:$0x1]
        %v6064 = vld [vmem:[%s4770 + $0x6c] sm:$0xe]
        %v6065 = vld [vmem:[%s4770 + $0x70] sm:$0xf]
        %v6066 = vld [vmem:[%s4770 + $0x74] sm:$0x1]
        %v6067 = vld [vmem:[%s4770 + $0x78] sm:$0xe]
        %v6068 = vld [vmem:[%s4770 + $0x7c] sm:$0xf]
        %v6069 = vld [vmem:[%s4770 + $0x80] sm:$0x1]
        %v6070 = vld [vmem:[%s4770 + $0x84] sm:$0xe]
        %v6071 = vld [vmem:[%s4770 + $0x88] sm:$0xf]
        %v6072 = vld [vmem:[%s4770 + $0x8c] sm:$0x1]
        %v6073 = vld [vmem:[%s4770 + $0x90] sm:$0xe]
        %v6074 = vld [vmem:[%s4770 + $0x94] sm:$0xf]
        %v6075 = vld [vmem:[%s4770 + $0x98] sm:$0x1]
        %v6076 = vld [vmem:[%s4770 + $0x9c] sm:$0xe]
        %v6077 = vld [vmem:[%s4770 + $0xa0] sm:$0xf]
        %v6078 = vld [vmem:[%s4770 + $0xa4] sm:$0x1]
        %v6079 = vld [vmem:[%s4770 + $0xa8] sm:$0xe]
        %v6080 = vld [vmem:[%s4770 + $0xac] sm:$0xf]
        %v6081 = vld [vmem:[%s4770 + $0xb0] sm:$0x1]
        %v6082 = vld [vmem:[%s4770 + $0xb4] sm:$0xe]
        %v6083 = vld [vmem:[%s4770 + $0xb8] sm:$0xf]
        %v6084 = vld [vmem:[%s4770 + $0xbc] sm:$0x1]
        %v6133 = vrot.slane %v6037, 5
        %v6134 = vrot.slane %v6133, 4
        %v6135 = vrot.slane %v6038, 5
        %v6136 = vsel %vm2413, %v6134, %v6135
        %v6137 = vrot.slane %v6135, 4
        %v6138 = vrot.slane %v6039, 5
        %v6139 = vsel %vm2413, %v6137, %v6138
        %v6140 = vrot.slane %v6040, 5
        %v6141 = vrot.slane %v6140, 4
        %v6142 = vrot.slane %v6041, 5
        %v6143 = vsel %vm2413, %v6141, %v6142
        %v6144 = vrot.slane %v6142, 4
        %v6145 = vrot.slane %v6042, 5
        %v6146 = vsel %vm2413, %v6144, %v6145
        %v6147 = vrot.slane %v6043, 5
        %v6148 = vrot.slane %v6147, 4
        %v6149 = vrot.slane %v6044, 5
        %v6150 = vsel %vm2413, %v6148, %v6149
        %v6151 = vrot.slane %v6149, 4
        %v6152 = vrot.slane %v6045, 5
        %v6153 = vsel %vm2413, %v6151, %v6152
        %v6154 = vrot.slane %v6046, 5
        %v6155 = vrot.slane %v6154, 4
        %v6156 = vrot.slane %v6047, 5
        %v6157 = vsel %vm2413, %v6155, %v6156
        %v6158 = vrot.slane %v6156, 4
        %v6159 = vrot.slane %v6048, 5
        %v6160 = vsel %vm2413, %v6158, %v6159
        %v6161 = vrot.slane %v6049, 5
        %v6162 = vrot.slane %v6161, 4
        %v6163 = vrot.slane %v6050, 5
        %v6164 = vsel %vm2413, %v6162, %v6163
        %v6165 = vrot.slane %v6163, 4
        %v6166 = vrot.slane %v6051, 5
        %v6167 = vsel %vm2413, %v6165, %v6166
        %v6168 = vrot.slane %v6052, 5
        %v6169 = vrot.slane %v6168, 4
        %v6170 = vrot.slane %v6053, 5
        %v6171 = vsel %vm2413, %v6169, %v6170
        %v6172 = vrot.slane %v6170, 4
        %v6173 = vrot.slane %v6054, 5
        %v6174 = vsel %vm2413, %v6172, %v6173
        %v6175 = vrot.slane %v6055, 5
        %v6176 = vrot.slane %v6175, 4
        %v6177 = vrot.slane %v6056, 5
        %v6178 = vsel %vm2413, %v6176, %v6177
        %v6179 = vrot.slane %v6177, 4
        %v6180 = vrot.slane %v6057, 5
        %v6181 = vsel %vm2413, %v6179, %v6180
        %v6182 = vrot.slane %v6058, 5
        %v6183 = vrot.slane %v6182, 4
        %v6184 = vrot.slane %v6059, 5
        %v6185 = vsel %vm2413, %v6183, %v6184
        %v6186 = vrot.slane %v6184, 4
        %v6187 = vrot.slane %v6060, 5
        %v6188 = vsel %vm2413, %v6186, %v6187
        %v6189 = vrot.slane %v6061, 5
        %v6190 = vrot.slane %v6189, 4
        %v6191 = vrot.slane %v6062, 5
        %v6192 = vsel %vm2413, %v6190, %v6191
        %v6193 = vrot.slane %v6191, 4
        %v6194 = vrot.slane %v6063, 5
        %v6195 = vsel %vm2413, %v6193, %v6194
        %v6196 = vrot.slane %v6064, 5
        %v6197 = vrot.slane %v6196, 4
        %v6198 = vrot.slane %v6065, 5
        %v6199 = vsel %vm2413, %v6197, %v6198
        %v6200 = vrot.slane %v6198, 4
        %v6201 = vrot.slane %v6066, 5
        %v6202 = vsel %vm2413, %v6200, %v6201
        %v6203 = vrot.slane %v6067, 5
        %v6204 = vrot.slane %v6203, 4
        %v6205 = vrot.slane %v6068, 5
        %v6206 = vsel %vm2413, %v6204, %v6205
        %v6207 = vrot.slane %v6205, 4
        %v6208 = vrot.slane %v6069, 5
        %v6209 = vsel %vm2413, %v6207, %v6208
        %v6210 = vrot.slane %v6070, 5
        %v6211 = vrot.slane %v6210, 4
        %v6212 = vrot.slane %v6071, 5
        %v6213 = vsel %vm2413, %v6211, %v6212
        %v6214 = vrot.slane %v6212, 4
        %v6215 = vrot.slane %v6072, 5
        %v6216 = vsel %vm2413, %v6214, %v6215
        %v6217 = vrot.slane %v6073, 5
        %v6218 = vrot.slane %v6217, 4
        %v6219 = vrot.slane %v6074, 5
        %v6220 = vsel %vm2413, %v6218, %v6219
        %v6221 = vrot.slane %v6219, 4
        %v6222 = vrot.slane %v6075, 5
        %v6223 = vsel %vm2413, %v6221, %v6222
        %v6224 = vrot.slane %v6076, 5
        %v6225 = vrot.slane %v6224, 4
        %v6226 = vrot.slane %v6077, 5
        %v6227 = vsel %vm2413, %v6225, %v6226
        %v6228 = vrot.slane %v6226, 4
        %v6229 = vrot.slane %v6078, 5
        %v6230 = vsel %vm2413, %v6228, %v6229
        %v6231 = vrot.slane %v6079, 5
        %v6232 = vrot.slane %v6231, 4
        %v6233 = vrot.slane %v6080, 5
        %v6234 = vsel %vm2413, %v6232, %v6233
        %v6235 = vrot.slane %v6233, 4
        %v6236 = vrot.slane %v6081, 5
        %v6237 = vsel %vm2413, %v6235, %v6236
        %v6238 = vrot.slane %v6082, 5
        %v6239 = vrot.slane %v6238, 4
        %v6240 = vrot.slane %v6083, 5
        %v6241 = vsel %vm2413, %v6239, %v6240
        %v6242 = vrot.slane %v6240, 4
        %v6243 = vrot.slane %v6084, 5
        %v6244 = vsel %vm2413, %v6242, %v6243
        %v6245 = vld [vmem:[#allocation3] sm:$0xff]
        %v6246 = vld [vmem:[#allocation3 + $0x8] sm:$0xff]
        %v6247 = vld [vmem:[#allocation3 + $0x10] sm:$0xff]
        %v6248 = vld [vmem:[#allocation3 + $0x18] sm:$0xff]
        %v6249 = vld [vmem:[#allocation3 + $0x20] sm:$0xff]
        %v6250 = vld [vmem:[#allocation3 + $0x28] sm:$0xff]
        %v6251 = vld [vmem:[#allocation3 + $0x30] sm:$0xff]
        %v6252 = vld [vmem:[#allocation3 + $0x38] sm:$0xff]
        %v6253 = vld [vmem:[#allocation3 + $0x40] sm:$0xff]
        %v6254 = vld [vmem:[#allocation3 + $0x48] sm:$0xff]
        %v6255 = vld [vmem:[#allocation3 + $0x50] sm:$0xff]
        %v6256 = vld [vmem:[#allocation3 + $0x58] sm:$0xff]
        %v6257 = vld [vmem:[#allocation3 + $0x60] sm:$0xff]
        %v6258 = vld [vmem:[#allocation3 + $0x68] sm:$0xff]
        %v6259 = vld [vmem:[#allocation3 + $0x70] sm:$0xff]
        %v6260 = vld [vmem:[#allocation3 + $0x78] sm:$0xff]
        %v6261 = vld [vmem:[#allocation3 + $0x80] sm:$0xff]
        %v6262 = vld [vmem:[#allocation3 + $0x88] sm:$0xff]
        %v6263 = vld [vmem:[#allocation3 + $0x90] sm:$0xff]
        %v6264 = vld [vmem:[#allocation3 + $0x98] sm:$0xff]
        %v6265 = vld [vmem:[#allocation3 + $0xa0] sm:$0xff]
        %v6266 = vld [vmem:[#allocation3 + $0xa8] sm:$0xff]
        %v6267 = vld [vmem:[#allocation3 + $0xb0] sm:$0xff]
        %v6268 = vld [vmem:[#allocation3 + $0xb8] sm:$0xff]
        %v6269 = vld [vmem:[#allocation3 + $0xc0] sm:$0xff]
        %v6270 = vld [vmem:[#allocation3 + $0xc8] sm:$0xff]
        %v6271 = vld [vmem:[#allocation3 + $0xd0] sm:$0xff]
        %v6272 = vld [vmem:[#allocation3 + $0xd8] sm:$0xff]
        %v6273 = vld [vmem:[#allocation3 + $0xe0] sm:$0xff]
        %v6274 = vld [vmem:[#allocation3 + $0xe8] sm:$0xff]
        %v6275 = vld [vmem:[#allocation3 + $0xf0] sm:$0xff]
        %v6276 = vld [vmem:[#allocation3 + $0xf8] sm:$0xff]
        %v6277 = vld [vmem:[#allocation7 + $0x200] sm:$0xf]
        %v6278 = vld [vmem:[#allocation7 + $0x204] sm:$0xf]
        %v6279 = vld [vmem:[#allocation7 + $0x208] sm:$0xf]
        %v6280 = vld [vmem:[#allocation7 + $0x20c] sm:$0xf]
        %v6281 = vld [vmem:[#allocation7 + $0x210] sm:$0xf]
        %v6282 = vld [vmem:[#allocation7 + $0x214] sm:$0xf]
        %v6283 = vld [vmem:[#allocation7 + $0x218] sm:$0xf]
        %v6284 = vld [vmem:[#allocation7 + $0x21c] sm:$0xf]
        %v6285 = vld [vmem:[#allocation7 + $0x220] sm:$0xf]
        %v6286 = vld [vmem:[#allocation7 + $0x224] sm:$0xf]
        %v6287 = vld [vmem:[#allocation7 + $0x228] sm:$0xf]
        %v6288 = vld [vmem:[#allocation7 + $0x22c] sm:$0xf]
        %v6289 = vld [vmem:[#allocation7 + $0x230] sm:$0xf]
        %v6290 = vld [vmem:[#allocation7 + $0x234] sm:$0xf]
        %v6291 = vld [vmem:[#allocation7 + $0x238] sm:$0xf]
        %v6292 = vld [vmem:[#allocation7 + $0x23c] sm:$0xf]
        %v6293 = vunpack.c.l.b16 %v6136
        %v6294 = vunpack.c.l.b16 %v6139
        %v6295 = vunpack.c.l.b16 %v6143
        %v6296 = vunpack.c.l.b16 %v6146
        %v6297 = vunpack.c.l.b16 %v6150
        %v6298 = vunpack.c.l.b16 %v6153
        %v6299 = vunpack.c.l.b16 %v6157
        %v6300 = vunpack.c.l.b16 %v6160
        %v6301 = vunpack.c.l.b16 %v6164
        %v6302 = vunpack.c.l.b16 %v6167
        %v6303 = vunpack.c.l.b16 %v6171
        %v6304 = vunpack.c.l.b16 %v6174
        %v6305 = vunpack.c.l.b16 %v6178
        %v6306 = vunpack.c.l.b16 %v6181
        %v6307 = vunpack.c.l.b16 %v6185
        %v6308 = vunpack.c.l.b16 %v6188
        %v6309 = vunpack.c.l.b16 %v6192
        %v6310 = vunpack.c.l.b16 %v6195
        %v6311 = vunpack.c.l.b16 %v6199
        %v6312 = vunpack.c.l.b16 %v6202
        %v6313 = vunpack.c.l.b16 %v6206
        %v6314 = vunpack.c.l.b16 %v6209
        %v6315 = vunpack.c.l.b16 %v6213
        %v6316 = vunpack.c.l.b16 %v6216
        %v6317 = vunpack.c.l.b16 %v6220
        %v6318 = vunpack.c.l.b16 %v6223
        %v6319 = vunpack.c.l.b16 %v6227
        %v6320 = vunpack.c.l.b16 %v6230
        %v6321 = vunpack.c.l.b16 %v6234
        %v6322 = vunpack.c.l.b16 %v6237
        %v6323 = vunpack.c.l.b16 %v6241
        %v6324 = vunpack.c.l.b16 %v6244
        %v6325 = vpack.c.b16 %v6294, %v6293
        %v6326 = vpack.c.b16 %v6296, %v6295
        %v6327 = vpack.c.b16 %v6298, %v6297
        %v6328 = vpack.c.b16 %v6300, %v6299
        %v6329 = vpack.c.b16 %v6302, %v6301
        %v6330 = vpack.c.b16 %v6304, %v6303
        %v6331 = vpack.c.b16 %v6306, %v6305
        %v6332 = vpack.c.b16 %v6308, %v6307
        %v6333 = vpack.c.b16 %v6310, %v6309
        %v6334 = vpack.c.b16 %v6312, %v6311
        %v6335 = vpack.c.b16 %v6314, %v6313
        %v6336 = vpack.c.b16 %v6316, %v6315
        %v6337 = vpack.c.b16 %v6318, %v6317
        %v6338 = vpack.c.b16 %v6320, %v6319
        %v6339 = vpack.c.b16 %v6322, %v6321
        %v6340 = vpack.c.b16 %v6324, %v6323
        %v6373 = vunpack.c.l.b16 %v6277
        %v6374 = vunpack.c.l.b16 %v6278
        %v6375 = vunpack.c.l.b16 %v6279
        %v6376 = vunpack.c.l.b16 %v6280
        %v6377 = vunpack.c.l.b16 %v6281
        %v6378 = vunpack.c.l.b16 %v6282
        %v6379 = vunpack.c.l.b16 %v6283
        %v6380 = vunpack.c.l.b16 %v6284
        %v6381 = vunpack.c.l.b16 %v6285
        %v6382 = vunpack.c.l.b16 %v6286
        %v6383 = vunpack.c.l.b16 %v6287
        %v6384 = vunpack.c.l.b16 %v6288
        %v6385 = vunpack.c.l.b16 %v6289
        %v6386 = vunpack.c.l.b16 %v6290
        %v6387 = vunpack.c.l.b16 %v6291
        %v6388 = vunpack.c.l.b16 %v6292
        %v6389 = vpack.c.b16 %v6374, %v6373
        %v6390 = vpack.c.b16 %v6376, %v6375
        %v6391 = vpack.c.b16 %v6378, %v6377
        %v6392 = vpack.c.b16 %v6380, %v6379
        %v6393 = vpack.c.b16 %v6382, %v6381
        %v6394 = vpack.c.b16 %v6384, %v6383
        %v6395 = vpack.c.b16 %v6386, %v6385
        %v6396 = vpack.c.b16 %v6388, %v6387
        %6405 = vmatprep.subr.bf16.mxu0 0
        %6406 = vmatpush1.bf16.msra.mxu0 %v6389
        %6407 = vmatprep.subr.bf16.mxu0 0
        %6408 = vmatpush1.bf16.msra.mxu0 %v6390
        %6409 = vmatprep.subr.bf16.mxu0 0
        %6410 = vmatpush1.bf16.msra.mxu0 %v6391
        %6411 = vmatprep.subr.bf16.mxu0 0
        %6412 = vmatpush1.bf16.msra.mxu0 %v6392
        %6413 = vmatprep.subr.bf16.mxu0 0
        %6414 = vmatpush1.bf16.msra.mxu0 %v6393
        %6415 = vmatprep.subr.bf16.mxu0 0
        %6416 = vmatpush1.bf16.msra.mxu0 %v6394
        %6417 = vmatprep.subr.bf16.mxu0 0
        %6418 = vmatpush1.bf16.msra.mxu0 %v6395
        %6419 = vmatprep.subr.bf16.mxu0 0
        %6420 = vmatpush1.bf16.msra.mxu0 %v6396
        %6421 = vmatprep.subr.bf16.mxu0 0
        %6422 = vmatpush1.bf16.msra.mxu0 0
        %6423 = vmatprep.subr.bf16.mxu0 0
        %6424 = vmatpush1.bf16.msra.mxu0 0
        %6425 = vmatprep.subr.bf16.mxu0 0
        %6426 = vmatpush1.bf16.msra.mxu0 0
        %6427 = vmatprep.subr.bf16.mxu0 0
        %6428 = vmatpush1.bf16.msra.mxu0 0
        %6429 = vmatprep.subr.bf16.mxu0 0
        %6430 = vmatpush1.bf16.msra.mxu0 0
        %6431 = vmatprep.subr.bf16.mxu0 0
        %6432 = vmatpush1.bf16.msra.mxu0 0
        %6433 = vmatprep.subr.bf16.mxu0 0
        %6434 = vmatpush1.bf16.msra.mxu0 0
        %6435 = vmatprep.subr.bf16.mxu0 0
        %6436 = vmatpush1.bf16.msra.mxu0 0
        %6437 = vmatprep.mubr.bf16.mxu0 0
        %6438 = vmatmul.mubr.bf16.gmra.mrb[0].mxu0 %v6325
        %v6439 = vpop.f32.mrb[0].mxu0
        %v6440 = vadd.f32 0.0, %v6439
        %v6441 = vpop.f32.mrb[0].mxu0
        %v6442 = vpop.f32.mrb[0].mxu0
        %v6443 = vadd.f32 0.0, %v6442
        %v6444 = vpop.f32.mrb[0].mxu0
        %6445 = vmatprep.mubr.bf16.mxu0 0
        %6446 = vmatmul.mubr.bf16.gmra.mrb[0].mxu0 %v6326
        %v6447 = vpop.f32.mrb[0].mxu0
        %v6448 = vadd.f32 0.0, %v6447
        %v6449 = vpop.f32.mrb[0].mxu0
        %v6450 = vpop.f32.mrb[0].mxu0
        %v6451 = vadd.f32 0.0, %v6450
        %v6452 = vpop.f32.mrb[0].mxu0
        %6453 = vmatprep.mubr.bf16.mxu0 0
        %6454 = vmatmul.mubr.bf16.gmra.mrb[0].mxu0 %v6327
        %v6455 = vpop.f32.mrb[0].mxu0
        %v6456 = vadd.f32 0.0, %v6455
        %v6457 = vpop.f32.mrb[0].mxu0
        %v6458 = vpop.f32.mrb[0].mxu0
        %v6459 = vadd.f32 0.0, %v6458
        %v6460 = vpop.f32.mrb[0].mxu0
        %6461 = vmatprep.mubr.bf16.mxu0 0
        %6462 = vmatmul.mubr.bf16.gmra.mrb[0].mxu0 %v6328
        %v6463 = vpop.f32.mrb[0].mxu0
        %v6464 = vadd.f32 0.0, %v6463
        %v6465 = vpop.f32.mrb[0].mxu0
        %v6466 = vpop.f32.mrb[0].mxu0
        %v6467 = vadd.f32 0.0, %v6466
        %v6468 = vpop.f32.mrb[0].mxu0
        %6469 = vmatprep.mubr.bf16.mxu0 0
        %6470 = vmatmul.mubr.bf16.gmra.mrb[0].mxu0 %v6329
        %v6471 = vpop.f32.mrb[0].mxu0
        %v6472 = vadd.f32 0.0, %v6471
        %v6473 = vpop.f32.mrb[0].mxu0
        %v6474 = vpop.f32.mrb[0].mxu0
        %v6475 = vadd.f32 0.0, %v6474
        %v6476 = vpop.f32.mrb[0].mxu0
        %6477 = vmatprep.mubr.bf16.mxu0 0
        %6478 = vmatmul.mubr.bf16.gmra.mrb[0].mxu0 %v6330
        %v6479 = vpop.f32.mrb[0].mxu0
        %v6480 = vadd.f32 0.0, %v6479
        %v6481 = vpop.f32.mrb[0].mxu0
        %v6482 = vpop.f32.mrb[0].mxu0
        %v6483 = vadd.f32 0.0, %v6482
        %v6484 = vpop.f32.mrb[0].mxu0
        %6485 = vmatprep.mubr.bf16.mxu0 0
        %6486 = vmatmul.mubr.bf16.gmra.mrb[0].mxu0 %v6331
        %v6487 = vpop.f32.mrb[0].mxu0
        %v6488 = vadd.f32 0.0, %v6487
        %v6489 = vpop.f32.mrb[0].mxu0
        %v6490 = vpop.f32.mrb[0].mxu0
        %v6491 = vadd.f32 0.0, %v6490
        %v6492 = vpop.f32.mrb[0].mxu0
        %6493 = vmatprep.mubr.bf16.mxu0 0
        %6494 = vmatmul.mubr.bf16.gmra.mrb[0].mxu0 %v6332
        %v6495 = vpop.f32.mrb[0].mxu0
        %v6496 = vadd.f32 0.0, %v6495
        %v6497 = vpop.f32.mrb[0].mxu0
        %v6498 = vpop.f32.mrb[0].mxu0
        %v6499 = vadd.f32 0.0, %v6498
        %v6500 = vpop.f32.mrb[0].mxu0
        %6501 = vmatprep.mubr.bf16.mxu0 0
        %6502 = vmatmul.mubr.bf16.gmra.mrb[0].mxu0 %v6333
        %v6503 = vpop.f32.mrb[0].mxu0
        %v6504 = vadd.f32 0.0, %v6503
        %v6505 = vpop.f32.mrb[0].mxu0
        %v6506 = vpop.f32.mrb[0].mxu0
        %v6507 = vadd.f32 0.0, %v6506
        %v6508 = vpop.f32.mrb[0].mxu0
        %6509 = vmatprep.mubr.bf16.mxu0 0
        %6510 = vmatmul.mubr.bf16.gmra.mrb[0].mxu0 %v6334
        %v6511 = vpop.f32.mrb[0].mxu0
        %v6512 = vadd.f32 0.0, %v6511
        %v6513 = vpop.f32.mrb[0].mxu0
        %v6514 = vpop.f32.mrb[0].mxu0
        %v6515 = vadd.f32 0.0, %v6514
        %v6516 = vpop.f32.mrb[0].mxu0
        %6517 = vmatprep.mubr.bf16.mxu0 0
        %6518 = vmatmul.mubr.bf16.gmra.mrb[0].mxu0 %v6335
        %v6519 = vpop.f32.mrb[0].mxu0
        %v6520 = vadd.f32 0.0, %v6519
        %v6521 = vpop.f32.mrb[0].mxu0
        %v6522 = vpop.f32.mrb[0].mxu0
        %v6523 = vadd.f32 0.0, %v6522
        %v6524 = vpop.f32.mrb[0].mxu0
        %6525 = vmatprep.mubr.bf16.mxu0 0
        %6526 = vmatmul.mubr.bf16.gmra.mrb[0].mxu0 %v6336
        %v6527 = vpop.f32.mrb[0].mxu0
        %v6528 = vadd.f32 0.0, %v6527
        %v6529 = vpop.f32.mrb[0].mxu0
        %v6530 = vpop.f32.mrb[0].mxu0
        %v6531 = vadd.f32 0.0, %v6530
        %v6532 = vpop.f32.mrb[0].mxu0
        %6533 = vmatprep.mubr.bf16.mxu0 0
        %6534 = vmatmul.mubr.bf16.gmra.mrb[0].mxu0 %v6337
        %v6535 = vpop.f32.mrb[0].mxu0
        %v6536 = vadd.f32 0.0, %v6535
        %v6537 = vpop.f32.mrb[0].mxu0
        %v6538 = vpop.f32.mrb[0].mxu0
        %v6539 = vadd.f32 0.0, %v6538
        %v6540 = vpop.f32.mrb[0].mxu0
        %6541 = vmatprep.mubr.bf16.mxu0 0
        %6542 = vmatmul.mubr.bf16.gmra.mrb[0].mxu0 %v6338
        %v6543 = vpop.f32.mrb[0].mxu0
        %v6544 = vadd.f32 0.0, %v6543
        %v6545 = vpop.f32.mrb[0].mxu0
        %v6546 = vpop.f32.mrb[0].mxu0
        %v6547 = vadd.f32 0.0, %v6546
        %v6548 = vpop.f32.mrb[0].mxu0
        %6549 = vmatprep.mubr.bf16.mxu0 0
        %6550 = vmatmul.mubr.bf16.gmra.mrb[0].mxu0 %v6339
        %v6551 = vpop.f32.mrb[0].mxu0
        %v6552 = vadd.f32 0.0, %v6551
        %v6553 = vpop.f32.mrb[0].mxu0
        %v6554 = vpop.f32.mrb[0].mxu0
        %v6555 = vadd.f32 0.0, %v6554
        %v6556 = vpop.f32.mrb[0].mxu0
        %6557 = vmatprep.mubr.bf16.mxu0 0
        %6558 = vmatmul.mubr.bf16.gmra.mrb[0].mxu0 %v6340
        %v6559 = vpop.f32.mrb[0].mxu0
        %v6560 = vadd.f32 0.0, %v6559
        %v6561 = vpop.f32.mrb[0].mxu0
        %v6562 = vpop.f32.mrb[0].mxu0
        %v6563 = vadd.f32 0.0, %v6562
        %v6564 = vpop.f32.mrb[0].mxu0
        %6565 = vdwg.mxu0
        %v6566 = vadd.f32 %v6245, %v6440
        %v6567 = vadd.f32 %v6246, %v6443
        %v6568 = vadd.f32 %v6247, %v6448
        %v6569 = vadd.f32 %v6248, %v6451
        %v6570 = vadd.f32 %v6249, %v6456
        %v6571 = vadd.f32 %v6250, %v6459
        %v6572 = vadd.f32 %v6251, %v6464
        %v6573 = vadd.f32 %v6252, %v6467
        %v6574 = vadd.f32 %v6253, %v6472
        %v6575 = vadd.f32 %v6254, %v6475
        %v6576 = vadd.f32 %v6255, %v6480
        %v6577 = vadd.f32 %v6256, %v6483
        %v6578 = vadd.f32 %v6257, %v6488
        %v6579 = vadd.f32 %v6258, %v6491
        %v6580 = vadd.f32 %v6259, %v6496
        %v6581 = vadd.f32 %v6260, %v6499
        %v6582 = vadd.f32 %v6261, %v6504
        %v6583 = vadd.f32 %v6262, %v6507
        %v6584 = vadd.f32 %v6263, %v6512
        %v6585 = vadd.f32 %v6264, %v6515
        %v6586 = vadd.f32 %v6265, %v6520
        %v6587 = vadd.f32 %v6266, %v6523
        %v6588 = vadd.f32 %v6267, %v6528
        %v6589 = vadd.f32 %v6268, %v6531
        %v6590 = vadd.f32 %v6269, %v6536
        %v6591 = vadd.f32 %v6270, %v6539
        %v6592 = vadd.f32 %v6271, %v6544
        %v6593 = vadd.f32 %v6272, %v6547
        %v6594 = vadd.f32 %v6273, %v6552
        %v6595 = vadd.f32 %v6274, %v6555
        %v6596 = vadd.f32 %v6275, %v6560
        %v6597 = vadd.f32 %v6276, %v6563
        %6598 = vst [vmem:[#allocation3] sm:$0xff] %v6566
        %6599 = vst [vmem:[#allocation3 + $0x8] sm:$0xff] %v6567
        %6600 = vst [vmem:[#allocation3 + $0x10] sm:$0xff] %v6568
        %6601 = vst [vmem:[#allocation3 + $0x18] sm:$0xff] %v6569
        %6602 = vst [vmem:[#allocation3 + $0x20] sm:$0xff] %v6570
        %6603 = vst [vmem:[#allocation3 + $0x28] sm:$0xff] %v6571
        %6604 = vst [vmem:[#allocation3 + $0x30] sm:$0xff] %v6572
        %6605 = vst [vmem:[#allocation3 + $0x38] sm:$0xff] %v6573
        %6606 = vst [vmem:[#allocation3 + $0x40] sm:$0xff] %v6574
        %6607 = vst [vmem:[#allocation3 + $0x48] sm:$0xff] %v6575
        %6608 = vst [vmem:[#allocation3 + $0x50] sm:$0xff] %v6576
        %6609 = vst [vmem:[#allocation3 + $0x58] sm:$0xff] %v6577
        %6610 = vst [vmem:[#allocation3 + $0x60] sm:$0xff] %v6578
        %6611 = vst [vmem:[#allocation3 + $0x68] sm:$0xff] %v6579
        %6612 = vst [vmem:[#allocation3 + $0x70] sm:$0xff] %v6580
        %6613 = vst [vmem:[#allocation3 + $0x78] sm:$0xff] %v6581
        %6614 = vst [vmem:[#allocation3 + $0x80] sm:$0xff] %v6582
        %6615 = vst [vmem:[#allocation3 + $0x88] sm:$0xff] %v6583
        %6616 = vst [vmem:[#allocation3 + $0x90] sm:$0xff] %v6584
        %6617 = vst [vmem:[#allocation3 + $0x98] sm:$0xff] %v6585
        %6618 = vst [vmem:[#allocation3 + $0xa0] sm:$0xff] %v6586
        %6619 = vst [vmem:[#allocation3 + $0xa8] sm:$0xff] %v6587
        %6620 = vst [vmem:[#allocation3 + $0xb0] sm:$0xff] %v6588
        %6621 = vst [vmem:[#allocation3 + $0xb8] sm:$0xff] %v6589
        %6622 = vst [vmem:[#allocation3 + $0xc0] sm:$0xff] %v6590
        %6623 = vst [vmem:[#allocation3 + $0xc8] sm:$0xff] %v6591
        %6624 = vst [vmem:[#allocation3 + $0xd0] sm:$0xff] %v6592
        %6625 = vst [vmem:[#allocation3 + $0xd8] sm:$0xff] %v6593
        %6626 = vst [vmem:[#allocation3 + $0xe0] sm:$0xff] %v6594
        %6627 = vst [vmem:[#allocation3 + $0xe8] sm:$0xff] %v6595
        %6628 = vst [vmem:[#allocation3 + $0xf0] sm:$0xff] %v6596
        %6629 = vst [vmem:[#allocation3 + $0xf8] sm:$0xff] %v6597
        %v6630 = vld [vmem:[#allocation3] sm:$0xff]
        %v6631 = vld [vmem:[#allocation3 + $0x8] sm:$0xff]
        %v6632 = vld [vmem:[#allocation3 + $0x10] sm:$0xff]
        %v6633 = vld [vmem:[#allocation3 + $0x18] sm:$0xff]
        %v6634 = vld [vmem:[#allocation3 + $0x20] sm:$0xff]
        %v6635 = vld [vmem:[#allocation3 + $0x28] sm:$0xff]
        %v6636 = vld [vmem:[#allocation3 + $0x30] sm:$0xff]
        %v6637 = vld [vmem:[#allocation3 + $0x38] sm:$0xff]
        %v6638 = vld [vmem:[#allocation3 + $0x40] sm:$0xff]
        %v6639 = vld [vmem:[#allocation3 + $0x48] sm:$0xff]
        %v6640 = vld [vmem:[#allocation3 + $0x50] sm:$0xff]
        %v6641 = vld [vmem:[#allocation3 + $0x58] sm:$0xff]
        %v6642 = vld [vmem:[#allocation3 + $0x60] sm:$0xff]
        %v6643 = vld [vmem:[#allocation3 + $0x68] sm:$0xff]
        %v6644 = vld [vmem:[#allocation3 + $0x70] sm:$0xff]
        %v6645 = vld [vmem:[#allocation3 + $0x78] sm:$0xff]
        %v6646 = vld [vmem:[#allocation3 + $0x80] sm:$0xff]
        %v6647 = vld [vmem:[#allocation3 + $0x88] sm:$0xff]
        %v6648 = vld [vmem:[#allocation3 + $0x90] sm:$0xff]
        %v6649 = vld [vmem:[#allocation3 + $0x98] sm:$0xff]
        %v6650 = vld [vmem:[#allocation3 + $0xa0] sm:$0xff]
        %v6651 = vld [vmem:[#allocation3 + $0xa8] sm:$0xff]
        %v6652 = vld [vmem:[#allocation3 + $0xb0] sm:$0xff]
        %v6653 = vld [vmem:[#allocation3 + $0xb8] sm:$0xff]
        %v6654 = vld [vmem:[#allocation3 + $0xc0] sm:$0xff]
        %v6655 = vld [vmem:[#allocation3 + $0xc8] sm:$0xff]
        %v6656 = vld [vmem:[#allocation3 + $0xd0] sm:$0xff]
        %v6657 = vld [vmem:[#allocation3 + $0xd8] sm:$0xff]
        %v6658 = vld [vmem:[#allocation3 + $0xe0] sm:$0xff]
        %v6659 = vld [vmem:[#allocation3 + $0xe8] sm:$0xff]
        %v6660 = vld [vmem:[#allocation3 + $0xf0] sm:$0xff]
        %v6661 = vld [vmem:[#allocation3 + $0xf8] sm:$0xff]
        %v6662 = vld [vmem:[%s2] sm:$0x1]
        %v6664 = vlaneseq
        %v6665 = vshrl.u32 %v6664, 7
        %v6666 = vsub.s32 0, %v6665
        %v6667 = vrot.slane %v6662, %v6666
        %v6669 = vadd.f32 %v6630, %v6667
        %v6670 = vadd.f32 %v6631, %v6667
        %v6671 = vadd.f32 %v6632, %v6667
        %v6672 = vadd.f32 %v6633, %v6667
        %v6673 = vadd.f32 %v6634, %v6667
        %v6674 = vadd.f32 %v6635, %v6667
        %v6675 = vadd.f32 %v6636, %v6667
        %v6676 = vadd.f32 %v6637, %v6667
        %v6677 = vadd.f32 %v6638, %v6667
        %v6678 = vadd.f32 %v6639, %v6667
        %v6679 = vadd.f32 %v6640, %v6667
        %v6680 = vadd.f32 %v6641, %v6667
        %v6681 = vadd.f32 %v6642, %v6667
        %v6682 = vadd.f32 %v6643, %v6667
        %v6683 = vadd.f32 %v6644, %v6667
        %v6684 = vadd.f32 %v6645, %v6667
        %v6685 = vadd.f32 %v6646, %v6667
        %v6686 = vadd.f32 %v6647, %v6667
        %v6687 = vadd.f32 %v6648, %v6667
        %v6688 = vadd.f32 %v6649, %v6667
        %v6689 = vadd.f32 %v6650, %v6667
        %v6690 = vadd.f32 %v6651, %v6667
        %v6691 = vadd.f32 %v6652, %v6667
        %v6692 = vadd.f32 %v6653, %v6667
        %v6693 = vadd.f32 %v6654, %v6667
        %v6694 = vadd.f32 %v6655, %v6667
        %v6695 = vadd.f32 %v6656, %v6667
        %v6696 = vadd.f32 %v6657, %v6667
        %v6697 = vadd.f32 %v6658, %v6667
        %v6698 = vadd.f32 %v6659, %v6667
        %v6699 = vadd.f32 %v6660, %v6667
        %v6700 = vadd.f32 %v6661, %v6667
        %v6701 = vpack.c.bf16 %v6670, %v6669
        %v6702 = vpack.c.bf16 %v6672, %v6671
        %v6703 = vpack.c.bf16 %v6674, %v6673
        %v6704 = vpack.c.bf16 %v6676, %v6675
        %v6705 = vpack.c.bf16 %v6678, %v6677
        %v6706 = vpack.c.bf16 %v6680, %v6679
        %v6707 = vpack.c.bf16 %v6682, %v6681
        %v6708 = vpack.c.bf16 %v6684, %v6683
        %v6709 = vpack.c.bf16 %v6686, %v6685
        %v6710 = vpack.c.bf16 %v6688, %v6687
        %v6711 = vpack.c.bf16 %v6690, %v6689
        %v6712 = vpack.c.bf16 %v6692, %v6691
        %v6713 = vpack.c.bf16 %v6694, %v6693
        %v6714 = vpack.c.bf16 %v6696, %v6695
        %v6715 = vpack.c.bf16 %v6698, %v6697
        %v6716 = vpack.c.bf16 %v6700, %v6699
        %v6733 = vunpack.c.l.b16 %v6701
        %v6734 = vunpack.c.h.b16 %v6701
        %v6735 = vunpack.c.l.b16 %v6702
        %v6736 = vunpack.c.h.b16 %v6702
        %v6737 = vunpack.c.l.b16 %v6703
        %v6738 = vunpack.c.h.b16 %v6703
        %v6739 = vunpack.c.l.b16 %v6704
        %v6740 = vunpack.c.h.b16 %v6704
        %v6741 = vunpack.c.l.b16 %v6705
        %v6742 = vunpack.c.h.b16 %v6705
        %v6743 = vunpack.c.l.b16 %v6706
        %v6744 = vunpack.c.h.b16 %v6706
        %v6745 = vunpack.c.l.b16 %v6707
        %v6746 = vunpack.c.h.b16 %v6707
        %v6747 = vunpack.c.l.b16 %v6708
        %v6748 = vunpack.c.h.b16 %v6708
        %v6749 = vunpack.c.l.b16 %v6709
        %v6750 = vunpack.c.h.b16 %v6709
        %v6751 = vunpack.c.l.b16 %v6710
        %v6752 = vunpack.c.h.b16 %v6710
        %v6753 = vunpack.c.l.b16 %v6711
        %v6754 = vunpack.c.h.b16 %v6711
        %v6755 = vunpack.c.l.b16 %v6712
        %v6756 = vunpack.c.h.b16 %v6712
        %v6757 = vunpack.c.l.b16 %v6713
        %v6758 = vunpack.c.h.b16 %v6713
        %v6759 = vunpack.c.l.b16 %v6714
        %v6760 = vunpack.c.h.b16 %v6714
        %v6761 = vunpack.c.l.b16 %v6715
        %v6762 = vunpack.c.h.b16 %v6715
        %v6763 = vunpack.c.l.b16 %v6716
        %v6764 = vunpack.c.h.b16 %v6716
        %v6765 = vpack.c.b16 %v6733, %v6733
        %v6766 = vpack.c.b16 %v6734, %v6734
        %v6767 = vpack.c.b16 %v6735, %v6735
        %v6768 = vpack.c.b16 %v6736, %v6736
        %v6769 = vpack.c.b16 %v6737, %v6737
        %v6770 = vpack.c.b16 %v6738, %v6738
        %v6771 = vpack.c.b16 %v6739, %v6739
        %v6772 = vpack.c.b16 %v6740, %v6740
        %v6773 = vpack.c.b16 %v6741, %v6741
        %v6774 = vpack.c.b16 %v6742, %v6742
        %v6775 = vpack.c.b16 %v6743, %v6743
        %v6776 = vpack.c.b16 %v6744, %v6744
        %v6777 = vpack.c.b16 %v6745, %v6745
        %v6778 = vpack.c.b16 %v6746, %v6746
        %v6779 = vpack.c.b16 %v6747, %v6747
        %v6780 = vpack.c.b16 %v6748, %v6748
        %v6781 = vpack.c.b16 %v6749, %v6749
        %v6782 = vpack.c.b16 %v6750, %v6750
        %v6783 = vpack.c.b16 %v6751, %v6751
        %v6784 = vpack.c.b16 %v6752, %v6752
        %v6785 = vpack.c.b16 %v6753, %v6753
        %v6786 = vpack.c.b16 %v6754, %v6754
        %v6787 = vpack.c.b16 %v6755, %v6755
        %v6788 = vpack.c.b16 %v6756, %v6756
        %v6789 = vpack.c.b16 %v6757, %v6757
        %v6790 = vpack.c.b16 %v6758, %v6758
        %v6791 = vpack.c.b16 %v6759, %v6759
        %v6792 = vpack.c.b16 %v6760, %v6760
        %v6793 = vpack.c.b16 %v6761, %v6761
        %v6794 = vpack.c.b16 %v6762, %v6762
        %v6795 = vpack.c.b16 %v6763, %v6763
        %v6796 = vpack.c.b16 %v6764, %v6764
        %6829 = vst [vmem:[%s315] sm:$0xf] %v6765
        %6830 = vst [vmem:[%s315 + $0x4] sm:$0xf] %v6766
        %6831 = vst [vmem:[%s315 + $0x8] sm:$0xf] %v6767
        %6832 = vst [vmem:[%s315 + $0xc] sm:$0xf] %v6768
        %6833 = vst [vmem:[%s315 + $0x10] sm:$0xf] %v6769
        %6834 = vst [vmem:[%s315 + $0x14] sm:$0xf] %v6770
        %6835 = vst [vmem:[%s315 + $0x18] sm:$0xf] %v6771
        %6836 = vst [vmem:[%s315 + $0x1c] sm:$0xf] %v6772
        %6837 = vst [vmem:[%s315 + $0x20] sm:$0xf] %v6773
        %6838 = vst [vmem:[%s315 + $0x24] sm:$0xf] %v6774
        %6839 = vst [vmem:[%s315 + $0x28] sm:$0xf] %v6775
        %6840 = vst [vmem:[%s315 + $0x2c] sm:$0xf] %v6776
        %6841 = vst [vmem:[%s315 + $0x30] sm:$0xf] %v6777
        %6842 = vst [vmem:[%s315 + $0x34] sm:$0xf] %v6778
        %6843 = vst [vmem:[%s315 + $0x38] sm:$0xf] %v6779
        %6844 = vst [vmem:[%s315 + $0x3c] sm:$0xf] %v6780
        %6845 = vst [vmem:[%s315 + $0x40] sm:$0xf] %v6781
        %6846 = vst [vmem:[%s315 + $0x44] sm:$0xf] %v6782
        %6847 = vst [vmem:[%s315 + $0x48] sm:$0xf] %v6783
        %6848 = vst [vmem:[%s315 + $0x4c] sm:$0xf] %v6784
        %6849 = vst [vmem:[%s315 + $0x50] sm:$0xf] %v6785
        %6850 = vst [vmem:[%s315 + $0x54] sm:$0xf] %v6786
        %6851 = vst [vmem:[%s315 + $0x58] sm:$0xf] %v6787
        %6852 = vst [vmem:[%s315 + $0x5c] sm:$0xf] %v6788
        %6853 = vst [vmem:[%s315 + $0x60] sm:$0xf] %v6789
        %6854 = vst [vmem:[%s315 + $0x64] sm:$0xf] %v6790
        %6855 = vst [vmem:[%s315 + $0x68] sm:$0xf] %v6791
        %6856 = vst [vmem:[%s315 + $0x6c] sm:$0xf] %v6792
        %6857 = vst [vmem:[%s315 + $0x70] sm:$0xf] %v6793
        %6858 = vst [vmem:[%s315 + $0x74] sm:$0xf] %v6794
        %6859 = vst [vmem:[%s315 + $0x78] sm:$0xf] %v6795
        %6860 = vst [vmem:[%s315 + $0x7c] sm:$0xf] %v6796
        %v6861 = vadd.f32 %v6669, %v6670
        %v6862 = vadd.f32 %v6861, %v6671
        %v6863 = vadd.f32 %v6862, %v6672
        %v6864 = vadd.f32 %v6863, %v6673
        %v6865 = vadd.f32 %v6864, %v6674
        %v6866 = vadd.f32 %v6865, %v6675
        %v6867 = vadd.f32 %v6866, %v6676
        %v6868 = vadd.f32 %v6867, %v6677
        %v6869 = vadd.f32 %v6868, %v6678
        %v6870 = vadd.f32 %v6869, %v6679
        %v6871 = vadd.f32 %v6870, %v6680
        %v6872 = vadd.f32 %v6871, %v6681
        %v6873 = vadd.f32 %v6872, %v6682
        %v6874 = vadd.f32 %v6873, %v6683
        %v6875 = vadd.f32 %v6874, %v6684
        %v6876 = vadd.f32 %v6875, %v6685
        %v6877 = vadd.f32 %v6876, %v6686
        %v6878 = vadd.f32 %v6877, %v6687
        %v6879 = vadd.f32 %v6878, %v6688
        %v6880 = vadd.f32 %v6879, %v6689
        %v6881 = vadd.f32 %v6880, %v6690
        %v6882 = vadd.f32 %v6881, %v6691
        %v6883 = vadd.f32 %v6882, %v6692
        %v6884 = vadd.f32 %v6883, %v6693
        %v6885 = vadd.f32 %v6884, %v6694
        %v6886 = vadd.f32 %v6885, %v6695
        %v6887 = vadd.f32 %v6886, %v6696
        %v6888 = vadd.f32 %v6887, %v6697
        %v6889 = vadd.f32 %v6888, %v6698
        %v6890 = vadd.f32 %v6889, %v6699
        %v6891 = vadd.f32 %v6890, %v6700
        %v6892 = vrot.slane %v6891, 4
        %v6893 = vadd.f32 %v6891, %v6892
        %v6894 = vrot.slane %v6893, 2
        %v6895 = vadd.f32 %v6893, %v6894
        %v6896 = vrot.slane %v6895, 1
        %v6897 = vadd.f32 %v6895, %v6896
        %6898 = vst [vmem:[%s321] sm:$0x1] %v6897
        %v6899 = vmul.f32 %v6669, %v6669
        %v6900 = vmul.f32 %v6670, %v6670
        %v6901 = vmul.f32 %v6671, %v6671
        %v6902 = vmul.f32 %v6672, %v6672
        %v6903 = vmul.f32 %v6673, %v6673
        %v6904 = vmul.f32 %v6674, %v6674
        %v6905 = vmul.f32 %v6675, %v6675
        %v6906 = vmul.f32 %v6676, %v6676
        %v6907 = vmul.f32 %v6677, %v6677
        %v6908 = vmul.f32 %v6678, %v6678
        %v6909 = vmul.f32 %v6679, %v6679
        %v6910 = vmul.f32 %v6680, %v6680
        %v6911 = vmul.f32 %v6681, %v6681
        %v6912 = vmul.f32 %v6682, %v6682
        %v6913 = vmul.f32 %v6683, %v6683
        %v6914 = vmul.f32 %v6684, %v6684
        %v6915 = vmul.f32 %v6685, %v6685
        %v6916 = vmul.f32 %v6686, %v6686
        %v6917 = vmul.f32 %v6687, %v6687
        %v6918 = vmul.f32 %v6688, %v6688
        %v6919 = vmul.f32 %v6689, %v6689
        %v6920 = vmul.f32 %v6690, %v6690
        %v6921 = vmul.f32 %v6691, %v6691
        %v6922 = vmul.f32 %v6692, %v6692
        %v6923 = vmul.f32 %v6693, %v6693
        %v6924 = vmul.f32 %v6694, %v6694
        %v6925 = vmul.f32 %v6695, %v6695
        %v6926 = vmul.f32 %v6696, %v6696
        %v6927 = vmul.f32 %v6697, %v6697
        %v6928 = vmul.f32 %v6698, %v6698
        %v6929 = vmul.f32 %v6699, %v6699
        %v6930 = vmul.f32 %v6700, %v6700
        %v6931 = vadd.f32 %v6899, %v6900
        %v6932 = vadd.f32 %v6931, %v6901
        %v6933 = vadd.f32 %v6932, %v6902
        %v6934 = vadd.f32 %v6933, %v6903
        %v6935 = vadd.f32 %v6934, %v6904
        %v6936 = vadd.f32 %v6935, %v6905
        %v6937 = vadd.f32 %v6936, %v6906
        %v6938 = vadd.f32 %v6937, %v6907
        %v6939 = vadd.f32 %v6938, %v6908
        %v6940 = vadd.f32 %v6939, %v6909
        %v6941 = vadd.f32 %v6940, %v6910
        %v6942 = vadd.f32 %v6941, %v6911
        %v6943 = vadd.f32 %v6942, %v6912
        %v6944 = vadd.f32 %v6943, %v6913
        %v6945 = vadd.f32 %v6944, %v6914
        %v6946 = vadd.f32 %v6945, %v6915
        %v6947 = vadd.f32 %v6946, %v6916
        %v6948 = vadd.f32 %v6947, %v6917
        %v6949 = vadd.f32 %v6948, %v6918
        %v6950 = vadd.f32 %v6949, %v6919
        %v6951 = vadd.f32 %v6950, %v6920
        %v6952 = vadd.f32 %v6951, %v6921
        %v6953 = vadd.f32 %v6952, %v6922
        %v6954 = vadd.f32 %v6953, %v6923
        %v6955 = vadd.f32 %v6954, %v6924
        %v6956 = vadd.f32 %v6955, %v6925
        %v6957 = vadd.f32 %v6956, %v6926
        %v6958 = vadd.f32 %v6957, %v6927
        %v6959 = vadd.f32 %v6958, %v6928
        %v6960 = vadd.f32 %v6959, %v6929
        %v6961 = vadd.f32 %v6960, %v6930
        %v6962 = vrot.slane %v6961, 4
        %v6963 = vadd.f32 %v6961, %v6962
        %v6964 = vrot.slane %v6963, 2
        %v6965 = vadd.f32 %v6963, %v6964
        %v6966 = vrot.slane %v6965, 1
        %v6967 = vadd.f32 %v6965, %v6966
        %6968 = vst [vmem:[%s327] sm:$0x1] %v6967
        %s6969 = sand.u32 %s147, 1
        %s6970 = scalar_lea.sflag [#allocation6], %s6969
        %s6971 = sand.u32 %s147, 1
        %s6972 = smul.addr %s6971, 128
        %s6973 = scalar_lea.vmem [#allocation9], %s6972
        %s6974 = sand.u32 %s29, 1
        %s6975 = scalar_lea.sflag [#allocation11], %s6974
        %s6976 = sand.u32 %s173, 1
        %s6977 = scalar_lea.vmem [#allocation10], %s6976
        %s6978 = sand.u32 %s29, 1
        %s6979 = scalar_lea.sflag [#allocation11], %s6978
        %s6980 = sand.u32 %s199, 1
        %s6981 = scalar_lea.vmem [#allocation12], %s6980
        // Predicated region
        $region49: #{tpu_custom_call.1} parent=39 // pred_check
          %p6982 = pneg %p157
        $region50: #{tpu_custom_call.1} parent=39 // pred_check_branch
          %6984 = sbr.rel (%p6982) target = $region52
        $region51: #{tpu_custom_call.1} parent=39 // pred_region
          %s6986 = ssub.s32 2048, 2048
          %6987 = vsyncadd %s6970, %s6986
          %s6988 = smul.addr %s29, 32
          %s6989 = smul.addr %s6988, 64
          %s6990 = scalar_lea.hbm %s5, %s6989
          %s6991 = sshll.u32 %s6973, 4
          %s6992 = int_to_ptr.vmem [resolvable:$true] %s6991
          %6997 = dma.vmem_to_hbm [thread:$0]  %s6992, 2048, %s6990, %s6970, 64, 64, 4
        $region52: #{tpu_custom_call.1} parent=39 // pred_fallthru
          _
        // Predicated region
        $region53: #{tpu_custom_call.1} parent=39 // pred_check
          %p6998 = pneg %p183
        $region54: #{tpu_custom_call.1} parent=39 // pred_check_branch
          %7000 = sbr.rel (%p6998) target = $region56
        $region55: #{tpu_custom_call.1} parent=39 // pred_region
          %s7002 = ssub.s32 16, 16
          %7003 = vsyncadd %s6975, %s7002
          %s7004 = smul.addr %s29, 16
          %s7005 = scalar_lea.hbm %s6, %s7004
          %s7007 = sshll.u32 %s6977, 4
          %s7008 = int_to_ptr.vmem [resolvable:$true] %s7007
          %7010 = dma.vmem_to_hbm [thread:$0]  %s7008, 16, %s7005, %s6975
        $region56: #{tpu_custom_call.1} parent=39 // pred_fallthru
          _
        // Predicated region
        $region57: #{tpu_custom_call.1} parent=39 // pred_check
          %p7011 = pneg %p209
        $region58: #{tpu_custom_call.1} parent=39 // pred_check_branch
          %7013 = sbr.rel (%p7011) target = $region60
        $region59: #{tpu_custom_call.1} parent=39 // pred_region
          %s7015 = ssub.s32 16, 16
          %7016 = vsyncadd %s6979, %s7015
          %s7017 = smul.addr %s29, 16
          %s7018 = scalar_lea.hbm %s7, %s7017
          %s7020 = sshll.u32 %s6981, 4
          %s7021 = int_to_ptr.vmem [resolvable:$true] %s7020
          %7023 = dma.vmem_to_hbm [thread:$0]  %s7021, 16, %s7018, %s6979
        $region60: #{tpu_custom_call.1} parent=39 // pred_fallthru
          _
      $region40: #{tpu_custom_call.1} parent=5 // pred_fallthru
        _
      %p7024 = scmp.le.s32.totalorder 2, %s24
      // Predicated region
      $region61: #{tpu_custom_call.1} parent=5 // pred_check
        %p7025 = pneg %p7024
      $region62: #{tpu_custom_call.1} parent=5 // pred_check_branch
        %7027 = sbr.rel (%p7025) target = $region64
      $region63: #{tpu_custom_call.1} parent=5 // pred_region
        %s7028 = ssub.s32 %s24, 2
        // Predicated region
        $region65: #{tpu_custom_call.1} parent=63 // pred_check
          %p7029 = pneg %p163
        $region66: #{tpu_custom_call.1} parent=63 // pred_check_branch
          %7031 = sbr.rel (%p7029) target = $region68
        $region67: #{tpu_custom_call.1} parent=63 // pred_region
          %s7032 = sand.u32 %s148, 1
          %s7033 = scalar_lea.sflag [#allocation6], %s7032
          %s7034 = sand.u32 %s148, 1
          %s7035 = smul.addr %s7034, 128
          %s7036 = scalar_lea.vmem [#allocation9], %s7035
          %7037 = dma.done %s7033, 2048
        $region68: #{tpu_custom_call.1} parent=63 // pred_fallthru
          _
        // Predicated region
        $region69: #{tpu_custom_call.1} parent=63 // pred_check
          %p7038 = pneg %p189
        $region70: #{tpu_custom_call.1} parent=63 // pred_check_branch
          %7040 = sbr.rel (%p7038) target = $region72
        $region71: #{tpu_custom_call.1} parent=63 // pred_region
          %s7041 = sand.u32 %s30, 1
          %s7042 = scalar_lea.sflag [#allocation11], %s7041
          %s7043 = sand.u32 %s174, 1
          %s7044 = scalar_lea.vmem [#allocation10], %s7043
          %7045 = dma.done %s7042, 16
        $region72: #{tpu_custom_call.1} parent=63 // pred_fallthru
          _
        // Predicated region
        $region73: #{tpu_custom_call.1} parent=63 // pred_check
          %p7046 = pneg %p215
        $region74: #{tpu_custom_call.1} parent=63 // pred_check_branch
          %7048 = sbr.rel (%p7046) target = $region76
        $region75: #{tpu_custom_call.1} parent=63 // pred_region
          %s7049 = sand.u32 %s30, 1
          %s7050 = scalar_lea.sflag [#allocation11], %s7049
          %s7051 = sand.u32 %s200, 1
          %s7052 = scalar_lea.vmem [#allocation12], %s7051
          %7053 = dma.done %s7050, 16
        $region76: #{tpu_custom_call.1} parent=63 // pred_fallthru
          _
      $region64: #{tpu_custom_call.1} parent=5 // pred_fallthru
        _
    $region6: #{tpu_custom_call.1} parent=1 // loop_footer
      %s28 = sadd.s32 1, %s24
    $region7: #{tpu_custom_call.1} parent=1 // loop_footer_branch
      %23 = sbr.rel target = $region3
    $region8: #{tpu_custom_call.1} parent=1 // loop_exit
      _
    %7054 = vsyncpa [#allocation5], 1
    %s7055 = scalar_lea.sflag [#allocation5], 1
    %7056 = vsyncpa %s7055, 1
    %7057 = vsyncpa [#allocation8], 1
    %7058 = vsyncpa [#allocation6], 1
    %s7059 = scalar_lea.sflag [#allocation6], 1
    %7060 = vsyncpa %s7059, 1
    %7061 = vsyncpa [#allocation11], 1
    %s7062 = scalar_lea.sflag [#allocation11], 1
    %7063 = vsyncpa %s7062, 1

</llo_original>
